<compile_context>
chip_gen: v5e
topology: v5e:2x2
jax: 0.10.0
libtpu: 0.0.40
codegen_flags: <defaults>
</compile_context>

<pallas_src>
import numpy as np

import jax
import jax.numpy as jnp
from jax.experimental import pallas as pl
from jax.experimental.pallas import tpu as pltpu

NUM_FEAS = 2048          # self.num_feas in the PyTorch module
REDUCTION = 16           # CBAM default reduction ratio -> hidden = 128
TARGET_SIZE = 11
PATCH = 8                # backbone-stub patch size
_VMEM_LIMIT = 48 * 1024 * 1024   # <= v7x 64 MiB physical; > 32 MiB scoped default


def _round_up(x, m):
    return (x + m - 1) // m * m


# --------------------------------------------------------------------------
# Backbone stub: patch-embedding projection (matmul + bias + ReLU) on the MXU.
# TODO(synk): the real model runs timm EfficientNet `forward_features`; that
# full CNN is not reproduced here - this Pallas matmul stub only preserves the
# (B, 2048, H', W') shape contract of the real backbone output.
# --------------------------------------------------------------------------
def _patch_embed_kernel(x_ref, w_ref, b_ref, o_ref):
    acc = jnp.dot(x_ref[...], w_ref[...], preferred_element_type=jnp.float32)
    acc = acc + b_ref[...]                      # (1, N) f32 broadcasts over rows
    o_ref[...] = jnp.maximum(acc, 0.0).astype(o_ref.dtype)


def _patch_proj(x2d, w, b, out_dtype=jnp.bfloat16):
    M, K = x2d.shape
    Kw, Nf = w.shape
    assert K == Kw
    # Fixed row tile + cdiv grid with a zero-padded tail (no giant fallback
    # block when tm does not divide M).
    tm = min(512, _round_up(M, 8))
    m_pad = _round_up(M, tm)
    x2d = x2d.astype(jnp.bfloat16)              # bf16 MXU operand
    if m_pad != M:
        x2d = jnp.pad(x2d, ((0, m_pad - M), (0, 0)))
    w = w.astype(jnp.bfloat16)                  # bf16 resident weight block
    # bias stays f32 (8 KiB), added post-accumulation.

    out = pl.pallas_call(
        _patch_embed_kernel,
        out_shape=jax.ShapeDtypeStruct((m_pad, Nf), out_dtype),
        grid=(m_pad // tm,),
        in_specs=[
            pl.BlockSpec((tm, K), lambda i: (i, 0)),     # row-streamed, pipelined
            pl.BlockSpec((K, Nf), lambda i: (0, 0)),     # weights resident
            pl.BlockSpec((1, Nf), lambda i: (0, 0)),
        ],
        out_specs=pl.BlockSpec((tm, Nf), lambda i: (i, 0)),
        compiler_params=pltpu.CompilerParams(
            dimension_semantics=("parallel",),
            vmem_limit_bytes=_VMEM_LIMIT),
    )(x2d, w, b)
    return out[:M] if m_pad != M else out


# --------------------------------------------------------------------------
# SpatialGate 7x7 "same" conv as a Toeplitz matrix (built in the wrapper).
# flat_out = flat_in @ T reproduces conv2d(pad=3) exactly on an HxW map.
# Lane-padded to n_pad columns/rows so the in-kernel matmul is lane-dense.
# TODO(synk): for H*W >= ~256 switch to a banded / pltpu.roll-based 7x7 conv
# instead of this dense (2N, N) Toeplitz (O(N^2) MACs + VMEM).
# --------------------------------------------------------------------------
def _conv7x7_toeplitz(w77, H, W, n_pad):
    N = H * W
    rows, cols, taps = [], [], []
    for di in range(7):
        for dj in range(7):
            for i in range(H):
                for j in range(W):
                    ii, jj = i + di - 3, j + dj - 3
                    if 0 <= ii < H and 0 <= jj < W:
                        rows.append(ii * W + jj)        # input index
                        cols.append(i * W + j)          # output index
                        taps.append(di * 7 + dj)
    rows = jnp.asarray(np.asarray(rows, np.int32))
    cols = jnp.asarray(np.asarray(cols, np.int32))
    taps = jnp.asarray(np.asarray(taps, np.int32))
    vals = w77.reshape(-1)[taps]
    t = jnp.zeros((N, N), jnp.float32).at[rows, cols].add(vals)
    if n_pad != N:
        t = jnp.pad(t, ((0, n_pad - N), (0, n_pad - N)))
    return t


# --------------------------------------------------------------------------
# Fused head: CBAM (channel gate + spatial gate) + global avg pool + classifier
# One grid step = TB batch elements (feature tile (TB, N, 2048); weights
# resident; all matmul operands bf16, all accumulation f32).
# --------------------------------------------------------------------------
def _cbam_head_kernel(feat_ref, caw1_ref, cab1_ref, caw2_ref, cab2_ref,
                      sat_ref, sab_ref, clsw_ref, clsb_ref, out_ref):
    x = feat_ref[...]                                   # (TB, N, C) bf16 (stays bf16)
    tb, n, c = x.shape
    n_pad = sat_ref.shape[1]
    inv_n = 1.0 / n
    inv_c = 1.0 / c
    f32 = jnp.float32

    # ---- CBAM ChannelGate --------------------------------------------------
    # avg-pool over N as a batched MXU matvec (f32 accumulation); max-pool
    # over N stays a cheap sublane reduce.
    ones_n = jnp.ones((tb, 1, n), jnp.bfloat16)
    avg_p = jnp.einsum('bqn,bnc->bqc', ones_n, x,
                       preferred_element_type=f32)[:, 0, :] * inv_n    # (TB, C)
    max_p = jnp.max(x, axis=1)                                         # (TB, C)
    # Fused shared-MLP pass for both branches: (2*TB, C) LHS.
    stacked = jnp.concatenate([avg_p.astype(jnp.bfloat16), max_p], axis=0)
    h = jnp.dot(stacked, caw1_ref[...], preferred_element_type=f32) + cab1_ref[...]
    h = jnp.maximum(h, 0.0)
    z = jnp.dot(h.astype(jnp.bfloat16), caw2_ref[...],
                preferred_element_type=f32) + cab2_ref[...]            # (2TB, C)
    ca = jax.nn.sigmoid(z[:tb] + z[tb:])                               # (TB, C)
    # Single full-tile elementwise pass, kept in bf16.
    x_g = x * ca.astype(jnp.bfloat16)[:, None, :]                      # (TB, N, C)

    # ---- CBAM SpatialGate ----------------------------------------------------
    # channel-max stays on the XLU; channel-mean moves to the MXU.
    ch_max = jnp.max(x_g, axis=2).astype(f32)                          # (TB, N)
    ones_c = jnp.ones((tb, 1, c), jnp.bfloat16)
    ch_avg = jnp.einsum('bqc,bnc->bqn', ones_c, x_g,
                        preferred_element_type=f32)[:, 0, :] * inv_c   # (TB, N)
    # Lane-pad the (max, mean) stats to the Toeplitz width (padded rows of sat
    # are zero, so the padding is inert).
    if n_pad == n:
        stats = jnp.concatenate([ch_max, ch_avg], axis=1)              # (TB, 2Np)
    else:
        zpad = jnp.zeros((tb, n_pad - n), f32)
        stats = jnp.concatenate([ch_max, zpad, ch_avg, zpad], axis=1)
    # 7x7 conv (+ folded eval-mode BatchNorm bias) as ONE MXU matmul.
    sa_pre = jnp.dot(stats.astype(jnp.bfloat16), sat_ref[...],
                     preferred_element_type=f32) + sab_ref[0]          # (TB, Np)
    sa = jax.nn.sigmoid(sa_pre)

    # ---- spatial gate * AdaptiveAvgPool2d(1) fused as one batched MXU matvec:
    #      mean_n(x_g * sa) == (sa @ x_g) / N  (no second full-tile multiply,
    #      no sublane reduce over the tile).  Dropout(0.1) is identity in eval.
    sa3 = sa[:, :n][:, None, :].astype(jnp.bfloat16)                   # (TB, 1, N)
    pooled = jnp.einsum('bqn,bnc->bqc', sa3, x_g,
                        preferred_element_type=f32)[:, 0, :] * inv_n   # (TB, C)

    # ---- classifier: Linear(2048, 11), lane-padded to 128 outputs ----
    logits = jnp.dot(pooled.astype(jnp.bfloat16), clsw_ref[...],
                     preferred_element_type=f32) + clsb_ref[...]       # (TB, TPAD)
    out_ref[...] = logits.astype(out_ref.dtype)


def cbam_head(feats_bnc, params, H, W):
    B, N, C = feats_bnc.shape
    assert N == H * W and C == NUM_FEAS
    Cr = params["ca_w1"].shape[1]
    T = params["cls_w"].shape[1]
    TPAD = _round_up(T, 128)                     # lane-dense classifier output
    Np = _round_up(N, 128)                       # lane-dense SpatialGate matmul

    # Batch tile: multi-row MXU LHS, bounded VMEM per grid step, >=2 grid
    # steps on larger batches so v7x's two TensorCores can split the grid.
    TB = B if B < 8 else 8
    B_pad = _round_up(B, TB)
    if B_pad != B:
        feats_bnc = jnp.pad(feats_bnc, ((0, B_pad - B), (0, 0), (0, 0)))

    # Resident weights in bf16 (f32 accumulation inside the kernel).
    ca_w1 = params["ca_w1"].astype(jnp.bfloat16)
    ca_w2 = params["ca_w2"].astype(jnp.bfloat16)
    cls_w = (jnp.zeros((C, TPAD), jnp.float32)
             .at[:, :T].set(params["cls_w"]).astype(jnp.bfloat16))
    cls_b = jnp.zeros((1, TPAD), jnp.float32).at[:, :T].set(params["cls_b"])

    # SpatialGate conv -> (2Np, Np) bf16 matrix; rows [0:Np] pair with the
    # channel-max map, rows [Np:2Np] with the channel-mean map (ChannelPool
    # order).  Eval-mode BatchNorm folds to identity with the synthetic stats.
    sat = jnp.concatenate(
        [_conv7x7_toeplitz(params["sa_w"][0], H, W, Np),
         _conv7x7_toeplitz(params["sa_w"][1], H, W, Np)],
        axis=0).astype(jnp.bfloat16)

    out = pl.pallas_call(
        _cbam_head_kernel,
        out_shape=jax.ShapeDtypeStruct((B_pad, TPAD), jnp.float32),
        grid=(B_pad // TB,),
        in_specs=[
            pl.BlockSpec((TB, N, C), lambda b: (b, 0, 0)),            # batch tile
            # Constant-index weight blocks stay resident across the grid.
            # NOTE: on a VMEM-tight v7x config these could additionally be
            # single-buffered (pipeline_mode); in bf16 the whole resident set
            # is small, so default buffering is kept.
            pl.BlockSpec((C, Cr), lambda b: (0, 0)),
            pl.BlockSpec((1, Cr), lambda b: (0, 0)),
            pl.BlockSpec((Cr, C), lambda b: (0, 0)),
            pl.BlockSpec((1, C), lambda b: (0, 0)),
            pl.BlockSpec((2 * Np, Np), lambda b: (0, 0)),             # Toeplitz conv
            pl.BlockSpec(memory_space=pltpu.MemorySpace.SMEM),        # folded BN bias (1,)
            pl.BlockSpec((C, TPAD), lambda b: (0, 0)),
            pl.BlockSpec((1, TPAD), lambda b: (0, 0)),
        ],
        out_specs=pl.BlockSpec((TB, TPAD), lambda b: (b, 0)),
        compiler_params=pltpu.CompilerParams(
            dimension_semantics=("parallel",),                        # megacore on v7x
            vmem_limit_bytes=_VMEM_LIMIT),
    )(feats_bnc, ca_w1, params["ca_b1"], ca_w2, params["ca_b2"],
      sat, params["sa_b"], cls_w, cls_b)
    return out[:B, :T]


# --------------------------------------------------------------------------
# Full forward pass (PyTorch-style NCHW input)
# --------------------------------------------------------------------------
def effnet_wlf_forward(image_nchw, params):
    B, Cin, IH, IW = image_nchw.shape
    Hp, Wp = IH // PATCH, IW // PATCH
    K = Cin * PATCH * PATCH
    K_pad = params["stem_w"].shape[0]

    # glue: NCHW -> non-overlapping patches (B*Hp*Wp, Cin*PATCH*PATCH), padded
    # to an MXU-aligned contraction dim, carried in bf16.
    # TODO(synk): fold this im2col + pad into the _patch_proj index_map (or a
    # manual DMA gather with memory_space=pl.ANY) so the stem reads NCHW
    # directly and skips this extra HBM round trip.
    x = image_nchw.reshape(B, Cin, Hp, PATCH, Wp, PATCH)
    x = jnp.transpose(x, (0, 2, 4, 1, 3, 5)).reshape(B * Hp * Wp, K)
    x = jnp.pad(x, ((0, 0), (0, K_pad - K))).astype(jnp.bfloat16)

    feats = _patch_proj(x, params["stem_w"], params["stem_b"])   # (B*Hp*Wp, 2048) bf16
    feats = feats.reshape(B, Hp * Wp, NUM_FEAS)                  # (B, N, C)
    return cbam_head(feats, params, Hp, Wp)                      # (B, target_size)


# --------------------------------------------------------------------------
# Deterministic synthetic parameters
# --------------------------------------------------------------------------
def init_params(key, cin=3):
    ks = jax.random.split(key, 5)
    k_raw = cin * PATCH * PATCH
    k_pad = _round_up(k_raw, 128)             # pad contraction dim to MXU depth
    cr = NUM_FEAS // REDUCTION

    def nrm(k, shape, scale):
        return scale * jax.random.normal(k, shape, jnp.float32)

    stem_w = jnp.zeros((k_pad, NUM_FEAS), jnp.float32).at[:k_raw].set(
        nrm(ks[0], (k_raw, NUM_FEAS), 0.02))

    return {
        # backbone stub
        "stem_w": stem_w,
        "stem_b": jnp.zeros((1, NUM_FEAS), jnp.float32),
        # CBAM ChannelGate MLP: Linear(C, C/16) -> ReLU -> Linear(C/16, C)
        "ca_w1": nrm(ks[1], (NUM_FEAS, cr), 0.02),
        "ca_b1": jnp.zeros((1, cr), jnp.float32),
        "ca_w2": nrm(ks[2], (cr, NUM_FEAS), 0.02),
        "ca_b2": jnp.zeros((1, NUM_FEAS), jnp.float32),
        # CBAM SpatialGate: 7x7 conv (2->1, no bias) with eval-mode BatchNorm
        # folded in (mean=0, var=1, gamma=1, beta=0 -> weights unchanged, bias 0).
        # channel 0 pairs with the channel-max map, channel 1 with the mean map.
        "sa_w": nrm(ks[3], (2, 7, 7), 0.05),
        "sa_b": jnp.zeros((1,), jnp.float32),
        # classifier Linear(2048, 11)
        "cls_w": nrm(ks[4], (NUM_FEAS, TARGET_SIZE), 0.02),
        "cls_b": jnp.zeros((1, TARGET_SIZE), jnp.float32),
    }


if __name__ == "__main__":
    key = jax.random.PRNGKey(0)
    pkey, xkey = jax.random.split(key)
    params = init_params(pkey)
    # small NCHW input, consistent with the PyTorch module's image input
    image = jax.random.normal(xkey, (2, 3, 32, 32), jnp.float32)

    out = jax.jit(effnet_wlf_forward)(image, params)
    out = jax.block_until_ready(out)
    assert out.shape == (2, TARGET_SIZE), out.shape
    assert bool(jnp.all(jnp.isfinite(out)))
    print("KERNEL_OK")
</pallas_src>

<mosaic_0001>
module attributes {stable_mosaic.version = 11 : i64} {
  func.func @_patch_embed_kernel(%arg0: i32, %arg1: memref<32x256xbf16, #tpu.memory_space<vmem>>, %arg2: memref<256x2048xbf16, #tpu.memory_space<vmem>>, %arg3: memref<1x2048xf32, #tpu.memory_space<vmem>>, %arg4: memref<32x2048xbf16, #tpu.memory_space<vmem>>) attributes {dimension_semantics = [#tpu.dimension_semantics<parallel>], iteration_bounds = array<i64: 1>, scalar_prefetch = 0 : i64, scratch_operands = 0 : i64, tpu.core_type = #tpu.core_type<tc>, window_params = [{transform_indices = @transform_0, window_bounds = array<i64: 32, 256>}, {pipeline_mode = #tpu.pipeline_mode<synchronous>, transform_indices = @transform_1, window_bounds = array<i64: 256, 2048>}, {pipeline_mode = #tpu.pipeline_mode<synchronous>, transform_indices = @transform_2, window_bounds = array<i64: 1, 2048>}, {transform_indices = @transform_3, window_bounds = array<i64: 32, 2048>}]} {
    %c0 = arith.constant 0 : index
    %c0_0 = arith.constant 0 : index
    %0 = vector.load %arg1[%c0, %c0_0] : memref<32x256xbf16, #tpu.memory_space<vmem>>, vector<32x256xbf16>
    %c0_1 = arith.constant 0 : index
    %c0_2 = arith.constant 0 : index
    %1 = vector.load %arg2[%c0_1, %c0_2] : memref<256x2048xbf16, #tpu.memory_space<vmem>>, vector<256x2048xbf16>
    %cst = arith.constant dense<0.000000e+00> : vector<32x2048xf32>
    %2 = tpu.matmul %0, %1, %cst {dimension_numbers = #tpu.dot_dimension_numbers<[1], [0], [0], [1], [0, 0, 1, 1], [], []>} : vector<32x256xbf16>, vector<256x2048xbf16>, vector<32x2048xf32> -> vector<32x2048xf32>
    %c0_3 = arith.constant 0 : index
    %c0_4 = arith.constant 0 : index
    %3 = vector.load %arg3[%c0_3, %c0_4] : memref<1x2048xf32, #tpu.memory_space<vmem>>, vector<1x2048xf32>
    %4 = vector.broadcast %3 : vector<1x2048xf32> to vector<32x2048xf32>
    %5 = arith.addf %2, %4 : vector<32x2048xf32>
    %cst_5 = arith.constant 0.000000e+00 : f32
    %6 = vector.broadcast %cst_5 : f32 to vector<32x2048xf32>
    %7 = arith.maximumf %5, %6 : vector<32x2048xf32>
    %8 = arith.truncf %7 : vector<32x2048xf32> to vector<32x2048xbf16>
    %c0_6 = arith.constant 0 : index
    %c0_7 = arith.constant 0 : index
    %9 = vector.load %arg4[%c0_6, %c0_7] : memref<32x2048xbf16, #tpu.memory_space<vmem>>, vector<32x2048xbf16>
    tpu.vector_store %arg4[%c0_6, %c0_7], %8 {strides = array<i32>} : memref<32x2048xbf16, #tpu.memory_space<vmem>>, vector<32x2048xbf16>,
    return
  }
  func.func @transform_0(%arg0: i32) -> (i32, i32) {
    %c0_i32 = arith.constant 0 : i32
    %c0_i32_0 = arith.constant 0 : i32
    return %arg0, %c0_i32 : i32, i32
  }
  func.func @transform_1(%arg0: i32) -> (i32, i32) {
    %c0_i32 = arith.constant 0 : i32
    %c0_i32_0 = arith.constant 0 : i32
    %c0_i32_1 = arith.constant 0 : i32
    return %c0_i32, %c0_i32_0 : i32, i32
  }
  func.func @transform_2(%arg0: i32) -> (i32, i32) {
    %c0_i32 = arith.constant 0 : i32
    %c0_i32_0 = arith.constant 0 : i32
    %c0_i32_1 = arith.constant 0 : i32
    return %c0_i32, %c0_i32_0 : i32, i32
  }
  func.func @transform_3(%arg0: i32) -> (i32, i32) {
    %c0_i32 = arith.constant 0 : i32
    %c0_i32_0 = arith.constant 0 : i32
    return %arg0, %c0_i32 : i32, i32
  }
}

module attributes {stable_mosaic.version = 11 : i64} {
  func.func @_cbam_head_kernel(%arg0: i32, %arg1: memref<2x16x2048xbf16, #tpu.memory_space<vmem>>, %arg2: memref<2048x128xbf16, #tpu.memory_space<vmem>>, %arg3: memref<1x128xf32, #tpu.memory_space<vmem>>, %arg4: memref<128x2048xbf16, #tpu.memory_space<vmem>>, %arg5: memref<1x2048xf32, #tpu.memory_space<vmem>>, %arg6: memref<256x128xbf16, #tpu.memory_space<vmem>>, %arg7: memref<1xf32, #tpu.memory_space<smem>>, %arg8: memref<2048x128xbf16, #tpu.memory_space<vmem>>, %arg9: memref<1x128xf32, #tpu.memory_space<vmem>>, %arg10: memref<2x128xf32, #tpu.memory_space<vmem>>) attributes {dimension_semantics = [#tpu.dimension_semantics<parallel>], iteration_bounds = array<i64: 1>, scalar_prefetch = 0 : i64, scratch_operands = 0 : i64, tpu.core_type = #tpu.core_type<tc>, window_params = [{transform_indices = @transform_0, window_bounds = array<i64: 2, 16, 2048>}, {pipeline_mode = #tpu.pipeline_mode<synchronous>, transform_indices = @transform_1, window_bounds = array<i64: 2048, 128>}, {pipeline_mode = #tpu.pipeline_mode<synchronous>, transform_indices = @transform_2, window_bounds = array<i64: 1, 128>}, {pipeline_mode = #tpu.pipeline_mode<synchronous>, transform_indices = @transform_3, window_bounds = array<i64: 128, 2048>}, {pipeline_mode = #tpu.pipeline_mode<synchronous>, transform_indices = @transform_4, window_bounds = array<i64: 1, 2048>}, {pipeline_mode = #tpu.pipeline_mode<synchronous>, transform_indices = @transform_5, window_bounds = array<i64: 256, 128>}, {transform_indices = @transform_6, window_bounds = array<i64: 1>}, {pipeline_mode = #tpu.pipeline_mode<synchronous>, transform_indices = @transform_7, window_bounds = array<i64: 2048, 128>}, {pipeline_mode = #tpu.pipeline_mode<synchronous>, transform_indices = @transform_8, window_bounds = array<i64: 1, 128>}, {transform_indices = @transform_9, window_bounds = array<i64: 2, 128>}]} {
    %c0 = arith.constant 0 : index
    %c0_0 = arith.constant 0 : index
    %c0_1 = arith.constant 0 : index
    %0 = vector.load %arg1[%c0, %c0_0, %c0_1] : memref<2x16x2048xbf16, #tpu.memory_space<vmem>>, vector<2x16x2048xbf16>
    %cst = arith.constant 1.000000e+00 : bf16
    %1 = vector.broadcast %cst : bf16 to vector<2x1x16xbf16>
    "tpu.trace_start"() <{level = 10 : i32, message = "bqn,bnc->bqc"}> : () -> ()
    %cst_2 = arith.constant dense<0.000000e+00> : vector<2x1x2048xf32>
    %2 = tpu.matmul %1, %0, %cst_2 {dimension_numbers = #tpu.dot_dimension_numbers<[2], [1], [1], [2], [0, 0, 0, 1, 1, 2], [0], [0]>} : vector<2x1x16xbf16>, vector<2x16x2048xbf16>, vector<2x1x2048xf32> -> vector<2x1x2048xf32>
    "tpu.trace_stop"() : () -> ()
    %3 = vector.shape_cast %2 : vector<2x1x2048xf32> to vector<2x2048xf32>
    %cst_3 = arith.constant 6.250000e-02 : f32
    %4 = vector.broadcast %cst_3 : f32 to vector<2x2048xf32>
    %5 = arith.mulf %3, %4 : vector<2x2048xf32>
    %cst_4 = arith.constant dense<0xFF80> : vector<2x2048xbf16>
    %6 = vector.multi_reduction <maximumf>, %0, %cst_4 [1] : vector<2x16x2048xbf16> to vector<2x2048xbf16>
    %7 = arith.truncf %5 : vector<2x2048xf32> to vector<2x2048xbf16>
    %8 = tpu.concatenate %7, %6 in 0 : vector<2x2048xbf16>, vector<2x2048xbf16> -> vector<4x2048xbf16>
    %c0_5 = arith.constant 0 : index
    %c0_6 = arith.constant 0 : index
    %9 = vector.load %arg2[%c0_5, %c0_6] : memref<2048x128xbf16, #tpu.memory_space<vmem>>, vector<2048x128xbf16>
    %cst_7 = arith.constant dense<0.000000e+00> : vector<4x128xf32>
    %10 = tpu.matmul %8, %9, %cst_7 {dimension_numbers = #tpu.dot_dimension_numbers<[1], [0], [0], [1], [0, 0, 1, 1], [], []>} : vector<4x2048xbf16>, vector<2048x128xbf16>, vector<4x128xf32> -> vector<4x128xf32>
    %c0_8 = arith.constant 0 : index
    %c0_9 = arith.constant 0 : index
    %11 = vector.load %arg3[%c0_8, %c0_9] : memref<1x128xf32, #tpu.memory_space<vmem>>, vector<1x128xf32>
    %12 = vector.broadcast %11 : vector<1x128xf32> to vector<4x128xf32>
    %13 = arith.addf %10, %12 : vector<4x128xf32>
    %cst_10 = arith.constant 0.000000e+00 : f32
    %14 = vector.broadcast %cst_10 : f32 to vector<4x128xf32>
    %15 = arith.maximumf %13, %14 : vector<4x128xf32>
    %16 = arith.truncf %15 : vector<4x128xf32> to vector<4x128xbf16>
    %c0_11 = arith.constant 0 : index
    %c0_12 = arith.constant 0 : index
    %17 = vector.load %arg4[%c0_11, %c0_12] : memref<128x2048xbf16, #tpu.memory_space<vmem>>, vector<128x2048xbf16>
    %cst_13 = arith.constant dense<0.000000e+00> : vector<4x2048xf32>
    %18 = tpu.matmul %16, %17, %cst_13 {dimension_numbers = #tpu.dot_dimension_numbers<[1], [0], [0], [1], [0, 0, 1, 1], [], []>} : vector<4x128xbf16>, vector<128x2048xbf16>, vector<4x2048xf32> -> vector<4x2048xf32>
    %c0_14 = arith.constant 0 : index
    %c0_15 = arith.constant 0 : index
    %19 = vector.load %arg5[%c0_14, %c0_15] : memref<1x2048xf32, #tpu.memory_space<vmem>>, vector<1x2048xf32>
    %20 = vector.broadcast %19 : vector<1x2048xf32> to vector<4x2048xf32>
    %21 = arith.addf %18, %20 : vector<4x2048xf32>
    %22 = vector.extract_strided_slice %21 {offsets = [0, 0], sizes = [2, 2048], strides = [1, 1]} : vector<4x2048xf32> to vector<2x2048xf32>
    %23 = vector.extract_strided_slice %21 {offsets = [2, 0], sizes = [2, 2048], strides = [1, 1]} : vector<4x2048xf32> to vector<2x2048xf32>
    %24 = arith.addf %22, %23 : vector<2x2048xf32>
    %25 = arith.negf %24 : vector<2x2048xf32>
    %26 = math.exp %25 : vector<2x2048xf32>
    %cst_16 = arith.constant 1.000000e+00 : f32
    %27 = vector.broadcast %cst_16 : f32 to vector<2x2048xf32>
    %28 = arith.addf %27, %26 : vector<2x2048xf32>
    %29 = arith.divf %27, %28 : vector<2x2048xf32>
    %30 = arith.truncf %29 : vector<2x2048xf32> to vector<2x2048xbf16>
    %31 = vector.shape_cast %30 : vector<2x2048xbf16> to vector<2x1x2048xbf16>
    %32 = vector.broadcast %31 : vector<2x1x2048xbf16> to vector<2x16x2048xbf16>
    %33 = arith.mulf %0, %32 : vector<2x16x2048xbf16>
    %cst_17 = arith.constant dense<0xFF80> : vector<2x16xbf16>
    %34 = vector.multi_reduction <maximumf>, %33, %cst_17 [2] : vector<2x16x2048xbf16> to vector<2x16xbf16>
    %35 = arith.extf %34 : vector<2x16xbf16> to vector<2x16xf32>
    %cst_18 = arith.constant 1.000000e+00 : bf16
    %36 = vector.broadcast %cst_18 : bf16 to vector<2x1x2048xbf16>
    "tpu.trace_start"() <{level = 10 : i32, message = "bqc,bnc->bqn"}> : () -> ()
    %cst_19 = arith.constant dense<0.000000e+00> : vector<2x1x16xf32>
    %37 = tpu.matmul %36, %33, %cst_19 {dimension_numbers = #tpu.dot_dimension_numbers<[2], [2], [1], [1], [0, 0, 0, 1, 1, 1], [0], [0]>} : vector<2x1x2048xbf16>, vector<2x16x2048xbf16>, vector<2x1x16xf32> -> vector<2x1x16xf32>
    "tpu.trace_stop"() : () -> ()
    %38 = vector.shape_cast %37 : vector<2x1x16xf32> to vector<2x16xf32>
    %cst_20 = arith.constant 4.8828125E-4 : f32
    %39 = vector.broadcast %cst_20 : f32 to vector<2x16xf32>
    %40 = arith.mulf %38, %39 : vector<2x16xf32>
    %cst_21 = arith.constant 0.000000e+00 : f32
    %41 = vector.broadcast %cst_21 : f32 to vector<2x112xf32>
    %42 = tpu.concatenate %35, %41, %40, %41 in 1 : vector<2x16xf32>, vector<2x112xf32>, vector<2x16xf32>, vector<2x112xf32> -> vector<2x256xf32>
    %43 = arith.truncf %42 : vector<2x256xf32> to vector<2x256xbf16>
    %c0_22 = arith.constant 0 : index
    %c0_23 = arith.constant 0 : index
    %44 = vector.load %arg6[%c0_22, %c0_23] : memref<256x128xbf16, #tpu.memory_space<vmem>>, vector<256x128xbf16>
    %cst_24 = arith.constant dense<0.000000e+00> : vector<2x128xf32>
    %45 = tpu.matmul %43, %44, %cst_24 {dimension_numbers = #tpu.dot_dimension_numbers<[1], [0], [0], [1], [0, 0, 1, 1], [], []>} : vector<2x256xbf16>, vector<256x128xbf16>, vector<2x128xf32> -> vector<2x128xf32>
    %c0_25 = arith.constant 0 : index
    %46 = memref.load %arg7[%c0_25] : memref<1xf32, #tpu.memory_space<smem>>
    %47 = vector.broadcast %46 : f32 to vector<2x128xf32>
    %48 = arith.addf %45, %47 : vector<2x128xf32>
    %49 = arith.negf %48 : vector<2x128xf32>
    %50 = math.exp %49 : vector<2x128xf32>
    %cst_26 = arith.constant 1.000000e+00 : f32
    %51 = vector.broadcast %cst_26 : f32 to vector<2x128xf32>
    %52 = arith.addf %51, %50 : vector<2x128xf32>
    %53 = arith.divf %51, %52 : vector<2x128xf32>
    %54 = vector.extract_strided_slice %53 {offsets = [0, 0], sizes = [2, 16], strides = [1, 1]} : vector<2x128xf32> to vector<2x16xf32>
    %55 = vector.shape_cast %54 : vector<2x16xf32> to vector<2x1x16xf32>
    %56 = arith.truncf %55 : vector<2x1x16xf32> to vector<2x1x16xbf16>
    "tpu.trace_start"() <{level = 10 : i32, message = "bqn,bnc->bqc"}> : () -> ()
    %cst_27 = arith.constant dense<0.000000e+00> : vector<2x1x2048xf32>
    %57 = tpu.matmul %56, %33, %cst_27 {dimension_numbers = #tpu.dot_dimension_numbers<[2], [1], [1], [2], [0, 0, 0, 1, 1, 2], [0], [0]>} : vector<2x1x16xbf16>, vector<2x16x2048xbf16>, vector<2x1x2048xf32> -> vector<2x1x2048xf32>
    "tpu.trace_stop"() : () -> ()
    %58 = vector.shape_cast %57 : vector<2x1x2048xf32> to vector<2x2048xf32>
    %cst_28 = arith.constant 6.250000e-02 : f32
    %59 = vector.broadcast %cst_28 : f32 to vector<2x2048xf32>
    %60 = arith.mulf %58, %59 : vector<2x2048xf32>
    %61 = arith.truncf %60 : vector<2x2048xf32> to vector<2x2048xbf16>
    %c0_29 = arith.constant 0 : index
    %c0_30 = arith.constant 0 : index
    %62 = vector.load %arg8[%c0_29, %c0_30] : memref<2048x128xbf16, #tpu.memory_space<vmem>>, vector<2048x128xbf16>
    %cst_31 = arith.constant dense<0.000000e+00> : vector<2x128xf32>
    %63 = tpu.matmul %61, %62, %cst_31 {dimension_numbers = #tpu.dot_dimension_numbers<[1], [0], [0], [1], [0, 0, 1, 1], [], []>} : vector<2x2048xbf16>, vector<2048x128xbf16>, vector<2x128xf32> -> vector<2x128xf32>
    %c0_32 = arith.constant 0 : index
    %c0_33 = arith.constant 0 : index
    %64 = vector.load %arg9[%c0_32, %c0_33] : memref<1x128xf32, #tpu.memory_space<vmem>>, vector<1x128xf32>
    %65 = vector.broadcast %64 : vector<1x128xf32> to vector<2x128xf32>
    %66 = arith.addf %63, %65 : vector<2x128xf32>
    %c0_34 = arith.constant 0 : index
    %c0_35 = arith.constant 0 : index
    %67 = vector.load %arg10[%c0_34, %c0_35] : memref<2x128xf32, #tpu.memory_space<vmem>>, vector<2x128xf32>
    tpu.vector_store %arg10[%c0_34, %c0_35], %66 {strides = array<i32>} : memref<2x128xf32, #tpu.memory_space<vmem>>, vector<2x128xf32>,
    return
  }
  func.func @transform_0(%arg0: i32) -> (i32, i32, i32) {
    %c0_i32 = arith.constant 0 : i32
    %c0_i32_0 = arith.constant 0 : i32
    %c0_i32_1 = arith.constant 0 : i32
    return %arg0, %c0_i32, %c0_i32_0 : i32, i32, i32
  }
  func.func @transform_1(%arg0: i32) -> (i32, i32) {
    %c0_i32 = arith.constant 0 : i32
    %c0_i32_0 = arith.constant 0 : i32
    %c0_i32_1 = arith.constant 0 : i32
    return %c0_i32, %c0_i32_0 : i32, i32
  }
  func.func @transform_2(%arg0: i32) -> (i32, i32) {
    %c0_i32 = arith.constant 0 : i32
    %c0_i32_0 = arith.constant 0 : i32
    %c0_i32_1 = arith.constant 0 : i32
    return %c0_i32, %c0_i32_0 : i32, i32
  }
  func.func @transform_3(%arg0: i32) -> (i32, i32) {
    %c0_i32 = arith.constant 0 : i32
    %c0_i32_0 = arith.constant 0 : i32
    %c0_i32_1 = arith.constant 0 : i32
    return %c0_i32, %c0_i32_0 : i32, i32
  }
  func.func @transform_4(%arg0: i32) -> (i32, i32) {
    %c0_i32 = arith.constant 0 : i32
    %c0_i32_0 = arith.constant 0 : i32
    %c0_i32_1 = arith.constant 0 : i32
    return %c0_i32, %c0_i32_0 : i32, i32
  }
  func.func @transform_5(%arg0: i32) -> (i32, i32) {
    %c0_i32 = arith.constant 0 : i32
    %c0_i32_0 = arith.constant 0 : i32
    %c0_i32_1 = arith.constant 0 : i32
    return %c0_i32, %c0_i32_0 : i32, i32
  }
  func.func @transform_6(%arg0: i32) -> i32 {
    %c0_i32 = arith.constant 0 : i32
    %c0_i32_0 = arith.constant 0 : i32
    return %c0_i32 : i32
  }
  func.func @transform_7(%arg0: i32) -> (i32, i32) {
    %c0_i32 = arith.constant 0 : i32
    %c0_i32_0 = arith.constant 0 : i32
    %c0_i32_1 = arith.constant 0 : i32
    return %c0_i32, %c0_i32_0 : i32, i32
  }
  func.func @transform_8(%arg0: i32) -> (i32, i32) {
    %c0_i32 = arith.constant 0 : i32
    %c0_i32_0 = arith.constant 0 : i32
    %c0_i32_1 = arith.constant 0 : i32
    return %c0_i32, %c0_i32_0 : i32, i32
  }
  func.func @transform_9(%arg0: i32) -> (i32, i32) {
    %c0_i32 = arith.constant 0 : i32
    %c0_i32_0 = arith.constant 0 : i32
    return %arg0, %c0_i32 : i32, i32
  }
}

</mosaic_0001>

<llo_original>
// kernel: squeeze.3
$region0: #{squeeze.3}
  %s0 = inlined_call_operand.vmem [shape: f32[7,7], index: 0, kind: input, shape index: {}]
  %s1 = inlined_call_operand.vmem [shape: f32[49], index: 1, kind: output, shape index: {}]
  $region1: #{squeeze.3} parent=0
    #allocation0 [shape = 'u8[4096]{0}', space=vmem, size = 0x1000, scoped, tag = 'scoped mem for output reshape']
    %v2 = vld [vmem:[%s0] sm:$0x1]
    %vm3 = vcmask 56320
    %4 = vst.msk [vmem:[#allocation0] sm:$0x1] %vm3, %v2
    %s5 = scalar_lea.vmem %s0, 6
    %v6 = vld [vmem:[%s5] sm:$0x1]
    %7 = vrot.lane.b32.xlu0 %v6, 42
    %v8 = vpop.permute.xlu0 %7
    %vm9 = vcmask 400720
    %10 = vst.msk [vmem:[#allocation0] sm:$0x1] %vm9, %v8
    %s11 = scalar_lea.vmem %s0, 5
    %v12 = vld [vmem:[%s11] sm:$0x1]
    %13 = vrot.lane.b32.xlu0 %v12, 35
    %v14 = vpop.permute.xlu0 %13
    %vm15 = vcmask 343320
    %16 = vst.msk [vmem:[#allocation0] sm:$0x1] %vm15, %v14
    %s17 = scalar_lea.vmem %s0, 4
    %v18 = vld [vmem:[%s17] sm:$0x1]
    %19 = vrot.lane.b32.xlu0 %v18, 28
    %v20 = vpop.permute.xlu0 %19
    %vm21 = vcmask 285920
    %22 = vst.msk [vmem:[#allocation0] sm:$0x1] %vm21, %v20
    %s23 = scalar_lea.vmem %s0, 3
    %v24 = vld [vmem:[%s23] sm:$0x1]
    %25 = vrot.lane.b32.xlu0 %v24, 21
    %v26 = vpop.permute.xlu0 %25
    %vm27 = vcmask 228520
    %28 = vst.msk [vmem:[#allocation0] sm:$0x1] %vm27, %v26
    %s29 = scalar_lea.vmem %s0, 2
    %v30 = vld [vmem:[%s29] sm:$0x1]
    %31 = vrot.lane.b32.xlu0 %v30, 14
    %v32 = vpop.permute.xlu0 %31
    %vm33 = vcmask 171120
    %34 = vst.msk [vmem:[#allocation0] sm:$0x1] %vm33, %v32
    %s35 = scalar_lea.vmem %s0, 1
    %v36 = vld [vmem:[%s35] sm:$0x1]
    %37 = vrot.lane.b32.xlu0 %v36, 7
    %v38 = vpop.permute.xlu0 %37
    %vm39 = vcmask 113720
    %40 = vst.msk [vmem:[#allocation0] sm:$0x1] %vm39, %v38
    %s42 = ssub.s32 2, 1
    %v43 = vld [vmem:[#allocation0] sm:%s42]
    %s45 = ssub.s32 2, 1
    %46 = vst [vmem:[%s1] sm:%s45] %v43

// kernel: effnet_wlf_forward.2
$region0: #{effnet_wlf_forward.2}
  #allocation0 [shape = 'u32[]', space=smem, size = 0x4, offset = 0x4, fixed_abs, tag = 'smem constant byte address 0x4 - core index']
  #allocation1 [shape = 'u32[72,128]{1,0:T(1,128)}', space=vmem, size = 0x9000, scoped, tag = 'internal scratch']
  %s0 = inlined_call_operand.vmem [shape: bf16[32,256], index: 0, kind: input, shape index: {}]
  %s1 = inlined_call_operand.vmem [shape: bf16[256,2048], index: 1, kind: input, shape index: {}]
  %s2 = inlined_call_operand.vmem [shape: f32[1,2048], index: 2, kind: input, shape index: {}]
  %s3 = inlined_call_operand.vmem [shape: bf16[32,2048], index: 3, kind: output, shape index: {}]
  %s4 = sld [smem:[#allocation0]]
  $region22: #{effnet_wlf_forward.2} parent=0
    _
  %s6 = ssub.s32 1, %s4
  %s7 = scalar_select 0, %s6, %s4
  // Predicated region
  $region2: #{effnet_wlf_forward.2} parent=0 // pred_check
    _
  $region3: #{effnet_wlf_forward.2} parent=0 // pred_check_branch
    %9 = sbr.rel (0) target = $region5
  $region4: #{effnet_wlf_forward.2} parent=0 // pred_region
    _
  $region5: #{effnet_wlf_forward.2} parent=0 // pred_fallthru
    _
  // Predicated region
  $region6: #{effnet_wlf_forward.2} parent=0 // pred_check
    _
  $region7: #{effnet_wlf_forward.2} parent=0 // pred_check_branch
    %11 = sbr.rel (0) target = $region9
  $region8: #{effnet_wlf_forward.2} parent=0 // pred_region
    _
  $region9: #{effnet_wlf_forward.2} parent=0 // pred_fallthru
    _
  // Predicated region
  $region10: #{effnet_wlf_forward.2} parent=0 // pred_check
    _
  $region11: #{effnet_wlf_forward.2} parent=0 // pred_check_branch
    %13 = sbr.rel (0) target = $region13
  $region12: #{effnet_wlf_forward.2} parent=0 // pred_region
    _
  $region13: #{effnet_wlf_forward.2} parent=0 // pred_fallthru
    _
  %v14 = vld [vmem:[%s0] sm:$0xff]
  %v15 = vld [vmem:[%s0 + $0x8] sm:$0xff]
  %v16 = vld [vmem:[%s0 + $0x10] sm:$0xff]
  %v17 = vld [vmem:[%s0 + $0x18] sm:$0xff]
  %v18 = vld [vmem:[%s1] sm:$0xff]
  %v19 = vld [vmem:[%s1 + $0x8] sm:$0xff]
  %v20 = vld [vmem:[%s1 + $0x10] sm:$0xff]
  %v21 = vld [vmem:[%s1 + $0x18] sm:$0xff]
  %v22 = vld [vmem:[%s1 + $0x20] sm:$0xff]
  %v23 = vld [vmem:[%s1 + $0x28] sm:$0xff]
  %v24 = vld [vmem:[%s1 + $0x30] sm:$0xff]
  %v25 = vld [vmem:[%s1 + $0x38] sm:$0xff]
  %v26 = vld [vmem:[%s1 + $0x40] sm:$0xff]
  %v27 = vld [vmem:[%s1 + $0x48] sm:$0xff]
  %v28 = vld [vmem:[%s1 + $0x50] sm:$0xff]
  %v29 = vld [vmem:[%s1 + $0x58] sm:$0xff]
  %v30 = vld [vmem:[%s1 + $0x60] sm:$0xff]
  %v31 = vld [vmem:[%s1 + $0x68] sm:$0xff]
  %v32 = vld [vmem:[%s1 + $0x70] sm:$0xff]
  %v33 = vld [vmem:[%s1 + $0x78] sm:$0xff]
  %v34 = vld [vmem:[%s1 + $0x80] sm:$0xff]
  %v35 = vld [vmem:[%s1 + $0x88] sm:$0xff]
  %v36 = vld [vmem:[%s1 + $0x90] sm:$0xff]
  %v37 = vld [vmem:[%s1 + $0x98] sm:$0xff]
  %v38 = vld [vmem:[%s1 + $0xa0] sm:$0xff]
  %v39 = vld [vmem:[%s1 + $0xa8] sm:$0xff]
  %v40 = vld [vmem:[%s1 + $0xb0] sm:$0xff]
  %v41 = vld [vmem:[%s1 + $0xb8] sm:$0xff]
  %v42 = vld [vmem:[%s1 + $0xc0] sm:$0xff]
  %v43 = vld [vmem:[%s1 + $0xc8] sm:$0xff]
  %v44 = vld [vmem:[%s1 + $0xd0] sm:$0xff]
  %v45 = vld [vmem:[%s1 + $0xd8] sm:$0xff]
  %v46 = vld [vmem:[%s1 + $0xe0] sm:$0xff]
  %v47 = vld [vmem:[%s1 + $0xe8] sm:$0xff]
  %v48 = vld [vmem:[%s1 + $0xf0] sm:$0xff]
  %v49 = vld [vmem:[%s1 + $0xf8] sm:$0xff]
  %v50 = vld [vmem:[%s1 + $0x100] sm:$0xff]
  %v51 = vld [vmem:[%s1 + $0x108] sm:$0xff]
  %v52 = vld [vmem:[%s1 + $0x110] sm:$0xff]
  %v53 = vld [vmem:[%s1 + $0x118] sm:$0xff]
  %v54 = vld [vmem:[%s1 + $0x120] sm:$0xff]
  %v55 = vld [vmem:[%s1 + $0x128] sm:$0xff]
  %v56 = vld [vmem:[%s1 + $0x130] sm:$0xff]
  %v57 = vld [vmem:[%s1 + $0x138] sm:$0xff]
  %v58 = vld [vmem:[%s1 + $0x140] sm:$0xff]
  %v59 = vld [vmem:[%s1 + $0x148] sm:$0xff]
  %v60 = vld [vmem:[%s1 + $0x150] sm:$0xff]
  %v61 = vld [vmem:[%s1 + $0x158] sm:$0xff]
  %v62 = vld [vmem:[%s1 + $0x160] sm:$0xff]
  %v63 = vld [vmem:[%s1 + $0x168] sm:$0xff]
  %v64 = vld [vmem:[%s1 + $0x170] sm:$0xff]
  %v65 = vld [vmem:[%s1 + $0x178] sm:$0xff]
  %v66 = vld [vmem:[%s1 + $0x180] sm:$0xff]
  %v67 = vld [vmem:[%s1 + $0x188] sm:$0xff]
  %v68 = vld [vmem:[%s1 + $0x190] sm:$0xff]
  %v69 = vld [vmem:[%s1 + $0x198] sm:$0xff]
  %v70 = vld [vmem:[%s1 + $0x1a0] sm:$0xff]
  %v71 = vld [vmem:[%s1 + $0x1a8] sm:$0xff]
  %v72 = vld [vmem:[%s1 + $0x1b0] sm:$0xff]
  %v73 = vld [vmem:[%s1 + $0x1b8] sm:$0xff]
  %v74 = vld [vmem:[%s1 + $0x1c0] sm:$0xff]
  %v75 = vld [vmem:[%s1 + $0x1c8] sm:$0xff]
  %v76 = vld [vmem:[%s1 + $0x1d0] sm:$0xff]
  %v77 = vld [vmem:[%s1 + $0x1d8] sm:$0xff]
  %v78 = vld [vmem:[%s1 + $0x1e0] sm:$0xff]
  %v79 = vld [vmem:[%s1 + $0x1e8] sm:$0xff]
  %v80 = vld [vmem:[%s1 + $0x1f0] sm:$0xff]
  %v81 = vld [vmem:[%s1 + $0x1f8] sm:$0xff]
  %v82 = vld [vmem:[%s1 + $0x200] sm:$0xff]
  %v83 = vld [vmem:[%s1 + $0x208] sm:$0xff]
  %v84 = vld [vmem:[%s1 + $0x210] sm:$0xff]
  %v85 = vld [vmem:[%s1 + $0x218] sm:$0xff]
  %v86 = vld [vmem:[%s1 + $0x220] sm:$0xff]
  %v87 = vld [vmem:[%s1 + $0x228] sm:$0xff]
  %v88 = vld [vmem:[%s1 + $0x230] sm:$0xff]
  %v89 = vld [vmem:[%s1 + $0x238] sm:$0xff]
  %v90 = vld [vmem:[%s1 + $0x240] sm:$0xff]
  %v91 = vld [vmem:[%s1 + $0x248] sm:$0xff]
  %v92 = vld [vmem:[%s1 + $0x250] sm:$0xff]
  %v93 = vld [vmem:[%s1 + $0x258] sm:$0xff]
  %v94 = vld [vmem:[%s1 + $0x260] sm:$0xff]
  %v95 = vld [vmem:[%s1 + $0x268] sm:$0xff]
  %v96 = vld [vmem:[%s1 + $0x270] sm:$0xff]
  %v97 = vld [vmem:[%s1 + $0x278] sm:$0xff]
  %v98 = vld [vmem:[%s1 + $0x280] sm:$0xff]
  %v99 = vld [vmem:[%s1 + $0x288] sm:$0xff]
  %v100 = vld [vmem:[%s1 + $0x290] sm:$0xff]
  %v101 = vld [vmem:[%s1 + $0x298] sm:$0xff]
  %v102 = vld [vmem:[%s1 + $0x2a0] sm:$0xff]
  %v103 = vld [vmem:[%s1 + $0x2a8] sm:$0xff]
  %v104 = vld [vmem:[%s1 + $0x2b0] sm:$0xff]
  %v105 = vld [vmem:[%s1 + $0x2b8] sm:$0xff]
  %v106 = vld [vmem:[%s1 + $0x2c0] sm:$0xff]
  %v107 = vld [vmem:[%s1 + $0x2c8] sm:$0xff]
  %v108 = vld [vmem:[%s1 + $0x2d0] sm:$0xff]
  %v109 = vld [vmem:[%s1 + $0x2d8] sm:$0xff]
  %v110 = vld [vmem:[%s1 + $0x2e0] sm:$0xff]
  %v111 = vld [vmem:[%s1 + $0x2e8] sm:$0xff]
  %v112 = vld [vmem:[%s1 + $0x2f0] sm:$0xff]
  %v113 = vld [vmem:[%s1 + $0x2f8] sm:$0xff]
  %v114 = vld [vmem:[%s1 + $0x300] sm:$0xff]
  %v115 = vld [vmem:[%s1 + $0x308] sm:$0xff]
  %v116 = vld [vmem:[%s1 + $0x310] sm:$0xff]
  %v117 = vld [vmem:[%s1 + $0x318] sm:$0xff]
  %v118 = vld [vmem:[%s1 + $0x320] sm:$0xff]
  %v119 = vld [vmem:[%s1 + $0x328] sm:$0xff]
  %v120 = vld [vmem:[%s1 + $0x330] sm:$0xff]
  %v121 = vld [vmem:[%s1 + $0x338] sm:$0xff]
  %v122 = vld [vmem:[%s1 + $0x340] sm:$0xff]
  %v123 = vld [vmem:[%s1 + $0x348] sm:$0xff]
  %v124 = vld [vmem:[%s1 + $0x350] sm:$0xff]
  %v125 = vld [vmem:[%s1 + $0x358] sm:$0xff]
  %v126 = vld [vmem:[%s1 + $0x360] sm:$0xff]
  %v127 = vld [vmem:[%s1 + $0x368] sm:$0xff]
  %v128 = vld [vmem:[%s1 + $0x370] sm:$0xff]
  %v129 = vld [vmem:[%s1 + $0x378] sm:$0xff]
  %v130 = vld [vmem:[%s1 + $0x380] sm:$0xff]
  %v131 = vld [vmem:[%s1 + $0x388] sm:$0xff]
  %v132 = vld [vmem:[%s1 + $0x390] sm:$0xff]
  %v133 = vld [vmem:[%s1 + $0x398] sm:$0xff]
  %v134 = vld [vmem:[%s1 + $0x3a0] sm:$0xff]
  %v135 = vld [vmem:[%s1 + $0x3a8] sm:$0xff]
  %v136 = vld [vmem:[%s1 + $0x3b0] sm:$0xff]
  %v137 = vld [vmem:[%s1 + $0x3b8] sm:$0xff]
  %v138 = vld [vmem:[%s1 + $0x3c0] sm:$0xff]
  %v139 = vld [vmem:[%s1 + $0x3c8] sm:$0xff]
  %v140 = vld [vmem:[%s1 + $0x3d0] sm:$0xff]
  %v141 = vld [vmem:[%s1 + $0x3d8] sm:$0xff]
  %v142 = vld [vmem:[%s1 + $0x3e0] sm:$0xff]
  %v143 = vld [vmem:[%s1 + $0x3e8] sm:$0xff]
  %v144 = vld [vmem:[%s1 + $0x3f0] sm:$0xff]
  %v145 = vld [vmem:[%s1 + $0x3f8] sm:$0xff]
  %v146 = vld [vmem:[%s1 + $0x400] sm:$0xff]
  %v147 = vld [vmem:[%s1 + $0x408] sm:$0xff]
  %v148 = vld [vmem:[%s1 + $0x410] sm:$0xff]
  %v149 = vld [vmem:[%s1 + $0x418] sm:$0xff]
  %v150 = vld [vmem:[%s1 + $0x420] sm:$0xff]
  %v151 = vld [vmem:[%s1 + $0x428] sm:$0xff]
  %v152 = vld [vmem:[%s1 + $0x430] sm:$0xff]
  %v153 = vld [vmem:[%s1 + $0x438] sm:$0xff]
  %v154 = vld [vmem:[%s1 + $0x440] sm:$0xff]
  %v155 = vld [vmem:[%s1 + $0x448] sm:$0xff]
  %v156 = vld [vmem:[%s1 + $0x450] sm:$0xff]
  %v157 = vld [vmem:[%s1 + $0x458] sm:$0xff]
  %v158 = vld [vmem:[%s1 + $0x460] sm:$0xff]
  %v159 = vld [vmem:[%s1 + $0x468] sm:$0xff]
  %v160 = vld [vmem:[%s1 + $0x470] sm:$0xff]
  %v161 = vld [vmem:[%s1 + $0x478] sm:$0xff]
  %v162 = vld [vmem:[%s1 + $0x480] sm:$0xff]
  %v163 = vld [vmem:[%s1 + $0x488] sm:$0xff]
  %v164 = vld [vmem:[%s1 + $0x490] sm:$0xff]
  %v165 = vld [vmem:[%s1 + $0x498] sm:$0xff]
  %v166 = vld [vmem:[%s1 + $0x4a0] sm:$0xff]
  %v167 = vld [vmem:[%s1 + $0x4a8] sm:$0xff]
  %v168 = vld [vmem:[%s1 + $0x4b0] sm:$0xff]
  %v169 = vld [vmem:[%s1 + $0x4b8] sm:$0xff]
  %v170 = vld [vmem:[%s1 + $0x4c0] sm:$0xff]
  %v171 = vld [vmem:[%s1 + $0x4c8] sm:$0xff]
  %v172 = vld [vmem:[%s1 + $0x4d0] sm:$0xff]
  %v173 = vld [vmem:[%s1 + $0x4d8] sm:$0xff]
  %v174 = vld [vmem:[%s1 + $0x4e0] sm:$0xff]
  %v175 = vld [vmem:[%s1 + $0x4e8] sm:$0xff]
  %v176 = vld [vmem:[%s1 + $0x4f0] sm:$0xff]
  %v177 = vld [vmem:[%s1 + $0x4f8] sm:$0xff]
  %v178 = vld [vmem:[%s1 + $0x500] sm:$0xff]
  %v179 = vld [vmem:[%s1 + $0x508] sm:$0xff]
  %v180 = vld [vmem:[%s1 + $0x510] sm:$0xff]
  %v181 = vld [vmem:[%s1 + $0x518] sm:$0xff]
  %v182 = vld [vmem:[%s1 + $0x520] sm:$0xff]
  %v183 = vld [vmem:[%s1 + $0x528] sm:$0xff]
  %v184 = vld [vmem:[%s1 + $0x530] sm:$0xff]
  %v185 = vld [vmem:[%s1 + $0x538] sm:$0xff]
  %v186 = vld [vmem:[%s1 + $0x540] sm:$0xff]
  %v187 = vld [vmem:[%s1 + $0x548] sm:$0xff]
  %v188 = vld [vmem:[%s1 + $0x550] sm:$0xff]
  %v189 = vld [vmem:[%s1 + $0x558] sm:$0xff]
  %v190 = vld [vmem:[%s1 + $0x560] sm:$0xff]
  %v191 = vld [vmem:[%s1 + $0x568] sm:$0xff]
  %v192 = vld [vmem:[%s1 + $0x570] sm:$0xff]
  %v193 = vld [vmem:[%s1 + $0x578] sm:$0xff]
  %v194 = vld [vmem:[%s1 + $0x580] sm:$0xff]
  %v195 = vld [vmem:[%s1 + $0x588] sm:$0xff]
  %v196 = vld [vmem:[%s1 + $0x590] sm:$0xff]
  %v197 = vld [vmem:[%s1 + $0x598] sm:$0xff]
  %v198 = vld [vmem:[%s1 + $0x5a0] sm:$0xff]
  %v199 = vld [vmem:[%s1 + $0x5a8] sm:$0xff]
  %v200 = vld [vmem:[%s1 + $0x5b0] sm:$0xff]
  %v201 = vld [vmem:[%s1 + $0x5b8] sm:$0xff]
  %v202 = vld [vmem:[%s1 + $0x5c0] sm:$0xff]
  %v203 = vld [vmem:[%s1 + $0x5c8] sm:$0xff]
  %v204 = vld [vmem:[%s1 + $0x5d0] sm:$0xff]
  %v205 = vld [vmem:[%s1 + $0x5d8] sm:$0xff]
  %v206 = vld [vmem:[%s1 + $0x5e0] sm:$0xff]
  %v207 = vld [vmem:[%s1 + $0x5e8] sm:$0xff]
  %v208 = vld [vmem:[%s1 + $0x5f0] sm:$0xff]
  %v209 = vld [vmem:[%s1 + $0x5f8] sm:$0xff]
  %v210 = vld [vmem:[%s1 + $0x600] sm:$0xff]
  %v211 = vld [vmem:[%s1 + $0x608] sm:$0xff]
  %v212 = vld [vmem:[%s1 + $0x610] sm:$0xff]
  %v213 = vld [vmem:[%s1 + $0x618] sm:$0xff]
  %v214 = vld [vmem:[%s1 + $0x620] sm:$0xff]
  %v215 = vld [vmem:[%s1 + $0x628] sm:$0xff]
  %v216 = vld [vmem:[%s1 + $0x630] sm:$0xff]
  %v217 = vld [vmem:[%s1 + $0x638] sm:$0xff]
  %v218 = vld [vmem:[%s1 + $0x640] sm:$0xff]
  %v219 = vld [vmem:[%s1 + $0x648] sm:$0xff]
  %v220 = vld [vmem:[%s1 + $0x650] sm:$0xff]
  %v221 = vld [vmem:[%s1 + $0x658] sm:$0xff]
  %v222 = vld [vmem:[%s1 + $0x660] sm:$0xff]
  %v223 = vld [vmem:[%s1 + $0x668] sm:$0xff]
  %v224 = vld [vmem:[%s1 + $0x670] sm:$0xff]
  %v225 = vld [vmem:[%s1 + $0x678] sm:$0xff]
  %v226 = vld [vmem:[%s1 + $0x680] sm:$0xff]
  %v227 = vld [vmem:[%s1 + $0x688] sm:$0xff]
  %v228 = vld [vmem:[%s1 + $0x690] sm:$0xff]
  %v229 = vld [vmem:[%s1 + $0x698] sm:$0xff]
  %v230 = vld [vmem:[%s1 + $0x6a0] sm:$0xff]
  %v231 = vld [vmem:[%s1 + $0x6a8] sm:$0xff]
  %v232 = vld [vmem:[%s1 + $0x6b0] sm:$0xff]
  %v233 = vld [vmem:[%s1 + $0x6b8] sm:$0xff]
  %v234 = vld [vmem:[%s1 + $0x6c0] sm:$0xff]
  %v235 = vld [vmem:[%s1 + $0x6c8] sm:$0xff]
  %v236 = vld [vmem:[%s1 + $0x6d0] sm:$0xff]
  %v237 = vld [vmem:[%s1 + $0x6d8] sm:$0xff]
  %v238 = vld [vmem:[%s1 + $0x6e0] sm:$0xff]
  %v239 = vld [vmem:[%s1 + $0x6e8] sm:$0xff]
  %v240 = vld [vmem:[%s1 + $0x6f0] sm:$0xff]
  %v241 = vld [vmem:[%s1 + $0x6f8] sm:$0xff]
  %v242 = vld [vmem:[%s1 + $0x700] sm:$0xff]
  %v243 = vld [vmem:[%s1 + $0x708] sm:$0xff]
  %v244 = vld [vmem:[%s1 + $0x710] sm:$0xff]
  %v245 = vld [vmem:[%s1 + $0x718] sm:$0xff]
  %v246 = vld [vmem:[%s1 + $0x720] sm:$0xff]
  %v247 = vld [vmem:[%s1 + $0x728] sm:$0xff]
  %v248 = vld [vmem:[%s1 + $0x730] sm:$0xff]
  %v249 = vld [vmem:[%s1 + $0x738] sm:$0xff]
  %v250 = vld [vmem:[%s1 + $0x740] sm:$0xff]
  %v251 = vld [vmem:[%s1 + $0x748] sm:$0xff]
  %v252 = vld [vmem:[%s1 + $0x750] sm:$0xff]
  %v253 = vld [vmem:[%s1 + $0x758] sm:$0xff]
  %v254 = vld [vmem:[%s1 + $0x760] sm:$0xff]
  %v255 = vld [vmem:[%s1 + $0x768] sm:$0xff]
  %v256 = vld [vmem:[%s1 + $0x770] sm:$0xff]
  %v257 = vld [vmem:[%s1 + $0x778] sm:$0xff]
  %v258 = vld [vmem:[%s1 + $0x780] sm:$0xff]
  %v259 = vld [vmem:[%s1 + $0x788] sm:$0xff]
  %v260 = vld [vmem:[%s1 + $0x790] sm:$0xff]
  %v261 = vld [vmem:[%s1 + $0x798] sm:$0xff]
  %v262 = vld [vmem:[%s1 + $0x7a0] sm:$0xff]
  %v263 = vld [vmem:[%s1 + $0x7a8] sm:$0xff]
  %v264 = vld [vmem:[%s1 + $0x7b0] sm:$0xff]
  %v265 = vld [vmem:[%s1 + $0x7b8] sm:$0xff]
  %v266 = vld [vmem:[%s1 + $0x7c0] sm:$0xff]
  %v267 = vld [vmem:[%s1 + $0x7c8] sm:$0xff]
  %v268 = vld [vmem:[%s1 + $0x7d0] sm:$0xff]
  %v269 = vld [vmem:[%s1 + $0x7d8] sm:$0xff]
  %v270 = vld [vmem:[%s1 + $0x7e0] sm:$0xff]
  %v271 = vld [vmem:[%s1 + $0x7e8] sm:$0xff]
  %v272 = vld [vmem:[%s1 + $0x7f0] sm:$0xff]
  %v273 = vld [vmem:[%s1 + $0x7f8] sm:$0xff]
  %v274 = vld [vmem:[%s2] sm:$0xff]
  %v275 = vld [vmem:[%s2 + $0x8] sm:$0xff]
  %v278 = vperm.slane %v274, 0
  %v279 = vperm.slane %v274, 1
  %v280 = vperm.slane %v274, 2
  %v281 = vperm.slane %v274, 3
  %v282 = vperm.slane %v274, 4
  %v283 = vperm.slane %v274, 5
  %v284 = vperm.slane %v274, 6
  %v285 = vperm.slane %v274, 7
  %v286 = vperm.slane %v275, 0
  %v287 = vperm.slane %v275, 1
  %v288 = vperm.slane %v275, 2
  %v289 = vperm.slane %v275, 3
  %v290 = vperm.slane %v275, 4
  %v291 = vperm.slane %v275, 5
  %v292 = vperm.slane %v275, 6
  %v293 = vperm.slane %v275, 7
  %v314 = vunpack.c.l.b16 %v14
  %v315 = vunpack.c.h.b16 %v14
  %v316 = vunpack.c.l.b16 %v15
  %v317 = vunpack.c.h.b16 %v15
  %v318 = vunpack.c.l.b16 %v16
  %v319 = vunpack.c.h.b16 %v16
  %v320 = vunpack.c.l.b16 %v17
  %v321 = vunpack.c.h.b16 %v17
  %v322 = vpack.c.b16 %v316, %v314
  %v323 = vpack.c.b16 %v317, %v315
  %v324 = vpack.c.b16 %v320, %v318
  %v325 = vpack.c.b16 %v321, %v319
  %v586 = vunpack.c.l.b16 %v18
  %v587 = vunpack.c.h.b16 %v18
  %v588 = vunpack.c.l.b16 %v19
  %v589 = vunpack.c.h.b16 %v19
  %v590 = vunpack.c.l.b16 %v20
  %v591 = vunpack.c.h.b16 %v20
  %v592 = vunpack.c.l.b16 %v21
  %v593 = vunpack.c.h.b16 %v21
  %v594 = vunpack.c.l.b16 %v22
  %v595 = vunpack.c.h.b16 %v22
  %v596 = vunpack.c.l.b16 %v23
  %v597 = vunpack.c.h.b16 %v23
  %v598 = vunpack.c.l.b16 %v24
  %v599 = vunpack.c.h.b16 %v24
  %v600 = vunpack.c.l.b16 %v25
  %v601 = vunpack.c.h.b16 %v25
  %v602 = vunpack.c.l.b16 %v26
  %v603 = vunpack.c.h.b16 %v26
  %v604 = vunpack.c.l.b16 %v27
  %v605 = vunpack.c.h.b16 %v27
  %v606 = vunpack.c.l.b16 %v28
  %v607 = vunpack.c.h.b16 %v28
  %v608 = vunpack.c.l.b16 %v29
  %v609 = vunpack.c.h.b16 %v29
  %v610 = vunpack.c.l.b16 %v30
  %v611 = vunpack.c.h.b16 %v30
  %v612 = vunpack.c.l.b16 %v31
  %v613 = vunpack.c.h.b16 %v31
  %v614 = vunpack.c.l.b16 %v32
  %v615 = vunpack.c.h.b16 %v32
  %v616 = vunpack.c.l.b16 %v33
  %v617 = vunpack.c.h.b16 %v33
  %v618 = vunpack.c.l.b16 %v34
  %v619 = vunpack.c.h.b16 %v34
  %v620 = vunpack.c.l.b16 %v35
  %v621 = vunpack.c.h.b16 %v35
  %v622 = vunpack.c.l.b16 %v36
  %v623 = vunpack.c.h.b16 %v36
  %v624 = vunpack.c.l.b16 %v37
  %v625 = vunpack.c.h.b16 %v37
  %v626 = vunpack.c.l.b16 %v38
  %v627 = vunpack.c.h.b16 %v38
  %v628 = vunpack.c.l.b16 %v39
  %v629 = vunpack.c.h.b16 %v39
  %v630 = vunpack.c.l.b16 %v40
  %v631 = vunpack.c.h.b16 %v40
  %v632 = vunpack.c.l.b16 %v41
  %v633 = vunpack.c.h.b16 %v41
  %v634 = vunpack.c.l.b16 %v42
  %v635 = vunpack.c.h.b16 %v42
  %v636 = vunpack.c.l.b16 %v43
  %v637 = vunpack.c.h.b16 %v43
  %v638 = vunpack.c.l.b16 %v44
  %v639 = vunpack.c.h.b16 %v44
  %v640 = vunpack.c.l.b16 %v45
  %v641 = vunpack.c.h.b16 %v45
  %v642 = vunpack.c.l.b16 %v46
  %v643 = vunpack.c.h.b16 %v46
  %v644 = vunpack.c.l.b16 %v47
  %v645 = vunpack.c.h.b16 %v47
  %v646 = vunpack.c.l.b16 %v48
  %v647 = vunpack.c.h.b16 %v48
  %v648 = vunpack.c.l.b16 %v49
  %v649 = vunpack.c.h.b16 %v49
  %v650 = vunpack.c.l.b16 %v50
  %v651 = vunpack.c.h.b16 %v50
  %v652 = vunpack.c.l.b16 %v51
  %v653 = vunpack.c.h.b16 %v51
  %v654 = vunpack.c.l.b16 %v52
  %v655 = vunpack.c.h.b16 %v52
  %v656 = vunpack.c.l.b16 %v53
  %v657 = vunpack.c.h.b16 %v53
  %v658 = vunpack.c.l.b16 %v54
  %v659 = vunpack.c.h.b16 %v54
  %v660 = vunpack.c.l.b16 %v55
  %v661 = vunpack.c.h.b16 %v55
  %v662 = vunpack.c.l.b16 %v56
  %v663 = vunpack.c.h.b16 %v56
  %v664 = vunpack.c.l.b16 %v57
  %v665 = vunpack.c.h.b16 %v57
  %v666 = vunpack.c.l.b16 %v58
  %v667 = vunpack.c.h.b16 %v58
  %v668 = vunpack.c.l.b16 %v59
  %v669 = vunpack.c.h.b16 %v59
  %v670 = vunpack.c.l.b16 %v60
  %v671 = vunpack.c.h.b16 %v60
  %v672 = vunpack.c.l.b16 %v61
  %v673 = vunpack.c.h.b16 %v61
  %v674 = vunpack.c.l.b16 %v62
  %v675 = vunpack.c.h.b16 %v62
  %v676 = vunpack.c.l.b16 %v63
  %v677 = vunpack.c.h.b16 %v63
  %v678 = vunpack.c.l.b16 %v64
  %v679 = vunpack.c.h.b16 %v64
  %v680 = vunpack.c.l.b16 %v65
  %v681 = vunpack.c.h.b16 %v65
  %v682 = vunpack.c.l.b16 %v66
  %v683 = vunpack.c.h.b16 %v66
  %v684 = vunpack.c.l.b16 %v67
  %v685 = vunpack.c.h.b16 %v67
  %v686 = vunpack.c.l.b16 %v68
  %v687 = vunpack.c.h.b16 %v68
  %v688 = vunpack.c.l.b16 %v69
  %v689 = vunpack.c.h.b16 %v69
  %v690 = vunpack.c.l.b16 %v70
  %v691 = vunpack.c.h.b16 %v70
  %v692 = vunpack.c.l.b16 %v71
  %v693 = vunpack.c.h.b16 %v71
  %v694 = vunpack.c.l.b16 %v72
  %v695 = vunpack.c.h.b16 %v72
  %v696 = vunpack.c.l.b16 %v73
  %v697 = vunpack.c.h.b16 %v73
  %v698 = vunpack.c.l.b16 %v74
  %v699 = vunpack.c.h.b16 %v74
  %v700 = vunpack.c.l.b16 %v75
  %v701 = vunpack.c.h.b16 %v75
  %v702 = vunpack.c.l.b16 %v76
  %v703 = vunpack.c.h.b16 %v76
  %v704 = vunpack.c.l.b16 %v77
  %v705 = vunpack.c.h.b16 %v77
  %v706 = vunpack.c.l.b16 %v78
  %v707 = vunpack.c.h.b16 %v78
  %v708 = vunpack.c.l.b16 %v79
  %v709 = vunpack.c.h.b16 %v79
  %v710 = vunpack.c.l.b16 %v80
  %v711 = vunpack.c.h.b16 %v80
  %v712 = vunpack.c.l.b16 %v81
  %v713 = vunpack.c.h.b16 %v81
  %v714 = vunpack.c.l.b16 %v82
  %v715 = vunpack.c.h.b16 %v82
  %v716 = vunpack.c.l.b16 %v83
  %v717 = vunpack.c.h.b16 %v83
  %v718 = vunpack.c.l.b16 %v84
  %v719 = vunpack.c.h.b16 %v84
  %v720 = vunpack.c.l.b16 %v85
  %v721 = vunpack.c.h.b16 %v85
  %v722 = vunpack.c.l.b16 %v86
  %v723 = vunpack.c.h.b16 %v86
  %v724 = vunpack.c.l.b16 %v87
  %v725 = vunpack.c.h.b16 %v87
  %v726 = vunpack.c.l.b16 %v88
  %v727 = vunpack.c.h.b16 %v88
  %v728 = vunpack.c.l.b16 %v89
  %v729 = vunpack.c.h.b16 %v89
  %v730 = vunpack.c.l.b16 %v90
  %v731 = vunpack.c.h.b16 %v90
  %v732 = vunpack.c.l.b16 %v91
  %v733 = vunpack.c.h.b16 %v91
  %v734 = vunpack.c.l.b16 %v92
  %v735 = vunpack.c.h.b16 %v92
  %v736 = vunpack.c.l.b16 %v93
  %v737 = vunpack.c.h.b16 %v93
  %v738 = vunpack.c.l.b16 %v94
  %v739 = vunpack.c.h.b16 %v94
  %v740 = vunpack.c.l.b16 %v95
  %v741 = vunpack.c.h.b16 %v95
  %v742 = vunpack.c.l.b16 %v96
  %v743 = vunpack.c.h.b16 %v96
  %v744 = vunpack.c.l.b16 %v97
  %v745 = vunpack.c.h.b16 %v97
  %v746 = vunpack.c.l.b16 %v98
  %v747 = vunpack.c.h.b16 %v98
  %v748 = vunpack.c.l.b16 %v99
  %v749 = vunpack.c.h.b16 %v99
  %v750 = vunpack.c.l.b16 %v100
  %v751 = vunpack.c.h.b16 %v100
  %v752 = vunpack.c.l.b16 %v101
  %v753 = vunpack.c.h.b16 %v101
  %v754 = vunpack.c.l.b16 %v102
  %v755 = vunpack.c.h.b16 %v102
  %v756 = vunpack.c.l.b16 %v103
  %v757 = vunpack.c.h.b16 %v103
  %v758 = vunpack.c.l.b16 %v104
  %v759 = vunpack.c.h.b16 %v104
  %v760 = vunpack.c.l.b16 %v105
  %v761 = vunpack.c.h.b16 %v105
  %v762 = vunpack.c.l.b16 %v106
  %v763 = vunpack.c.h.b16 %v106
  %v764 = vunpack.c.l.b16 %v107
  %v765 = vunpack.c.h.b16 %v107
  %v766 = vunpack.c.l.b16 %v108
  %v767 = vunpack.c.h.b16 %v108
  %v768 = vunpack.c.l.b16 %v109
  %v769 = vunpack.c.h.b16 %v109
  %v770 = vunpack.c.l.b16 %v110
  %v771 = vunpack.c.h.b16 %v110
  %v772 = vunpack.c.l.b16 %v111
  %v773 = vunpack.c.h.b16 %v111
  %v774 = vunpack.c.l.b16 %v112
  %v775 = vunpack.c.h.b16 %v112
  %v776 = vunpack.c.l.b16 %v113
  %v777 = vunpack.c.h.b16 %v113
  %v778 = vunpack.c.l.b16 %v114
  %v779 = vunpack.c.h.b16 %v114
  %v780 = vunpack.c.l.b16 %v115
  %v781 = vunpack.c.h.b16 %v115
  %v782 = vunpack.c.l.b16 %v116
  %v783 = vunpack.c.h.b16 %v116
  %v784 = vunpack.c.l.b16 %v117
  %v785 = vunpack.c.h.b16 %v117
  %v786 = vunpack.c.l.b16 %v118
  %v787 = vunpack.c.h.b16 %v118
  %v788 = vunpack.c.l.b16 %v119
  %v789 = vunpack.c.h.b16 %v119
  %v790 = vunpack.c.l.b16 %v120
  %v791 = vunpack.c.h.b16 %v120
  %v792 = vunpack.c.l.b16 %v121
  %v793 = vunpack.c.h.b16 %v121
  %v794 = vunpack.c.l.b16 %v122
  %v795 = vunpack.c.h.b16 %v122
  %v796 = vunpack.c.l.b16 %v123
  %v797 = vunpack.c.h.b16 %v123
  %v798 = vunpack.c.l.b16 %v124
  %v799 = vunpack.c.h.b16 %v124
  %v800 = vunpack.c.l.b16 %v125
  %v801 = vunpack.c.h.b16 %v125
  %v802 = vunpack.c.l.b16 %v126
  %v803 = vunpack.c.h.b16 %v126
  %v804 = vunpack.c.l.b16 %v127
  %v805 = vunpack.c.h.b16 %v127
  %v806 = vunpack.c.l.b16 %v128
  %v807 = vunpack.c.h.b16 %v128
  %v808 = vunpack.c.l.b16 %v129
  %v809 = vunpack.c.h.b16 %v129
  %v810 = vunpack.c.l.b16 %v130
  %v811 = vunpack.c.h.b16 %v130
  %v812 = vunpack.c.l.b16 %v131
  %v813 = vunpack.c.h.b16 %v131
  %v814 = vunpack.c.l.b16 %v132
  %v815 = vunpack.c.h.b16 %v132
  %v816 = vunpack.c.l.b16 %v133
  %v817 = vunpack.c.h.b16 %v133
  %v818 = vunpack.c.l.b16 %v134
  %v819 = vunpack.c.h.b16 %v134
  %v820 = vunpack.c.l.b16 %v135
  %v821 = vunpack.c.h.b16 %v135
  %v822 = vunpack.c.l.b16 %v136
  %v823 = vunpack.c.h.b16 %v136
  %v824 = vunpack.c.l.b16 %v137
  %v825 = vunpack.c.h.b16 %v137
  %v826 = vunpack.c.l.b16 %v138
  %v827 = vunpack.c.h.b16 %v138
  %v828 = vunpack.c.l.b16 %v139
  %v829 = vunpack.c.h.b16 %v139
  %v830 = vunpack.c.l.b16 %v140
  %v831 = vunpack.c.h.b16 %v140
  %v832 = vunpack.c.l.b16 %v141
  %v833 = vunpack.c.h.b16 %v141
  %v834 = vunpack.c.l.b16 %v142
  %v835 = vunpack.c.h.b16 %v142
  %v836 = vunpack.c.l.b16 %v143
  %v837 = vunpack.c.h.b16 %v143
  %v838 = vunpack.c.l.b16 %v144
  %v839 = vunpack.c.h.b16 %v144
  %v840 = vunpack.c.l.b16 %v145
  %v841 = vunpack.c.h.b16 %v145
  %v842 = vunpack.c.l.b16 %v146
  %v843 = vunpack.c.h.b16 %v146
  %v844 = vunpack.c.l.b16 %v147
  %v845 = vunpack.c.h.b16 %v147
  %v846 = vunpack.c.l.b16 %v148
  %v847 = vunpack.c.h.b16 %v148
  %v848 = vunpack.c.l.b16 %v149
  %v849 = vunpack.c.h.b16 %v149
  %v850 = vunpack.c.l.b16 %v150
  %v851 = vunpack.c.h.b16 %v150
  %v852 = vunpack.c.l.b16 %v151
  %v853 = vunpack.c.h.b16 %v151
  %v854 = vunpack.c.l.b16 %v152
  %v855 = vunpack.c.h.b16 %v152
  %v856 = vunpack.c.l.b16 %v153
  %v857 = vunpack.c.h.b16 %v153
  %v858 = vunpack.c.l.b16 %v154
  %v859 = vunpack.c.h.b16 %v154
  %v860 = vunpack.c.l.b16 %v155
  %v861 = vunpack.c.h.b16 %v155
  %v862 = vunpack.c.l.b16 %v156
  %v863 = vunpack.c.h.b16 %v156
  %v864 = vunpack.c.l.b16 %v157
  %v865 = vunpack.c.h.b16 %v157
  %v866 = vunpack.c.l.b16 %v158
  %v867 = vunpack.c.h.b16 %v158
  %v868 = vunpack.c.l.b16 %v159
  %v869 = vunpack.c.h.b16 %v159
  %v870 = vunpack.c.l.b16 %v160
  %v871 = vunpack.c.h.b16 %v160
  %v872 = vunpack.c.l.b16 %v161
  %v873 = vunpack.c.h.b16 %v161
  %v874 = vunpack.c.l.b16 %v162
  %v875 = vunpack.c.h.b16 %v162
  %v876 = vunpack.c.l.b16 %v163
  %v877 = vunpack.c.h.b16 %v163
  %v878 = vunpack.c.l.b16 %v164
  %v879 = vunpack.c.h.b16 %v164
  %v880 = vunpack.c.l.b16 %v165
  %v881 = vunpack.c.h.b16 %v165
  %v882 = vunpack.c.l.b16 %v166
  %v883 = vunpack.c.h.b16 %v166
  %v884 = vunpack.c.l.b16 %v167
  %v885 = vunpack.c.h.b16 %v167
  %v886 = vunpack.c.l.b16 %v168
  %v887 = vunpack.c.h.b16 %v168
  %v888 = vunpack.c.l.b16 %v169
  %v889 = vunpack.c.h.b16 %v169
  %v890 = vunpack.c.l.b16 %v170
  %v891 = vunpack.c.h.b16 %v170
  %v892 = vunpack.c.l.b16 %v171
  %v893 = vunpack.c.h.b16 %v171
  %v894 = vunpack.c.l.b16 %v172
  %v895 = vunpack.c.h.b16 %v172
  %v896 = vunpack.c.l.b16 %v173
  %v897 = vunpack.c.h.b16 %v173
  %v898 = vunpack.c.l.b16 %v174
  %v899 = vunpack.c.h.b16 %v174
  %v900 = vunpack.c.l.b16 %v175
  %v901 = vunpack.c.h.b16 %v175
  %v902 = vunpack.c.l.b16 %v176
  %v903 = vunpack.c.h.b16 %v176
  %v904 = vunpack.c.l.b16 %v177
  %v905 = vunpack.c.h.b16 %v177
  %v906 = vunpack.c.l.b16 %v178
  %v907 = vunpack.c.h.b16 %v178
  %v908 = vunpack.c.l.b16 %v179
  %v909 = vunpack.c.h.b16 %v179
  %v910 = vunpack.c.l.b16 %v180
  %v911 = vunpack.c.h.b16 %v180
  %v912 = vunpack.c.l.b16 %v181
  %v913 = vunpack.c.h.b16 %v181
  %v914 = vunpack.c.l.b16 %v182
  %v915 = vunpack.c.h.b16 %v182
  %v916 = vunpack.c.l.b16 %v183
  %v917 = vunpack.c.h.b16 %v183
  %v918 = vunpack.c.l.b16 %v184
  %v919 = vunpack.c.h.b16 %v184
  %v920 = vunpack.c.l.b16 %v185
  %v921 = vunpack.c.h.b16 %v185
  %v922 = vunpack.c.l.b16 %v186
  %v923 = vunpack.c.h.b16 %v186
  %v924 = vunpack.c.l.b16 %v187
  %v925 = vunpack.c.h.b16 %v187
  %v926 = vunpack.c.l.b16 %v188
  %v927 = vunpack.c.h.b16 %v188
  %v928 = vunpack.c.l.b16 %v189
  %v929 = vunpack.c.h.b16 %v189
  %v930 = vunpack.c.l.b16 %v190
  %v931 = vunpack.c.h.b16 %v190
  %v932 = vunpack.c.l.b16 %v191
  %v933 = vunpack.c.h.b16 %v191
  %v934 = vunpack.c.l.b16 %v192
  %v935 = vunpack.c.h.b16 %v192
  %v936 = vunpack.c.l.b16 %v193
  %v937 = vunpack.c.h.b16 %v193
  %v938 = vunpack.c.l.b16 %v194
  %v939 = vunpack.c.h.b16 %v194
  %v940 = vunpack.c.l.b16 %v195
  %v941 = vunpack.c.h.b16 %v195
  %v942 = vunpack.c.l.b16 %v196
  %v943 = vunpack.c.h.b16 %v196
  %v944 = vunpack.c.l.b16 %v197
  %v945 = vunpack.c.h.b16 %v197
  %v946 = vunpack.c.l.b16 %v198
  %v947 = vunpack.c.h.b16 %v198
  %v948 = vunpack.c.l.b16 %v199
  %v949 = vunpack.c.h.b16 %v199
  %v950 = vunpack.c.l.b16 %v200
  %v951 = vunpack.c.h.b16 %v200
  %v952 = vunpack.c.l.b16 %v201
  %v953 = vunpack.c.h.b16 %v201
  %v954 = vunpack.c.l.b16 %v202
  %v955 = vunpack.c.h.b16 %v202
  %v956 = vunpack.c.l.b16 %v203
  %v957 = vunpack.c.h.b16 %v203
  %v958 = vunpack.c.l.b16 %v204
  %v959 = vunpack.c.h.b16 %v204
  %v960 = vunpack.c.l.b16 %v205
  %v961 = vunpack.c.h.b16 %v205
  %v962 = vunpack.c.l.b16 %v206
  %v963 = vunpack.c.h.b16 %v206
  %v964 = vunpack.c.l.b16 %v207
  %v965 = vunpack.c.h.b16 %v207
  %v966 = vunpack.c.l.b16 %v208
  %v967 = vunpack.c.h.b16 %v208
  %v968 = vunpack.c.l.b16 %v209
  %v969 = vunpack.c.h.b16 %v209
  %v970 = vunpack.c.l.b16 %v210
  %v971 = vunpack.c.h.b16 %v210
  %v972 = vunpack.c.l.b16 %v211
  %v973 = vunpack.c.h.b16 %v211
  %v974 = vunpack.c.l.b16 %v212
  %v975 = vunpack.c.h.b16 %v212
  %v976 = vunpack.c.l.b16 %v213
  %v977 = vunpack.c.h.b16 %v213
  %v978 = vunpack.c.l.b16 %v214
  %v979 = vunpack.c.h.b16 %v214
  %v980 = vunpack.c.l.b16 %v215
  %v981 = vunpack.c.h.b16 %v215
  %v982 = vunpack.c.l.b16 %v216
  %v983 = vunpack.c.h.b16 %v216
  %v984 = vunpack.c.l.b16 %v217
  %v985 = vunpack.c.h.b16 %v217
  %v986 = vunpack.c.l.b16 %v218
  %v987 = vunpack.c.h.b16 %v218
  %v988 = vunpack.c.l.b16 %v219
  %v989 = vunpack.c.h.b16 %v219
  %v990 = vunpack.c.l.b16 %v220
  %v991 = vunpack.c.h.b16 %v220
  %v992 = vunpack.c.l.b16 %v221
  %v993 = vunpack.c.h.b16 %v221
  %v994 = vunpack.c.l.b16 %v222
  %v995 = vunpack.c.h.b16 %v222
  %v996 = vunpack.c.l.b16 %v223
  %v997 = vunpack.c.h.b16 %v223
  %v998 = vunpack.c.l.b16 %v224
  %v999 = vunpack.c.h.b16 %v224
  %v1000 = vunpack.c.l.b16 %v225
  %v1001 = vunpack.c.h.b16 %v225
  %v1002 = vunpack.c.l.b16 %v226
  %v1003 = vunpack.c.h.b16 %v226
  %v1004 = vunpack.c.l.b16 %v227
  %v1005 = vunpack.c.h.b16 %v227
  %v1006 = vunpack.c.l.b16 %v228
  %v1007 = vunpack.c.h.b16 %v228
  %v1008 = vunpack.c.l.b16 %v229
  %v1009 = vunpack.c.h.b16 %v229
  %v1010 = vunpack.c.l.b16 %v230
  %v1011 = vunpack.c.h.b16 %v230
  %v1012 = vunpack.c.l.b16 %v231
  %v1013 = vunpack.c.h.b16 %v231
  %v1014 = vunpack.c.l.b16 %v232
  %v1015 = vunpack.c.h.b16 %v232
  %v1016 = vunpack.c.l.b16 %v233
  %v1017 = vunpack.c.h.b16 %v233
  %v1018 = vunpack.c.l.b16 %v234
  %v1019 = vunpack.c.h.b16 %v234
  %v1020 = vunpack.c.l.b16 %v235
  %v1021 = vunpack.c.h.b16 %v235
  %v1022 = vunpack.c.l.b16 %v236
  %v1023 = vunpack.c.h.b16 %v236
  %v1024 = vunpack.c.l.b16 %v237
  %v1025 = vunpack.c.h.b16 %v237
  %v1026 = vunpack.c.l.b16 %v238
  %v1027 = vunpack.c.h.b16 %v238
  %v1028 = vunpack.c.l.b16 %v239
  %v1029 = vunpack.c.h.b16 %v239
  %v1030 = vunpack.c.l.b16 %v240
  %v1031 = vunpack.c.h.b16 %v240
  %v1032 = vunpack.c.l.b16 %v241
  %v1033 = vunpack.c.h.b16 %v241
  %v1034 = vunpack.c.l.b16 %v242
  %v1035 = vunpack.c.h.b16 %v242
  %v1036 = vunpack.c.l.b16 %v243
  %v1037 = vunpack.c.h.b16 %v243
  %v1038 = vunpack.c.l.b16 %v244
  %v1039 = vunpack.c.h.b16 %v244
  %v1040 = vunpack.c.l.b16 %v245
  %v1041 = vunpack.c.h.b16 %v245
  %v1042 = vunpack.c.l.b16 %v246
  %v1043 = vunpack.c.h.b16 %v246
  %v1044 = vunpack.c.l.b16 %v247
  %v1045 = vunpack.c.h.b16 %v247
  %v1046 = vunpack.c.l.b16 %v248
  %v1047 = vunpack.c.h.b16 %v248
  %v1048 = vunpack.c.l.b16 %v249
  %v1049 = vunpack.c.h.b16 %v249
  %v1050 = vunpack.c.l.b16 %v250
  %v1051 = vunpack.c.h.b16 %v250
  %v1052 = vunpack.c.l.b16 %v251
  %v1053 = vunpack.c.h.b16 %v251
  %v1054 = vunpack.c.l.b16 %v252
  %v1055 = vunpack.c.h.b16 %v252
  %v1056 = vunpack.c.l.b16 %v253
  %v1057 = vunpack.c.h.b16 %v253
  %v1058 = vunpack.c.l.b16 %v254
  %v1059 = vunpack.c.h.b16 %v254
  %v1060 = vunpack.c.l.b16 %v255
  %v1061 = vunpack.c.h.b16 %v255
  %v1062 = vunpack.c.l.b16 %v256
  %v1063 = vunpack.c.h.b16 %v256
  %v1064 = vunpack.c.l.b16 %v257
  %v1065 = vunpack.c.h.b16 %v257
  %v1066 = vunpack.c.l.b16 %v258
  %v1067 = vunpack.c.h.b16 %v258
  %v1068 = vunpack.c.l.b16 %v259
  %v1069 = vunpack.c.h.b16 %v259
  %v1070 = vunpack.c.l.b16 %v260
  %v1071 = vunpack.c.h.b16 %v260
  %v1072 = vunpack.c.l.b16 %v261
  %v1073 = vunpack.c.h.b16 %v261
  %v1074 = vunpack.c.l.b16 %v262
  %v1075 = vunpack.c.h.b16 %v262
  %v1076 = vunpack.c.l.b16 %v263
  %v1077 = vunpack.c.h.b16 %v263
  %v1078 = vunpack.c.l.b16 %v264
  %v1079 = vunpack.c.h.b16 %v264
  %v1080 = vunpack.c.l.b16 %v265
  %v1081 = vunpack.c.h.b16 %v265
  %v1082 = vunpack.c.l.b16 %v266
  %v1083 = vunpack.c.h.b16 %v266
  %v1084 = vunpack.c.l.b16 %v267
  %v1085 = vunpack.c.h.b16 %v267
  %v1086 = vunpack.c.l.b16 %v268
  %v1087 = vunpack.c.h.b16 %v268
  %v1088 = vunpack.c.l.b16 %v269
  %v1089 = vunpack.c.h.b16 %v269
  %v1090 = vunpack.c.l.b16 %v270
  %v1091 = vunpack.c.h.b16 %v270
  %v1092 = vunpack.c.l.b16 %v271
  %v1093 = vunpack.c.h.b16 %v271
  %v1094 = vunpack.c.l.b16 %v272
  %v1095 = vunpack.c.h.b16 %v272
  %v1096 = vunpack.c.l.b16 %v273
  %v1097 = vunpack.c.h.b16 %v273
  %v1098 = vpack.c.b16 %v602, %v586
  %v1099 = vpack.c.b16 %v603, %v587
  %v1100 = vpack.c.b16 %v604, %v588
  %v1101 = vpack.c.b16 %v605, %v589
  %v1102 = vpack.c.b16 %v606, %v590
  %v1103 = vpack.c.b16 %v607, %v591
  %v1104 = vpack.c.b16 %v608, %v592
  %v1105 = vpack.c.b16 %v609, %v593
  %v1106 = vpack.c.b16 %v610, %v594
  %v1107 = vpack.c.b16 %v611, %v595
  %v1108 = vpack.c.b16 %v612, %v596
  %v1109 = vpack.c.b16 %v613, %v597
  %v1110 = vpack.c.b16 %v614, %v598
  %v1111 = vpack.c.b16 %v615, %v599
  %v1112 = vpack.c.b16 %v616, %v600
  %v1113 = vpack.c.b16 %v617, %v601
  %v1114 = vpack.c.b16 %v634, %v618
  %v1115 = vpack.c.b16 %v635, %v619
  %v1116 = vpack.c.b16 %v636, %v620
  %v1117 = vpack.c.b16 %v637, %v621
  %v1118 = vpack.c.b16 %v638, %v622
  %v1119 = vpack.c.b16 %v639, %v623
  %v1120 = vpack.c.b16 %v640, %v624
  %v1121 = vpack.c.b16 %v641, %v625
  %v1122 = vpack.c.b16 %v642, %v626
  %v1123 = vpack.c.b16 %v643, %v627
  %v1124 = vpack.c.b16 %v644, %v628
  %v1125 = vpack.c.b16 %v645, %v629
  %v1126 = vpack.c.b16 %v646, %v630
  %v1127 = vpack.c.b16 %v647, %v631
  %v1128 = vpack.c.b16 %v648, %v632
  %v1129 = vpack.c.b16 %v649, %v633
  %v1130 = vpack.c.b16 %v666, %v650
  %v1131 = vpack.c.b16 %v667, %v651
  %v1132 = vpack.c.b16 %v668, %v652
  %v1133 = vpack.c.b16 %v669, %v653
  %v1134 = vpack.c.b16 %v670, %v654
  %v1135 = vpack.c.b16 %v671, %v655
  %v1136 = vpack.c.b16 %v672, %v656
  %v1137 = vpack.c.b16 %v673, %v657
  %v1138 = vpack.c.b16 %v674, %v658
  %v1139 = vpack.c.b16 %v675, %v659
  %v1140 = vpack.c.b16 %v676, %v660
  %v1141 = vpack.c.b16 %v677, %v661
  %v1142 = vpack.c.b16 %v678, %v662
  %v1143 = vpack.c.b16 %v679, %v663
  %v1144 = vpack.c.b16 %v680, %v664
  %v1145 = vpack.c.b16 %v681, %v665
  %v1146 = vpack.c.b16 %v698, %v682
  %v1147 = vpack.c.b16 %v699, %v683
  %v1148 = vpack.c.b16 %v700, %v684
  %v1149 = vpack.c.b16 %v701, %v685
  %v1150 = vpack.c.b16 %v702, %v686
  %v1151 = vpack.c.b16 %v703, %v687
  %v1152 = vpack.c.b16 %v704, %v688
  %v1153 = vpack.c.b16 %v705, %v689
  %v1154 = vpack.c.b16 %v706, %v690
  %v1155 = vpack.c.b16 %v707, %v691
  %v1156 = vpack.c.b16 %v708, %v692
  %v1157 = vpack.c.b16 %v709, %v693
  %v1158 = vpack.c.b16 %v710, %v694
  %v1159 = vpack.c.b16 %v711, %v695
  %v1160 = vpack.c.b16 %v712, %v696
  %v1161 = vpack.c.b16 %v713, %v697
  %v1162 = vpack.c.b16 %v730, %v714
  %v1163 = vpack.c.b16 %v731, %v715
  %v1164 = vpack.c.b16 %v732, %v716
  %v1165 = vpack.c.b16 %v733, %v717
  %v1166 = vpack.c.b16 %v734, %v718
  %v1167 = vpack.c.b16 %v735, %v719
  %v1168 = vpack.c.b16 %v736, %v720
  %v1169 = vpack.c.b16 %v737, %v721
  %v1170 = vpack.c.b16 %v738, %v722
  %v1171 = vpack.c.b16 %v739, %v723
  %v1172 = vpack.c.b16 %v740, %v724
  %v1173 = vpack.c.b16 %v741, %v725
  %v1174 = vpack.c.b16 %v742, %v726
  %v1175 = vpack.c.b16 %v743, %v727
  %v1176 = vpack.c.b16 %v744, %v728
  %v1177 = vpack.c.b16 %v745, %v729
  %v1178 = vpack.c.b16 %v762, %v746
  %v1179 = vpack.c.b16 %v763, %v747
  %v1180 = vpack.c.b16 %v764, %v748
  %v1181 = vpack.c.b16 %v765, %v749
  %v1182 = vpack.c.b16 %v766, %v750
  %v1183 = vpack.c.b16 %v767, %v751
  %v1184 = vpack.c.b16 %v768, %v752
  %v1185 = vpack.c.b16 %v769, %v753
  %v1186 = vpack.c.b16 %v770, %v754
  %v1187 = vpack.c.b16 %v771, %v755
  %v1188 = vpack.c.b16 %v772, %v756
  %v1189 = vpack.c.b16 %v773, %v757
  %v1190 = vpack.c.b16 %v774, %v758
  %v1191 = vpack.c.b16 %v775, %v759
  %v1192 = vpack.c.b16 %v776, %v760
  %v1193 = vpack.c.b16 %v777, %v761
  %v1194 = vpack.c.b16 %v794, %v778
  %v1195 = vpack.c.b16 %v795, %v779
  %v1196 = vpack.c.b16 %v796, %v780
  %v1197 = vpack.c.b16 %v797, %v781
  %v1198 = vpack.c.b16 %v798, %v782
  %v1199 = vpack.c.b16 %v799, %v783
  %v1200 = vpack.c.b16 %v800, %v784
  %v1201 = vpack.c.b16 %v801, %v785
  %v1202 = vpack.c.b16 %v802, %v786
  %v1203 = vpack.c.b16 %v803, %v787
  %v1204 = vpack.c.b16 %v804, %v788
  %v1205 = vpack.c.b16 %v805, %v789
  %v1206 = vpack.c.b16 %v806, %v790
  %v1207 = vpack.c.b16 %v807, %v791
  %v1208 = vpack.c.b16 %v808, %v792
  %v1209 = vpack.c.b16 %v809, %v793
  %v1210 = vpack.c.b16 %v826, %v810
  %v1211 = vpack.c.b16 %v827, %v811
  %v1212 = vpack.c.b16 %v828, %v812
  %v1213 = vpack.c.b16 %v829, %v813
  %v1214 = vpack.c.b16 %v830, %v814
  %v1215 = vpack.c.b16 %v831, %v815
  %v1216 = vpack.c.b16 %v832, %v816
  %v1217 = vpack.c.b16 %v833, %v817
  %v1218 = vpack.c.b16 %v834, %v818
  %v1219 = vpack.c.b16 %v835, %v819
  %v1220 = vpack.c.b16 %v836, %v820
  %v1221 = vpack.c.b16 %v837, %v821
  %v1222 = vpack.c.b16 %v838, %v822
  %v1223 = vpack.c.b16 %v839, %v823
  %v1224 = vpack.c.b16 %v840, %v824
  %v1225 = vpack.c.b16 %v841, %v825
  %v1226 = vpack.c.b16 %v858, %v842
  %v1227 = vpack.c.b16 %v859, %v843
  %v1228 = vpack.c.b16 %v860, %v844
  %v1229 = vpack.c.b16 %v861, %v845
  %v1230 = vpack.c.b16 %v862, %v846
  %v1231 = vpack.c.b16 %v863, %v847
  %v1232 = vpack.c.b16 %v864, %v848
  %v1233 = vpack.c.b16 %v865, %v849
  %v1234 = vpack.c.b16 %v866, %v850
  %v1235 = vpack.c.b16 %v867, %v851
  %v1236 = vpack.c.b16 %v868, %v852
  %v1237 = vpack.c.b16 %v869, %v853
  %v1238 = vpack.c.b16 %v870, %v854
  %v1239 = vpack.c.b16 %v871, %v855
  %v1240 = vpack.c.b16 %v872, %v856
  %v1241 = vpack.c.b16 %v873, %v857
  %v1242 = vpack.c.b16 %v890, %v874
  %v1243 = vpack.c.b16 %v891, %v875
  %v1244 = vpack.c.b16 %v892, %v876
  %v1245 = vpack.c.b16 %v893, %v877
  %v1246 = vpack.c.b16 %v894, %v878
  %v1247 = vpack.c.b16 %v895, %v879
  %v1248 = vpack.c.b16 %v896, %v880
  %v1249 = vpack.c.b16 %v897, %v881
  %v1250 = vpack.c.b16 %v898, %v882
  %v1251 = vpack.c.b16 %v899, %v883
  %v1252 = vpack.c.b16 %v900, %v884
  %v1253 = vpack.c.b16 %v901, %v885
  %v1254 = vpack.c.b16 %v902, %v886
  %v1255 = vpack.c.b16 %v903, %v887
  %v1256 = vpack.c.b16 %v904, %v888
  %v1257 = vpack.c.b16 %v905, %v889
  %v1258 = vpack.c.b16 %v922, %v906
  %v1259 = vpack.c.b16 %v923, %v907
  %v1260 = vpack.c.b16 %v924, %v908
  %v1261 = vpack.c.b16 %v925, %v909
  %v1262 = vpack.c.b16 %v926, %v910
  %v1263 = vpack.c.b16 %v927, %v911
  %v1264 = vpack.c.b16 %v928, %v912
  %v1265 = vpack.c.b16 %v929, %v913
  %v1266 = vpack.c.b16 %v930, %v914
  %v1267 = vpack.c.b16 %v931, %v915
  %v1268 = vpack.c.b16 %v932, %v916
  %v1269 = vpack.c.b16 %v933, %v917
  %v1270 = vpack.c.b16 %v934, %v918
  %v1271 = vpack.c.b16 %v935, %v919
  %v1272 = vpack.c.b16 %v936, %v920
  %v1273 = vpack.c.b16 %v937, %v921
  %v1274 = vpack.c.b16 %v954, %v938
  %v1275 = vpack.c.b16 %v955, %v939
  %v1276 = vpack.c.b16 %v956, %v940
  %v1277 = vpack.c.b16 %v957, %v941
  %v1278 = vpack.c.b16 %v958, %v942
  %v1279 = vpack.c.b16 %v959, %v943
  %v1280 = vpack.c.b16 %v960, %v944
  %v1281 = vpack.c.b16 %v961, %v945
  %v1282 = vpack.c.b16 %v962, %v946
  %v1283 = vpack.c.b16 %v963, %v947
  %v1284 = vpack.c.b16 %v964, %v948
  %v1285 = vpack.c.b16 %v965, %v949
  %v1286 = vpack.c.b16 %v966, %v950
  %v1287 = vpack.c.b16 %v967, %v951
  %v1288 = vpack.c.b16 %v968, %v952
  %v1289 = vpack.c.b16 %v969, %v953
  %v1290 = vpack.c.b16 %v986, %v970
  %v1291 = vpack.c.b16 %v987, %v971
  %v1292 = vpack.c.b16 %v988, %v972
  %v1293 = vpack.c.b16 %v989, %v973
  %v1294 = vpack.c.b16 %v990, %v974
  %v1295 = vpack.c.b16 %v991, %v975
  %v1296 = vpack.c.b16 %v992, %v976
  %v1297 = vpack.c.b16 %v993, %v977
  %v1298 = vpack.c.b16 %v994, %v978
  %v1299 = vpack.c.b16 %v995, %v979
  %v1300 = vpack.c.b16 %v996, %v980
  %v1301 = vpack.c.b16 %v997, %v981
  %v1302 = vpack.c.b16 %v998, %v982
  %v1303 = vpack.c.b16 %v999, %v983
  %v1304 = vpack.c.b16 %v1000, %v984
  %v1305 = vpack.c.b16 %v1001, %v985
  %v1306 = vpack.c.b16 %v1018, %v1002
  %v1307 = vpack.c.b16 %v1019, %v1003
  %v1308 = vpack.c.b16 %v1020, %v1004
  %v1309 = vpack.c.b16 %v1021, %v1005
  %v1310 = vpack.c.b16 %v1022, %v1006
  %v1311 = vpack.c.b16 %v1023, %v1007
  %v1312 = vpack.c.b16 %v1024, %v1008
  %v1313 = vpack.c.b16 %v1025, %v1009
  %v1314 = vpack.c.b16 %v1026, %v1010
  %v1315 = vpack.c.b16 %v1027, %v1011
  %v1316 = vpack.c.b16 %v1028, %v1012
  %v1317 = vpack.c.b16 %v1029, %v1013
  %v1318 = vpack.c.b16 %v1030, %v1014
  %v1319 = vpack.c.b16 %v1031, %v1015
  %v1320 = vpack.c.b16 %v1032, %v1016
  %v1321 = vpack.c.b16 %v1033, %v1017
  %v1322 = vpack.c.b16 %v1050, %v1034
  %v1323 = vpack.c.b16 %v1051, %v1035
  %v1324 = vpack.c.b16 %v1052, %v1036
  %v1325 = vpack.c.b16 %v1053, %v1037
  %v1326 = vpack.c.b16 %v1054, %v1038
  %v1327 = vpack.c.b16 %v1055, %v1039
  %v1328 = vpack.c.b16 %v1056, %v1040
  %v1329 = vpack.c.b16 %v1057, %v1041
  %v1330 = vpack.c.b16 %v1058, %v1042
  %v1331 = vpack.c.b16 %v1059, %v1043
  %v1332 = vpack.c.b16 %v1060, %v1044
  %v1333 = vpack.c.b16 %v1061, %v1045
  %v1334 = vpack.c.b16 %v1062, %v1046
  %v1335 = vpack.c.b16 %v1063, %v1047
  %v1336 = vpack.c.b16 %v1064, %v1048
  %v1337 = vpack.c.b16 %v1065, %v1049
  %v1338 = vpack.c.b16 %v1082, %v1066
  %v1339 = vpack.c.b16 %v1083, %v1067
  %v1340 = vpack.c.b16 %v1084, %v1068
  %v1341 = vpack.c.b16 %v1085, %v1069
  %v1342 = vpack.c.b16 %v1086, %v1070
  %v1343 = vpack.c.b16 %v1087, %v1071
  %v1344 = vpack.c.b16 %v1088, %v1072
  %v1345 = vpack.c.b16 %v1089, %v1073
  %v1346 = vpack.c.b16 %v1090, %v1074
  %v1347 = vpack.c.b16 %v1091, %v1075
  %v1348 = vpack.c.b16 %v1092, %v1076
  %v1349 = vpack.c.b16 %v1093, %v1077
  %v1350 = vpack.c.b16 %v1094, %v1078
  %v1351 = vpack.c.b16 %v1095, %v1079
  %v1352 = vpack.c.b16 %v1096, %v1080
  %v1353 = vpack.c.b16 %v1097, %v1081
  %1610 = vmatpush.bf16.msra.mxu0 %v1210
  %1611 = vmatpush.bf16.msra.mxu0 %v1194
  %1612 = vmatpush.bf16.msra.mxu0 %v1178
  %1613 = vmatpush.bf16.msra.mxu0 %v1162
  %1614 = vmatpush.bf16.msra.mxu0 %v1146
  %1615 = vmatpush.bf16.msra.mxu0 %v1130
  %1616 = vmatpush.bf16.msra.mxu0 %v1114
  %1617 = vmatpush.bf16.msra.mxu0 %v1098
  %1618 = vmatmul.bf16.gmra.mxu0 %v322
  %v1619 = vpop.f32.mrf.mxu0
  %v1620 = vadd.f32 %v278, %v1619
  %v1621 = vpop.f32.mrf.mxu0
  %v1622 = vadd.f32 %v278, %v1621
  %1623 = vmatmul.bf16.gmra.mxu0 %v324
  %v1624 = vpop.f32.mrf.mxu0
  %v1625 = vadd.f32 %v278, %v1624
  %v1626 = vpop.f32.mrf.mxu0
  %v1627 = vadd.f32 %v278, %v1626
  %1628 = vdwg.mxu0
  %1629 = vmatpush.bf16.msra.mxu0 %v1338
  %1630 = vmatpush.bf16.msra.mxu0 %v1322
  %1631 = vmatpush.bf16.msra.mxu0 %v1306
  %1632 = vmatpush.bf16.msra.mxu0 %v1290
  %1633 = vmatpush.bf16.msra.mxu0 %v1274
  %1634 = vmatpush.bf16.msra.mxu0 %v1258
  %1635 = vmatpush.bf16.msra.mxu0 %v1242
  %1636 = vmatpush.bf16.msra.mxu0 %v1226
  %1637 = vmatmul.bf16.gmra.mxu0 %v323
  %v1638 = vpop.f32.mrf.mxu0
  %v1639 = vadd.f32 %v1620, %v1638
  %v1640 = vpop.f32.mrf.mxu0
  %v1641 = vadd.f32 %v1622, %v1640
  %1642 = vmatmul.bf16.gmra.mxu0 %v325
  %v1643 = vpop.f32.mrf.mxu0
  %v1644 = vadd.f32 %v1625, %v1643
  %v1645 = vpop.f32.mrf.mxu0
  %v1646 = vadd.f32 %v1627, %v1645
  %1647 = vdwg.mxu0
  %1648 = vmatpush.bf16.msra.mxu0 %v1211
  %1649 = vmatpush.bf16.msra.mxu0 %v1195
  %1650 = vmatpush.bf16.msra.mxu0 %v1179
  %1651 = vmatpush.bf16.msra.mxu0 %v1163
  %1652 = vmatpush.bf16.msra.mxu0 %v1147
  %1653 = vmatpush.bf16.msra.mxu0 %v1131
  %1654 = vmatpush.bf16.msra.mxu0 %v1115
  %1655 = vmatpush.bf16.msra.mxu0 %v1099
  %1656 = vmatmul.bf16.gmra.mxu0 %v322
  %v1657 = vpop.f32.mrf.mxu0
  %v1658 = vadd.f32 %v279, %v1657
  %v1659 = vpop.f32.mrf.mxu0
  %v1660 = vadd.f32 %v279, %v1659
  %1661 = vmatmul.bf16.gmra.mxu0 %v324
  %v1662 = vpop.f32.mrf.mxu0
  %v1663 = vadd.f32 %v279, %v1662
  %v1664 = vpop.f32.mrf.mxu0
  %v1665 = vadd.f32 %v279, %v1664
  %1666 = vdwg.mxu0
  %1667 = vmatpush.bf16.msra.mxu0 %v1339
  %1668 = vmatpush.bf16.msra.mxu0 %v1323
  %1669 = vmatpush.bf16.msra.mxu0 %v1307
  %1670 = vmatpush.bf16.msra.mxu0 %v1291
  %1671 = vmatpush.bf16.msra.mxu0 %v1275
  %1672 = vmatpush.bf16.msra.mxu0 %v1259
  %1673 = vmatpush.bf16.msra.mxu0 %v1243
  %1674 = vmatpush.bf16.msra.mxu0 %v1227
  %1675 = vmatmul.bf16.gmra.mxu0 %v323
  %v1676 = vpop.f32.mrf.mxu0
  %v1677 = vadd.f32 %v1658, %v1676
  %v1678 = vpop.f32.mrf.mxu0
  %v1679 = vadd.f32 %v1660, %v1678
  %1680 = vmatmul.bf16.gmra.mxu0 %v325
  %v1681 = vpop.f32.mrf.mxu0
  %v1682 = vadd.f32 %v1663, %v1681
  %v1683 = vpop.f32.mrf.mxu0
  %v1684 = vadd.f32 %v1665, %v1683
  %1685 = vdwg.mxu0
  %1686 = vmatpush.bf16.msra.mxu0 %v1212
  %1687 = vmatpush.bf16.msra.mxu0 %v1196
  %1688 = vmatpush.bf16.msra.mxu0 %v1180
  %1689 = vmatpush.bf16.msra.mxu0 %v1164
  %1690 = vmatpush.bf16.msra.mxu0 %v1148
  %1691 = vmatpush.bf16.msra.mxu0 %v1132
  %1692 = vmatpush.bf16.msra.mxu0 %v1116
  %1693 = vmatpush.bf16.msra.mxu0 %v1100
  %1694 = vmatmul.bf16.gmra.mxu0 %v322
  %v1695 = vpop.f32.mrf.mxu0
  %v1696 = vadd.f32 %v280, %v1695
  %v1697 = vpop.f32.mrf.mxu0
  %v1698 = vadd.f32 %v280, %v1697
  %1699 = vmatmul.bf16.gmra.mxu0 %v324
  %v1700 = vpop.f32.mrf.mxu0
  %v1701 = vadd.f32 %v280, %v1700
  %v1702 = vpop.f32.mrf.mxu0
  %v1703 = vadd.f32 %v280, %v1702
  %1704 = vdwg.mxu0
  %1705 = vmatpush.bf16.msra.mxu0 %v1340
  %1706 = vmatpush.bf16.msra.mxu0 %v1324
  %1707 = vmatpush.bf16.msra.mxu0 %v1308
  %1708 = vmatpush.bf16.msra.mxu0 %v1292
  %1709 = vmatpush.bf16.msra.mxu0 %v1276
  %1710 = vmatpush.bf16.msra.mxu0 %v1260
  %1711 = vmatpush.bf16.msra.mxu0 %v1244
  %1712 = vmatpush.bf16.msra.mxu0 %v1228
  %1713 = vmatmul.bf16.gmra.mxu0 %v323
  %v1714 = vpop.f32.mrf.mxu0
  %v1715 = vadd.f32 %v1696, %v1714
  %v1716 = vpop.f32.mrf.mxu0
  %v1717 = vadd.f32 %v1698, %v1716
  %1718 = vmatmul.bf16.gmra.mxu0 %v325
  %v1719 = vpop.f32.mrf.mxu0
  %v1720 = vadd.f32 %v1701, %v1719
  %v1721 = vpop.f32.mrf.mxu0
  %v1722 = vadd.f32 %v1703, %v1721
  %1723 = vdwg.mxu0
  %1724 = vmatpush.bf16.msra.mxu0 %v1213
  %1725 = vmatpush.bf16.msra.mxu0 %v1197
  %1726 = vmatpush.bf16.msra.mxu0 %v1181
  %1727 = vmatpush.bf16.msra.mxu0 %v1165
  %1728 = vmatpush.bf16.msra.mxu0 %v1149
  %1729 = vmatpush.bf16.msra.mxu0 %v1133
  %1730 = vmatpush.bf16.msra.mxu0 %v1117
  %1731 = vmatpush.bf16.msra.mxu0 %v1101
  %1732 = vmatmul.bf16.gmra.mxu0 %v322
  %v1733 = vpop.f32.mrf.mxu0
  %v1734 = vadd.f32 %v281, %v1733
  %v1735 = vpop.f32.mrf.mxu0
  %v1736 = vadd.f32 %v281, %v1735
  %1737 = vmatmul.bf16.gmra.mxu0 %v324
  %v1738 = vpop.f32.mrf.mxu0
  %v1739 = vadd.f32 %v281, %v1738
  %v1740 = vpop.f32.mrf.mxu0
  %v1741 = vadd.f32 %v281, %v1740
  %1742 = vdwg.mxu0
  %1743 = vmatpush.bf16.msra.mxu0 %v1341
  %1744 = vmatpush.bf16.msra.mxu0 %v1325
  %1745 = vmatpush.bf16.msra.mxu0 %v1309
  %1746 = vmatpush.bf16.msra.mxu0 %v1293
  %1747 = vmatpush.bf16.msra.mxu0 %v1277
  %1748 = vmatpush.bf16.msra.mxu0 %v1261
  %1749 = vmatpush.bf16.msra.mxu0 %v1245
  %1750 = vmatpush.bf16.msra.mxu0 %v1229
  %1751 = vmatmul.bf16.gmra.mxu0 %v323
  %v1752 = vpop.f32.mrf.mxu0
  %v1753 = vadd.f32 %v1734, %v1752
  %v1754 = vpop.f32.mrf.mxu0
  %v1755 = vadd.f32 %v1736, %v1754
  %1756 = vmatmul.bf16.gmra.mxu0 %v325
  %v1757 = vpop.f32.mrf.mxu0
  %v1758 = vadd.f32 %v1739, %v1757
  %v1759 = vpop.f32.mrf.mxu0
  %v1760 = vadd.f32 %v1741, %v1759
  %1761 = vdwg.mxu0
  %1762 = vmatpush.bf16.msra.mxu0 %v1214
  %1763 = vmatpush.bf16.msra.mxu0 %v1198
  %1764 = vmatpush.bf16.msra.mxu0 %v1182
  %1765 = vmatpush.bf16.msra.mxu0 %v1166
  %1766 = vmatpush.bf16.msra.mxu0 %v1150
  %1767 = vmatpush.bf16.msra.mxu0 %v1134
  %1768 = vmatpush.bf16.msra.mxu0 %v1118
  %1769 = vmatpush.bf16.msra.mxu0 %v1102
  %1770 = vmatmul.bf16.gmra.mxu0 %v322
  %v1771 = vpop.f32.mrf.mxu0
  %v1772 = vadd.f32 %v282, %v1771
  %v1773 = vpop.f32.mrf.mxu0
  %v1774 = vadd.f32 %v282, %v1773
  %1775 = vmatmul.bf16.gmra.mxu0 %v324
  %v1776 = vpop.f32.mrf.mxu0
  %v1777 = vadd.f32 %v282, %v1776
  %v1778 = vpop.f32.mrf.mxu0
  %v1779 = vadd.f32 %v282, %v1778
  %1780 = vdwg.mxu0
  %1781 = vmatpush.bf16.msra.mxu0 %v1342
  %1782 = vmatpush.bf16.msra.mxu0 %v1326
  %1783 = vmatpush.bf16.msra.mxu0 %v1310
  %1784 = vmatpush.bf16.msra.mxu0 %v1294
  %1785 = vmatpush.bf16.msra.mxu0 %v1278
  %1786 = vmatpush.bf16.msra.mxu0 %v1262
  %1787 = vmatpush.bf16.msra.mxu0 %v1246
  %1788 = vmatpush.bf16.msra.mxu0 %v1230
  %1789 = vmatmul.bf16.gmra.mxu0 %v323
  %v1790 = vpop.f32.mrf.mxu0
  %v1791 = vadd.f32 %v1772, %v1790
  %v1792 = vpop.f32.mrf.mxu0
  %v1793 = vadd.f32 %v1774, %v1792
  %1794 = vmatmul.bf16.gmra.mxu0 %v325
  %v1795 = vpop.f32.mrf.mxu0
  %v1796 = vadd.f32 %v1777, %v1795
  %v1797 = vpop.f32.mrf.mxu0
  %v1798 = vadd.f32 %v1779, %v1797
  %1799 = vdwg.mxu0
  %1800 = vmatpush.bf16.msra.mxu0 %v1215
  %1801 = vmatpush.bf16.msra.mxu0 %v1199
  %1802 = vmatpush.bf16.msra.mxu0 %v1183
  %1803 = vmatpush.bf16.msra.mxu0 %v1167
  %1804 = vmatpush.bf16.msra.mxu0 %v1151
  %1805 = vmatpush.bf16.msra.mxu0 %v1135
  %1806 = vmatpush.bf16.msra.mxu0 %v1119
  %1807 = vmatpush.bf16.msra.mxu0 %v1103
  %1808 = vmatmul.bf16.gmra.mxu0 %v322
  %v1809 = vpop.f32.mrf.mxu0
  %v1810 = vadd.f32 %v283, %v1809
  %v1811 = vpop.f32.mrf.mxu0
  %v1812 = vadd.f32 %v283, %v1811
  %1813 = vmatmul.bf16.gmra.mxu0 %v324
  %v1814 = vpop.f32.mrf.mxu0
  %v1815 = vadd.f32 %v283, %v1814
  %v1816 = vpop.f32.mrf.mxu0
  %v1817 = vadd.f32 %v283, %v1816
  %1818 = vdwg.mxu0
  %1819 = vmatpush.bf16.msra.mxu0 %v1343
  %1820 = vmatpush.bf16.msra.mxu0 %v1327
  %1821 = vmatpush.bf16.msra.mxu0 %v1311
  %1822 = vmatpush.bf16.msra.mxu0 %v1295
  %1823 = vmatpush.bf16.msra.mxu0 %v1279
  %1824 = vmatpush.bf16.msra.mxu0 %v1263
  %1825 = vmatpush.bf16.msra.mxu0 %v1247
  %1826 = vmatpush.bf16.msra.mxu0 %v1231
  %1827 = vmatmul.bf16.gmra.mxu0 %v323
  %v1828 = vpop.f32.mrf.mxu0
  %v1829 = vadd.f32 %v1810, %v1828
  %v1830 = vpop.f32.mrf.mxu0
  %v1831 = vadd.f32 %v1812, %v1830
  %1832 = vmatmul.bf16.gmra.mxu0 %v325
  %v1833 = vpop.f32.mrf.mxu0
  %v1834 = vadd.f32 %v1815, %v1833
  %v1835 = vpop.f32.mrf.mxu0
  %v1836 = vadd.f32 %v1817, %v1835
  %1837 = vdwg.mxu0
  %1838 = vmatpush.bf16.msra.mxu0 %v1216
  %1839 = vmatpush.bf16.msra.mxu0 %v1200
  %1840 = vmatpush.bf16.msra.mxu0 %v1184
  %1841 = vmatpush.bf16.msra.mxu0 %v1168
  %1842 = vmatpush.bf16.msra.mxu0 %v1152
  %1843 = vmatpush.bf16.msra.mxu0 %v1136
  %1844 = vmatpush.bf16.msra.mxu0 %v1120
  %1845 = vmatpush.bf16.msra.mxu0 %v1104
  %1846 = vmatmul.bf16.gmra.mxu0 %v322
  %v1847 = vpop.f32.mrf.mxu0
  %v1848 = vadd.f32 %v284, %v1847
  %v1849 = vpop.f32.mrf.mxu0
  %v1850 = vadd.f32 %v284, %v1849
  %1851 = vmatmul.bf16.gmra.mxu0 %v324
  %v1852 = vpop.f32.mrf.mxu0
  %v1853 = vadd.f32 %v284, %v1852
  %v1854 = vpop.f32.mrf.mxu0
  %v1855 = vadd.f32 %v284, %v1854
  %1856 = vdwg.mxu0
  %1857 = vmatpush.bf16.msra.mxu0 %v1344
  %1858 = vmatpush.bf16.msra.mxu0 %v1328
  %1859 = vmatpush.bf16.msra.mxu0 %v1312
  %1860 = vmatpush.bf16.msra.mxu0 %v1296
  %1861 = vmatpush.bf16.msra.mxu0 %v1280
  %1862 = vmatpush.bf16.msra.mxu0 %v1264
  %1863 = vmatpush.bf16.msra.mxu0 %v1248
  %1864 = vmatpush.bf16.msra.mxu0 %v1232
  %1865 = vmatmul.bf16.gmra.mxu0 %v323
  %v1866 = vpop.f32.mrf.mxu0
  %v1867 = vadd.f32 %v1848, %v1866
  %v1868 = vpop.f32.mrf.mxu0
  %v1869 = vadd.f32 %v1850, %v1868
  %1870 = vmatmul.bf16.gmra.mxu0 %v325
  %v1871 = vpop.f32.mrf.mxu0
  %v1872 = vadd.f32 %v1853, %v1871
  %v1873 = vpop.f32.mrf.mxu0
  %v1874 = vadd.f32 %v1855, %v1873
  %1875 = vdwg.mxu0
  %1876 = vmatpush.bf16.msra.mxu0 %v1217
  %1877 = vmatpush.bf16.msra.mxu0 %v1201
  %1878 = vmatpush.bf16.msra.mxu0 %v1185
  %1879 = vmatpush.bf16.msra.mxu0 %v1169
  %1880 = vmatpush.bf16.msra.mxu0 %v1153
  %1881 = vmatpush.bf16.msra.mxu0 %v1137
  %1882 = vmatpush.bf16.msra.mxu0 %v1121
  %1883 = vmatpush.bf16.msra.mxu0 %v1105
  %1884 = vmatmul.bf16.gmra.mxu0 %v322
  %v1885 = vpop.f32.mrf.mxu0
  %v1886 = vadd.f32 %v285, %v1885
  %v1887 = vpop.f32.mrf.mxu0
  %v1888 = vadd.f32 %v285, %v1887
  %1889 = vmatmul.bf16.gmra.mxu0 %v324
  %v1890 = vpop.f32.mrf.mxu0
  %v1891 = vadd.f32 %v285, %v1890
  %v1892 = vpop.f32.mrf.mxu0
  %v1893 = vadd.f32 %v285, %v1892
  %1894 = vdwg.mxu0
  %1895 = vmatpush.bf16.msra.mxu0 %v1345
  %1896 = vmatpush.bf16.msra.mxu0 %v1329
  %1897 = vmatpush.bf16.msra.mxu0 %v1313
  %1898 = vmatpush.bf16.msra.mxu0 %v1297
  %1899 = vmatpush.bf16.msra.mxu0 %v1281
  %1900 = vmatpush.bf16.msra.mxu0 %v1265
  %1901 = vmatpush.bf16.msra.mxu0 %v1249
  %1902 = vmatpush.bf16.msra.mxu0 %v1233
  %1903 = vmatmul.bf16.gmra.mxu0 %v323
  %v1904 = vpop.f32.mrf.mxu0
  %v1905 = vadd.f32 %v1886, %v1904
  %v1906 = vpop.f32.mrf.mxu0
  %v1907 = vadd.f32 %v1888, %v1906
  %1908 = vmatmul.bf16.gmra.mxu0 %v325
  %v1909 = vpop.f32.mrf.mxu0
  %v1910 = vadd.f32 %v1891, %v1909
  %v1911 = vpop.f32.mrf.mxu0
  %v1912 = vadd.f32 %v1893, %v1911
  %1913 = vdwg.mxu0
  %1914 = vmatpush.bf16.msra.mxu0 %v1218
  %1915 = vmatpush.bf16.msra.mxu0 %v1202
  %1916 = vmatpush.bf16.msra.mxu0 %v1186
  %1917 = vmatpush.bf16.msra.mxu0 %v1170
  %1918 = vmatpush.bf16.msra.mxu0 %v1154
  %1919 = vmatpush.bf16.msra.mxu0 %v1138
  %1920 = vmatpush.bf16.msra.mxu0 %v1122
  %1921 = vmatpush.bf16.msra.mxu0 %v1106
  %1922 = vmatmul.bf16.gmra.mxu0 %v322
  %v1923 = vpop.f32.mrf.mxu0
  %v1924 = vadd.f32 %v286, %v1923
  %v1925 = vpop.f32.mrf.mxu0
  %v1926 = vadd.f32 %v286, %v1925
  %1927 = vmatmul.bf16.gmra.mxu0 %v324
  %v1928 = vpop.f32.mrf.mxu0
  %v1929 = vadd.f32 %v286, %v1928
  %v1930 = vpop.f32.mrf.mxu0
  %v1931 = vadd.f32 %v286, %v1930
  %1932 = vdwg.mxu0
  %1933 = vmatpush.bf16.msra.mxu0 %v1346
  %1934 = vmatpush.bf16.msra.mxu0 %v1330
  %1935 = vmatpush.bf16.msra.mxu0 %v1314
  %1936 = vmatpush.bf16.msra.mxu0 %v1298
  %1937 = vmatpush.bf16.msra.mxu0 %v1282
  %1938 = vmatpush.bf16.msra.mxu0 %v1266
  %1939 = vmatpush.bf16.msra.mxu0 %v1250
  %1940 = vmatpush.bf16.msra.mxu0 %v1234
  %1941 = vmatmul.bf16.gmra.mxu0 %v323
  %v1942 = vpop.f32.mrf.mxu0
  %v1943 = vadd.f32 %v1924, %v1942
  %v1944 = vpop.f32.mrf.mxu0
  %v1945 = vadd.f32 %v1926, %v1944
  %1946 = vmatmul.bf16.gmra.mxu0 %v325
  %v1947 = vpop.f32.mrf.mxu0
  %v1948 = vadd.f32 %v1929, %v1947
  %v1949 = vpop.f32.mrf.mxu0
  %v1950 = vadd.f32 %v1931, %v1949
  %1951 = vdwg.mxu0
  %1952 = vmatpush.bf16.msra.mxu0 %v1219
  %1953 = vmatpush.bf16.msra.mxu0 %v1203
  %1954 = vmatpush.bf16.msra.mxu0 %v1187
  %1955 = vmatpush.bf16.msra.mxu0 %v1171
  %1956 = vmatpush.bf16.msra.mxu0 %v1155
  %1957 = vmatpush.bf16.msra.mxu0 %v1139
  %1958 = vmatpush.bf16.msra.mxu0 %v1123
  %1959 = vmatpush.bf16.msra.mxu0 %v1107
  %1960 = vmatmul.bf16.gmra.mxu0 %v322
  %v1961 = vpop.f32.mrf.mxu0
  %v1962 = vadd.f32 %v287, %v1961
  %v1963 = vpop.f32.mrf.mxu0
  %v1964 = vadd.f32 %v287, %v1963
  %1965 = vmatmul.bf16.gmra.mxu0 %v324
  %v1966 = vpop.f32.mrf.mxu0
  %v1967 = vadd.f32 %v287, %v1966
  %v1968 = vpop.f32.mrf.mxu0
  %v1969 = vadd.f32 %v287, %v1968
  %1970 = vdwg.mxu0
  %1971 = vmatpush.bf16.msra.mxu0 %v1347
  %1972 = vmatpush.bf16.msra.mxu0 %v1331
  %1973 = vmatpush.bf16.msra.mxu0 %v1315
  %1974 = vmatpush.bf16.msra.mxu0 %v1299
  %1975 = vmatpush.bf16.msra.mxu0 %v1283
  %1976 = vmatpush.bf16.msra.mxu0 %v1267
  %1977 = vmatpush.bf16.msra.mxu0 %v1251
  %1978 = vmatpush.bf16.msra.mxu0 %v1235
  %1979 = vmatmul.bf16.gmra.mxu0 %v323
  %v1980 = vpop.f32.mrf.mxu0
  %v1981 = vadd.f32 %v1962, %v1980
  %v1982 = vpop.f32.mrf.mxu0
  %v1983 = vadd.f32 %v1964, %v1982
  %1984 = vmatmul.bf16.gmra.mxu0 %v325
  %v1985 = vpop.f32.mrf.mxu0
  %v1986 = vadd.f32 %v1967, %v1985
  %v1987 = vpop.f32.mrf.mxu0
  %v1988 = vadd.f32 %v1969, %v1987
  %1989 = vdwg.mxu0
  %1990 = vmatpush.bf16.msra.mxu0 %v1220
  %1991 = vmatpush.bf16.msra.mxu0 %v1204
  %1992 = vmatpush.bf16.msra.mxu0 %v1188
  %1993 = vmatpush.bf16.msra.mxu0 %v1172
  %1994 = vmatpush.bf16.msra.mxu0 %v1156
  %1995 = vmatpush.bf16.msra.mxu0 %v1140
  %1996 = vmatpush.bf16.msra.mxu0 %v1124
  %1997 = vmatpush.bf16.msra.mxu0 %v1108
  %1998 = vmatmul.bf16.gmra.mxu0 %v322
  %v1999 = vpop.f32.mrf.mxu0
  %v2000 = vadd.f32 %v288, %v1999
  %v2001 = vpop.f32.mrf.mxu0
  %v2002 = vadd.f32 %v288, %v2001
  %2003 = vmatmul.bf16.gmra.mxu0 %v324
  %v2004 = vpop.f32.mrf.mxu0
  %v2005 = vadd.f32 %v288, %v2004
  %v2006 = vpop.f32.mrf.mxu0
  %v2007 = vadd.f32 %v288, %v2006
  %2008 = vdwg.mxu0
  %2009 = vmatpush.bf16.msra.mxu0 %v1348
  %2010 = vmatpush.bf16.msra.mxu0 %v1332
  %2011 = vmatpush.bf16.msra.mxu0 %v1316
  %2012 = vmatpush.bf16.msra.mxu0 %v1300
  %2013 = vmatpush.bf16.msra.mxu0 %v1284
  %2014 = vmatpush.bf16.msra.mxu0 %v1268
  %2015 = vmatpush.bf16.msra.mxu0 %v1252
  %2016 = vmatpush.bf16.msra.mxu0 %v1236
  %2017 = vmatmul.bf16.gmra.mxu0 %v323
  %v2018 = vpop.f32.mrf.mxu0
  %v2019 = vadd.f32 %v2000, %v2018
  %v2020 = vpop.f32.mrf.mxu0
  %v2021 = vadd.f32 %v2002, %v2020
  %2022 = vmatmul.bf16.gmra.mxu0 %v325
  %v2023 = vpop.f32.mrf.mxu0
  %v2024 = vadd.f32 %v2005, %v2023
  %v2025 = vpop.f32.mrf.mxu0
  %v2026 = vadd.f32 %v2007, %v2025
  %2027 = vdwg.mxu0
  %2028 = vmatpush.bf16.msra.mxu0 %v1221
  %2029 = vmatpush.bf16.msra.mxu0 %v1205
  %2030 = vmatpush.bf16.msra.mxu0 %v1189
  %2031 = vmatpush.bf16.msra.mxu0 %v1173
  %2032 = vmatpush.bf16.msra.mxu0 %v1157
  %2033 = vmatpush.bf16.msra.mxu0 %v1141
  %2034 = vmatpush.bf16.msra.mxu0 %v1125
  %2035 = vmatpush.bf16.msra.mxu0 %v1109
  %2036 = vmatmul.bf16.gmra.mxu0 %v322
  %v2037 = vpop.f32.mrf.mxu0
  %v2038 = vadd.f32 %v289, %v2037
  %v2039 = vpop.f32.mrf.mxu0
  %v2040 = vadd.f32 %v289, %v2039
  %2041 = vmatmul.bf16.gmra.mxu0 %v324
  %v2042 = vpop.f32.mrf.mxu0
  %v2043 = vadd.f32 %v289, %v2042
  %v2044 = vpop.f32.mrf.mxu0
  %v2045 = vadd.f32 %v289, %v2044
  %2046 = vdwg.mxu0
  %2047 = vmatpush.bf16.msra.mxu0 %v1349
  %2048 = vmatpush.bf16.msra.mxu0 %v1333
  %2049 = vmatpush.bf16.msra.mxu0 %v1317
  %2050 = vmatpush.bf16.msra.mxu0 %v1301
  %2051 = vmatpush.bf16.msra.mxu0 %v1285
  %2052 = vmatpush.bf16.msra.mxu0 %v1269
  %2053 = vmatpush.bf16.msra.mxu0 %v1253
  %2054 = vmatpush.bf16.msra.mxu0 %v1237
  %2055 = vmatmul.bf16.gmra.mxu0 %v323
  %v2056 = vpop.f32.mrf.mxu0
  %v2057 = vadd.f32 %v2038, %v2056
  %v2058 = vpop.f32.mrf.mxu0
  %v2059 = vadd.f32 %v2040, %v2058
  %2060 = vmatmul.bf16.gmra.mxu0 %v325
  %v2061 = vpop.f32.mrf.mxu0
  %v2062 = vadd.f32 %v2043, %v2061
  %v2063 = vpop.f32.mrf.mxu0
  %v2064 = vadd.f32 %v2045, %v2063
  %2065 = vdwg.mxu0
  %2066 = vmatpush.bf16.msra.mxu0 %v1222
  %2067 = vmatpush.bf16.msra.mxu0 %v1206
  %2068 = vmatpush.bf16.msra.mxu0 %v1190
  %2069 = vmatpush.bf16.msra.mxu0 %v1174
  %2070 = vmatpush.bf16.msra.mxu0 %v1158
  %2071 = vmatpush.bf16.msra.mxu0 %v1142
  %2072 = vmatpush.bf16.msra.mxu0 %v1126
  %2073 = vmatpush.bf16.msra.mxu0 %v1110
  %2074 = vmatmul.bf16.gmra.mxu0 %v322
  %v2075 = vpop.f32.mrf.mxu0
  %v2076 = vadd.f32 %v290, %v2075
  %v2077 = vpop.f32.mrf.mxu0
  %v2078 = vadd.f32 %v290, %v2077
  %2079 = vmatmul.bf16.gmra.mxu0 %v324
  %v2080 = vpop.f32.mrf.mxu0
  %v2081 = vadd.f32 %v290, %v2080
  %v2082 = vpop.f32.mrf.mxu0
  %v2083 = vadd.f32 %v290, %v2082
  %2084 = vdwg.mxu0
  %2085 = vmatpush.bf16.msra.mxu0 %v1350
  %2086 = vmatpush.bf16.msra.mxu0 %v1334
  %2087 = vmatpush.bf16.msra.mxu0 %v1318
  %2088 = vmatpush.bf16.msra.mxu0 %v1302
  %2089 = vmatpush.bf16.msra.mxu0 %v1286
  %2090 = vmatpush.bf16.msra.mxu0 %v1270
  %2091 = vmatpush.bf16.msra.mxu0 %v1254
  %2092 = vmatpush.bf16.msra.mxu0 %v1238
  %2093 = vmatmul.bf16.gmra.mxu0 %v323
  %v2094 = vpop.f32.mrf.mxu0
  %v2095 = vadd.f32 %v2076, %v2094
  %v2096 = vpop.f32.mrf.mxu0
  %v2097 = vadd.f32 %v2078, %v2096
  %2098 = vmatmul.bf16.gmra.mxu0 %v325
  %v2099 = vpop.f32.mrf.mxu0
  %v2100 = vadd.f32 %v2081, %v2099
  %v2101 = vpop.f32.mrf.mxu0
  %v2102 = vadd.f32 %v2083, %v2101
  %2103 = vdwg.mxu0
  %2104 = vmatpush.bf16.msra.mxu0 %v1223
  %2105 = vmatpush.bf16.msra.mxu0 %v1207
  %2106 = vmatpush.bf16.msra.mxu0 %v1191
  %2107 = vmatpush.bf16.msra.mxu0 %v1175
  %2108 = vmatpush.bf16.msra.mxu0 %v1159
  %2109 = vmatpush.bf16.msra.mxu0 %v1143
  %2110 = vmatpush.bf16.msra.mxu0 %v1127
  %2111 = vmatpush.bf16.msra.mxu0 %v1111
  %2112 = vmatmul.bf16.gmra.mxu0 %v322
  %v2113 = vpop.f32.mrf.mxu0
  %v2114 = vadd.f32 %v291, %v2113
  %v2115 = vpop.f32.mrf.mxu0
  %v2116 = vadd.f32 %v291, %v2115
  %2117 = vmatmul.bf16.gmra.mxu0 %v324
  %v2118 = vpop.f32.mrf.mxu0
  %v2119 = vadd.f32 %v291, %v2118
  %v2120 = vpop.f32.mrf.mxu0
  %v2121 = vadd.f32 %v291, %v2120
  %2122 = vdwg.mxu0
  %2123 = vmatpush.bf16.msra.mxu0 %v1351
  %2124 = vmatpush.bf16.msra.mxu0 %v1335
  %2125 = vmatpush.bf16.msra.mxu0 %v1319
  %2126 = vmatpush.bf16.msra.mxu0 %v1303
  %2127 = vmatpush.bf16.msra.mxu0 %v1287
  %2128 = vmatpush.bf16.msra.mxu0 %v1271
  %2129 = vmatpush.bf16.msra.mxu0 %v1255
  %2130 = vmatpush.bf16.msra.mxu0 %v1239
  %2131 = vmatmul.bf16.gmra.mxu0 %v323
  %v2132 = vpop.f32.mrf.mxu0
  %v2133 = vadd.f32 %v2114, %v2132
  %v2134 = vpop.f32.mrf.mxu0
  %v2135 = vadd.f32 %v2116, %v2134
  %2136 = vmatmul.bf16.gmra.mxu0 %v325
  %v2137 = vpop.f32.mrf.mxu0
  %v2138 = vadd.f32 %v2119, %v2137
  %v2139 = vpop.f32.mrf.mxu0
  %v2140 = vadd.f32 %v2121, %v2139
  %2141 = vdwg.mxu0
  %2142 = vmatpush.bf16.msra.mxu0 %v1224
  %2143 = vmatpush.bf16.msra.mxu0 %v1208
  %2144 = vmatpush.bf16.msra.mxu0 %v1192
  %2145 = vmatpush.bf16.msra.mxu0 %v1176
  %2146 = vmatpush.bf16.msra.mxu0 %v1160
  %2147 = vmatpush.bf16.msra.mxu0 %v1144
  %2148 = vmatpush.bf16.msra.mxu0 %v1128
  %2149 = vmatpush.bf16.msra.mxu0 %v1112
  %2150 = vmatmul.bf16.gmra.mxu0 %v322
  %v2151 = vpop.f32.mrf.mxu0
  %v2152 = vadd.f32 %v292, %v2151
  %v2153 = vpop.f32.mrf.mxu0
  %v2154 = vadd.f32 %v292, %v2153
  %2155 = vmatmul.bf16.gmra.mxu0 %v324
  %v2156 = vpop.f32.mrf.mxu0
  %v2157 = vadd.f32 %v292, %v2156
  %v2158 = vpop.f32.mrf.mxu0
  %v2159 = vadd.f32 %v292, %v2158
  %2160 = vdwg.mxu0
  %2161 = vmatpush.bf16.msra.mxu0 %v1352
  %2162 = vmatpush.bf16.msra.mxu0 %v1336
  %2163 = vmatpush.bf16.msra.mxu0 %v1320
  %2164 = vmatpush.bf16.msra.mxu0 %v1304
  %2165 = vmatpush.bf16.msra.mxu0 %v1288
  %2166 = vmatpush.bf16.msra.mxu0 %v1272
  %2167 = vmatpush.bf16.msra.mxu0 %v1256
  %2168 = vmatpush.bf16.msra.mxu0 %v1240
  %2169 = vmatmul.bf16.gmra.mxu0 %v323
  %v2170 = vpop.f32.mrf.mxu0
  %v2171 = vadd.f32 %v2152, %v2170
  %v2172 = vpop.f32.mrf.mxu0
  %v2173 = vadd.f32 %v2154, %v2172
  %2174 = vmatmul.bf16.gmra.mxu0 %v325
  %v2175 = vpop.f32.mrf.mxu0
  %v2176 = vadd.f32 %v2157, %v2175
  %v2177 = vpop.f32.mrf.mxu0
  %v2178 = vadd.f32 %v2159, %v2177
  %2179 = vdwg.mxu0
  %2180 = vmatpush.bf16.msra.mxu0 %v1225
  %2181 = vmatpush.bf16.msra.mxu0 %v1209
  %2182 = vmatpush.bf16.msra.mxu0 %v1193
  %2183 = vmatpush.bf16.msra.mxu0 %v1177
  %2184 = vmatpush.bf16.msra.mxu0 %v1161
  %2185 = vmatpush.bf16.msra.mxu0 %v1145
  %2186 = vmatpush.bf16.msra.mxu0 %v1129
  %2187 = vmatpush.bf16.msra.mxu0 %v1113
  %2188 = vmatmul.bf16.gmra.mxu0 %v322
  %v2189 = vpop.f32.mrf.mxu0
  %v2190 = vadd.f32 %v293, %v2189
  %v2191 = vpop.f32.mrf.mxu0
  %v2192 = vadd.f32 %v293, %v2191
  %2193 = vmatmul.bf16.gmra.mxu0 %v324
  %v2194 = vpop.f32.mrf.mxu0
  %v2195 = vadd.f32 %v293, %v2194
  %v2196 = vpop.f32.mrf.mxu0
  %v2197 = vadd.f32 %v293, %v2196
  %2198 = vdwg.mxu0
  %2199 = vmatpush.bf16.msra.mxu0 %v1353
  %2200 = vmatpush.bf16.msra.mxu0 %v1337
  %2201 = vmatpush.bf16.msra.mxu0 %v1321
  %2202 = vmatpush.bf16.msra.mxu0 %v1305
  %2203 = vmatpush.bf16.msra.mxu0 %v1289
  %2204 = vmatpush.bf16.msra.mxu0 %v1273
  %2205 = vmatpush.bf16.msra.mxu0 %v1257
  %2206 = vmatpush.bf16.msra.mxu0 %v1241
  %2207 = vmatmul.bf16.gmra.mxu0 %v323
  %v2208 = vpop.f32.mrf.mxu0
  %v2209 = vadd.f32 %v2190, %v2208
  %v2210 = vpop.f32.mrf.mxu0
  %v2211 = vadd.f32 %v2192, %v2210
  %2212 = vmatmul.bf16.gmra.mxu0 %v325
  %v2213 = vpop.f32.mrf.mxu0
  %v2214 = vadd.f32 %v2195, %v2213
  %v2215 = vpop.f32.mrf.mxu0
  %v2216 = vadd.f32 %v2197, %v2215
  %2217 = vdwg.mxu0
  %v2218 = vmax.f32 %v1639, 0.0
  %v2219 = vmax.f32 %v1677, 0.0
  %v2220 = vmax.f32 %v1715, 0.0
  %v2221 = vmax.f32 %v1753, 0.0
  %v2222 = vmax.f32 %v1791, 0.0
  %v2223 = vmax.f32 %v1829, 0.0
  %v2224 = vmax.f32 %v1867, 0.0
  %v2225 = vmax.f32 %v1905, 0.0
  %v2226 = vmax.f32 %v1943, 0.0
  %v2227 = vmax.f32 %v1981, 0.0
  %v2228 = vmax.f32 %v2019, 0.0
  %v2229 = vmax.f32 %v2057, 0.0
  %v2230 = vmax.f32 %v2095, 0.0
  %v2231 = vmax.f32 %v2133, 0.0
  %v2232 = vmax.f32 %v2171, 0.0
  %v2233 = vmax.f32 %v2209, 0.0
  %v2234 = vmax.f32 %v1641, 0.0
  %v2235 = vmax.f32 %v1679, 0.0
  %v2236 = vmax.f32 %v1717, 0.0
  %v2237 = vmax.f32 %v1755, 0.0
  %v2238 = vmax.f32 %v1793, 0.0
  %v2239 = vmax.f32 %v1831, 0.0
  %v2240 = vmax.f32 %v1869, 0.0
  %v2241 = vmax.f32 %v1907, 0.0
  %v2242 = vmax.f32 %v1945, 0.0
  %v2243 = vmax.f32 %v1983, 0.0
  %v2244 = vmax.f32 %v2021, 0.0
  %v2245 = vmax.f32 %v2059, 0.0
  %v2246 = vmax.f32 %v2097, 0.0
  %v2247 = vmax.f32 %v2135, 0.0
  %v2248 = vmax.f32 %v2173, 0.0
  %v2249 = vmax.f32 %v2211, 0.0
  %v2250 = vmax.f32 %v1644, 0.0
  %v2251 = vmax.f32 %v1682, 0.0
  %v2252 = vmax.f32 %v1720, 0.0
  %v2253 = vmax.f32 %v1758, 0.0
  %v2254 = vmax.f32 %v1796, 0.0
  %v2255 = vmax.f32 %v1834, 0.0
  %v2256 = vmax.f32 %v1872, 0.0
  %v2257 = vmax.f32 %v1910, 0.0
  %v2258 = vmax.f32 %v1948, 0.0
  %v2259 = vmax.f32 %v1986, 0.0
  %v2260 = vmax.f32 %v2024, 0.0
  %v2261 = vmax.f32 %v2062, 0.0
  %v2262 = vmax.f32 %v2100, 0.0
  %v2263 = vmax.f32 %v2138, 0.0
  %v2264 = vmax.f32 %v2176, 0.0
  %v2265 = vmax.f32 %v2214, 0.0
  %v2266 = vmax.f32 %v1646, 0.0
  %v2267 = vmax.f32 %v1684, 0.0
  %v2268 = vmax.f32 %v1722, 0.0
  %v2269 = vmax.f32 %v1760, 0.0
  %v2270 = vmax.f32 %v1798, 0.0
  %v2271 = vmax.f32 %v1836, 0.0
  %v2272 = vmax.f32 %v1874, 0.0
  %v2273 = vmax.f32 %v1912, 0.0
  %v2274 = vmax.f32 %v1950, 0.0
  %v2275 = vmax.f32 %v1988, 0.0
  %v2276 = vmax.f32 %v2026, 0.0
  %v2277 = vmax.f32 %v2064, 0.0
  %v2278 = vmax.f32 %v2102, 0.0
  %v2279 = vmax.f32 %v2140, 0.0
  %v2280 = vmax.f32 %v2178, 0.0
  %v2281 = vmax.f32 %v2216, 0.0
  %v2282 = vpack.c.bf16 %v2219, %v2218
  %v2283 = vpack.c.bf16 %v2221, %v2220
  %v2284 = vpack.c.bf16 %v2223, %v2222
  %v2285 = vpack.c.bf16 %v2225, %v2224
  %v2286 = vpack.c.bf16 %v2227, %v2226
  %v2287 = vpack.c.bf16 %v2229, %v2228
  %v2288 = vpack.c.bf16 %v2231, %v2230
  %v2289 = vpack.c.bf16 %v2233, %v2232
  %v2290 = vpack.c.bf16 %v2235, %v2234
  %v2291 = vpack.c.bf16 %v2237, %v2236
  %v2292 = vpack.c.bf16 %v2239, %v2238
  %v2293 = vpack.c.bf16 %v2241, %v2240
  %v2294 = vpack.c.bf16 %v2243, %v2242
  %v2295 = vpack.c.bf16 %v2245, %v2244
  %v2296 = vpack.c.bf16 %v2247, %v2246
  %v2297 = vpack.c.bf16 %v2249, %v2248
  %v2298 = vpack.c.bf16 %v2251, %v2250
  %v2299 = vpack.c.bf16 %v2253, %v2252
  %v2300 = vpack.c.bf16 %v2255, %v2254
  %v2301 = vpack.c.bf16 %v2257, %v2256
  %v2302 = vpack.c.bf16 %v2259, %v2258
  %v2303 = vpack.c.bf16 %v2261, %v2260
  %v2304 = vpack.c.bf16 %v2263, %v2262
  %v2305 = vpack.c.bf16 %v2265, %v2264
  %v2306 = vpack.c.bf16 %v2267, %v2266
  %v2307 = vpack.c.bf16 %v2269, %v2268
  %v2308 = vpack.c.bf16 %v2271, %v2270
  %v2309 = vpack.c.bf16 %v2273, %v2272
  %v2310 = vpack.c.bf16 %v2275, %v2274
  %v2311 = vpack.c.bf16 %v2277, %v2276
  %v2312 = vpack.c.bf16 %v2279, %v2278
  %v2313 = vpack.c.bf16 %v2281, %v2280
  %2314 = vst [vmem:[%s3] sm:$0xff] %v2282
  %2315 = vst [vmem:[%s3 + $0x8] sm:$0xff] %v2283
  %2316 = vst [vmem:[%s3 + $0x10] sm:$0xff] %v2284
  %2317 = vst [vmem:[%s3 + $0x18] sm:$0xff] %v2285
  %2318 = vst [vmem:[%s3 + $0x20] sm:$0xff] %v2286
  %2319 = vst [vmem:[%s3 + $0x28] sm:$0xff] %v2287
  %2320 = vst [vmem:[%s3 + $0x30] sm:$0xff] %v2288
  %2321 = vst [vmem:[%s3 + $0x38] sm:$0xff] %v2289
  %2322 = vst [vmem:[%s3 + $0x40] sm:$0xff] %v2290
  %2323 = vst [vmem:[%s3 + $0x48] sm:$0xff] %v2291
  %2324 = vst [vmem:[%s3 + $0x50] sm:$0xff] %v2292
  %2325 = vst [vmem:[%s3 + $0x58] sm:$0xff] %v2293
  %2326 = vst [vmem:[%s3 + $0x60] sm:$0xff] %v2294
  %2327 = vst [vmem:[%s3 + $0x68] sm:$0xff] %v2295
  %2328 = vst [vmem:[%s3 + $0x70] sm:$0xff] %v2296
  %2329 = vst [vmem:[%s3 + $0x78] sm:$0xff] %v2297
  %2330 = vst [vmem:[%s3 + $0x80] sm:$0xff] %v2298
  %2331 = vst [vmem:[%s3 + $0x88] sm:$0xff] %v2299
  %2332 = vst [vmem:[%s3 + $0x90] sm:$0xff] %v2300
  %2333 = vst [vmem:[%s3 + $0x98] sm:$0xff] %v2301
  %2334 = vst [vmem:[%s3 + $0xa0] sm:$0xff] %v2302
  %2335 = vst [vmem:[%s3 + $0xa8] sm:$0xff] %v2303
  %2336 = vst [vmem:[%s3 + $0xb0] sm:$0xff] %v2304
  %2337 = vst [vmem:[%s3 + $0xb8] sm:$0xff] %v2305
  %2338 = vst [vmem:[%s3 + $0xc0] sm:$0xff] %v2306
  %2339 = vst [vmem:[%s3 + $0xc8] sm:$0xff] %v2307
  %2340 = vst [vmem:[%s3 + $0xd0] sm:$0xff] %v2308
  %2341 = vst [vmem:[%s3 + $0xd8] sm:$0xff] %v2309
  %2342 = vst [vmem:[%s3 + $0xe0] sm:$0xff] %v2310
  %2343 = vst [vmem:[%s3 + $0xe8] sm:$0xff] %v2311
  %2344 = vst [vmem:[%s3 + $0xf0] sm:$0xff] %v2312
  %2345 = vst [vmem:[%s3 + $0xf8] sm:$0xff] %v2313
  // Predicated region
  $region14: #{effnet_wlf_forward.2} parent=0 // pred_check
    _
  $region15: #{effnet_wlf_forward.2} parent=0 // pred_check_branch
    %2347 = sbr.rel (0) target = $region17
  $region16: #{effnet_wlf_forward.2} parent=0 // pred_region
    _
  $region17: #{effnet_wlf_forward.2} parent=0 // pred_fallthru
    _
  // Predicated region
  $region18: #{effnet_wlf_forward.2} parent=0 // pred_check
    _
  $region19: #{effnet_wlf_forward.2} parent=0 // pred_check_branch
    %2349 = sbr.rel (0) target = $region21
  $region20: #{effnet_wlf_forward.2} parent=0 // pred_region
    _
  $region21: #{effnet_wlf_forward.2} parent=0 // pred_fallthru
    _

// kernel: effnet_wlf_forward.3
$region0: #{effnet_wlf_forward.3}
  #allocation0 [shape = 'u32[]', space=smem, size = 0x4, offset = 0x4, fixed_abs, tag = 'smem constant byte address 0x4 - core index']
  #allocation1 [shape = 'u32[72,128]{1,0:T(1,128)}', space=vmem, size = 0x9000, scoped, tag = 'internal scratch']
  #allocation2 [shape = 'f32[1]{0:T(128)S(6)}', space=smem, size = 0x200, scoped, tag = 'scoped memory for effnet_wlf_forward.3']
  %s0 = inlined_call_operand.vmem [shape: bf16[2,16,2048], index: 0, kind: input, shape index: {}]
  %s1 = inlined_call_operand.vmem [shape: bf16[2048,128], index: 1, kind: input, shape index: {}]
  %s2 = inlined_call_operand.vmem [shape: f32[1,128], index: 2, kind: input, shape index: {}]
  %s3 = inlined_call_operand.vmem [shape: bf16[128,2048], index: 3, kind: input, shape index: {}]
  %s4 = inlined_call_operand.vmem [shape: f32[1,2048], index: 4, kind: input, shape index: {}]
  %s5 = inlined_call_operand.vmem [shape: bf16[256,128], index: 5, kind: input, shape index: {}]
  %s6 = inlined_call_operand.<no memory space> [shape: f32[1], index: 6, kind: input, shape index: {}]
  %s7 = inlined_call_operand.vmem [shape: bf16[2048,128], index: 7, kind: input, shape index: {}]
  %s8 = inlined_call_operand.vmem [shape: f32[1,128], index: 8, kind: input, shape index: {}]
  %s9 = inlined_call_operand.hbm [shape: f32[2,128], index: 9, kind: output, shape index: {}]
  %s10 = sld [smem:[#allocation0]]
  $region46: #{effnet_wlf_forward.3} parent=0
    _
  %s12 = ssub.s32 1, %s10
  %s13 = scalar_select 0, %s12, %s10
  %14 = sst [smem:[#allocation2]] %s6
  $region1: #{effnet_wlf_forward.3} parent=0
    #allocation3 [shape = 'u8[1024]{0}', space=vmem, size = 0x400, scoped, tag = 'output window, operand 0, single buffered']
    #allocation4 [shape = 's32[1]{0}', space=sflag, size = 0x4, scoped, tag = 'scoped memory for effnet_wlf_forward.3']
    %15 = vsyncpa [#allocation4], 0
    // Predicated region
    $region2: #{effnet_wlf_forward.3} parent=1 // pred_check
      _
    $region3: #{effnet_wlf_forward.3} parent=1 // pred_check_branch
      %17 = sbr.rel (0) target = $region5
    $region4: #{effnet_wlf_forward.3} parent=1 // pred_region
      _
    $region5: #{effnet_wlf_forward.3} parent=1 // pred_fallthru
      _
    // Predicated region
    $region6: #{effnet_wlf_forward.3} parent=1 // pred_check
      _
    $region7: #{effnet_wlf_forward.3} parent=1 // pred_check_branch
      %19 = sbr.rel (0) target = $region9
    $region8: #{effnet_wlf_forward.3} parent=1 // pred_region
      _
    $region9: #{effnet_wlf_forward.3} parent=1 // pred_fallthru
      _
    // Predicated region
    $region10: #{effnet_wlf_forward.3} parent=1 // pred_check
      _
    $region11: #{effnet_wlf_forward.3} parent=1 // pred_check_branch
      %21 = sbr.rel (0) target = $region13
    $region12: #{effnet_wlf_forward.3} parent=1 // pred_region
      _
    $region13: #{effnet_wlf_forward.3} parent=1 // pred_fallthru
      _
    // Predicated region
    $region14: #{effnet_wlf_forward.3} parent=1 // pred_check
      _
    $region15: #{effnet_wlf_forward.3} parent=1 // pred_check_branch
      %23 = sbr.rel (0) target = $region17
    $region16: #{effnet_wlf_forward.3} parent=1 // pred_region
      _
    $region17: #{effnet_wlf_forward.3} parent=1 // pred_fallthru
      _
    // Predicated region
    $region18: #{effnet_wlf_forward.3} parent=1 // pred_check
      _
    $region19: #{effnet_wlf_forward.3} parent=1 // pred_check_branch
      %25 = sbr.rel (0) target = $region21
    $region20: #{effnet_wlf_forward.3} parent=1 // pred_region
      _
    $region21: #{effnet_wlf_forward.3} parent=1 // pred_fallthru
      _
    // Predicated region
    $region22: #{effnet_wlf_forward.3} parent=1 // pred_check
      _
    $region23: #{effnet_wlf_forward.3} parent=1 // pred_check_branch
      %27 = sbr.rel (0) target = $region25
    $region24: #{effnet_wlf_forward.3} parent=1 // pred_region
      _
    $region25: #{effnet_wlf_forward.3} parent=1 // pred_fallthru
      _
    // Predicated region
    $region26: #{effnet_wlf_forward.3} parent=1 // pred_check
      _
    $region27: #{effnet_wlf_forward.3} parent=1 // pred_check_branch
      %29 = sbr.rel (0) target = $region29
    $region28: #{effnet_wlf_forward.3} parent=1 // pred_region
      _
    $region29: #{effnet_wlf_forward.3} parent=1 // pred_fallthru
      _
    // Predicated region
    $region30: #{effnet_wlf_forward.3} parent=1 // pred_check
      _
    $region31: #{effnet_wlf_forward.3} parent=1 // pred_check_branch
      %31 = sbr.rel (0) target = $region33
    $region32: #{effnet_wlf_forward.3} parent=1 // pred_region
      _
    $region33: #{effnet_wlf_forward.3} parent=1 // pred_fallthru
      _
    // Predicated region
    $region34: #{effnet_wlf_forward.3} parent=1 // pred_check
      _
    $region35: #{effnet_wlf_forward.3} parent=1 // pred_check_branch
      %33 = sbr.rel (0) target = $region37
    $region36: #{effnet_wlf_forward.3} parent=1 // pred_region
      _
    $region37: #{effnet_wlf_forward.3} parent=1 // pred_fallthru
      _
    %v36 = vld [vmem:[%s0] sm:$0xff]
    %v37 = vld [vmem:[%s0 + $0x8] sm:$0xff]
    %v38 = vld [vmem:[%s0 + $0x10] sm:$0xff]
    %v39 = vld [vmem:[%s0 + $0x18] sm:$0xff]
    %v40 = vld [vmem:[%s0 + $0x20] sm:$0xff]
    %v41 = vld [vmem:[%s0 + $0x28] sm:$0xff]
    %v42 = vld [vmem:[%s0 + $0x30] sm:$0xff]
    %v43 = vld [vmem:[%s0 + $0x38] sm:$0xff]
    %v44 = vld [vmem:[%s0 + $0x40] sm:$0xff]
    %v45 = vld [vmem:[%s0 + $0x48] sm:$0xff]
    %v46 = vld [vmem:[%s0 + $0x50] sm:$0xff]
    %v47 = vld [vmem:[%s0 + $0x58] sm:$0xff]
    %v48 = vld [vmem:[%s0 + $0x60] sm:$0xff]
    %v49 = vld [vmem:[%s0 + $0x68] sm:$0xff]
    %v50 = vld [vmem:[%s0 + $0x70] sm:$0xff]
    %v51 = vld [vmem:[%s0 + $0x78] sm:$0xff]
    %v52 = vld [vmem:[%s0 + $0x80] sm:$0xff]
    %v53 = vld [vmem:[%s0 + $0x88] sm:$0xff]
    %v54 = vld [vmem:[%s0 + $0x90] sm:$0xff]
    %v55 = vld [vmem:[%s0 + $0x98] sm:$0xff]
    %v56 = vld [vmem:[%s0 + $0xa0] sm:$0xff]
    %v57 = vld [vmem:[%s0 + $0xa8] sm:$0xff]
    %v58 = vld [vmem:[%s0 + $0xb0] sm:$0xff]
    %v59 = vld [vmem:[%s0 + $0xb8] sm:$0xff]
    %v60 = vld [vmem:[%s0 + $0xc0] sm:$0xff]
    %v61 = vld [vmem:[%s0 + $0xc8] sm:$0xff]
    %v62 = vld [vmem:[%s0 + $0xd0] sm:$0xff]
    %v63 = vld [vmem:[%s0 + $0xd8] sm:$0xff]
    %v64 = vld [vmem:[%s0 + $0xe0] sm:$0xff]
    %v65 = vld [vmem:[%s0 + $0xe8] sm:$0xff]
    %v66 = vld [vmem:[%s0 + $0xf0] sm:$0xff]
    %v67 = vld [vmem:[%s0 + $0xf8] sm:$0xff]
    %v84 = vunpack.c.l.b16 %v36
    %v85 = vunpack.c.h.b16 %v36
    %v86 = vunpack.c.l.b16 %v37
    %v87 = vunpack.c.h.b16 %v37
    %v88 = vunpack.c.l.b16 %v38
    %v89 = vunpack.c.h.b16 %v38
    %v90 = vunpack.c.l.b16 %v39
    %v91 = vunpack.c.h.b16 %v39
    %v92 = vunpack.c.l.b16 %v40
    %v93 = vunpack.c.h.b16 %v40
    %v94 = vunpack.c.l.b16 %v41
    %v95 = vunpack.c.h.b16 %v41
    %v96 = vunpack.c.l.b16 %v42
    %v97 = vunpack.c.h.b16 %v42
    %v98 = vunpack.c.l.b16 %v43
    %v99 = vunpack.c.h.b16 %v43
    %v100 = vunpack.c.l.b16 %v44
    %v101 = vunpack.c.h.b16 %v44
    %v102 = vunpack.c.l.b16 %v45
    %v103 = vunpack.c.h.b16 %v45
    %v104 = vunpack.c.l.b16 %v46
    %v105 = vunpack.c.h.b16 %v46
    %v106 = vunpack.c.l.b16 %v47
    %v107 = vunpack.c.h.b16 %v47
    %v108 = vunpack.c.l.b16 %v48
    %v109 = vunpack.c.h.b16 %v48
    %v110 = vunpack.c.l.b16 %v49
    %v111 = vunpack.c.h.b16 %v49
    %v112 = vunpack.c.l.b16 %v50
    %v113 = vunpack.c.h.b16 %v50
    %v114 = vunpack.c.l.b16 %v51
    %v115 = vunpack.c.h.b16 %v51
    %v116 = vpack.c.b16 %v100, %v84
    %v117 = vpack.c.b16 %v101, %v85
    %v118 = vpack.c.b16 %v102, %v86
    %v119 = vpack.c.b16 %v103, %v87
    %v120 = vpack.c.b16 %v104, %v88
    %v121 = vpack.c.b16 %v105, %v89
    %v122 = vpack.c.b16 %v106, %v90
    %v123 = vpack.c.b16 %v107, %v91
    %v124 = vpack.c.b16 %v108, %v92
    %v125 = vpack.c.b16 %v109, %v93
    %v126 = vpack.c.b16 %v110, %v94
    %v127 = vpack.c.b16 %v111, %v95
    %v128 = vpack.c.b16 %v112, %v96
    %v129 = vpack.c.b16 %v113, %v97
    %v130 = vpack.c.b16 %v114, %v98
    %v131 = vpack.c.b16 %v115, %v99
    %vm148 = vcmask 130048
    %v150 = vsel %vm148, 1065369472, 0
    %152 = vmatpush.bf16.msra.mxu0 0
    %153 = vmatpush.bf16.msra.mxu0 0
    %154 = vmatpush.bf16.msra.mxu0 0
    %155 = vmatpush.bf16.msra.mxu0 0
    %156 = vmatpush.bf16.msra.mxu0 0
    %157 = vmatpush.bf16.msra.mxu0 0
    %158 = vmatpush.bf16.msra.mxu0 0
    %159 = vmatpush.bf16.msra.mxu0 %v116
    %160 = vmatmul.bf16.gmra.mxu0 %v150
    %v161 = vpop.f32.mrf.mxu0
    %v162 = vadd.f32 0.0, %v161
    %v163 = vpop.f32.mrf.mxu0
    %164 = vdwg.mxu0
    %165 = vmatpush.bf16.msra.mxu0 0
    %166 = vmatpush.bf16.msra.mxu0 0
    %167 = vmatpush.bf16.msra.mxu0 0
    %168 = vmatpush.bf16.msra.mxu0 0
    %169 = vmatpush.bf16.msra.mxu0 0
    %170 = vmatpush.bf16.msra.mxu0 0
    %171 = vmatpush.bf16.msra.mxu0 0
    %172 = vmatpush.bf16.msra.mxu0 %v117
    %173 = vmatmul.bf16.gmra.mxu0 %v150
    %v174 = vpop.f32.mrf.mxu0
    %v175 = vadd.f32 0.0, %v174
    %v176 = vpop.f32.mrf.mxu0
    %177 = vdwg.mxu0
    %178 = vmatpush.bf16.msra.mxu0 0
    %179 = vmatpush.bf16.msra.mxu0 0
    %180 = vmatpush.bf16.msra.mxu0 0
    %181 = vmatpush.bf16.msra.mxu0 0
    %182 = vmatpush.bf16.msra.mxu0 0
    %183 = vmatpush.bf16.msra.mxu0 0
    %184 = vmatpush.bf16.msra.mxu0 0
    %185 = vmatpush.bf16.msra.mxu0 %v118
    %186 = vmatmul.bf16.gmra.mxu0 %v150
    %v187 = vpop.f32.mrf.mxu0
    %v188 = vadd.f32 0.0, %v187
    %v189 = vpop.f32.mrf.mxu0
    %190 = vdwg.mxu0
    %191 = vmatpush.bf16.msra.mxu0 0
    %192 = vmatpush.bf16.msra.mxu0 0
    %193 = vmatpush.bf16.msra.mxu0 0
    %194 = vmatpush.bf16.msra.mxu0 0
    %195 = vmatpush.bf16.msra.mxu0 0
    %196 = vmatpush.bf16.msra.mxu0 0
    %197 = vmatpush.bf16.msra.mxu0 0
    %198 = vmatpush.bf16.msra.mxu0 %v119
    %199 = vmatmul.bf16.gmra.mxu0 %v150
    %v200 = vpop.f32.mrf.mxu0
    %v201 = vadd.f32 0.0, %v200
    %v202 = vpop.f32.mrf.mxu0
    %203 = vdwg.mxu0
    %204 = vmatpush.bf16.msra.mxu0 0
    %205 = vmatpush.bf16.msra.mxu0 0
    %206 = vmatpush.bf16.msra.mxu0 0
    %207 = vmatpush.bf16.msra.mxu0 0
    %208 = vmatpush.bf16.msra.mxu0 0
    %209 = vmatpush.bf16.msra.mxu0 0
    %210 = vmatpush.bf16.msra.mxu0 0
    %211 = vmatpush.bf16.msra.mxu0 %v120
    %212 = vmatmul.bf16.gmra.mxu0 %v150
    %v213 = vpop.f32.mrf.mxu0
    %v214 = vadd.f32 0.0, %v213
    %v215 = vpop.f32.mrf.mxu0
    %216 = vdwg.mxu0
    %217 = vmatpush.bf16.msra.mxu0 0
    %218 = vmatpush.bf16.msra.mxu0 0
    %219 = vmatpush.bf16.msra.mxu0 0
    %220 = vmatpush.bf16.msra.mxu0 0
    %221 = vmatpush.bf16.msra.mxu0 0
    %222 = vmatpush.bf16.msra.mxu0 0
    %223 = vmatpush.bf16.msra.mxu0 0
    %224 = vmatpush.bf16.msra.mxu0 %v121
    %225 = vmatmul.bf16.gmra.mxu0 %v150
    %v226 = vpop.f32.mrf.mxu0
    %v227 = vadd.f32 0.0, %v226
    %v228 = vpop.f32.mrf.mxu0
    %229 = vdwg.mxu0
    %230 = vmatpush.bf16.msra.mxu0 0
    %231 = vmatpush.bf16.msra.mxu0 0
    %232 = vmatpush.bf16.msra.mxu0 0
    %233 = vmatpush.bf16.msra.mxu0 0
    %234 = vmatpush.bf16.msra.mxu0 0
    %235 = vmatpush.bf16.msra.mxu0 0
    %236 = vmatpush.bf16.msra.mxu0 0
    %237 = vmatpush.bf16.msra.mxu0 %v122
    %238 = vmatmul.bf16.gmra.mxu0 %v150
    %v239 = vpop.f32.mrf.mxu0
    %v240 = vadd.f32 0.0, %v239
    %v241 = vpop.f32.mrf.mxu0
    %242 = vdwg.mxu0
    %243 = vmatpush.bf16.msra.mxu0 0
    %244 = vmatpush.bf16.msra.mxu0 0
    %245 = vmatpush.bf16.msra.mxu0 0
    %246 = vmatpush.bf16.msra.mxu0 0
    %247 = vmatpush.bf16.msra.mxu0 0
    %248 = vmatpush.bf16.msra.mxu0 0
    %249 = vmatpush.bf16.msra.mxu0 0
    %250 = vmatpush.bf16.msra.mxu0 %v123
    %251 = vmatmul.bf16.gmra.mxu0 %v150
    %v252 = vpop.f32.mrf.mxu0
    %v253 = vadd.f32 0.0, %v252
    %v254 = vpop.f32.mrf.mxu0
    %255 = vdwg.mxu0
    %256 = vmatpush.bf16.msra.mxu0 0
    %257 = vmatpush.bf16.msra.mxu0 0
    %258 = vmatpush.bf16.msra.mxu0 0
    %259 = vmatpush.bf16.msra.mxu0 0
    %260 = vmatpush.bf16.msra.mxu0 0
    %261 = vmatpush.bf16.msra.mxu0 0
    %262 = vmatpush.bf16.msra.mxu0 0
    %263 = vmatpush.bf16.msra.mxu0 %v124
    %264 = vmatmul.bf16.gmra.mxu0 %v150
    %v265 = vpop.f32.mrf.mxu0
    %v266 = vadd.f32 0.0, %v265
    %v267 = vpop.f32.mrf.mxu0
    %268 = vdwg.mxu0
    %269 = vmatpush.bf16.msra.mxu0 0
    %270 = vmatpush.bf16.msra.mxu0 0
    %271 = vmatpush.bf16.msra.mxu0 0
    %272 = vmatpush.bf16.msra.mxu0 0
    %273 = vmatpush.bf16.msra.mxu0 0
    %274 = vmatpush.bf16.msra.mxu0 0
    %275 = vmatpush.bf16.msra.mxu0 0
    %276 = vmatpush.bf16.msra.mxu0 %v125
    %277 = vmatmul.bf16.gmra.mxu0 %v150
    %v278 = vpop.f32.mrf.mxu0
    %v279 = vadd.f32 0.0, %v278
    %v280 = vpop.f32.mrf.mxu0
    %281 = vdwg.mxu0
    %282 = vmatpush.bf16.msra.mxu0 0
    %283 = vmatpush.bf16.msra.mxu0 0
    %284 = vmatpush.bf16.msra.mxu0 0
    %285 = vmatpush.bf16.msra.mxu0 0
    %286 = vmatpush.bf16.msra.mxu0 0
    %287 = vmatpush.bf16.msra.mxu0 0
    %288 = vmatpush.bf16.msra.mxu0 0
    %289 = vmatpush.bf16.msra.mxu0 %v126
    %290 = vmatmul.bf16.gmra.mxu0 %v150
    %v291 = vpop.f32.mrf.mxu0
    %v292 = vadd.f32 0.0, %v291
    %v293 = vpop.f32.mrf.mxu0
    %294 = vdwg.mxu0
    %295 = vmatpush.bf16.msra.mxu0 0
    %296 = vmatpush.bf16.msra.mxu0 0
    %297 = vmatpush.bf16.msra.mxu0 0
    %298 = vmatpush.bf16.msra.mxu0 0
    %299 = vmatpush.bf16.msra.mxu0 0
    %300 = vmatpush.bf16.msra.mxu0 0
    %301 = vmatpush.bf16.msra.mxu0 0
    %302 = vmatpush.bf16.msra.mxu0 %v127
    %303 = vmatmul.bf16.gmra.mxu0 %v150
    %v304 = vpop.f32.mrf.mxu0
    %v305 = vadd.f32 0.0, %v304
    %v306 = vpop.f32.mrf.mxu0
    %307 = vdwg.mxu0
    %308 = vmatpush.bf16.msra.mxu0 0
    %309 = vmatpush.bf16.msra.mxu0 0
    %310 = vmatpush.bf16.msra.mxu0 0
    %311 = vmatpush.bf16.msra.mxu0 0
    %312 = vmatpush.bf16.msra.mxu0 0
    %313 = vmatpush.bf16.msra.mxu0 0
    %314 = vmatpush.bf16.msra.mxu0 0
    %315 = vmatpush.bf16.msra.mxu0 %v128
    %316 = vmatmul.bf16.gmra.mxu0 %v150
    %v317 = vpop.f32.mrf.mxu0
    %v318 = vadd.f32 0.0, %v317
    %v319 = vpop.f32.mrf.mxu0
    %320 = vdwg.mxu0
    %321 = vmatpush.bf16.msra.mxu0 0
    %322 = vmatpush.bf16.msra.mxu0 0
    %323 = vmatpush.bf16.msra.mxu0 0
    %324 = vmatpush.bf16.msra.mxu0 0
    %325 = vmatpush.bf16.msra.mxu0 0
    %326 = vmatpush.bf16.msra.mxu0 0
    %327 = vmatpush.bf16.msra.mxu0 0
    %328 = vmatpush.bf16.msra.mxu0 %v129
    %329 = vmatmul.bf16.gmra.mxu0 %v150
    %v330 = vpop.f32.mrf.mxu0
    %v331 = vadd.f32 0.0, %v330
    %v332 = vpop.f32.mrf.mxu0
    %333 = vdwg.mxu0
    %334 = vmatpush.bf16.msra.mxu0 0
    %335 = vmatpush.bf16.msra.mxu0 0
    %336 = vmatpush.bf16.msra.mxu0 0
    %337 = vmatpush.bf16.msra.mxu0 0
    %338 = vmatpush.bf16.msra.mxu0 0
    %339 = vmatpush.bf16.msra.mxu0 0
    %340 = vmatpush.bf16.msra.mxu0 0
    %341 = vmatpush.bf16.msra.mxu0 %v130
    %342 = vmatmul.bf16.gmra.mxu0 %v150
    %v343 = vpop.f32.mrf.mxu0
    %v344 = vadd.f32 0.0, %v343
    %v345 = vpop.f32.mrf.mxu0
    %346 = vdwg.mxu0
    %347 = vmatpush.bf16.msra.mxu0 0
    %348 = vmatpush.bf16.msra.mxu0 0
    %349 = vmatpush.bf16.msra.mxu0 0
    %350 = vmatpush.bf16.msra.mxu0 0
    %351 = vmatpush.bf16.msra.mxu0 0
    %352 = vmatpush.bf16.msra.mxu0 0
    %353 = vmatpush.bf16.msra.mxu0 0
    %354 = vmatpush.bf16.msra.mxu0 %v131
    %355 = vmatmul.bf16.gmra.mxu0 %v150
    %v356 = vpop.f32.mrf.mxu0
    %v357 = vadd.f32 0.0, %v356
    %v358 = vpop.f32.mrf.mxu0
    %359 = vdwg.mxu0
    %v376 = vunpack.c.l.b16 %v52
    %v377 = vunpack.c.h.b16 %v52
    %v378 = vunpack.c.l.b16 %v53
    %v379 = vunpack.c.h.b16 %v53
    %v380 = vunpack.c.l.b16 %v54
    %v381 = vunpack.c.h.b16 %v54
    %v382 = vunpack.c.l.b16 %v55
    %v383 = vunpack.c.h.b16 %v55
    %v384 = vunpack.c.l.b16 %v56
    %v385 = vunpack.c.h.b16 %v56
    %v386 = vunpack.c.l.b16 %v57
    %v387 = vunpack.c.h.b16 %v57
    %v388 = vunpack.c.l.b16 %v58
    %v389 = vunpack.c.h.b16 %v58
    %v390 = vunpack.c.l.b16 %v59
    %v391 = vunpack.c.h.b16 %v59
    %v392 = vunpack.c.l.b16 %v60
    %v393 = vunpack.c.h.b16 %v60
    %v394 = vunpack.c.l.b16 %v61
    %v395 = vunpack.c.h.b16 %v61
    %v396 = vunpack.c.l.b16 %v62
    %v397 = vunpack.c.h.b16 %v62
    %v398 = vunpack.c.l.b16 %v63
    %v399 = vunpack.c.h.b16 %v63
    %v400 = vunpack.c.l.b16 %v64
    %v401 = vunpack.c.h.b16 %v64
    %v402 = vunpack.c.l.b16 %v65
    %v403 = vunpack.c.h.b16 %v65
    %v404 = vunpack.c.l.b16 %v66
    %v405 = vunpack.c.h.b16 %v66
    %v406 = vunpack.c.l.b16 %v67
    %v407 = vunpack.c.h.b16 %v67
    %v408 = vpack.c.b16 %v392, %v376
    %v409 = vpack.c.b16 %v393, %v377
    %v410 = vpack.c.b16 %v394, %v378
    %v411 = vpack.c.b16 %v395, %v379
    %v412 = vpack.c.b16 %v396, %v380
    %v413 = vpack.c.b16 %v397, %v381
    %v414 = vpack.c.b16 %v398, %v382
    %v415 = vpack.c.b16 %v399, %v383
    %v416 = vpack.c.b16 %v400, %v384
    %v417 = vpack.c.b16 %v401, %v385
    %v418 = vpack.c.b16 %v402, %v386
    %v419 = vpack.c.b16 %v403, %v387
    %v420 = vpack.c.b16 %v404, %v388
    %v421 = vpack.c.b16 %v405, %v389
    %v422 = vpack.c.b16 %v406, %v390
    %v423 = vpack.c.b16 %v407, %v391
    %440 = vmatpush.bf16.msra.mxu0 0
    %441 = vmatpush.bf16.msra.mxu0 0
    %442 = vmatpush.bf16.msra.mxu0 0
    %443 = vmatpush.bf16.msra.mxu0 0
    %444 = vmatpush.bf16.msra.mxu0 0
    %445 = vmatpush.bf16.msra.mxu0 0
    %446 = vmatpush.bf16.msra.mxu0 0
    %447 = vmatpush.bf16.msra.mxu0 %v408
    %448 = vmatmul.bf16.gmra.mxu0 %v150
    %v449 = vpop.f32.mrf.mxu0
    %v450 = vadd.f32 0.0, %v449
    %v451 = vpop.f32.mrf.mxu0
    %452 = vdwg.mxu0
    %453 = vmatpush.bf16.msra.mxu0 0
    %454 = vmatpush.bf16.msra.mxu0 0
    %455 = vmatpush.bf16.msra.mxu0 0
    %456 = vmatpush.bf16.msra.mxu0 0
    %457 = vmatpush.bf16.msra.mxu0 0
    %458 = vmatpush.bf16.msra.mxu0 0
    %459 = vmatpush.bf16.msra.mxu0 0
    %460 = vmatpush.bf16.msra.mxu0 %v409
    %461 = vmatmul.bf16.gmra.mxu0 %v150
    %v462 = vpop.f32.mrf.mxu0
    %v463 = vadd.f32 0.0, %v462
    %v464 = vpop.f32.mrf.mxu0
    %465 = vdwg.mxu0
    %466 = vmatpush.bf16.msra.mxu0 0
    %467 = vmatpush.bf16.msra.mxu0 0
    %468 = vmatpush.bf16.msra.mxu0 0
    %469 = vmatpush.bf16.msra.mxu0 0
    %470 = vmatpush.bf16.msra.mxu0 0
    %471 = vmatpush.bf16.msra.mxu0 0
    %472 = vmatpush.bf16.msra.mxu0 0
    %473 = vmatpush.bf16.msra.mxu0 %v410
    %474 = vmatmul.bf16.gmra.mxu0 %v150
    %v475 = vpop.f32.mrf.mxu0
    %v476 = vadd.f32 0.0, %v475
    %v477 = vpop.f32.mrf.mxu0
    %478 = vdwg.mxu0
    %479 = vmatpush.bf16.msra.mxu0 0
    %480 = vmatpush.bf16.msra.mxu0 0
    %481 = vmatpush.bf16.msra.mxu0 0
    %482 = vmatpush.bf16.msra.mxu0 0
    %483 = vmatpush.bf16.msra.mxu0 0
    %484 = vmatpush.bf16.msra.mxu0 0
    %485 = vmatpush.bf16.msra.mxu0 0
    %486 = vmatpush.bf16.msra.mxu0 %v411
    %487 = vmatmul.bf16.gmra.mxu0 %v150
    %v488 = vpop.f32.mrf.mxu0
    %v489 = vadd.f32 0.0, %v488
    %v490 = vpop.f32.mrf.mxu0
    %491 = vdwg.mxu0
    %492 = vmatpush.bf16.msra.mxu0 0
    %493 = vmatpush.bf16.msra.mxu0 0
    %494 = vmatpush.bf16.msra.mxu0 0
    %495 = vmatpush.bf16.msra.mxu0 0
    %496 = vmatpush.bf16.msra.mxu0 0
    %497 = vmatpush.bf16.msra.mxu0 0
    %498 = vmatpush.bf16.msra.mxu0 0
    %499 = vmatpush.bf16.msra.mxu0 %v412
    %500 = vmatmul.bf16.gmra.mxu0 %v150
    %v501 = vpop.f32.mrf.mxu0
    %v502 = vadd.f32 0.0, %v501
    %v503 = vpop.f32.mrf.mxu0
    %504 = vdwg.mxu0
    %505 = vmatpush.bf16.msra.mxu0 0
    %506 = vmatpush.bf16.msra.mxu0 0
    %507 = vmatpush.bf16.msra.mxu0 0
    %508 = vmatpush.bf16.msra.mxu0 0
    %509 = vmatpush.bf16.msra.mxu0 0
    %510 = vmatpush.bf16.msra.mxu0 0
    %511 = vmatpush.bf16.msra.mxu0 0
    %512 = vmatpush.bf16.msra.mxu0 %v413
    %513 = vmatmul.bf16.gmra.mxu0 %v150
    %v514 = vpop.f32.mrf.mxu0
    %v515 = vadd.f32 0.0, %v514
    %v516 = vpop.f32.mrf.mxu0
    %517 = vdwg.mxu0
    %518 = vmatpush.bf16.msra.mxu0 0
    %519 = vmatpush.bf16.msra.mxu0 0
    %520 = vmatpush.bf16.msra.mxu0 0
    %521 = vmatpush.bf16.msra.mxu0 0
    %522 = vmatpush.bf16.msra.mxu0 0
    %523 = vmatpush.bf16.msra.mxu0 0
    %524 = vmatpush.bf16.msra.mxu0 0
    %525 = vmatpush.bf16.msra.mxu0 %v414
    %526 = vmatmul.bf16.gmra.mxu0 %v150
    %v527 = vpop.f32.mrf.mxu0
    %v528 = vadd.f32 0.0, %v527
    %v529 = vpop.f32.mrf.mxu0
    %530 = vdwg.mxu0
    %531 = vmatpush.bf16.msra.mxu0 0
    %532 = vmatpush.bf16.msra.mxu0 0
    %533 = vmatpush.bf16.msra.mxu0 0
    %534 = vmatpush.bf16.msra.mxu0 0
    %535 = vmatpush.bf16.msra.mxu0 0
    %536 = vmatpush.bf16.msra.mxu0 0
    %537 = vmatpush.bf16.msra.mxu0 0
    %538 = vmatpush.bf16.msra.mxu0 %v415
    %539 = vmatmul.bf16.gmra.mxu0 %v150
    %v540 = vpop.f32.mrf.mxu0
    %v541 = vadd.f32 0.0, %v540
    %v542 = vpop.f32.mrf.mxu0
    %543 = vdwg.mxu0
    %544 = vmatpush.bf16.msra.mxu0 0
    %545 = vmatpush.bf16.msra.mxu0 0
    %546 = vmatpush.bf16.msra.mxu0 0
    %547 = vmatpush.bf16.msra.mxu0 0
    %548 = vmatpush.bf16.msra.mxu0 0
    %549 = vmatpush.bf16.msra.mxu0 0
    %550 = vmatpush.bf16.msra.mxu0 0
    %551 = vmatpush.bf16.msra.mxu0 %v416
    %552 = vmatmul.bf16.gmra.mxu0 %v150
    %v553 = vpop.f32.mrf.mxu0
    %v554 = vadd.f32 0.0, %v553
    %v555 = vpop.f32.mrf.mxu0
    %556 = vdwg.mxu0
    %557 = vmatpush.bf16.msra.mxu0 0
    %558 = vmatpush.bf16.msra.mxu0 0
    %559 = vmatpush.bf16.msra.mxu0 0
    %560 = vmatpush.bf16.msra.mxu0 0
    %561 = vmatpush.bf16.msra.mxu0 0
    %562 = vmatpush.bf16.msra.mxu0 0
    %563 = vmatpush.bf16.msra.mxu0 0
    %564 = vmatpush.bf16.msra.mxu0 %v417
    %565 = vmatmul.bf16.gmra.mxu0 %v150
    %v566 = vpop.f32.mrf.mxu0
    %v567 = vadd.f32 0.0, %v566
    %v568 = vpop.f32.mrf.mxu0
    %569 = vdwg.mxu0
    %570 = vmatpush.bf16.msra.mxu0 0
    %571 = vmatpush.bf16.msra.mxu0 0
    %572 = vmatpush.bf16.msra.mxu0 0
    %573 = vmatpush.bf16.msra.mxu0 0
    %574 = vmatpush.bf16.msra.mxu0 0
    %575 = vmatpush.bf16.msra.mxu0 0
    %576 = vmatpush.bf16.msra.mxu0 0
    %577 = vmatpush.bf16.msra.mxu0 %v418
    %578 = vmatmul.bf16.gmra.mxu0 %v150
    %v579 = vpop.f32.mrf.mxu0
    %v580 = vadd.f32 0.0, %v579
    %v581 = vpop.f32.mrf.mxu0
    %582 = vdwg.mxu0
    %583 = vmatpush.bf16.msra.mxu0 0
    %584 = vmatpush.bf16.msra.mxu0 0
    %585 = vmatpush.bf16.msra.mxu0 0
    %586 = vmatpush.bf16.msra.mxu0 0
    %587 = vmatpush.bf16.msra.mxu0 0
    %588 = vmatpush.bf16.msra.mxu0 0
    %589 = vmatpush.bf16.msra.mxu0 0
    %590 = vmatpush.bf16.msra.mxu0 %v419
    %591 = vmatmul.bf16.gmra.mxu0 %v150
    %v592 = vpop.f32.mrf.mxu0
    %v593 = vadd.f32 0.0, %v592
    %v594 = vpop.f32.mrf.mxu0
    %595 = vdwg.mxu0
    %596 = vmatpush.bf16.msra.mxu0 0
    %597 = vmatpush.bf16.msra.mxu0 0
    %598 = vmatpush.bf16.msra.mxu0 0
    %599 = vmatpush.bf16.msra.mxu0 0
    %600 = vmatpush.bf16.msra.mxu0 0
    %601 = vmatpush.bf16.msra.mxu0 0
    %602 = vmatpush.bf16.msra.mxu0 0
    %603 = vmatpush.bf16.msra.mxu0 %v420
    %604 = vmatmul.bf16.gmra.mxu0 %v150
    %v605 = vpop.f32.mrf.mxu0
    %v606 = vadd.f32 0.0, %v605
    %v607 = vpop.f32.mrf.mxu0
    %608 = vdwg.mxu0
    %609 = vmatpush.bf16.msra.mxu0 0
    %610 = vmatpush.bf16.msra.mxu0 0
    %611 = vmatpush.bf16.msra.mxu0 0
    %612 = vmatpush.bf16.msra.mxu0 0
    %613 = vmatpush.bf16.msra.mxu0 0
    %614 = vmatpush.bf16.msra.mxu0 0
    %615 = vmatpush.bf16.msra.mxu0 0
    %616 = vmatpush.bf16.msra.mxu0 %v421
    %617 = vmatmul.bf16.gmra.mxu0 %v150
    %v618 = vpop.f32.mrf.mxu0
    %v619 = vadd.f32 0.0, %v618
    %v620 = vpop.f32.mrf.mxu0
    %621 = vdwg.mxu0
    %622 = vmatpush.bf16.msra.mxu0 0
    %623 = vmatpush.bf16.msra.mxu0 0
    %624 = vmatpush.bf16.msra.mxu0 0
    %625 = vmatpush.bf16.msra.mxu0 0
    %626 = vmatpush.bf16.msra.mxu0 0
    %627 = vmatpush.bf16.msra.mxu0 0
    %628 = vmatpush.bf16.msra.mxu0 0
    %629 = vmatpush.bf16.msra.mxu0 %v422
    %630 = vmatmul.bf16.gmra.mxu0 %v150
    %v631 = vpop.f32.mrf.mxu0
    %v632 = vadd.f32 0.0, %v631
    %v633 = vpop.f32.mrf.mxu0
    %634 = vdwg.mxu0
    %635 = vmatpush.bf16.msra.mxu0 0
    %636 = vmatpush.bf16.msra.mxu0 0
    %637 = vmatpush.bf16.msra.mxu0 0
    %638 = vmatpush.bf16.msra.mxu0 0
    %639 = vmatpush.bf16.msra.mxu0 0
    %640 = vmatpush.bf16.msra.mxu0 0
    %641 = vmatpush.bf16.msra.mxu0 0
    %642 = vmatpush.bf16.msra.mxu0 %v423
    %643 = vmatmul.bf16.gmra.mxu0 %v150
    %v644 = vpop.f32.mrf.mxu0
    %v645 = vadd.f32 0.0, %v644
    %v646 = vpop.f32.mrf.mxu0
    %647 = vdwg.mxu0
    %v648 = vmul.f32 %v162, 0.0625
    %v649 = vmul.f32 %v175, 0.0625
    %v650 = vmul.f32 %v188, 0.0625
    %v651 = vmul.f32 %v201, 0.0625
    %v652 = vmul.f32 %v214, 0.0625
    %v653 = vmul.f32 %v227, 0.0625
    %v654 = vmul.f32 %v240, 0.0625
    %v655 = vmul.f32 %v253, 0.0625
    %v656 = vmul.f32 %v266, 0.0625
    %v657 = vmul.f32 %v279, 0.0625
    %v658 = vmul.f32 %v292, 0.0625
    %v659 = vmul.f32 %v305, 0.0625
    %v660 = vmul.f32 %v318, 0.0625
    %v661 = vmul.f32 %v331, 0.0625
    %v662 = vmul.f32 %v344, 0.0625
    %v663 = vmul.f32 %v357, 0.0625
    %v664 = vmul.f32 %v450, 0.0625
    %v665 = vmul.f32 %v463, 0.0625
    %v666 = vmul.f32 %v476, 0.0625
    %v667 = vmul.f32 %v489, 0.0625
    %v668 = vmul.f32 %v502, 0.0625
    %v669 = vmul.f32 %v515, 0.0625
    %v670 = vmul.f32 %v528, 0.0625
    %v671 = vmul.f32 %v541, 0.0625
    %v672 = vmul.f32 %v554, 0.0625
    %v673 = vmul.f32 %v567, 0.0625
    %v674 = vmul.f32 %v580, 0.0625
    %v675 = vmul.f32 %v593, 0.0625
    %v676 = vmul.f32 %v606, 0.0625
    %v677 = vmul.f32 %v619, 0.0625
    %v678 = vmul.f32 %v632, 0.0625
    %v679 = vmul.f32 %v645, 0.0625
    %v680 = vunpack.c.l.bf16 %v36
    %v681 = vunpack.c.h.bf16 %v36
    %v682 = vunpack.c.l.bf16 %v37
    %v683 = vunpack.c.h.bf16 %v37
    %v684 = vunpack.c.l.bf16 %v38
    %v685 = vunpack.c.h.bf16 %v38
    %v686 = vunpack.c.l.bf16 %v39
    %v687 = vunpack.c.h.bf16 %v39
    %v688 = vunpack.c.l.bf16 %v40
    %v689 = vunpack.c.h.bf16 %v40
    %v690 = vunpack.c.l.bf16 %v41
    %v691 = vunpack.c.h.bf16 %v41
    %v692 = vunpack.c.l.bf16 %v42
    %v693 = vunpack.c.h.bf16 %v42
    %v694 = vunpack.c.l.bf16 %v43
    %v695 = vunpack.c.h.bf16 %v43
    %v696 = vunpack.c.l.bf16 %v44
    %v697 = vunpack.c.h.bf16 %v44
    %v698 = vunpack.c.l.bf16 %v45
    %v699 = vunpack.c.h.bf16 %v45
    %v700 = vunpack.c.l.bf16 %v46
    %v701 = vunpack.c.h.bf16 %v46
    %v702 = vunpack.c.l.bf16 %v47
    %v703 = vunpack.c.h.bf16 %v47
    %v704 = vunpack.c.l.bf16 %v48
    %v705 = vunpack.c.h.bf16 %v48
    %v706 = vunpack.c.l.bf16 %v49
    %v707 = vunpack.c.h.bf16 %v49
    %v708 = vunpack.c.l.bf16 %v50
    %v709 = vunpack.c.h.bf16 %v50
    %v710 = vunpack.c.l.bf16 %v51
    %v711 = vunpack.c.h.bf16 %v51
    %v712 = vunpack.c.l.bf16 %v52
    %v713 = vunpack.c.h.bf16 %v52
    %v714 = vunpack.c.l.bf16 %v53
    %v715 = vunpack.c.h.bf16 %v53
    %v716 = vunpack.c.l.bf16 %v54
    %v717 = vunpack.c.h.bf16 %v54
    %v718 = vunpack.c.l.bf16 %v55
    %v719 = vunpack.c.h.bf16 %v55
    %v720 = vunpack.c.l.bf16 %v56
    %v721 = vunpack.c.h.bf16 %v56
    %v722 = vunpack.c.l.bf16 %v57
    %v723 = vunpack.c.h.bf16 %v57
    %v724 = vunpack.c.l.bf16 %v58
    %v725 = vunpack.c.h.bf16 %v58
    %v726 = vunpack.c.l.bf16 %v59
    %v727 = vunpack.c.h.bf16 %v59
    %v728 = vunpack.c.l.bf16 %v60
    %v729 = vunpack.c.h.bf16 %v60
    %v730 = vunpack.c.l.bf16 %v61
    %v731 = vunpack.c.h.bf16 %v61
    %v732 = vunpack.c.l.bf16 %v62
    %v733 = vunpack.c.h.bf16 %v62
    %v734 = vunpack.c.l.bf16 %v63
    %v735 = vunpack.c.h.bf16 %v63
    %v736 = vunpack.c.l.bf16 %v64
    %v737 = vunpack.c.h.bf16 %v64
    %v738 = vunpack.c.l.bf16 %v65
    %v739 = vunpack.c.h.bf16 %v65
    %v740 = vunpack.c.l.bf16 %v66
    %v741 = vunpack.c.h.bf16 %v66
    %v742 = vunpack.c.l.bf16 %v67
    %v743 = vunpack.c.h.bf16 %v67
    %v744 = vmax.f32 %v680, %v696
    %v745 = vrot.slane %v744, 4
    %v746 = vmax.f32 %v744, %v745
    %v747 = vrot.slane %v746, 2
    %v748 = vmax.f32 %v746, %v747
    %v749 = vrot.slane %v748, 1
    %v750 = vmax.f32 %v748, %v749
    %v751 = vmax.f32 %v681, %v697
    %v752 = vrot.slane %v751, 4
    %v753 = vmax.f32 %v751, %v752
    %v754 = vrot.slane %v753, 2
    %v755 = vmax.f32 %v753, %v754
    %v756 = vrot.slane %v755, 1
    %v757 = vmax.f32 %v755, %v756
    %v758 = vmax.f32 %v682, %v698
    %v759 = vrot.slane %v758, 4
    %v760 = vmax.f32 %v758, %v759
    %v761 = vrot.slane %v760, 2
    %v762 = vmax.f32 %v760, %v761
    %v763 = vrot.slane %v762, 1
    %v764 = vmax.f32 %v762, %v763
    %v765 = vmax.f32 %v683, %v699
    %v766 = vrot.slane %v765, 4
    %v767 = vmax.f32 %v765, %v766
    %v768 = vrot.slane %v767, 2
    %v769 = vmax.f32 %v767, %v768
    %v770 = vrot.slane %v769, 1
    %v771 = vmax.f32 %v769, %v770
    %v772 = vmax.f32 %v684, %v700
    %v773 = vrot.slane %v772, 4
    %v774 = vmax.f32 %v772, %v773
    %v775 = vrot.slane %v774, 2
    %v776 = vmax.f32 %v774, %v775
    %v777 = vrot.slane %v776, 1
    %v778 = vmax.f32 %v776, %v777
    %v779 = vmax.f32 %v685, %v701
    %v780 = vrot.slane %v779, 4
    %v781 = vmax.f32 %v779, %v780
    %v782 = vrot.slane %v781, 2
    %v783 = vmax.f32 %v781, %v782
    %v784 = vrot.slane %v783, 1
    %v785 = vmax.f32 %v783, %v784
    %v786 = vmax.f32 %v686, %v702
    %v787 = vrot.slane %v786, 4
    %v788 = vmax.f32 %v786, %v787
    %v789 = vrot.slane %v788, 2
    %v790 = vmax.f32 %v788, %v789
    %v791 = vrot.slane %v790, 1
    %v792 = vmax.f32 %v790, %v791
    %v793 = vmax.f32 %v687, %v703
    %v794 = vrot.slane %v793, 4
    %v795 = vmax.f32 %v793, %v794
    %v796 = vrot.slane %v795, 2
    %v797 = vmax.f32 %v795, %v796
    %v798 = vrot.slane %v797, 1
    %v799 = vmax.f32 %v797, %v798
    %v800 = vmax.f32 %v688, %v704
    %v801 = vrot.slane %v800, 4
    %v802 = vmax.f32 %v800, %v801
    %v803 = vrot.slane %v802, 2
    %v804 = vmax.f32 %v802, %v803
    %v805 = vrot.slane %v804, 1
    %v806 = vmax.f32 %v804, %v805
    %v807 = vmax.f32 %v689, %v705
    %v808 = vrot.slane %v807, 4
    %v809 = vmax.f32 %v807, %v808
    %v810 = vrot.slane %v809, 2
    %v811 = vmax.f32 %v809, %v810
    %v812 = vrot.slane %v811, 1
    %v813 = vmax.f32 %v811, %v812
    %v814 = vmax.f32 %v690, %v706
    %v815 = vrot.slane %v814, 4
    %v816 = vmax.f32 %v814, %v815
    %v817 = vrot.slane %v816, 2
    %v818 = vmax.f32 %v816, %v817
    %v819 = vrot.slane %v818, 1
    %v820 = vmax.f32 %v818, %v819
    %v821 = vmax.f32 %v691, %v707
    %v822 = vrot.slane %v821, 4
    %v823 = vmax.f32 %v821, %v822
    %v824 = vrot.slane %v823, 2
    %v825 = vmax.f32 %v823, %v824
    %v826 = vrot.slane %v825, 1
    %v827 = vmax.f32 %v825, %v826
    %v828 = vmax.f32 %v692, %v708
    %v829 = vrot.slane %v828, 4
    %v830 = vmax.f32 %v828, %v829
    %v831 = vrot.slane %v830, 2
    %v832 = vmax.f32 %v830, %v831
    %v833 = vrot.slane %v832, 1
    %v834 = vmax.f32 %v832, %v833
    %v835 = vmax.f32 %v693, %v709
    %v836 = vrot.slane %v835, 4
    %v837 = vmax.f32 %v835, %v836
    %v838 = vrot.slane %v837, 2
    %v839 = vmax.f32 %v837, %v838
    %v840 = vrot.slane %v839, 1
    %v841 = vmax.f32 %v839, %v840
    %v842 = vmax.f32 %v694, %v710
    %v843 = vrot.slane %v842, 4
    %v844 = vmax.f32 %v842, %v843
    %v845 = vrot.slane %v844, 2
    %v846 = vmax.f32 %v844, %v845
    %v847 = vrot.slane %v846, 1
    %v848 = vmax.f32 %v846, %v847
    %v849 = vmax.f32 %v695, %v711
    %v850 = vrot.slane %v849, 4
    %v851 = vmax.f32 %v849, %v850
    %v852 = vrot.slane %v851, 2
    %v853 = vmax.f32 %v851, %v852
    %v854 = vrot.slane %v853, 1
    %v855 = vmax.f32 %v853, %v854
    %v856 = vmax.f32 %v712, %v728
    %v857 = vrot.slane %v856, 4
    %v858 = vmax.f32 %v856, %v857
    %v859 = vrot.slane %v858, 2
    %v860 = vmax.f32 %v858, %v859
    %v861 = vrot.slane %v860, 1
    %v862 = vmax.f32 %v860, %v861
    %v863 = vmax.f32 %v713, %v729
    %v864 = vrot.slane %v863, 4
    %v865 = vmax.f32 %v863, %v864
    %v866 = vrot.slane %v865, 2
    %v867 = vmax.f32 %v865, %v866
    %v868 = vrot.slane %v867, 1
    %v869 = vmax.f32 %v867, %v868
    %v870 = vmax.f32 %v714, %v730
    %v871 = vrot.slane %v870, 4
    %v872 = vmax.f32 %v870, %v871
    %v873 = vrot.slane %v872, 2
    %v874 = vmax.f32 %v872, %v873
    %v875 = vrot.slane %v874, 1
    %v876 = vmax.f32 %v874, %v875
    %v877 = vmax.f32 %v715, %v731
    %v878 = vrot.slane %v877, 4
    %v879 = vmax.f32 %v877, %v878
    %v880 = vrot.slane %v879, 2
    %v881 = vmax.f32 %v879, %v880
    %v882 = vrot.slane %v881, 1
    %v883 = vmax.f32 %v881, %v882
    %v884 = vmax.f32 %v716, %v732
    %v885 = vrot.slane %v884, 4
    %v886 = vmax.f32 %v884, %v885
    %v887 = vrot.slane %v886, 2
    %v888 = vmax.f32 %v886, %v887
    %v889 = vrot.slane %v888, 1
    %v890 = vmax.f32 %v888, %v889
    %v891 = vmax.f32 %v717, %v733
    %v892 = vrot.slane %v891, 4
    %v893 = vmax.f32 %v891, %v892
    %v894 = vrot.slane %v893, 2
    %v895 = vmax.f32 %v893, %v894
    %v896 = vrot.slane %v895, 1
    %v897 = vmax.f32 %v895, %v896
    %v898 = vmax.f32 %v718, %v734
    %v899 = vrot.slane %v898, 4
    %v900 = vmax.f32 %v898, %v899
    %v901 = vrot.slane %v900, 2
    %v902 = vmax.f32 %v900, %v901
    %v903 = vrot.slane %v902, 1
    %v904 = vmax.f32 %v902, %v903
    %v905 = vmax.f32 %v719, %v735
    %v906 = vrot.slane %v905, 4
    %v907 = vmax.f32 %v905, %v906
    %v908 = vrot.slane %v907, 2
    %v909 = vmax.f32 %v907, %v908
    %v910 = vrot.slane %v909, 1
    %v911 = vmax.f32 %v909, %v910
    %v912 = vmax.f32 %v720, %v736
    %v913 = vrot.slane %v912, 4
    %v914 = vmax.f32 %v912, %v913
    %v915 = vrot.slane %v914, 2
    %v916 = vmax.f32 %v914, %v915
    %v917 = vrot.slane %v916, 1
    %v918 = vmax.f32 %v916, %v917
    %v919 = vmax.f32 %v721, %v737
    %v920 = vrot.slane %v919, 4
    %v921 = vmax.f32 %v919, %v920
    %v922 = vrot.slane %v921, 2
    %v923 = vmax.f32 %v921, %v922
    %v924 = vrot.slane %v923, 1
    %v925 = vmax.f32 %v923, %v924
    %v926 = vmax.f32 %v722, %v738
    %v927 = vrot.slane %v926, 4
    %v928 = vmax.f32 %v926, %v927
    %v929 = vrot.slane %v928, 2
    %v930 = vmax.f32 %v928, %v929
    %v931 = vrot.slane %v930, 1
    %v932 = vmax.f32 %v930, %v931
    %v933 = vmax.f32 %v723, %v739
    %v934 = vrot.slane %v933, 4
    %v935 = vmax.f32 %v933, %v934
    %v936 = vrot.slane %v935, 2
    %v937 = vmax.f32 %v935, %v936
    %v938 = vrot.slane %v937, 1
    %v939 = vmax.f32 %v937, %v938
    %v940 = vmax.f32 %v724, %v740
    %v941 = vrot.slane %v940, 4
    %v942 = vmax.f32 %v940, %v941
    %v943 = vrot.slane %v942, 2
    %v944 = vmax.f32 %v942, %v943
    %v945 = vrot.slane %v944, 1
    %v946 = vmax.f32 %v944, %v945
    %v947 = vmax.f32 %v725, %v741
    %v948 = vrot.slane %v947, 4
    %v949 = vmax.f32 %v947, %v948
    %v950 = vrot.slane %v949, 2
    %v951 = vmax.f32 %v949, %v950
    %v952 = vrot.slane %v951, 1
    %v953 = vmax.f32 %v951, %v952
    %v954 = vmax.f32 %v726, %v742
    %v955 = vrot.slane %v954, 4
    %v956 = vmax.f32 %v954, %v955
    %v957 = vrot.slane %v956, 2
    %v958 = vmax.f32 %v956, %v957
    %v959 = vrot.slane %v958, 1
    %v960 = vmax.f32 %v958, %v959
    %v961 = vmax.f32 %v727, %v743
    %v962 = vrot.slane %v961, 4
    %v963 = vmax.f32 %v961, %v962
    %v964 = vrot.slane %v963, 2
    %v965 = vmax.f32 %v963, %v964
    %v966 = vrot.slane %v965, 1
    %v967 = vmax.f32 %v965, %v966
    %v968 = vpack.c.bf16 %v757, %v750
    %v969 = vpack.c.bf16 %v771, %v764
    %v970 = vpack.c.bf16 %v785, %v778
    %v971 = vpack.c.bf16 %v799, %v792
    %v972 = vpack.c.bf16 %v813, %v806
    %v973 = vpack.c.bf16 %v827, %v820
    %v974 = vpack.c.bf16 %v841, %v834
    %v975 = vpack.c.bf16 %v855, %v848
    %v976 = vpack.c.bf16 %v869, %v862
    %v977 = vpack.c.bf16 %v883, %v876
    %v978 = vpack.c.bf16 %v897, %v890
    %v979 = vpack.c.bf16 %v911, %v904
    %v980 = vpack.c.bf16 %v925, %v918
    %v981 = vpack.c.bf16 %v939, %v932
    %v982 = vpack.c.bf16 %v953, %v946
    %v983 = vpack.c.bf16 %v967, %v960
    %v984 = vpack.c.bf16 %v649, %v648
    %v985 = vpack.c.bf16 %v651, %v650
    %v986 = vpack.c.bf16 %v653, %v652
    %v987 = vpack.c.bf16 %v655, %v654
    %v988 = vpack.c.bf16 %v657, %v656
    %v989 = vpack.c.bf16 %v659, %v658
    %v990 = vpack.c.bf16 %v661, %v660
    %v991 = vpack.c.bf16 %v663, %v662
    %v992 = vpack.c.bf16 %v665, %v664
    %v993 = vpack.c.bf16 %v667, %v666
    %v994 = vpack.c.bf16 %v669, %v668
    %v995 = vpack.c.bf16 %v671, %v670
    %v996 = vpack.c.bf16 %v673, %v672
    %v997 = vpack.c.bf16 %v675, %v674
    %v998 = vpack.c.bf16 %v677, %v676
    %v999 = vpack.c.bf16 %v679, %v678
    %v1016 = vunpack.c.l.b16 %v984
    %v1017 = vunpack.c.h.b16 %v984
    %v1018 = vunpack.c.l.b16 %v985
    %v1019 = vunpack.c.h.b16 %v985
    %v1020 = vunpack.c.l.b16 %v986
    %v1021 = vunpack.c.h.b16 %v986
    %v1022 = vunpack.c.l.b16 %v987
    %v1023 = vunpack.c.h.b16 %v987
    %v1024 = vunpack.c.l.b16 %v988
    %v1025 = vunpack.c.h.b16 %v988
    %v1026 = vunpack.c.l.b16 %v989
    %v1027 = vunpack.c.h.b16 %v989
    %v1028 = vunpack.c.l.b16 %v990
    %v1029 = vunpack.c.h.b16 %v990
    %v1030 = vunpack.c.l.b16 %v991
    %v1031 = vunpack.c.h.b16 %v991
    %v1032 = vunpack.c.l.b16 %v992
    %v1033 = vunpack.c.h.b16 %v992
    %v1034 = vunpack.c.l.b16 %v993
    %v1035 = vunpack.c.h.b16 %v993
    %v1036 = vunpack.c.l.b16 %v994
    %v1037 = vunpack.c.h.b16 %v994
    %v1038 = vunpack.c.l.b16 %v995
    %v1039 = vunpack.c.h.b16 %v995
    %v1040 = vunpack.c.l.b16 %v996
    %v1041 = vunpack.c.h.b16 %v996
    %v1042 = vunpack.c.l.b16 %v997
    %v1043 = vunpack.c.h.b16 %v997
    %v1044 = vunpack.c.l.b16 %v998
    %v1045 = vunpack.c.h.b16 %v998
    %v1046 = vunpack.c.l.b16 %v999
    %v1047 = vunpack.c.h.b16 %v999
    %v1048 = vpack.c.b16 %v1016, %v1016
    %v1049 = vpack.c.b16 %v1017, %v1017
    %v1050 = vpack.c.b16 %v1018, %v1018
    %v1051 = vpack.c.b16 %v1019, %v1019
    %v1052 = vpack.c.b16 %v1020, %v1020
    %v1053 = vpack.c.b16 %v1021, %v1021
    %v1054 = vpack.c.b16 %v1022, %v1022
    %v1055 = vpack.c.b16 %v1023, %v1023
    %v1056 = vpack.c.b16 %v1024, %v1024
    %v1057 = vpack.c.b16 %v1025, %v1025
    %v1058 = vpack.c.b16 %v1026, %v1026
    %v1059 = vpack.c.b16 %v1027, %v1027
    %v1060 = vpack.c.b16 %v1028, %v1028
    %v1061 = vpack.c.b16 %v1029, %v1029
    %v1062 = vpack.c.b16 %v1030, %v1030
    %v1063 = vpack.c.b16 %v1031, %v1031
    %v1064 = vpack.c.b16 %v1032, %v1032
    %v1065 = vpack.c.b16 %v1033, %v1033
    %v1066 = vpack.c.b16 %v1034, %v1034
    %v1067 = vpack.c.b16 %v1035, %v1035
    %v1068 = vpack.c.b16 %v1036, %v1036
    %v1069 = vpack.c.b16 %v1037, %v1037
    %v1070 = vpack.c.b16 %v1038, %v1038
    %v1071 = vpack.c.b16 %v1039, %v1039
    %v1072 = vpack.c.b16 %v1040, %v1040
    %v1073 = vpack.c.b16 %v1041, %v1041
    %v1074 = vpack.c.b16 %v1042, %v1042
    %v1075 = vpack.c.b16 %v1043, %v1043
    %v1076 = vpack.c.b16 %v1044, %v1044
    %v1077 = vpack.c.b16 %v1045, %v1045
    %v1078 = vpack.c.b16 %v1046, %v1046
    %v1079 = vpack.c.b16 %v1047, %v1047
    %v1080 = vunpack.c.l.b16 %v1048
    %v1081 = vunpack.c.l.b16 %v1049
    %v1082 = vunpack.c.l.b16 %v1050
    %v1083 = vunpack.c.l.b16 %v1051
    %v1084 = vunpack.c.l.b16 %v1052
    %v1085 = vunpack.c.l.b16 %v1053
    %v1086 = vunpack.c.l.b16 %v1054
    %v1087 = vunpack.c.l.b16 %v1055
    %v1088 = vunpack.c.l.b16 %v1056
    %v1089 = vunpack.c.l.b16 %v1057
    %v1090 = vunpack.c.l.b16 %v1058
    %v1091 = vunpack.c.l.b16 %v1059
    %v1092 = vunpack.c.l.b16 %v1060
    %v1093 = vunpack.c.l.b16 %v1061
    %v1094 = vunpack.c.l.b16 %v1062
    %v1095 = vunpack.c.l.b16 %v1063
    %v1096 = vunpack.c.l.b16 %v1064
    %v1097 = vunpack.c.l.b16 %v1065
    %v1098 = vunpack.c.l.b16 %v1066
    %v1099 = vunpack.c.l.b16 %v1067
    %v1100 = vunpack.c.l.b16 %v1068
    %v1101 = vunpack.c.l.b16 %v1069
    %v1102 = vunpack.c.l.b16 %v1070
    %v1103 = vunpack.c.l.b16 %v1071
    %v1104 = vunpack.c.l.b16 %v1072
    %v1105 = vunpack.c.l.b16 %v1073
    %v1106 = vunpack.c.l.b16 %v1074
    %v1107 = vunpack.c.l.b16 %v1075
    %v1108 = vunpack.c.l.b16 %v1076
    %v1109 = vunpack.c.l.b16 %v1077
    %v1110 = vunpack.c.l.b16 %v1078
    %v1111 = vunpack.c.l.b16 %v1079
    %v1112 = vrot.slane %v1096, 7
    %vm1113 = vcmask 1041409
    %v1114 = vsel %vm1113, %v1112, %v1080
    %v1115 = vrot.slane %v1097, 7
    %v1116 = vsel %vm1113, %v1115, %v1081
    %v1117 = vrot.slane %v1098, 7
    %v1118 = vsel %vm1113, %v1117, %v1082
    %v1119 = vrot.slane %v1099, 7
    %v1120 = vsel %vm1113, %v1119, %v1083
    %v1121 = vrot.slane %v1100, 7
    %v1122 = vsel %vm1113, %v1121, %v1084
    %v1123 = vrot.slane %v1101, 7
    %v1124 = vsel %vm1113, %v1123, %v1085
    %v1125 = vrot.slane %v1102, 7
    %v1126 = vsel %vm1113, %v1125, %v1086
    %v1127 = vrot.slane %v1103, 7
    %v1128 = vsel %vm1113, %v1127, %v1087
    %v1129 = vrot.slane %v1104, 7
    %v1130 = vsel %vm1113, %v1129, %v1088
    %v1131 = vrot.slane %v1105, 7
    %v1132 = vsel %vm1113, %v1131, %v1089
    %v1133 = vrot.slane %v1106, 7
    %v1134 = vsel %vm1113, %v1133, %v1090
    %v1135 = vrot.slane %v1107, 7
    %v1136 = vsel %vm1113, %v1135, %v1091
    %v1137 = vrot.slane %v1108, 7
    %v1138 = vsel %vm1113, %v1137, %v1092
    %v1139 = vrot.slane %v1109, 7
    %v1140 = vsel %vm1113, %v1139, %v1093
    %v1141 = vrot.slane %v1110, 7
    %v1142 = vsel %vm1113, %v1141, %v1094
    %v1143 = vrot.slane %v1111, 7
    %v1144 = vsel %vm1113, %v1143, %v1095
    %v1145 = vpack.c.b16 %v1114, %v1114
    %v1146 = vpack.c.b16 %v1116, %v1116
    %v1147 = vpack.c.b16 %v1118, %v1118
    %v1148 = vpack.c.b16 %v1120, %v1120
    %v1149 = vpack.c.b16 %v1122, %v1122
    %v1150 = vpack.c.b16 %v1124, %v1124
    %v1151 = vpack.c.b16 %v1126, %v1126
    %v1152 = vpack.c.b16 %v1128, %v1128
    %v1153 = vpack.c.b16 %v1130, %v1130
    %v1154 = vpack.c.b16 %v1132, %v1132
    %v1155 = vpack.c.b16 %v1134, %v1134
    %v1156 = vpack.c.b16 %v1136, %v1136
    %v1157 = vpack.c.b16 %v1138, %v1138
    %v1158 = vpack.c.b16 %v1140, %v1140
    %v1159 = vpack.c.b16 %v1142, %v1142
    %v1160 = vpack.c.b16 %v1144, %v1144
    %v1177 = vperm.slane %v968, 0
    %v1178 = vperm.slane %v968, 4
    %v1179 = vperm.slane %v969, 0
    %v1180 = vperm.slane %v969, 4
    %v1181 = vperm.slane %v970, 0
    %v1182 = vperm.slane %v970, 4
    %v1183 = vperm.slane %v971, 0
    %v1184 = vperm.slane %v971, 4
    %v1185 = vperm.slane %v972, 0
    %v1186 = vperm.slane %v972, 4
    %v1187 = vperm.slane %v973, 0
    %v1188 = vperm.slane %v973, 4
    %v1189 = vperm.slane %v974, 0
    %v1190 = vperm.slane %v974, 4
    %v1191 = vperm.slane %v975, 0
    %v1192 = vperm.slane %v975, 4
    %v1193 = vperm.slane %v976, 0
    %v1194 = vperm.slane %v976, 4
    %v1195 = vperm.slane %v977, 0
    %v1196 = vperm.slane %v977, 4
    %v1197 = vperm.slane %v978, 0
    %v1198 = vperm.slane %v978, 4
    %v1199 = vperm.slane %v979, 0
    %v1200 = vperm.slane %v979, 4
    %v1201 = vperm.slane %v980, 0
    %v1202 = vperm.slane %v980, 4
    %v1203 = vperm.slane %v981, 0
    %v1204 = vperm.slane %v981, 4
    %v1205 = vperm.slane %v982, 0
    %v1206 = vperm.slane %v982, 4
    %v1207 = vperm.slane %v983, 0
    %v1208 = vperm.slane %v983, 4
    %v1209 = vunpack.c.l.b16 %v1177
    %v1210 = vunpack.c.l.b16 %v1178
    %v1211 = vunpack.c.l.b16 %v1179
    %v1212 = vunpack.c.l.b16 %v1180
    %v1213 = vunpack.c.l.b16 %v1181
    %v1214 = vunpack.c.l.b16 %v1182
    %v1215 = vunpack.c.l.b16 %v1183
    %v1216 = vunpack.c.l.b16 %v1184
    %v1217 = vunpack.c.l.b16 %v1185
    %v1218 = vunpack.c.l.b16 %v1186
    %v1219 = vunpack.c.l.b16 %v1187
    %v1220 = vunpack.c.l.b16 %v1188
    %v1221 = vunpack.c.l.b16 %v1189
    %v1222 = vunpack.c.l.b16 %v1190
    %v1223 = vunpack.c.l.b16 %v1191
    %v1224 = vunpack.c.l.b16 %v1192
    %v1225 = vunpack.c.l.b16 %v1193
    %v1226 = vunpack.c.l.b16 %v1194
    %v1227 = vunpack.c.l.b16 %v1195
    %v1228 = vunpack.c.l.b16 %v1196
    %v1229 = vunpack.c.l.b16 %v1197
    %v1230 = vunpack.c.l.b16 %v1198
    %v1231 = vunpack.c.l.b16 %v1199
    %v1232 = vunpack.c.l.b16 %v1200
    %v1233 = vunpack.c.l.b16 %v1201
    %v1234 = vunpack.c.l.b16 %v1202
    %v1235 = vunpack.c.l.b16 %v1203
    %v1236 = vunpack.c.l.b16 %v1204
    %v1237 = vunpack.c.l.b16 %v1205
    %v1238 = vunpack.c.l.b16 %v1206
    %v1239 = vunpack.c.l.b16 %v1207
    %v1240 = vunpack.c.l.b16 %v1208
    %vm1241 = vcmask 1043459
    %v1242 = vsel %vm1241, %v1225, %v1209
    %v1243 = vsel %vm1241, %v1226, %v1210
    %v1244 = vsel %vm1241, %v1227, %v1211
    %v1245 = vsel %vm1241, %v1228, %v1212
    %v1246 = vsel %vm1241, %v1229, %v1213
    %v1247 = vsel %vm1241, %v1230, %v1214
    %v1248 = vsel %vm1241, %v1231, %v1215
    %v1249 = vsel %vm1241, %v1232, %v1216
    %v1250 = vsel %vm1241, %v1233, %v1217
    %v1251 = vsel %vm1241, %v1234, %v1218
    %v1252 = vsel %vm1241, %v1235, %v1219
    %v1253 = vsel %vm1241, %v1236, %v1220
    %v1254 = vsel %vm1241, %v1237, %v1221
    %v1255 = vsel %vm1241, %v1238, %v1222
    %v1256 = vsel %vm1241, %v1239, %v1223
    %v1257 = vsel %vm1241, %v1240, %v1224
    %v1258 = vpack.c.b16 %v1242, %v1242
    %v1259 = vpack.c.b16 %v1243, %v1243
    %v1260 = vpack.c.b16 %v1244, %v1244
    %v1261 = vpack.c.b16 %v1245, %v1245
    %v1262 = vpack.c.b16 %v1246, %v1246
    %v1263 = vpack.c.b16 %v1247, %v1247
    %v1264 = vpack.c.b16 %v1248, %v1248
    %v1265 = vpack.c.b16 %v1249, %v1249
    %v1266 = vpack.c.b16 %v1250, %v1250
    %v1267 = vpack.c.b16 %v1251, %v1251
    %v1268 = vpack.c.b16 %v1252, %v1252
    %v1269 = vpack.c.b16 %v1253, %v1253
    %v1270 = vpack.c.b16 %v1254, %v1254
    %v1271 = vpack.c.b16 %v1255, %v1255
    %v1272 = vpack.c.b16 %v1256, %v1256
    %v1273 = vpack.c.b16 %v1257, %v1257
    %vm1274 = vcmask 1040384
    %v1277 = vsel %vm1274, %v1145, %v1258
    %v1281 = vsel %vm1274, %v1146, %v1259
    %v1285 = vsel %vm1274, %v1147, %v1260
    %v1289 = vsel %vm1274, %v1148, %v1261
    %v1293 = vsel %vm1274, %v1149, %v1262
    %v1297 = vsel %vm1274, %v1150, %v1263
    %v1301 = vsel %vm1274, %v1151, %v1264
    %v1305 = vsel %vm1274, %v1152, %v1265
    %v1309 = vsel %vm1274, %v1153, %v1266
    %v1313 = vsel %vm1274, %v1154, %v1267
    %v1317 = vsel %vm1274, %v1155, %v1268
    %v1321 = vsel %vm1274, %v1156, %v1269
    %v1325 = vsel %vm1274, %v1157, %v1270
    %v1329 = vsel %vm1274, %v1158, %v1271
    %v1333 = vsel %vm1274, %v1159, %v1272
    %v1337 = vsel %vm1274, %v1160, %v1273
    %v1339 = vld [vmem:[%s1] sm:$0xf]
    %v1340 = vld [vmem:[%s1 + $0x4] sm:$0xf]
    %v1341 = vld [vmem:[%s1 + $0x8] sm:$0xf]
    %v1342 = vld [vmem:[%s1 + $0xc] sm:$0xf]
    %v1343 = vld [vmem:[%s1 + $0x10] sm:$0xf]
    %v1344 = vld [vmem:[%s1 + $0x14] sm:$0xf]
    %v1345 = vld [vmem:[%s1 + $0x18] sm:$0xf]
    %v1346 = vld [vmem:[%s1 + $0x1c] sm:$0xf]
    %v1347 = vld [vmem:[%s1 + $0x20] sm:$0xf]
    %v1348 = vld [vmem:[%s1 + $0x24] sm:$0xf]
    %v1349 = vld [vmem:[%s1 + $0x28] sm:$0xf]
    %v1350 = vld [vmem:[%s1 + $0x2c] sm:$0xf]
    %v1351 = vld [vmem:[%s1 + $0x30] sm:$0xf]
    %v1352 = vld [vmem:[%s1 + $0x34] sm:$0xf]
    %v1353 = vld [vmem:[%s1 + $0x38] sm:$0xf]
    %v1354 = vld [vmem:[%s1 + $0x3c] sm:$0xf]
    %v1355 = vld [vmem:[%s1 + $0x40] sm:$0xf]
    %v1356 = vld [vmem:[%s1 + $0x44] sm:$0xf]
    %v1357 = vld [vmem:[%s1 + $0x48] sm:$0xf]
    %v1358 = vld [vmem:[%s1 + $0x4c] sm:$0xf]
    %v1359 = vld [vmem:[%s1 + $0x50] sm:$0xf]
    %v1360 = vld [vmem:[%s1 + $0x54] sm:$0xf]
    %v1361 = vld [vmem:[%s1 + $0x58] sm:$0xf]
    %v1362 = vld [vmem:[%s1 + $0x5c] sm:$0xf]
    %v1363 = vld [vmem:[%s1 + $0x60] sm:$0xf]
    %v1364 = vld [vmem:[%s1 + $0x64] sm:$0xf]
    %v1365 = vld [vmem:[%s1 + $0x68] sm:$0xf]
    %v1366 = vld [vmem:[%s1 + $0x6c] sm:$0xf]
    %v1367 = vld [vmem:[%s1 + $0x70] sm:$0xf]
    %v1368 = vld [vmem:[%s1 + $0x74] sm:$0xf]
    %v1369 = vld [vmem:[%s1 + $0x78] sm:$0xf]
    %v1370 = vld [vmem:[%s1 + $0x7c] sm:$0xf]
    %v1371 = vld [vmem:[%s1 + $0x80] sm:$0xf]
    %v1372 = vld [vmem:[%s1 + $0x84] sm:$0xf]
    %v1373 = vld [vmem:[%s1 + $0x88] sm:$0xf]
    %v1374 = vld [vmem:[%s1 + $0x8c] sm:$0xf]
    %v1375 = vld [vmem:[%s1 + $0x90] sm:$0xf]
    %v1376 = vld [vmem:[%s1 + $0x94] sm:$0xf]
    %v1377 = vld [vmem:[%s1 + $0x98] sm:$0xf]
    %v1378 = vld [vmem:[%s1 + $0x9c] sm:$0xf]
    %v1379 = vld [vmem:[%s1 + $0xa0] sm:$0xf]
    %v1380 = vld [vmem:[%s1 + $0xa4] sm:$0xf]
    %v1381 = vld [vmem:[%s1 + $0xa8] sm:$0xf]
    %v1382 = vld [vmem:[%s1 + $0xac] sm:$0xf]
    %v1383 = vld [vmem:[%s1 + $0xb0] sm:$0xf]
    %v1384 = vld [vmem:[%s1 + $0xb4] sm:$0xf]
    %v1385 = vld [vmem:[%s1 + $0xb8] sm:$0xf]
    %v1386 = vld [vmem:[%s1 + $0xbc] sm:$0xf]
    %v1387 = vld [vmem:[%s1 + $0xc0] sm:$0xf]
    %v1388 = vld [vmem:[%s1 + $0xc4] sm:$0xf]
    %v1389 = vld [vmem:[%s1 + $0xc8] sm:$0xf]
    %v1390 = vld [vmem:[%s1 + $0xcc] sm:$0xf]
    %v1391 = vld [vmem:[%s1 + $0xd0] sm:$0xf]
    %v1392 = vld [vmem:[%s1 + $0xd4] sm:$0xf]
    %v1393 = vld [vmem:[%s1 + $0xd8] sm:$0xf]
    %v1394 = vld [vmem:[%s1 + $0xdc] sm:$0xf]
    %v1395 = vld [vmem:[%s1 + $0xe0] sm:$0xf]
    %v1396 = vld [vmem:[%s1 + $0xe4] sm:$0xf]
    %v1397 = vld [vmem:[%s1 + $0xe8] sm:$0xf]
    %v1398 = vld [vmem:[%s1 + $0xec] sm:$0xf]
    %v1399 = vld [vmem:[%s1 + $0xf0] sm:$0xf]
    %v1400 = vld [vmem:[%s1 + $0xf4] sm:$0xf]
    %v1401 = vld [vmem:[%s1 + $0xf8] sm:$0xf]
    %v1402 = vld [vmem:[%s1 + $0xfc] sm:$0xf]
    %v1403 = vld [vmem:[%s1 + $0x100] sm:$0xf]
    %v1404 = vld [vmem:[%s1 + $0x104] sm:$0xf]
    %v1405 = vld [vmem:[%s1 + $0x108] sm:$0xf]
    %v1406 = vld [vmem:[%s1 + $0x10c] sm:$0xf]
    %v1407 = vld [vmem:[%s1 + $0x110] sm:$0xf]
    %v1408 = vld [vmem:[%s1 + $0x114] sm:$0xf]
    %v1409 = vld [vmem:[%s1 + $0x118] sm:$0xf]
    %v1410 = vld [vmem:[%s1 + $0x11c] sm:$0xf]
    %v1411 = vld [vmem:[%s1 + $0x120] sm:$0xf]
    %v1412 = vld [vmem:[%s1 + $0x124] sm:$0xf]
    %v1413 = vld [vmem:[%s1 + $0x128] sm:$0xf]
    %v1414 = vld [vmem:[%s1 + $0x12c] sm:$0xf]
    %v1415 = vld [vmem:[%s1 + $0x130] sm:$0xf]
    %v1416 = vld [vmem:[%s1 + $0x134] sm:$0xf]
    %v1417 = vld [vmem:[%s1 + $0x138] sm:$0xf]
    %v1418 = vld [vmem:[%s1 + $0x13c] sm:$0xf]
    %v1419 = vld [vmem:[%s1 + $0x140] sm:$0xf]
    %v1420 = vld [vmem:[%s1 + $0x144] sm:$0xf]
    %v1421 = vld [vmem:[%s1 + $0x148] sm:$0xf]
    %v1422 = vld [vmem:[%s1 + $0x14c] sm:$0xf]
    %v1423 = vld [vmem:[%s1 + $0x150] sm:$0xf]
    %v1424 = vld [vmem:[%s1 + $0x154] sm:$0xf]
    %v1425 = vld [vmem:[%s1 + $0x158] sm:$0xf]
    %v1426 = vld [vmem:[%s1 + $0x15c] sm:$0xf]
    %v1427 = vld [vmem:[%s1 + $0x160] sm:$0xf]
    %v1428 = vld [vmem:[%s1 + $0x164] sm:$0xf]
    %v1429 = vld [vmem:[%s1 + $0x168] sm:$0xf]
    %v1430 = vld [vmem:[%s1 + $0x16c] sm:$0xf]
    %v1431 = vld [vmem:[%s1 + $0x170] sm:$0xf]
    %v1432 = vld [vmem:[%s1 + $0x174] sm:$0xf]
    %v1433 = vld [vmem:[%s1 + $0x178] sm:$0xf]
    %v1434 = vld [vmem:[%s1 + $0x17c] sm:$0xf]
    %v1435 = vld [vmem:[%s1 + $0x180] sm:$0xf]
    %v1436 = vld [vmem:[%s1 + $0x184] sm:$0xf]
    %v1437 = vld [vmem:[%s1 + $0x188] sm:$0xf]
    %v1438 = vld [vmem:[%s1 + $0x18c] sm:$0xf]
    %v1439 = vld [vmem:[%s1 + $0x190] sm:$0xf]
    %v1440 = vld [vmem:[%s1 + $0x194] sm:$0xf]
    %v1441 = vld [vmem:[%s1 + $0x198] sm:$0xf]
    %v1442 = vld [vmem:[%s1 + $0x19c] sm:$0xf]
    %v1443 = vld [vmem:[%s1 + $0x1a0] sm:$0xf]
    %v1444 = vld [vmem:[%s1 + $0x1a4] sm:$0xf]
    %v1445 = vld [vmem:[%s1 + $0x1a8] sm:$0xf]
    %v1446 = vld [vmem:[%s1 + $0x1ac] sm:$0xf]
    %v1447 = vld [vmem:[%s1 + $0x1b0] sm:$0xf]
    %v1448 = vld [vmem:[%s1 + $0x1b4] sm:$0xf]
    %v1449 = vld [vmem:[%s1 + $0x1b8] sm:$0xf]
    %v1450 = vld [vmem:[%s1 + $0x1bc] sm:$0xf]
    %v1451 = vld [vmem:[%s1 + $0x1c0] sm:$0xf]
    %v1452 = vld [vmem:[%s1 + $0x1c4] sm:$0xf]
    %v1453 = vld [vmem:[%s1 + $0x1c8] sm:$0xf]
    %v1454 = vld [vmem:[%s1 + $0x1cc] sm:$0xf]
    %v1455 = vld [vmem:[%s1 + $0x1d0] sm:$0xf]
    %v1456 = vld [vmem:[%s1 + $0x1d4] sm:$0xf]
    %v1457 = vld [vmem:[%s1 + $0x1d8] sm:$0xf]
    %v1458 = vld [vmem:[%s1 + $0x1dc] sm:$0xf]
    %v1459 = vld [vmem:[%s1 + $0x1e0] sm:$0xf]
    %v1460 = vld [vmem:[%s1 + $0x1e4] sm:$0xf]
    %v1461 = vld [vmem:[%s1 + $0x1e8] sm:$0xf]
    %v1462 = vld [vmem:[%s1 + $0x1ec] sm:$0xf]
    %v1463 = vld [vmem:[%s1 + $0x1f0] sm:$0xf]
    %v1464 = vld [vmem:[%s1 + $0x1f4] sm:$0xf]
    %v1465 = vld [vmem:[%s1 + $0x1f8] sm:$0xf]
    %v1466 = vld [vmem:[%s1 + $0x1fc] sm:$0xf]
    %v1467 = vld [vmem:[%s1 + $0x200] sm:$0xf]
    %v1468 = vld [vmem:[%s1 + $0x204] sm:$0xf]
    %v1469 = vld [vmem:[%s1 + $0x208] sm:$0xf]
    %v1470 = vld [vmem:[%s1 + $0x20c] sm:$0xf]
    %v1471 = vld [vmem:[%s1 + $0x210] sm:$0xf]
    %v1472 = vld [vmem:[%s1 + $0x214] sm:$0xf]
    %v1473 = vld [vmem:[%s1 + $0x218] sm:$0xf]
    %v1474 = vld [vmem:[%s1 + $0x21c] sm:$0xf]
    %v1475 = vld [vmem:[%s1 + $0x220] sm:$0xf]
    %v1476 = vld [vmem:[%s1 + $0x224] sm:$0xf]
    %v1477 = vld [vmem:[%s1 + $0x228] sm:$0xf]
    %v1478 = vld [vmem:[%s1 + $0x22c] sm:$0xf]
    %v1479 = vld [vmem:[%s1 + $0x230] sm:$0xf]
    %v1480 = vld [vmem:[%s1 + $0x234] sm:$0xf]
    %v1481 = vld [vmem:[%s1 + $0x238] sm:$0xf]
    %v1482 = vld [vmem:[%s1 + $0x23c] sm:$0xf]
    %v1483 = vld [vmem:[%s1 + $0x240] sm:$0xf]
    %v1484 = vld [vmem:[%s1 + $0x244] sm:$0xf]
    %v1485 = vld [vmem:[%s1 + $0x248] sm:$0xf]
    %v1486 = vld [vmem:[%s1 + $0x24c] sm:$0xf]
    %v1487 = vld [vmem:[%s1 + $0x250] sm:$0xf]
    %v1488 = vld [vmem:[%s1 + $0x254] sm:$0xf]
    %v1489 = vld [vmem:[%s1 + $0x258] sm:$0xf]
    %v1490 = vld [vmem:[%s1 + $0x25c] sm:$0xf]
    %v1491 = vld [vmem:[%s1 + $0x260] sm:$0xf]
    %v1492 = vld [vmem:[%s1 + $0x264] sm:$0xf]
    %v1493 = vld [vmem:[%s1 + $0x268] sm:$0xf]
    %v1494 = vld [vmem:[%s1 + $0x26c] sm:$0xf]
    %v1495 = vld [vmem:[%s1 + $0x270] sm:$0xf]
    %v1496 = vld [vmem:[%s1 + $0x274] sm:$0xf]
    %v1497 = vld [vmem:[%s1 + $0x278] sm:$0xf]
    %v1498 = vld [vmem:[%s1 + $0x27c] sm:$0xf]
    %v1499 = vld [vmem:[%s1 + $0x280] sm:$0xf]
    %v1500 = vld [vmem:[%s1 + $0x284] sm:$0xf]
    %v1501 = vld [vmem:[%s1 + $0x288] sm:$0xf]
    %v1502 = vld [vmem:[%s1 + $0x28c] sm:$0xf]
    %v1503 = vld [vmem:[%s1 + $0x290] sm:$0xf]
    %v1504 = vld [vmem:[%s1 + $0x294] sm:$0xf]
    %v1505 = vld [vmem:[%s1 + $0x298] sm:$0xf]
    %v1506 = vld [vmem:[%s1 + $0x29c] sm:$0xf]
    %v1507 = vld [vmem:[%s1 + $0x2a0] sm:$0xf]
    %v1508 = vld [vmem:[%s1 + $0x2a4] sm:$0xf]
    %v1509 = vld [vmem:[%s1 + $0x2a8] sm:$0xf]
    %v1510 = vld [vmem:[%s1 + $0x2ac] sm:$0xf]
    %v1511 = vld [vmem:[%s1 + $0x2b0] sm:$0xf]
    %v1512 = vld [vmem:[%s1 + $0x2b4] sm:$0xf]
    %v1513 = vld [vmem:[%s1 + $0x2b8] sm:$0xf]
    %v1514 = vld [vmem:[%s1 + $0x2bc] sm:$0xf]
    %v1515 = vld [vmem:[%s1 + $0x2c0] sm:$0xf]
    %v1516 = vld [vmem:[%s1 + $0x2c4] sm:$0xf]
    %v1517 = vld [vmem:[%s1 + $0x2c8] sm:$0xf]
    %v1518 = vld [vmem:[%s1 + $0x2cc] sm:$0xf]
    %v1519 = vld [vmem:[%s1 + $0x2d0] sm:$0xf]
    %v1520 = vld [vmem:[%s1 + $0x2d4] sm:$0xf]
    %v1521 = vld [vmem:[%s1 + $0x2d8] sm:$0xf]
    %v1522 = vld [vmem:[%s1 + $0x2dc] sm:$0xf]
    %v1523 = vld [vmem:[%s1 + $0x2e0] sm:$0xf]
    %v1524 = vld [vmem:[%s1 + $0x2e4] sm:$0xf]
    %v1525 = vld [vmem:[%s1 + $0x2e8] sm:$0xf]
    %v1526 = vld [vmem:[%s1 + $0x2ec] sm:$0xf]
    %v1527 = vld [vmem:[%s1 + $0x2f0] sm:$0xf]
    %v1528 = vld [vmem:[%s1 + $0x2f4] sm:$0xf]
    %v1529 = vld [vmem:[%s1 + $0x2f8] sm:$0xf]
    %v1530 = vld [vmem:[%s1 + $0x2fc] sm:$0xf]
    %v1531 = vld [vmem:[%s1 + $0x300] sm:$0xf]
    %v1532 = vld [vmem:[%s1 + $0x304] sm:$0xf]
    %v1533 = vld [vmem:[%s1 + $0x308] sm:$0xf]
    %v1534 = vld [vmem:[%s1 + $0x30c] sm:$0xf]
    %v1535 = vld [vmem:[%s1 + $0x310] sm:$0xf]
    %v1536 = vld [vmem:[%s1 + $0x314] sm:$0xf]
    %v1537 = vld [vmem:[%s1 + $0x318] sm:$0xf]
    %v1538 = vld [vmem:[%s1 + $0x31c] sm:$0xf]
    %v1539 = vld [vmem:[%s1 + $0x320] sm:$0xf]
    %v1540 = vld [vmem:[%s1 + $0x324] sm:$0xf]
    %v1541 = vld [vmem:[%s1 + $0x328] sm:$0xf]
    %v1542 = vld [vmem:[%s1 + $0x32c] sm:$0xf]
    %v1543 = vld [vmem:[%s1 + $0x330] sm:$0xf]
    %v1544 = vld [vmem:[%s1 + $0x334] sm:$0xf]
    %v1545 = vld [vmem:[%s1 + $0x338] sm:$0xf]
    %v1546 = vld [vmem:[%s1 + $0x33c] sm:$0xf]
    %v1547 = vld [vmem:[%s1 + $0x340] sm:$0xf]
    %v1548 = vld [vmem:[%s1 + $0x344] sm:$0xf]
    %v1549 = vld [vmem:[%s1 + $0x348] sm:$0xf]
    %v1550 = vld [vmem:[%s1 + $0x34c] sm:$0xf]
    %v1551 = vld [vmem:[%s1 + $0x350] sm:$0xf]
    %v1552 = vld [vmem:[%s1 + $0x354] sm:$0xf]
    %v1553 = vld [vmem:[%s1 + $0x358] sm:$0xf]
    %v1554 = vld [vmem:[%s1 + $0x35c] sm:$0xf]
    %v1555 = vld [vmem:[%s1 + $0x360] sm:$0xf]
    %v1556 = vld [vmem:[%s1 + $0x364] sm:$0xf]
    %v1557 = vld [vmem:[%s1 + $0x368] sm:$0xf]
    %v1558 = vld [vmem:[%s1 + $0x36c] sm:$0xf]
    %v1559 = vld [vmem:[%s1 + $0x370] sm:$0xf]
    %v1560 = vld [vmem:[%s1 + $0x374] sm:$0xf]
    %v1561 = vld [vmem:[%s1 + $0x378] sm:$0xf]
    %v1562 = vld [vmem:[%s1 + $0x37c] sm:$0xf]
    %v1563 = vld [vmem:[%s1 + $0x380] sm:$0xf]
    %v1564 = vld [vmem:[%s1 + $0x384] sm:$0xf]
    %v1565 = vld [vmem:[%s1 + $0x388] sm:$0xf]
    %v1566 = vld [vmem:[%s1 + $0x38c] sm:$0xf]
    %v1567 = vld [vmem:[%s1 + $0x390] sm:$0xf]
    %v1568 = vld [vmem:[%s1 + $0x394] sm:$0xf]
    %v1569 = vld [vmem:[%s1 + $0x398] sm:$0xf]
    %v1570 = vld [vmem:[%s1 + $0x39c] sm:$0xf]
    %v1571 = vld [vmem:[%s1 + $0x3a0] sm:$0xf]
    %v1572 = vld [vmem:[%s1 + $0x3a4] sm:$0xf]
    %v1573 = vld [vmem:[%s1 + $0x3a8] sm:$0xf]
    %v1574 = vld [vmem:[%s1 + $0x3ac] sm:$0xf]
    %v1575 = vld [vmem:[%s1 + $0x3b0] sm:$0xf]
    %v1576 = vld [vmem:[%s1 + $0x3b4] sm:$0xf]
    %v1577 = vld [vmem:[%s1 + $0x3b8] sm:$0xf]
    %v1578 = vld [vmem:[%s1 + $0x3bc] sm:$0xf]
    %v1579 = vld [vmem:[%s1 + $0x3c0] sm:$0xf]
    %v1580 = vld [vmem:[%s1 + $0x3c4] sm:$0xf]
    %v1581 = vld [vmem:[%s1 + $0x3c8] sm:$0xf]
    %v1582 = vld [vmem:[%s1 + $0x3cc] sm:$0xf]
    %v1583 = vld [vmem:[%s1 + $0x3d0] sm:$0xf]
    %v1584 = vld [vmem:[%s1 + $0x3d4] sm:$0xf]
    %v1585 = vld [vmem:[%s1 + $0x3d8] sm:$0xf]
    %v1586 = vld [vmem:[%s1 + $0x3dc] sm:$0xf]
    %v1587 = vld [vmem:[%s1 + $0x3e0] sm:$0xf]
    %v1588 = vld [vmem:[%s1 + $0x3e4] sm:$0xf]
    %v1589 = vld [vmem:[%s1 + $0x3e8] sm:$0xf]
    %v1590 = vld [vmem:[%s1 + $0x3ec] sm:$0xf]
    %v1591 = vld [vmem:[%s1 + $0x3f0] sm:$0xf]
    %v1592 = vld [vmem:[%s1 + $0x3f4] sm:$0xf]
    %v1593 = vld [vmem:[%s1 + $0x3f8] sm:$0xf]
    %v1594 = vld [vmem:[%s1 + $0x3fc] sm:$0xf]
    %v1595 = vld [vmem:[%s2] sm:$0x1]
    %v1597 = vperm.slane %v1595, 0
    %v1855 = vunpack.c.l.b16 %v1339
    %v1856 = vunpack.c.l.b16 %v1340
    %v1857 = vunpack.c.l.b16 %v1341
    %v1858 = vunpack.c.l.b16 %v1342
    %v1859 = vunpack.c.l.b16 %v1343
    %v1860 = vunpack.c.l.b16 %v1344
    %v1861 = vunpack.c.l.b16 %v1345
    %v1862 = vunpack.c.l.b16 %v1346
    %v1863 = vunpack.c.l.b16 %v1347
    %v1864 = vunpack.c.l.b16 %v1348
    %v1865 = vunpack.c.l.b16 %v1349
    %v1866 = vunpack.c.l.b16 %v1350
    %v1867 = vunpack.c.l.b16 %v1351
    %v1868 = vunpack.c.l.b16 %v1352
    %v1869 = vunpack.c.l.b16 %v1353
    %v1870 = vunpack.c.l.b16 %v1354
    %v1871 = vunpack.c.l.b16 %v1355
    %v1872 = vunpack.c.l.b16 %v1356
    %v1873 = vunpack.c.l.b16 %v1357
    %v1874 = vunpack.c.l.b16 %v1358
    %v1875 = vunpack.c.l.b16 %v1359
    %v1876 = vunpack.c.l.b16 %v1360
    %v1877 = vunpack.c.l.b16 %v1361
    %v1878 = vunpack.c.l.b16 %v1362
    %v1879 = vunpack.c.l.b16 %v1363
    %v1880 = vunpack.c.l.b16 %v1364
    %v1881 = vunpack.c.l.b16 %v1365
    %v1882 = vunpack.c.l.b16 %v1366
    %v1883 = vunpack.c.l.b16 %v1367
    %v1884 = vunpack.c.l.b16 %v1368
    %v1885 = vunpack.c.l.b16 %v1369
    %v1886 = vunpack.c.l.b16 %v1370
    %v1887 = vunpack.c.l.b16 %v1371
    %v1888 = vunpack.c.l.b16 %v1372
    %v1889 = vunpack.c.l.b16 %v1373
    %v1890 = vunpack.c.l.b16 %v1374
    %v1891 = vunpack.c.l.b16 %v1375
    %v1892 = vunpack.c.l.b16 %v1376
    %v1893 = vunpack.c.l.b16 %v1377
    %v1894 = vunpack.c.l.b16 %v1378
    %v1895 = vunpack.c.l.b16 %v1379
    %v1896 = vunpack.c.l.b16 %v1380
    %v1897 = vunpack.c.l.b16 %v1381
    %v1898 = vunpack.c.l.b16 %v1382
    %v1899 = vunpack.c.l.b16 %v1383
    %v1900 = vunpack.c.l.b16 %v1384
    %v1901 = vunpack.c.l.b16 %v1385
    %v1902 = vunpack.c.l.b16 %v1386
    %v1903 = vunpack.c.l.b16 %v1387
    %v1904 = vunpack.c.l.b16 %v1388
    %v1905 = vunpack.c.l.b16 %v1389
    %v1906 = vunpack.c.l.b16 %v1390
    %v1907 = vunpack.c.l.b16 %v1391
    %v1908 = vunpack.c.l.b16 %v1392
    %v1909 = vunpack.c.l.b16 %v1393
    %v1910 = vunpack.c.l.b16 %v1394
    %v1911 = vunpack.c.l.b16 %v1395
    %v1912 = vunpack.c.l.b16 %v1396
    %v1913 = vunpack.c.l.b16 %v1397
    %v1914 = vunpack.c.l.b16 %v1398
    %v1915 = vunpack.c.l.b16 %v1399
    %v1916 = vunpack.c.l.b16 %v1400
    %v1917 = vunpack.c.l.b16 %v1401
    %v1918 = vunpack.c.l.b16 %v1402
    %v1919 = vunpack.c.l.b16 %v1403
    %v1920 = vunpack.c.l.b16 %v1404
    %v1921 = vunpack.c.l.b16 %v1405
    %v1922 = vunpack.c.l.b16 %v1406
    %v1923 = vunpack.c.l.b16 %v1407
    %v1924 = vunpack.c.l.b16 %v1408
    %v1925 = vunpack.c.l.b16 %v1409
    %v1926 = vunpack.c.l.b16 %v1410
    %v1927 = vunpack.c.l.b16 %v1411
    %v1928 = vunpack.c.l.b16 %v1412
    %v1929 = vunpack.c.l.b16 %v1413
    %v1930 = vunpack.c.l.b16 %v1414
    %v1931 = vunpack.c.l.b16 %v1415
    %v1932 = vunpack.c.l.b16 %v1416
    %v1933 = vunpack.c.l.b16 %v1417
    %v1934 = vunpack.c.l.b16 %v1418
    %v1935 = vunpack.c.l.b16 %v1419
    %v1936 = vunpack.c.l.b16 %v1420
    %v1937 = vunpack.c.l.b16 %v1421
    %v1938 = vunpack.c.l.b16 %v1422
    %v1939 = vunpack.c.l.b16 %v1423
    %v1940 = vunpack.c.l.b16 %v1424
    %v1941 = vunpack.c.l.b16 %v1425
    %v1942 = vunpack.c.l.b16 %v1426
    %v1943 = vunpack.c.l.b16 %v1427
    %v1944 = vunpack.c.l.b16 %v1428
    %v1945 = vunpack.c.l.b16 %v1429
    %v1946 = vunpack.c.l.b16 %v1430
    %v1947 = vunpack.c.l.b16 %v1431
    %v1948 = vunpack.c.l.b16 %v1432
    %v1949 = vunpack.c.l.b16 %v1433
    %v1950 = vunpack.c.l.b16 %v1434
    %v1951 = vunpack.c.l.b16 %v1435
    %v1952 = vunpack.c.l.b16 %v1436
    %v1953 = vunpack.c.l.b16 %v1437
    %v1954 = vunpack.c.l.b16 %v1438
    %v1955 = vunpack.c.l.b16 %v1439
    %v1956 = vunpack.c.l.b16 %v1440
    %v1957 = vunpack.c.l.b16 %v1441
    %v1958 = vunpack.c.l.b16 %v1442
    %v1959 = vunpack.c.l.b16 %v1443
    %v1960 = vunpack.c.l.b16 %v1444
    %v1961 = vunpack.c.l.b16 %v1445
    %v1962 = vunpack.c.l.b16 %v1446
    %v1963 = vunpack.c.l.b16 %v1447
    %v1964 = vunpack.c.l.b16 %v1448
    %v1965 = vunpack.c.l.b16 %v1449
    %v1966 = vunpack.c.l.b16 %v1450
    %v1967 = vunpack.c.l.b16 %v1451
    %v1968 = vunpack.c.l.b16 %v1452
    %v1969 = vunpack.c.l.b16 %v1453
    %v1970 = vunpack.c.l.b16 %v1454
    %v1971 = vunpack.c.l.b16 %v1455
    %v1972 = vunpack.c.l.b16 %v1456
    %v1973 = vunpack.c.l.b16 %v1457
    %v1974 = vunpack.c.l.b16 %v1458
    %v1975 = vunpack.c.l.b16 %v1459
    %v1976 = vunpack.c.l.b16 %v1460
    %v1977 = vunpack.c.l.b16 %v1461
    %v1978 = vunpack.c.l.b16 %v1462
    %v1979 = vunpack.c.l.b16 %v1463
    %v1980 = vunpack.c.l.b16 %v1464
    %v1981 = vunpack.c.l.b16 %v1465
    %v1982 = vunpack.c.l.b16 %v1466
    %v1983 = vunpack.c.l.b16 %v1467
    %v1984 = vunpack.c.l.b16 %v1468
    %v1985 = vunpack.c.l.b16 %v1469
    %v1986 = vunpack.c.l.b16 %v1470
    %v1987 = vunpack.c.l.b16 %v1471
    %v1988 = vunpack.c.l.b16 %v1472
    %v1989 = vunpack.c.l.b16 %v1473
    %v1990 = vunpack.c.l.b16 %v1474
    %v1991 = vunpack.c.l.b16 %v1475
    %v1992 = vunpack.c.l.b16 %v1476
    %v1993 = vunpack.c.l.b16 %v1477
    %v1994 = vunpack.c.l.b16 %v1478
    %v1995 = vunpack.c.l.b16 %v1479
    %v1996 = vunpack.c.l.b16 %v1480
    %v1997 = vunpack.c.l.b16 %v1481
    %v1998 = vunpack.c.l.b16 %v1482
    %v1999 = vunpack.c.l.b16 %v1483
    %v2000 = vunpack.c.l.b16 %v1484
    %v2001 = vunpack.c.l.b16 %v1485
    %v2002 = vunpack.c.l.b16 %v1486
    %v2003 = vunpack.c.l.b16 %v1487
    %v2004 = vunpack.c.l.b16 %v1488
    %v2005 = vunpack.c.l.b16 %v1489
    %v2006 = vunpack.c.l.b16 %v1490
    %v2007 = vunpack.c.l.b16 %v1491
    %v2008 = vunpack.c.l.b16 %v1492
    %v2009 = vunpack.c.l.b16 %v1493
    %v2010 = vunpack.c.l.b16 %v1494
    %v2011 = vunpack.c.l.b16 %v1495
    %v2012 = vunpack.c.l.b16 %v1496
    %v2013 = vunpack.c.l.b16 %v1497
    %v2014 = vunpack.c.l.b16 %v1498
    %v2015 = vunpack.c.l.b16 %v1499
    %v2016 = vunpack.c.l.b16 %v1500
    %v2017 = vunpack.c.l.b16 %v1501
    %v2018 = vunpack.c.l.b16 %v1502
    %v2019 = vunpack.c.l.b16 %v1503
    %v2020 = vunpack.c.l.b16 %v1504
    %v2021 = vunpack.c.l.b16 %v1505
    %v2022 = vunpack.c.l.b16 %v1506
    %v2023 = vunpack.c.l.b16 %v1507
    %v2024 = vunpack.c.l.b16 %v1508
    %v2025 = vunpack.c.l.b16 %v1509
    %v2026 = vunpack.c.l.b16 %v1510
    %v2027 = vunpack.c.l.b16 %v1511
    %v2028 = vunpack.c.l.b16 %v1512
    %v2029 = vunpack.c.l.b16 %v1513
    %v2030 = vunpack.c.l.b16 %v1514
    %v2031 = vunpack.c.l.b16 %v1515
    %v2032 = vunpack.c.l.b16 %v1516
    %v2033 = vunpack.c.l.b16 %v1517
    %v2034 = vunpack.c.l.b16 %v1518
    %v2035 = vunpack.c.l.b16 %v1519
    %v2036 = vunpack.c.l.b16 %v1520
    %v2037 = vunpack.c.l.b16 %v1521
    %v2038 = vunpack.c.l.b16 %v1522
    %v2039 = vunpack.c.l.b16 %v1523
    %v2040 = vunpack.c.l.b16 %v1524
    %v2041 = vunpack.c.l.b16 %v1525
    %v2042 = vunpack.c.l.b16 %v1526
    %v2043 = vunpack.c.l.b16 %v1527
    %v2044 = vunpack.c.l.b16 %v1528
    %v2045 = vunpack.c.l.b16 %v1529
    %v2046 = vunpack.c.l.b16 %v1530
    %v2047 = vunpack.c.l.b16 %v1531
    %v2048 = vunpack.c.l.b16 %v1532
    %v2049 = vunpack.c.l.b16 %v1533
    %v2050 = vunpack.c.l.b16 %v1534
    %v2051 = vunpack.c.l.b16 %v1535
    %v2052 = vunpack.c.l.b16 %v1536
    %v2053 = vunpack.c.l.b16 %v1537
    %v2054 = vunpack.c.l.b16 %v1538
    %v2055 = vunpack.c.l.b16 %v1539
    %v2056 = vunpack.c.l.b16 %v1540
    %v2057 = vunpack.c.l.b16 %v1541
    %v2058 = vunpack.c.l.b16 %v1542
    %v2059 = vunpack.c.l.b16 %v1543
    %v2060 = vunpack.c.l.b16 %v1544
    %v2061 = vunpack.c.l.b16 %v1545
    %v2062 = vunpack.c.l.b16 %v1546
    %v2063 = vunpack.c.l.b16 %v1547
    %v2064 = vunpack.c.l.b16 %v1548
    %v2065 = vunpack.c.l.b16 %v1549
    %v2066 = vunpack.c.l.b16 %v1550
    %v2067 = vunpack.c.l.b16 %v1551
    %v2068 = vunpack.c.l.b16 %v1552
    %v2069 = vunpack.c.l.b16 %v1553
    %v2070 = vunpack.c.l.b16 %v1554
    %v2071 = vunpack.c.l.b16 %v1555
    %v2072 = vunpack.c.l.b16 %v1556
    %v2073 = vunpack.c.l.b16 %v1557
    %v2074 = vunpack.c.l.b16 %v1558
    %v2075 = vunpack.c.l.b16 %v1559
    %v2076 = vunpack.c.l.b16 %v1560
    %v2077 = vunpack.c.l.b16 %v1561
    %v2078 = vunpack.c.l.b16 %v1562
    %v2079 = vunpack.c.l.b16 %v1563
    %v2080 = vunpack.c.l.b16 %v1564
    %v2081 = vunpack.c.l.b16 %v1565
    %v2082 = vunpack.c.l.b16 %v1566
    %v2083 = vunpack.c.l.b16 %v1567
    %v2084 = vunpack.c.l.b16 %v1568
    %v2085 = vunpack.c.l.b16 %v1569
    %v2086 = vunpack.c.l.b16 %v1570
    %v2087 = vunpack.c.l.b16 %v1571
    %v2088 = vunpack.c.l.b16 %v1572
    %v2089 = vunpack.c.l.b16 %v1573
    %v2090 = vunpack.c.l.b16 %v1574
    %v2091 = vunpack.c.l.b16 %v1575
    %v2092 = vunpack.c.l.b16 %v1576
    %v2093 = vunpack.c.l.b16 %v1577
    %v2094 = vunpack.c.l.b16 %v1578
    %v2095 = vunpack.c.l.b16 %v1579
    %v2096 = vunpack.c.l.b16 %v1580
    %v2097 = vunpack.c.l.b16 %v1581
    %v2098 = vunpack.c.l.b16 %v1582
    %v2099 = vunpack.c.l.b16 %v1583
    %v2100 = vunpack.c.l.b16 %v1584
    %v2101 = vunpack.c.l.b16 %v1585
    %v2102 = vunpack.c.l.b16 %v1586
    %v2103 = vunpack.c.l.b16 %v1587
    %v2104 = vunpack.c.l.b16 %v1588
    %v2105 = vunpack.c.l.b16 %v1589
    %v2106 = vunpack.c.l.b16 %v1590
    %v2107 = vunpack.c.l.b16 %v1591
    %v2108 = vunpack.c.l.b16 %v1592
    %v2109 = vunpack.c.l.b16 %v1593
    %v2110 = vunpack.c.l.b16 %v1594
    %v2111 = vpack.c.b16 %v1856, %v1855
    %v2112 = vpack.c.b16 %v1858, %v1857
    %v2113 = vpack.c.b16 %v1860, %v1859
    %v2114 = vpack.c.b16 %v1862, %v1861
    %v2115 = vpack.c.b16 %v1864, %v1863
    %v2116 = vpack.c.b16 %v1866, %v1865
    %v2117 = vpack.c.b16 %v1868, %v1867
    %v2118 = vpack.c.b16 %v1870, %v1869
    %v2119 = vpack.c.b16 %v1872, %v1871
    %v2120 = vpack.c.b16 %v1874, %v1873
    %v2121 = vpack.c.b16 %v1876, %v1875
    %v2122 = vpack.c.b16 %v1878, %v1877
    %v2123 = vpack.c.b16 %v1880, %v1879
    %v2124 = vpack.c.b16 %v1882, %v1881
    %v2125 = vpack.c.b16 %v1884, %v1883
    %v2126 = vpack.c.b16 %v1886, %v1885
    %v2127 = vpack.c.b16 %v1888, %v1887
    %v2128 = vpack.c.b16 %v1890, %v1889
    %v2129 = vpack.c.b16 %v1892, %v1891
    %v2130 = vpack.c.b16 %v1894, %v1893
    %v2131 = vpack.c.b16 %v1896, %v1895
    %v2132 = vpack.c.b16 %v1898, %v1897
    %v2133 = vpack.c.b16 %v1900, %v1899
    %v2134 = vpack.c.b16 %v1902, %v1901
    %v2135 = vpack.c.b16 %v1904, %v1903
    %v2136 = vpack.c.b16 %v1906, %v1905
    %v2137 = vpack.c.b16 %v1908, %v1907
    %v2138 = vpack.c.b16 %v1910, %v1909
    %v2139 = vpack.c.b16 %v1912, %v1911
    %v2140 = vpack.c.b16 %v1914, %v1913
    %v2141 = vpack.c.b16 %v1916, %v1915
    %v2142 = vpack.c.b16 %v1918, %v1917
    %v2143 = vpack.c.b16 %v1920, %v1919
    %v2144 = vpack.c.b16 %v1922, %v1921
    %v2145 = vpack.c.b16 %v1924, %v1923
    %v2146 = vpack.c.b16 %v1926, %v1925
    %v2147 = vpack.c.b16 %v1928, %v1927
    %v2148 = vpack.c.b16 %v1930, %v1929
    %v2149 = vpack.c.b16 %v1932, %v1931
    %v2150 = vpack.c.b16 %v1934, %v1933
    %v2151 = vpack.c.b16 %v1936, %v1935
    %v2152 = vpack.c.b16 %v1938, %v1937
    %v2153 = vpack.c.b16 %v1940, %v1939
    %v2154 = vpack.c.b16 %v1942, %v1941
    %v2155 = vpack.c.b16 %v1944, %v1943
    %v2156 = vpack.c.b16 %v1946, %v1945
    %v2157 = vpack.c.b16 %v1948, %v1947
    %v2158 = vpack.c.b16 %v1950, %v1949
    %v2159 = vpack.c.b16 %v1952, %v1951
    %v2160 = vpack.c.b16 %v1954, %v1953
    %v2161 = vpack.c.b16 %v1956, %v1955
    %v2162 = vpack.c.b16 %v1958, %v1957
    %v2163 = vpack.c.b16 %v1960, %v1959
    %v2164 = vpack.c.b16 %v1962, %v1961
    %v2165 = vpack.c.b16 %v1964, %v1963
    %v2166 = vpack.c.b16 %v1966, %v1965
    %v2167 = vpack.c.b16 %v1968, %v1967
    %v2168 = vpack.c.b16 %v1970, %v1969
    %v2169 = vpack.c.b16 %v1972, %v1971
    %v2170 = vpack.c.b16 %v1974, %v1973
    %v2171 = vpack.c.b16 %v1976, %v1975
    %v2172 = vpack.c.b16 %v1978, %v1977
    %v2173 = vpack.c.b16 %v1980, %v1979
    %v2174 = vpack.c.b16 %v1982, %v1981
    %v2175 = vpack.c.b16 %v1984, %v1983
    %v2176 = vpack.c.b16 %v1986, %v1985
    %v2177 = vpack.c.b16 %v1988, %v1987
    %v2178 = vpack.c.b16 %v1990, %v1989
    %v2179 = vpack.c.b16 %v1992, %v1991
    %v2180 = vpack.c.b16 %v1994, %v1993
    %v2181 = vpack.c.b16 %v1996, %v1995
    %v2182 = vpack.c.b16 %v1998, %v1997
    %v2183 = vpack.c.b16 %v2000, %v1999
    %v2184 = vpack.c.b16 %v2002, %v2001
    %v2185 = vpack.c.b16 %v2004, %v2003
    %v2186 = vpack.c.b16 %v2006, %v2005
    %v2187 = vpack.c.b16 %v2008, %v2007
    %v2188 = vpack.c.b16 %v2010, %v2009
    %v2189 = vpack.c.b16 %v2012, %v2011
    %v2190 = vpack.c.b16 %v2014, %v2013
    %v2191 = vpack.c.b16 %v2016, %v2015
    %v2192 = vpack.c.b16 %v2018, %v2017
    %v2193 = vpack.c.b16 %v2020, %v2019
    %v2194 = vpack.c.b16 %v2022, %v2021
    %v2195 = vpack.c.b16 %v2024, %v2023
    %v2196 = vpack.c.b16 %v2026, %v2025
    %v2197 = vpack.c.b16 %v2028, %v2027
    %v2198 = vpack.c.b16 %v2030, %v2029
    %v2199 = vpack.c.b16 %v2032, %v2031
    %v2200 = vpack.c.b16 %v2034, %v2033
    %v2201 = vpack.c.b16 %v2036, %v2035
    %v2202 = vpack.c.b16 %v2038, %v2037
    %v2203 = vpack.c.b16 %v2040, %v2039
    %v2204 = vpack.c.b16 %v2042, %v2041
    %v2205 = vpack.c.b16 %v2044, %v2043
    %v2206 = vpack.c.b16 %v2046, %v2045
    %v2207 = vpack.c.b16 %v2048, %v2047
    %v2208 = vpack.c.b16 %v2050, %v2049
    %v2209 = vpack.c.b16 %v2052, %v2051
    %v2210 = vpack.c.b16 %v2054, %v2053
    %v2211 = vpack.c.b16 %v2056, %v2055
    %v2212 = vpack.c.b16 %v2058, %v2057
    %v2213 = vpack.c.b16 %v2060, %v2059
    %v2214 = vpack.c.b16 %v2062, %v2061
    %v2215 = vpack.c.b16 %v2064, %v2063
    %v2216 = vpack.c.b16 %v2066, %v2065
    %v2217 = vpack.c.b16 %v2068, %v2067
    %v2218 = vpack.c.b16 %v2070, %v2069
    %v2219 = vpack.c.b16 %v2072, %v2071
    %v2220 = vpack.c.b16 %v2074, %v2073
    %v2221 = vpack.c.b16 %v2076, %v2075
    %v2222 = vpack.c.b16 %v2078, %v2077
    %v2223 = vpack.c.b16 %v2080, %v2079
    %v2224 = vpack.c.b16 %v2082, %v2081
    %v2225 = vpack.c.b16 %v2084, %v2083
    %v2226 = vpack.c.b16 %v2086, %v2085
    %v2227 = vpack.c.b16 %v2088, %v2087
    %v2228 = vpack.c.b16 %v2090, %v2089
    %v2229 = vpack.c.b16 %v2092, %v2091
    %v2230 = vpack.c.b16 %v2094, %v2093
    %v2231 = vpack.c.b16 %v2096, %v2095
    %v2232 = vpack.c.b16 %v2098, %v2097
    %v2233 = vpack.c.b16 %v2100, %v2099
    %v2234 = vpack.c.b16 %v2102, %v2101
    %v2235 = vpack.c.b16 %v2104, %v2103
    %v2236 = vpack.c.b16 %v2106, %v2105
    %v2237 = vpack.c.b16 %v2108, %v2107
    %v2238 = vpack.c.b16 %v2110, %v2109
    %2367 = vmatpush.bf16.msra.mxu0 %v2118
    %2368 = vmatpush.bf16.msra.mxu0 %v2117
    %2369 = vmatpush.bf16.msra.mxu0 %v2116
    %2370 = vmatpush.bf16.msra.mxu0 %v2115
    %2371 = vmatpush.bf16.msra.mxu0 %v2114
    %2372 = vmatpush.bf16.msra.mxu0 %v2113
    %2373 = vmatpush.bf16.msra.mxu0 %v2112
    %2374 = vmatpush.bf16.msra.mxu0 %v2111
    %2375 = vmatmul.bf16.gmra.mxu0 %v1277
    %v2376 = vpop.f32.mrf.mxu0
    %v2377 = vadd.f32 %v1597, %v2376
    %v2378 = vpop.f32.mrf.mxu0
    %2379 = vdwg.mxu0
    %2380 = vmatpush.bf16.msra.mxu0 %v2126
    %2381 = vmatpush.bf16.msra.mxu0 %v2125
    %2382 = vmatpush.bf16.msra.mxu0 %v2124
    %2383 = vmatpush.bf16.msra.mxu0 %v2123
    %2384 = vmatpush.bf16.msra.mxu0 %v2122
    %2385 = vmatpush.bf16.msra.mxu0 %v2121
    %2386 = vmatpush.bf16.msra.mxu0 %v2120
    %2387 = vmatpush.bf16.msra.mxu0 %v2119
    %2388 = vmatmul.bf16.gmra.mxu0 %v1281
    %v2389 = vpop.f32.mrf.mxu0
    %v2390 = vadd.f32 %v2377, %v2389
    %v2391 = vpop.f32.mrf.mxu0
    %2392 = vdwg.mxu0
    %2393 = vmatpush.bf16.msra.mxu0 %v2134
    %2394 = vmatpush.bf16.msra.mxu0 %v2133
    %2395 = vmatpush.bf16.msra.mxu0 %v2132
    %2396 = vmatpush.bf16.msra.mxu0 %v2131
    %2397 = vmatpush.bf16.msra.mxu0 %v2130
    %2398 = vmatpush.bf16.msra.mxu0 %v2129
    %2399 = vmatpush.bf16.msra.mxu0 %v2128
    %2400 = vmatpush.bf16.msra.mxu0 %v2127
    %2401 = vmatmul.bf16.gmra.mxu0 %v1285
    %v2402 = vpop.f32.mrf.mxu0
    %v2403 = vadd.f32 %v2390, %v2402
    %v2404 = vpop.f32.mrf.mxu0
    %2405 = vdwg.mxu0
    %2406 = vmatpush.bf16.msra.mxu0 %v2142
    %2407 = vmatpush.bf16.msra.mxu0 %v2141
    %2408 = vmatpush.bf16.msra.mxu0 %v2140
    %2409 = vmatpush.bf16.msra.mxu0 %v2139
    %2410 = vmatpush.bf16.msra.mxu0 %v2138
    %2411 = vmatpush.bf16.msra.mxu0 %v2137
    %2412 = vmatpush.bf16.msra.mxu0 %v2136
    %2413 = vmatpush.bf16.msra.mxu0 %v2135
    %2414 = vmatmul.bf16.gmra.mxu0 %v1289
    %v2415 = vpop.f32.mrf.mxu0
    %v2416 = vadd.f32 %v2403, %v2415
    %v2417 = vpop.f32.mrf.mxu0
    %2418 = vdwg.mxu0
    %2419 = vmatpush.bf16.msra.mxu0 %v2150
    %2420 = vmatpush.bf16.msra.mxu0 %v2149
    %2421 = vmatpush.bf16.msra.mxu0 %v2148
    %2422 = vmatpush.bf16.msra.mxu0 %v2147
    %2423 = vmatpush.bf16.msra.mxu0 %v2146
    %2424 = vmatpush.bf16.msra.mxu0 %v2145
    %2425 = vmatpush.bf16.msra.mxu0 %v2144
    %2426 = vmatpush.bf16.msra.mxu0 %v2143
    %2427 = vmatmul.bf16.gmra.mxu0 %v1293
    %v2428 = vpop.f32.mrf.mxu0
    %v2429 = vadd.f32 %v2416, %v2428
    %v2430 = vpop.f32.mrf.mxu0
    %2431 = vdwg.mxu0
    %2432 = vmatpush.bf16.msra.mxu0 %v2158
    %2433 = vmatpush.bf16.msra.mxu0 %v2157
    %2434 = vmatpush.bf16.msra.mxu0 %v2156
    %2435 = vmatpush.bf16.msra.mxu0 %v2155
    %2436 = vmatpush.bf16.msra.mxu0 %v2154
    %2437 = vmatpush.bf16.msra.mxu0 %v2153
    %2438 = vmatpush.bf16.msra.mxu0 %v2152
    %2439 = vmatpush.bf16.msra.mxu0 %v2151
    %2440 = vmatmul.bf16.gmra.mxu0 %v1297
    %v2441 = vpop.f32.mrf.mxu0
    %v2442 = vadd.f32 %v2429, %v2441
    %v2443 = vpop.f32.mrf.mxu0
    %2444 = vdwg.mxu0
    %2445 = vmatpush.bf16.msra.mxu0 %v2166
    %2446 = vmatpush.bf16.msra.mxu0 %v2165
    %2447 = vmatpush.bf16.msra.mxu0 %v2164
    %2448 = vmatpush.bf16.msra.mxu0 %v2163
    %2449 = vmatpush.bf16.msra.mxu0 %v2162
    %2450 = vmatpush.bf16.msra.mxu0 %v2161
    %2451 = vmatpush.bf16.msra.mxu0 %v2160
    %2452 = vmatpush.bf16.msra.mxu0 %v2159
    %2453 = vmatmul.bf16.gmra.mxu0 %v1301
    %v2454 = vpop.f32.mrf.mxu0
    %v2455 = vadd.f32 %v2442, %v2454
    %v2456 = vpop.f32.mrf.mxu0
    %2457 = vdwg.mxu0
    %2458 = vmatpush.bf16.msra.mxu0 %v2174
    %2459 = vmatpush.bf16.msra.mxu0 %v2173
    %2460 = vmatpush.bf16.msra.mxu0 %v2172
    %2461 = vmatpush.bf16.msra.mxu0 %v2171
    %2462 = vmatpush.bf16.msra.mxu0 %v2170
    %2463 = vmatpush.bf16.msra.mxu0 %v2169
    %2464 = vmatpush.bf16.msra.mxu0 %v2168
    %2465 = vmatpush.bf16.msra.mxu0 %v2167
    %2466 = vmatmul.bf16.gmra.mxu0 %v1305
    %v2467 = vpop.f32.mrf.mxu0
    %v2468 = vadd.f32 %v2455, %v2467
    %v2469 = vpop.f32.mrf.mxu0
    %2470 = vdwg.mxu0
    %2471 = vmatpush.bf16.msra.mxu0 %v2182
    %2472 = vmatpush.bf16.msra.mxu0 %v2181
    %2473 = vmatpush.bf16.msra.mxu0 %v2180
    %2474 = vmatpush.bf16.msra.mxu0 %v2179
    %2475 = vmatpush.bf16.msra.mxu0 %v2178
    %2476 = vmatpush.bf16.msra.mxu0 %v2177
    %2477 = vmatpush.bf16.msra.mxu0 %v2176
    %2478 = vmatpush.bf16.msra.mxu0 %v2175
    %2479 = vmatmul.bf16.gmra.mxu0 %v1309
    %v2480 = vpop.f32.mrf.mxu0
    %v2481 = vadd.f32 %v2468, %v2480
    %v2482 = vpop.f32.mrf.mxu0
    %2483 = vdwg.mxu0
    %2484 = vmatpush.bf16.msra.mxu0 %v2190
    %2485 = vmatpush.bf16.msra.mxu0 %v2189
    %2486 = vmatpush.bf16.msra.mxu0 %v2188
    %2487 = vmatpush.bf16.msra.mxu0 %v2187
    %2488 = vmatpush.bf16.msra.mxu0 %v2186
    %2489 = vmatpush.bf16.msra.mxu0 %v2185
    %2490 = vmatpush.bf16.msra.mxu0 %v2184
    %2491 = vmatpush.bf16.msra.mxu0 %v2183
    %2492 = vmatmul.bf16.gmra.mxu0 %v1313
    %v2493 = vpop.f32.mrf.mxu0
    %v2494 = vadd.f32 %v2481, %v2493
    %v2495 = vpop.f32.mrf.mxu0
    %2496 = vdwg.mxu0
    %2497 = vmatpush.bf16.msra.mxu0 %v2198
    %2498 = vmatpush.bf16.msra.mxu0 %v2197
    %2499 = vmatpush.bf16.msra.mxu0 %v2196
    %2500 = vmatpush.bf16.msra.mxu0 %v2195
    %2501 = vmatpush.bf16.msra.mxu0 %v2194
    %2502 = vmatpush.bf16.msra.mxu0 %v2193
    %2503 = vmatpush.bf16.msra.mxu0 %v2192
    %2504 = vmatpush.bf16.msra.mxu0 %v2191
    %2505 = vmatmul.bf16.gmra.mxu0 %v1317
    %v2506 = vpop.f32.mrf.mxu0
    %v2507 = vadd.f32 %v2494, %v2506
    %v2508 = vpop.f32.mrf.mxu0
    %2509 = vdwg.mxu0
    %2510 = vmatpush.bf16.msra.mxu0 %v2206
    %2511 = vmatpush.bf16.msra.mxu0 %v2205
    %2512 = vmatpush.bf16.msra.mxu0 %v2204
    %2513 = vmatpush.bf16.msra.mxu0 %v2203
    %2514 = vmatpush.bf16.msra.mxu0 %v2202
    %2515 = vmatpush.bf16.msra.mxu0 %v2201
    %2516 = vmatpush.bf16.msra.mxu0 %v2200
    %2517 = vmatpush.bf16.msra.mxu0 %v2199
    %2518 = vmatmul.bf16.gmra.mxu0 %v1321
    %v2519 = vpop.f32.mrf.mxu0
    %v2520 = vadd.f32 %v2507, %v2519
    %v2521 = vpop.f32.mrf.mxu0
    %2522 = vdwg.mxu0
    %2523 = vmatpush.bf16.msra.mxu0 %v2214
    %2524 = vmatpush.bf16.msra.mxu0 %v2213
    %2525 = vmatpush.bf16.msra.mxu0 %v2212
    %2526 = vmatpush.bf16.msra.mxu0 %v2211
    %2527 = vmatpush.bf16.msra.mxu0 %v2210
    %2528 = vmatpush.bf16.msra.mxu0 %v2209
    %2529 = vmatpush.bf16.msra.mxu0 %v2208
    %2530 = vmatpush.bf16.msra.mxu0 %v2207
    %2531 = vmatmul.bf16.gmra.mxu0 %v1325
    %v2532 = vpop.f32.mrf.mxu0
    %v2533 = vadd.f32 %v2520, %v2532
    %v2534 = vpop.f32.mrf.mxu0
    %2535 = vdwg.mxu0
    %2536 = vmatpush.bf16.msra.mxu0 %v2222
    %2537 = vmatpush.bf16.msra.mxu0 %v2221
    %2538 = vmatpush.bf16.msra.mxu0 %v2220
    %2539 = vmatpush.bf16.msra.mxu0 %v2219
    %2540 = vmatpush.bf16.msra.mxu0 %v2218
    %2541 = vmatpush.bf16.msra.mxu0 %v2217
    %2542 = vmatpush.bf16.msra.mxu0 %v2216
    %2543 = vmatpush.bf16.msra.mxu0 %v2215
    %2544 = vmatmul.bf16.gmra.mxu0 %v1329
    %v2545 = vpop.f32.mrf.mxu0
    %v2546 = vadd.f32 %v2533, %v2545
    %v2547 = vpop.f32.mrf.mxu0
    %2548 = vdwg.mxu0
    %2549 = vmatpush.bf16.msra.mxu0 %v2230
    %2550 = vmatpush.bf16.msra.mxu0 %v2229
    %2551 = vmatpush.bf16.msra.mxu0 %v2228
    %2552 = vmatpush.bf16.msra.mxu0 %v2227
    %2553 = vmatpush.bf16.msra.mxu0 %v2226
    %2554 = vmatpush.bf16.msra.mxu0 %v2225
    %2555 = vmatpush.bf16.msra.mxu0 %v2224
    %2556 = vmatpush.bf16.msra.mxu0 %v2223
    %2557 = vmatmul.bf16.gmra.mxu0 %v1333
    %v2558 = vpop.f32.mrf.mxu0
    %v2559 = vadd.f32 %v2546, %v2558
    %v2560 = vpop.f32.mrf.mxu0
    %2561 = vdwg.mxu0
    %2562 = vmatpush.bf16.msra.mxu0 %v2238
    %2563 = vmatpush.bf16.msra.mxu0 %v2237
    %2564 = vmatpush.bf16.msra.mxu0 %v2236
    %2565 = vmatpush.bf16.msra.mxu0 %v2235
    %2566 = vmatpush.bf16.msra.mxu0 %v2234
    %2567 = vmatpush.bf16.msra.mxu0 %v2233
    %2568 = vmatpush.bf16.msra.mxu0 %v2232
    %2569 = vmatpush.bf16.msra.mxu0 %v2231
    %2570 = vmatmul.bf16.gmra.mxu0 %v1337
    %v2571 = vpop.f32.mrf.mxu0
    %v2572 = vadd.f32 %v2559, %v2571
    %v2573 = vpop.f32.mrf.mxu0
    %2574 = vdwg.mxu0
    %v2575 = vmax.f32 %v2572, 0.0
    %v2576 = vpack.c.bf16 %v2575, %v2575
    %v2577 = vld [vmem:[%s3] sm:$0xff]
    %v2578 = vld [vmem:[%s3 + $0x8] sm:$0xff]
    %v2579 = vld [vmem:[%s3 + $0x10] sm:$0xff]
    %v2580 = vld [vmem:[%s3 + $0x18] sm:$0xff]
    %v2581 = vld [vmem:[%s3 + $0x20] sm:$0xff]
    %v2582 = vld [vmem:[%s3 + $0x28] sm:$0xff]
    %v2583 = vld [vmem:[%s3 + $0x30] sm:$0xff]
    %v2584 = vld [vmem:[%s3 + $0x38] sm:$0xff]
    %v2585 = vld [vmem:[%s3 + $0x40] sm:$0xff]
    %v2586 = vld [vmem:[%s3 + $0x48] sm:$0xff]
    %v2587 = vld [vmem:[%s3 + $0x50] sm:$0xff]
    %v2588 = vld [vmem:[%s3 + $0x58] sm:$0xff]
    %v2589 = vld [vmem:[%s3 + $0x60] sm:$0xff]
    %v2590 = vld [vmem:[%s3 + $0x68] sm:$0xff]
    %v2591 = vld [vmem:[%s3 + $0x70] sm:$0xff]
    %v2592 = vld [vmem:[%s3 + $0x78] sm:$0xff]
    %v2593 = vld [vmem:[%s3 + $0x80] sm:$0xff]
    %v2594 = vld [vmem:[%s3 + $0x88] sm:$0xff]
    %v2595 = vld [vmem:[%s3 + $0x90] sm:$0xff]
    %v2596 = vld [vmem:[%s3 + $0x98] sm:$0xff]
    %v2597 = vld [vmem:[%s3 + $0xa0] sm:$0xff]
    %v2598 = vld [vmem:[%s3 + $0xa8] sm:$0xff]
    %v2599 = vld [vmem:[%s3 + $0xb0] sm:$0xff]
    %v2600 = vld [vmem:[%s3 + $0xb8] sm:$0xff]
    %v2601 = vld [vmem:[%s3 + $0xc0] sm:$0xff]
    %v2602 = vld [vmem:[%s3 + $0xc8] sm:$0xff]
    %v2603 = vld [vmem:[%s3 + $0xd0] sm:$0xff]
    %v2604 = vld [vmem:[%s3 + $0xd8] sm:$0xff]
    %v2605 = vld [vmem:[%s3 + $0xe0] sm:$0xff]
    %v2606 = vld [vmem:[%s3 + $0xe8] sm:$0xff]
    %v2607 = vld [vmem:[%s3 + $0xf0] sm:$0xff]
    %v2608 = vld [vmem:[%s3 + $0xf8] sm:$0xff]
    %v2609 = vld [vmem:[%s3 + $0x100] sm:$0xff]
    %v2610 = vld [vmem:[%s3 + $0x108] sm:$0xff]
    %v2611 = vld [vmem:[%s3 + $0x110] sm:$0xff]
    %v2612 = vld [vmem:[%s3 + $0x118] sm:$0xff]
    %v2613 = vld [vmem:[%s3 + $0x120] sm:$0xff]
    %v2614 = vld [vmem:[%s3 + $0x128] sm:$0xff]
    %v2615 = vld [vmem:[%s3 + $0x130] sm:$0xff]
    %v2616 = vld [vmem:[%s3 + $0x138] sm:$0xff]
    %v2617 = vld [vmem:[%s3 + $0x140] sm:$0xff]
    %v2618 = vld [vmem:[%s3 + $0x148] sm:$0xff]
    %v2619 = vld [vmem:[%s3 + $0x150] sm:$0xff]
    %v2620 = vld [vmem:[%s3 + $0x158] sm:$0xff]
    %v2621 = vld [vmem:[%s3 + $0x160] sm:$0xff]
    %v2622 = vld [vmem:[%s3 + $0x168] sm:$0xff]
    %v2623 = vld [vmem:[%s3 + $0x170] sm:$0xff]
    %v2624 = vld [vmem:[%s3 + $0x178] sm:$0xff]
    %v2625 = vld [vmem:[%s3 + $0x180] sm:$0xff]
    %v2626 = vld [vmem:[%s3 + $0x188] sm:$0xff]
    %v2627 = vld [vmem:[%s3 + $0x190] sm:$0xff]
    %v2628 = vld [vmem:[%s3 + $0x198] sm:$0xff]
    %v2629 = vld [vmem:[%s3 + $0x1a0] sm:$0xff]
    %v2630 = vld [vmem:[%s3 + $0x1a8] sm:$0xff]
    %v2631 = vld [vmem:[%s3 + $0x1b0] sm:$0xff]
    %v2632 = vld [vmem:[%s3 + $0x1b8] sm:$0xff]
    %v2633 = vld [vmem:[%s3 + $0x1c0] sm:$0xff]
    %v2634 = vld [vmem:[%s3 + $0x1c8] sm:$0xff]
    %v2635 = vld [vmem:[%s3 + $0x1d0] sm:$0xff]
    %v2636 = vld [vmem:[%s3 + $0x1d8] sm:$0xff]
    %v2637 = vld [vmem:[%s3 + $0x1e0] sm:$0xff]
    %v2638 = vld [vmem:[%s3 + $0x1e8] sm:$0xff]
    %v2639 = vld [vmem:[%s3 + $0x1f0] sm:$0xff]
    %v2640 = vld [vmem:[%s3 + $0x1f8] sm:$0xff]
    %v2641 = vld [vmem:[%s3 + $0x200] sm:$0xff]
    %v2642 = vld [vmem:[%s3 + $0x208] sm:$0xff]
    %v2643 = vld [vmem:[%s3 + $0x210] sm:$0xff]
    %v2644 = vld [vmem:[%s3 + $0x218] sm:$0xff]
    %v2645 = vld [vmem:[%s3 + $0x220] sm:$0xff]
    %v2646 = vld [vmem:[%s3 + $0x228] sm:$0xff]
    %v2647 = vld [vmem:[%s3 + $0x230] sm:$0xff]
    %v2648 = vld [vmem:[%s3 + $0x238] sm:$0xff]
    %v2649 = vld [vmem:[%s3 + $0x240] sm:$0xff]
    %v2650 = vld [vmem:[%s3 + $0x248] sm:$0xff]
    %v2651 = vld [vmem:[%s3 + $0x250] sm:$0xff]
    %v2652 = vld [vmem:[%s3 + $0x258] sm:$0xff]
    %v2653 = vld [vmem:[%s3 + $0x260] sm:$0xff]
    %v2654 = vld [vmem:[%s3 + $0x268] sm:$0xff]
    %v2655 = vld [vmem:[%s3 + $0x270] sm:$0xff]
    %v2656 = vld [vmem:[%s3 + $0x278] sm:$0xff]
    %v2657 = vld [vmem:[%s3 + $0x280] sm:$0xff]
    %v2658 = vld [vmem:[%s3 + $0x288] sm:$0xff]
    %v2659 = vld [vmem:[%s3 + $0x290] sm:$0xff]
    %v2660 = vld [vmem:[%s3 + $0x298] sm:$0xff]
    %v2661 = vld [vmem:[%s3 + $0x2a0] sm:$0xff]
    %v2662 = vld [vmem:[%s3 + $0x2a8] sm:$0xff]
    %v2663 = vld [vmem:[%s3 + $0x2b0] sm:$0xff]
    %v2664 = vld [vmem:[%s3 + $0x2b8] sm:$0xff]
    %v2665 = vld [vmem:[%s3 + $0x2c0] sm:$0xff]
    %v2666 = vld [vmem:[%s3 + $0x2c8] sm:$0xff]
    %v2667 = vld [vmem:[%s3 + $0x2d0] sm:$0xff]
    %v2668 = vld [vmem:[%s3 + $0x2d8] sm:$0xff]
    %v2669 = vld [vmem:[%s3 + $0x2e0] sm:$0xff]
    %v2670 = vld [vmem:[%s3 + $0x2e8] sm:$0xff]
    %v2671 = vld [vmem:[%s3 + $0x2f0] sm:$0xff]
    %v2672 = vld [vmem:[%s3 + $0x2f8] sm:$0xff]
    %v2673 = vld [vmem:[%s3 + $0x300] sm:$0xff]
    %v2674 = vld [vmem:[%s3 + $0x308] sm:$0xff]
    %v2675 = vld [vmem:[%s3 + $0x310] sm:$0xff]
    %v2676 = vld [vmem:[%s3 + $0x318] sm:$0xff]
    %v2677 = vld [vmem:[%s3 + $0x320] sm:$0xff]
    %v2678 = vld [vmem:[%s3 + $0x328] sm:$0xff]
    %v2679 = vld [vmem:[%s3 + $0x330] sm:$0xff]
    %v2680 = vld [vmem:[%s3 + $0x338] sm:$0xff]
    %v2681 = vld [vmem:[%s3 + $0x340] sm:$0xff]
    %v2682 = vld [vmem:[%s3 + $0x348] sm:$0xff]
    %v2683 = vld [vmem:[%s3 + $0x350] sm:$0xff]
    %v2684 = vld [vmem:[%s3 + $0x358] sm:$0xff]
    %v2685 = vld [vmem:[%s3 + $0x360] sm:$0xff]
    %v2686 = vld [vmem:[%s3 + $0x368] sm:$0xff]
    %v2687 = vld [vmem:[%s3 + $0x370] sm:$0xff]
    %v2688 = vld [vmem:[%s3 + $0x378] sm:$0xff]
    %v2689 = vld [vmem:[%s3 + $0x380] sm:$0xff]
    %v2690 = vld [vmem:[%s3 + $0x388] sm:$0xff]
    %v2691 = vld [vmem:[%s3 + $0x390] sm:$0xff]
    %v2692 = vld [vmem:[%s3 + $0x398] sm:$0xff]
    %v2693 = vld [vmem:[%s3 + $0x3a0] sm:$0xff]
    %v2694 = vld [vmem:[%s3 + $0x3a8] sm:$0xff]
    %v2695 = vld [vmem:[%s3 + $0x3b0] sm:$0xff]
    %v2696 = vld [vmem:[%s3 + $0x3b8] sm:$0xff]
    %v2697 = vld [vmem:[%s3 + $0x3c0] sm:$0xff]
    %v2698 = vld [vmem:[%s3 + $0x3c8] sm:$0xff]
    %v2699 = vld [vmem:[%s3 + $0x3d0] sm:$0xff]
    %v2700 = vld [vmem:[%s3 + $0x3d8] sm:$0xff]
    %v2701 = vld [vmem:[%s3 + $0x3e0] sm:$0xff]
    %v2702 = vld [vmem:[%s3 + $0x3e8] sm:$0xff]
    %v2703 = vld [vmem:[%s3 + $0x3f0] sm:$0xff]
    %v2704 = vld [vmem:[%s3 + $0x3f8] sm:$0xff]
    %v2705 = vld [vmem:[%s4] sm:$0xff]
    %v2706 = vld [vmem:[%s4 + $0x8] sm:$0xff]
    %v2709 = vperm.slane %v2705, 0
    %v2710 = vperm.slane %v2705, 1
    %v2711 = vperm.slane %v2705, 2
    %v2712 = vperm.slane %v2705, 3
    %v2713 = vperm.slane %v2705, 4
    %v2714 = vperm.slane %v2705, 5
    %v2715 = vperm.slane %v2705, 6
    %v2716 = vperm.slane %v2705, 7
    %v2717 = vperm.slane %v2706, 0
    %v2718 = vperm.slane %v2706, 1
    %v2719 = vperm.slane %v2706, 2
    %v2720 = vperm.slane %v2706, 3
    %v2721 = vperm.slane %v2706, 4
    %v2722 = vperm.slane %v2706, 5
    %v2723 = vperm.slane %v2706, 6
    %v2724 = vperm.slane %v2706, 7
    %v2869 = vunpack.c.l.b16 %v2577
    %v2870 = vunpack.c.h.b16 %v2577
    %v2871 = vunpack.c.l.b16 %v2578
    %v2872 = vunpack.c.h.b16 %v2578
    %v2873 = vunpack.c.l.b16 %v2579
    %v2874 = vunpack.c.h.b16 %v2579
    %v2875 = vunpack.c.l.b16 %v2580
    %v2876 = vunpack.c.h.b16 %v2580
    %v2877 = vunpack.c.l.b16 %v2581
    %v2878 = vunpack.c.h.b16 %v2581
    %v2879 = vunpack.c.l.b16 %v2582
    %v2880 = vunpack.c.h.b16 %v2582
    %v2881 = vunpack.c.l.b16 %v2583
    %v2882 = vunpack.c.h.b16 %v2583
    %v2883 = vunpack.c.l.b16 %v2584
    %v2884 = vunpack.c.h.b16 %v2584
    %v2885 = vunpack.c.l.b16 %v2585
    %v2886 = vunpack.c.h.b16 %v2585
    %v2887 = vunpack.c.l.b16 %v2586
    %v2888 = vunpack.c.h.b16 %v2586
    %v2889 = vunpack.c.l.b16 %v2587
    %v2890 = vunpack.c.h.b16 %v2587
    %v2891 = vunpack.c.l.b16 %v2588
    %v2892 = vunpack.c.h.b16 %v2588
    %v2893 = vunpack.c.l.b16 %v2589
    %v2894 = vunpack.c.h.b16 %v2589
    %v2895 = vunpack.c.l.b16 %v2590
    %v2896 = vunpack.c.h.b16 %v2590
    %v2897 = vunpack.c.l.b16 %v2591
    %v2898 = vunpack.c.h.b16 %v2591
    %v2899 = vunpack.c.l.b16 %v2592
    %v2900 = vunpack.c.h.b16 %v2592
    %v2901 = vunpack.c.l.b16 %v2593
    %v2902 = vunpack.c.h.b16 %v2593
    %v2903 = vunpack.c.l.b16 %v2594
    %v2904 = vunpack.c.h.b16 %v2594
    %v2905 = vunpack.c.l.b16 %v2595
    %v2906 = vunpack.c.h.b16 %v2595
    %v2907 = vunpack.c.l.b16 %v2596
    %v2908 = vunpack.c.h.b16 %v2596
    %v2909 = vunpack.c.l.b16 %v2597
    %v2910 = vunpack.c.h.b16 %v2597
    %v2911 = vunpack.c.l.b16 %v2598
    %v2912 = vunpack.c.h.b16 %v2598
    %v2913 = vunpack.c.l.b16 %v2599
    %v2914 = vunpack.c.h.b16 %v2599
    %v2915 = vunpack.c.l.b16 %v2600
    %v2916 = vunpack.c.h.b16 %v2600
    %v2917 = vunpack.c.l.b16 %v2601
    %v2918 = vunpack.c.h.b16 %v2601
    %v2919 = vunpack.c.l.b16 %v2602
    %v2920 = vunpack.c.h.b16 %v2602
    %v2921 = vunpack.c.l.b16 %v2603
    %v2922 = vunpack.c.h.b16 %v2603
    %v2923 = vunpack.c.l.b16 %v2604
    %v2924 = vunpack.c.h.b16 %v2604
    %v2925 = vunpack.c.l.b16 %v2605
    %v2926 = vunpack.c.h.b16 %v2605
    %v2927 = vunpack.c.l.b16 %v2606
    %v2928 = vunpack.c.h.b16 %v2606
    %v2929 = vunpack.c.l.b16 %v2607
    %v2930 = vunpack.c.h.b16 %v2607
    %v2931 = vunpack.c.l.b16 %v2608
    %v2932 = vunpack.c.h.b16 %v2608
    %v2933 = vunpack.c.l.b16 %v2609
    %v2934 = vunpack.c.h.b16 %v2609
    %v2935 = vunpack.c.l.b16 %v2610
    %v2936 = vunpack.c.h.b16 %v2610
    %v2937 = vunpack.c.l.b16 %v2611
    %v2938 = vunpack.c.h.b16 %v2611
    %v2939 = vunpack.c.l.b16 %v2612
    %v2940 = vunpack.c.h.b16 %v2612
    %v2941 = vunpack.c.l.b16 %v2613
    %v2942 = vunpack.c.h.b16 %v2613
    %v2943 = vunpack.c.l.b16 %v2614
    %v2944 = vunpack.c.h.b16 %v2614
    %v2945 = vunpack.c.l.b16 %v2615
    %v2946 = vunpack.c.h.b16 %v2615
    %v2947 = vunpack.c.l.b16 %v2616
    %v2948 = vunpack.c.h.b16 %v2616
    %v2949 = vunpack.c.l.b16 %v2617
    %v2950 = vunpack.c.h.b16 %v2617
    %v2951 = vunpack.c.l.b16 %v2618
    %v2952 = vunpack.c.h.b16 %v2618
    %v2953 = vunpack.c.l.b16 %v2619
    %v2954 = vunpack.c.h.b16 %v2619
    %v2955 = vunpack.c.l.b16 %v2620
    %v2956 = vunpack.c.h.b16 %v2620
    %v2957 = vunpack.c.l.b16 %v2621
    %v2958 = vunpack.c.h.b16 %v2621
    %v2959 = vunpack.c.l.b16 %v2622
    %v2960 = vunpack.c.h.b16 %v2622
    %v2961 = vunpack.c.l.b16 %v2623
    %v2962 = vunpack.c.h.b16 %v2623
    %v2963 = vunpack.c.l.b16 %v2624
    %v2964 = vunpack.c.h.b16 %v2624
    %v2965 = vunpack.c.l.b16 %v2625
    %v2966 = vunpack.c.h.b16 %v2625
    %v2967 = vunpack.c.l.b16 %v2626
    %v2968 = vunpack.c.h.b16 %v2626
    %v2969 = vunpack.c.l.b16 %v2627
    %v2970 = vunpack.c.h.b16 %v2627
    %v2971 = vunpack.c.l.b16 %v2628
    %v2972 = vunpack.c.h.b16 %v2628
    %v2973 = vunpack.c.l.b16 %v2629
    %v2974 = vunpack.c.h.b16 %v2629
    %v2975 = vunpack.c.l.b16 %v2630
    %v2976 = vunpack.c.h.b16 %v2630
    %v2977 = vunpack.c.l.b16 %v2631
    %v2978 = vunpack.c.h.b16 %v2631
    %v2979 = vunpack.c.l.b16 %v2632
    %v2980 = vunpack.c.h.b16 %v2632
    %v2981 = vunpack.c.l.b16 %v2633
    %v2982 = vunpack.c.h.b16 %v2633
    %v2983 = vunpack.c.l.b16 %v2634
    %v2984 = vunpack.c.h.b16 %v2634
    %v2985 = vunpack.c.l.b16 %v2635
    %v2986 = vunpack.c.h.b16 %v2635
    %v2987 = vunpack.c.l.b16 %v2636
    %v2988 = vunpack.c.h.b16 %v2636
    %v2989 = vunpack.c.l.b16 %v2637
    %v2990 = vunpack.c.h.b16 %v2637
    %v2991 = vunpack.c.l.b16 %v2638
    %v2992 = vunpack.c.h.b16 %v2638
    %v2993 = vunpack.c.l.b16 %v2639
    %v2994 = vunpack.c.h.b16 %v2639
    %v2995 = vunpack.c.l.b16 %v2640
    %v2996 = vunpack.c.h.b16 %v2640
    %v2997 = vunpack.c.l.b16 %v2641
    %v2998 = vunpack.c.h.b16 %v2641
    %v2999 = vunpack.c.l.b16 %v2642
    %v3000 = vunpack.c.h.b16 %v2642
    %v3001 = vunpack.c.l.b16 %v2643
    %v3002 = vunpack.c.h.b16 %v2643
    %v3003 = vunpack.c.l.b16 %v2644
    %v3004 = vunpack.c.h.b16 %v2644
    %v3005 = vunpack.c.l.b16 %v2645
    %v3006 = vunpack.c.h.b16 %v2645
    %v3007 = vunpack.c.l.b16 %v2646
    %v3008 = vunpack.c.h.b16 %v2646
    %v3009 = vunpack.c.l.b16 %v2647
    %v3010 = vunpack.c.h.b16 %v2647
    %v3011 = vunpack.c.l.b16 %v2648
    %v3012 = vunpack.c.h.b16 %v2648
    %v3013 = vunpack.c.l.b16 %v2649
    %v3014 = vunpack.c.h.b16 %v2649
    %v3015 = vunpack.c.l.b16 %v2650
    %v3016 = vunpack.c.h.b16 %v2650
    %v3017 = vunpack.c.l.b16 %v2651
    %v3018 = vunpack.c.h.b16 %v2651
    %v3019 = vunpack.c.l.b16 %v2652
    %v3020 = vunpack.c.h.b16 %v2652
    %v3021 = vunpack.c.l.b16 %v2653
    %v3022 = vunpack.c.h.b16 %v2653
    %v3023 = vunpack.c.l.b16 %v2654
    %v3024 = vunpack.c.h.b16 %v2654
    %v3025 = vunpack.c.l.b16 %v2655
    %v3026 = vunpack.c.h.b16 %v2655
    %v3027 = vunpack.c.l.b16 %v2656
    %v3028 = vunpack.c.h.b16 %v2656
    %v3029 = vunpack.c.l.b16 %v2657
    %v3030 = vunpack.c.h.b16 %v2657
    %v3031 = vunpack.c.l.b16 %v2658
    %v3032 = vunpack.c.h.b16 %v2658
    %v3033 = vunpack.c.l.b16 %v2659
    %v3034 = vunpack.c.h.b16 %v2659
    %v3035 = vunpack.c.l.b16 %v2660
    %v3036 = vunpack.c.h.b16 %v2660
    %v3037 = vunpack.c.l.b16 %v2661
    %v3038 = vunpack.c.h.b16 %v2661
    %v3039 = vunpack.c.l.b16 %v2662
    %v3040 = vunpack.c.h.b16 %v2662
    %v3041 = vunpack.c.l.b16 %v2663
    %v3042 = vunpack.c.h.b16 %v2663
    %v3043 = vunpack.c.l.b16 %v2664
    %v3044 = vunpack.c.h.b16 %v2664
    %v3045 = vunpack.c.l.b16 %v2665
    %v3046 = vunpack.c.h.b16 %v2665
    %v3047 = vunpack.c.l.b16 %v2666
    %v3048 = vunpack.c.h.b16 %v2666
    %v3049 = vunpack.c.l.b16 %v2667
    %v3050 = vunpack.c.h.b16 %v2667
    %v3051 = vunpack.c.l.b16 %v2668
    %v3052 = vunpack.c.h.b16 %v2668
    %v3053 = vunpack.c.l.b16 %v2669
    %v3054 = vunpack.c.h.b16 %v2669
    %v3055 = vunpack.c.l.b16 %v2670
    %v3056 = vunpack.c.h.b16 %v2670
    %v3057 = vunpack.c.l.b16 %v2671
    %v3058 = vunpack.c.h.b16 %v2671
    %v3059 = vunpack.c.l.b16 %v2672
    %v3060 = vunpack.c.h.b16 %v2672
    %v3061 = vunpack.c.l.b16 %v2673
    %v3062 = vunpack.c.h.b16 %v2673
    %v3063 = vunpack.c.l.b16 %v2674
    %v3064 = vunpack.c.h.b16 %v2674
    %v3065 = vunpack.c.l.b16 %v2675
    %v3066 = vunpack.c.h.b16 %v2675
    %v3067 = vunpack.c.l.b16 %v2676
    %v3068 = vunpack.c.h.b16 %v2676
    %v3069 = vunpack.c.l.b16 %v2677
    %v3070 = vunpack.c.h.b16 %v2677
    %v3071 = vunpack.c.l.b16 %v2678
    %v3072 = vunpack.c.h.b16 %v2678
    %v3073 = vunpack.c.l.b16 %v2679
    %v3074 = vunpack.c.h.b16 %v2679
    %v3075 = vunpack.c.l.b16 %v2680
    %v3076 = vunpack.c.h.b16 %v2680
    %v3077 = vunpack.c.l.b16 %v2681
    %v3078 = vunpack.c.h.b16 %v2681
    %v3079 = vunpack.c.l.b16 %v2682
    %v3080 = vunpack.c.h.b16 %v2682
    %v3081 = vunpack.c.l.b16 %v2683
    %v3082 = vunpack.c.h.b16 %v2683
    %v3083 = vunpack.c.l.b16 %v2684
    %v3084 = vunpack.c.h.b16 %v2684
    %v3085 = vunpack.c.l.b16 %v2685
    %v3086 = vunpack.c.h.b16 %v2685
    %v3087 = vunpack.c.l.b16 %v2686
    %v3088 = vunpack.c.h.b16 %v2686
    %v3089 = vunpack.c.l.b16 %v2687
    %v3090 = vunpack.c.h.b16 %v2687
    %v3091 = vunpack.c.l.b16 %v2688
    %v3092 = vunpack.c.h.b16 %v2688
    %v3093 = vunpack.c.l.b16 %v2689
    %v3094 = vunpack.c.h.b16 %v2689
    %v3095 = vunpack.c.l.b16 %v2690
    %v3096 = vunpack.c.h.b16 %v2690
    %v3097 = vunpack.c.l.b16 %v2691
    %v3098 = vunpack.c.h.b16 %v2691
    %v3099 = vunpack.c.l.b16 %v2692
    %v3100 = vunpack.c.h.b16 %v2692
    %v3101 = vunpack.c.l.b16 %v2693
    %v3102 = vunpack.c.h.b16 %v2693
    %v3103 = vunpack.c.l.b16 %v2694
    %v3104 = vunpack.c.h.b16 %v2694
    %v3105 = vunpack.c.l.b16 %v2695
    %v3106 = vunpack.c.h.b16 %v2695
    %v3107 = vunpack.c.l.b16 %v2696
    %v3108 = vunpack.c.h.b16 %v2696
    %v3109 = vunpack.c.l.b16 %v2697
    %v3110 = vunpack.c.h.b16 %v2697
    %v3111 = vunpack.c.l.b16 %v2698
    %v3112 = vunpack.c.h.b16 %v2698
    %v3113 = vunpack.c.l.b16 %v2699
    %v3114 = vunpack.c.h.b16 %v2699
    %v3115 = vunpack.c.l.b16 %v2700
    %v3116 = vunpack.c.h.b16 %v2700
    %v3117 = vunpack.c.l.b16 %v2701
    %v3118 = vunpack.c.h.b16 %v2701
    %v3119 = vunpack.c.l.b16 %v2702
    %v3120 = vunpack.c.h.b16 %v2702
    %v3121 = vunpack.c.l.b16 %v2703
    %v3122 = vunpack.c.h.b16 %v2703
    %v3123 = vunpack.c.l.b16 %v2704
    %v3124 = vunpack.c.h.b16 %v2704
    %v3125 = vpack.c.b16 %v2885, %v2869
    %v3126 = vpack.c.b16 %v2886, %v2870
    %v3127 = vpack.c.b16 %v2887, %v2871
    %v3128 = vpack.c.b16 %v2888, %v2872
    %v3129 = vpack.c.b16 %v2889, %v2873
    %v3130 = vpack.c.b16 %v2890, %v2874
    %v3131 = vpack.c.b16 %v2891, %v2875
    %v3132 = vpack.c.b16 %v2892, %v2876
    %v3133 = vpack.c.b16 %v2893, %v2877
    %v3134 = vpack.c.b16 %v2894, %v2878
    %v3135 = vpack.c.b16 %v2895, %v2879
    %v3136 = vpack.c.b16 %v2896, %v2880
    %v3137 = vpack.c.b16 %v2897, %v2881
    %v3138 = vpack.c.b16 %v2898, %v2882
    %v3139 = vpack.c.b16 %v2899, %v2883
    %v3140 = vpack.c.b16 %v2900, %v2884
    %v3141 = vpack.c.b16 %v2917, %v2901
    %v3142 = vpack.c.b16 %v2918, %v2902
    %v3143 = vpack.c.b16 %v2919, %v2903
    %v3144 = vpack.c.b16 %v2920, %v2904
    %v3145 = vpack.c.b16 %v2921, %v2905
    %v3146 = vpack.c.b16 %v2922, %v2906
    %v3147 = vpack.c.b16 %v2923, %v2907
    %v3148 = vpack.c.b16 %v2924, %v2908
    %v3149 = vpack.c.b16 %v2925, %v2909
    %v3150 = vpack.c.b16 %v2926, %v2910
    %v3151 = vpack.c.b16 %v2927, %v2911
    %v3152 = vpack.c.b16 %v2928, %v2912
    %v3153 = vpack.c.b16 %v2929, %v2913
    %v3154 = vpack.c.b16 %v2930, %v2914
    %v3155 = vpack.c.b16 %v2931, %v2915
    %v3156 = vpack.c.b16 %v2932, %v2916
    %v3157 = vpack.c.b16 %v2949, %v2933
    %v3158 = vpack.c.b16 %v2950, %v2934
    %v3159 = vpack.c.b16 %v2951, %v2935
    %v3160 = vpack.c.b16 %v2952, %v2936
    %v3161 = vpack.c.b16 %v2953, %v2937
    %v3162 = vpack.c.b16 %v2954, %v2938
    %v3163 = vpack.c.b16 %v2955, %v2939
    %v3164 = vpack.c.b16 %v2956, %v2940
    %v3165 = vpack.c.b16 %v2957, %v2941
    %v3166 = vpack.c.b16 %v2958, %v2942
    %v3167 = vpack.c.b16 %v2959, %v2943
    %v3168 = vpack.c.b16 %v2960, %v2944
    %v3169 = vpack.c.b16 %v2961, %v2945
    %v3170 = vpack.c.b16 %v2962, %v2946
    %v3171 = vpack.c.b16 %v2963, %v2947
    %v3172 = vpack.c.b16 %v2964, %v2948
    %v3173 = vpack.c.b16 %v2981, %v2965
    %v3174 = vpack.c.b16 %v2982, %v2966
    %v3175 = vpack.c.b16 %v2983, %v2967
    %v3176 = vpack.c.b16 %v2984, %v2968
    %v3177 = vpack.c.b16 %v2985, %v2969
    %v3178 = vpack.c.b16 %v2986, %v2970
    %v3179 = vpack.c.b16 %v2987, %v2971
    %v3180 = vpack.c.b16 %v2988, %v2972
    %v3181 = vpack.c.b16 %v2989, %v2973
    %v3182 = vpack.c.b16 %v2990, %v2974
    %v3183 = vpack.c.b16 %v2991, %v2975
    %v3184 = vpack.c.b16 %v2992, %v2976
    %v3185 = vpack.c.b16 %v2993, %v2977
    %v3186 = vpack.c.b16 %v2994, %v2978
    %v3187 = vpack.c.b16 %v2995, %v2979
    %v3188 = vpack.c.b16 %v2996, %v2980
    %v3189 = vpack.c.b16 %v3013, %v2997
    %v3190 = vpack.c.b16 %v3014, %v2998
    %v3191 = vpack.c.b16 %v3015, %v2999
    %v3192 = vpack.c.b16 %v3016, %v3000
    %v3193 = vpack.c.b16 %v3017, %v3001
    %v3194 = vpack.c.b16 %v3018, %v3002
    %v3195 = vpack.c.b16 %v3019, %v3003
    %v3196 = vpack.c.b16 %v3020, %v3004
    %v3197 = vpack.c.b16 %v3021, %v3005
    %v3198 = vpack.c.b16 %v3022, %v3006
    %v3199 = vpack.c.b16 %v3023, %v3007
    %v3200 = vpack.c.b16 %v3024, %v3008
    %v3201 = vpack.c.b16 %v3025, %v3009
    %v3202 = vpack.c.b16 %v3026, %v3010
    %v3203 = vpack.c.b16 %v3027, %v3011
    %v3204 = vpack.c.b16 %v3028, %v3012
    %v3205 = vpack.c.b16 %v3045, %v3029
    %v3206 = vpack.c.b16 %v3046, %v3030
    %v3207 = vpack.c.b16 %v3047, %v3031
    %v3208 = vpack.c.b16 %v3048, %v3032
    %v3209 = vpack.c.b16 %v3049, %v3033
    %v3210 = vpack.c.b16 %v3050, %v3034
    %v3211 = vpack.c.b16 %v3051, %v3035
    %v3212 = vpack.c.b16 %v3052, %v3036
    %v3213 = vpack.c.b16 %v3053, %v3037
    %v3214 = vpack.c.b16 %v3054, %v3038
    %v3215 = vpack.c.b16 %v3055, %v3039
    %v3216 = vpack.c.b16 %v3056, %v3040
    %v3217 = vpack.c.b16 %v3057, %v3041
    %v3218 = vpack.c.b16 %v3058, %v3042
    %v3219 = vpack.c.b16 %v3059, %v3043
    %v3220 = vpack.c.b16 %v3060, %v3044
    %v3221 = vpack.c.b16 %v3077, %v3061
    %v3222 = vpack.c.b16 %v3078, %v3062
    %v3223 = vpack.c.b16 %v3079, %v3063
    %v3224 = vpack.c.b16 %v3080, %v3064
    %v3225 = vpack.c.b16 %v3081, %v3065
    %v3226 = vpack.c.b16 %v3082, %v3066
    %v3227 = vpack.c.b16 %v3083, %v3067
    %v3228 = vpack.c.b16 %v3084, %v3068
    %v3229 = vpack.c.b16 %v3085, %v3069
    %v3230 = vpack.c.b16 %v3086, %v3070
    %v3231 = vpack.c.b16 %v3087, %v3071
    %v3232 = vpack.c.b16 %v3088, %v3072
    %v3233 = vpack.c.b16 %v3089, %v3073
    %v3234 = vpack.c.b16 %v3090, %v3074
    %v3235 = vpack.c.b16 %v3091, %v3075
    %v3236 = vpack.c.b16 %v3092, %v3076
    %v3237 = vpack.c.b16 %v3109, %v3093
    %v3238 = vpack.c.b16 %v3110, %v3094
    %v3239 = vpack.c.b16 %v3111, %v3095
    %v3240 = vpack.c.b16 %v3112, %v3096
    %v3241 = vpack.c.b16 %v3113, %v3097
    %v3242 = vpack.c.b16 %v3114, %v3098
    %v3243 = vpack.c.b16 %v3115, %v3099
    %v3244 = vpack.c.b16 %v3116, %v3100
    %v3245 = vpack.c.b16 %v3117, %v3101
    %v3246 = vpack.c.b16 %v3118, %v3102
    %v3247 = vpack.c.b16 %v3119, %v3103
    %v3248 = vpack.c.b16 %v3120, %v3104
    %v3249 = vpack.c.b16 %v3121, %v3105
    %v3250 = vpack.c.b16 %v3122, %v3106
    %v3251 = vpack.c.b16 %v3123, %v3107
    %v3252 = vpack.c.b16 %v3124, %v3108
    %3381 = vmatpush.bf16.msra.mxu0 %v3237
    %3382 = vmatpush.bf16.msra.mxu0 %v3221
    %3383 = vmatpush.bf16.msra.mxu0 %v3205
    %3384 = vmatpush.bf16.msra.mxu0 %v3189
    %3385 = vmatpush.bf16.msra.mxu0 %v3173
    %3386 = vmatpush.bf16.msra.mxu0 %v3157
    %3387 = vmatpush.bf16.msra.mxu0 %v3141
    %3388 = vmatpush.bf16.msra.mxu0 %v3125
    %3389 = vmatmul.bf16.gmra.mxu0 %v2576
    %v3390 = vpop.f32.mrf.mxu0
    %v3391 = vadd.f32 %v2709, %v3390
    %v3392 = vpop.f32.mrf.mxu0
    %3393 = vdwg.mxu0
    %3394 = vmatpush.bf16.msra.mxu0 %v3238
    %3395 = vmatpush.bf16.msra.mxu0 %v3222
    %3396 = vmatpush.bf16.msra.mxu0 %v3206
    %3397 = vmatpush.bf16.msra.mxu0 %v3190
    %3398 = vmatpush.bf16.msra.mxu0 %v3174
    %3399 = vmatpush.bf16.msra.mxu0 %v3158
    %3400 = vmatpush.bf16.msra.mxu0 %v3142
    %3401 = vmatpush.bf16.msra.mxu0 %v3126
    %3402 = vmatmul.bf16.gmra.mxu0 %v2576
    %v3403 = vpop.f32.mrf.mxu0
    %v3404 = vadd.f32 %v2710, %v3403
    %v3405 = vpop.f32.mrf.mxu0
    %3406 = vdwg.mxu0
    %3407 = vmatpush.bf16.msra.mxu0 %v3239
    %3408 = vmatpush.bf16.msra.mxu0 %v3223
    %3409 = vmatpush.bf16.msra.mxu0 %v3207
    %3410 = vmatpush.bf16.msra.mxu0 %v3191
    %3411 = vmatpush.bf16.msra.mxu0 %v3175
    %3412 = vmatpush.bf16.msra.mxu0 %v3159
    %3413 = vmatpush.bf16.msra.mxu0 %v3143
    %3414 = vmatpush.bf16.msra.mxu0 %v3127
    %3415 = vmatmul.bf16.gmra.mxu0 %v2576
    %v3416 = vpop.f32.mrf.mxu0
    %v3417 = vadd.f32 %v2711, %v3416
    %v3418 = vpop.f32.mrf.mxu0
    %3419 = vdwg.mxu0
    %3420 = vmatpush.bf16.msra.mxu0 %v3240
    %3421 = vmatpush.bf16.msra.mxu0 %v3224
    %3422 = vmatpush.bf16.msra.mxu0 %v3208
    %3423 = vmatpush.bf16.msra.mxu0 %v3192
    %3424 = vmatpush.bf16.msra.mxu0 %v3176
    %3425 = vmatpush.bf16.msra.mxu0 %v3160
    %3426 = vmatpush.bf16.msra.mxu0 %v3144
    %3427 = vmatpush.bf16.msra.mxu0 %v3128
    %3428 = vmatmul.bf16.gmra.mxu0 %v2576
    %v3429 = vpop.f32.mrf.mxu0
    %v3430 = vadd.f32 %v2712, %v3429
    %v3431 = vpop.f32.mrf.mxu0
    %3432 = vdwg.mxu0
    %3433 = vmatpush.bf16.msra.mxu0 %v3241
    %3434 = vmatpush.bf16.msra.mxu0 %v3225
    %3435 = vmatpush.bf16.msra.mxu0 %v3209
    %3436 = vmatpush.bf16.msra.mxu0 %v3193
    %3437 = vmatpush.bf16.msra.mxu0 %v3177
    %3438 = vmatpush.bf16.msra.mxu0 %v3161
    %3439 = vmatpush.bf16.msra.mxu0 %v3145
    %3440 = vmatpush.bf16.msra.mxu0 %v3129
    %3441 = vmatmul.bf16.gmra.mxu0 %v2576
    %v3442 = vpop.f32.mrf.mxu0
    %v3443 = vadd.f32 %v2713, %v3442
    %v3444 = vpop.f32.mrf.mxu0
    %3445 = vdwg.mxu0
    %3446 = vmatpush.bf16.msra.mxu0 %v3242
    %3447 = vmatpush.bf16.msra.mxu0 %v3226
    %3448 = vmatpush.bf16.msra.mxu0 %v3210
    %3449 = vmatpush.bf16.msra.mxu0 %v3194
    %3450 = vmatpush.bf16.msra.mxu0 %v3178
    %3451 = vmatpush.bf16.msra.mxu0 %v3162
    %3452 = vmatpush.bf16.msra.mxu0 %v3146
    %3453 = vmatpush.bf16.msra.mxu0 %v3130
    %3454 = vmatmul.bf16.gmra.mxu0 %v2576
    %v3455 = vpop.f32.mrf.mxu0
    %v3456 = vadd.f32 %v2714, %v3455
    %v3457 = vpop.f32.mrf.mxu0
    %3458 = vdwg.mxu0
    %3459 = vmatpush.bf16.msra.mxu0 %v3243
    %3460 = vmatpush.bf16.msra.mxu0 %v3227
    %3461 = vmatpush.bf16.msra.mxu0 %v3211
    %3462 = vmatpush.bf16.msra.mxu0 %v3195
    %3463 = vmatpush.bf16.msra.mxu0 %v3179
    %3464 = vmatpush.bf16.msra.mxu0 %v3163
    %3465 = vmatpush.bf16.msra.mxu0 %v3147
    %3466 = vmatpush.bf16.msra.mxu0 %v3131
    %3467 = vmatmul.bf16.gmra.mxu0 %v2576
    %v3468 = vpop.f32.mrf.mxu0
    %v3469 = vadd.f32 %v2715, %v3468
    %v3470 = vpop.f32.mrf.mxu0
    %3471 = vdwg.mxu0
    %3472 = vmatpush.bf16.msra.mxu0 %v3244
    %3473 = vmatpush.bf16.msra.mxu0 %v3228
    %3474 = vmatpush.bf16.msra.mxu0 %v3212
    %3475 = vmatpush.bf16.msra.mxu0 %v3196
    %3476 = vmatpush.bf16.msra.mxu0 %v3180
    %3477 = vmatpush.bf16.msra.mxu0 %v3164
    %3478 = vmatpush.bf16.msra.mxu0 %v3148
    %3479 = vmatpush.bf16.msra.mxu0 %v3132
    %3480 = vmatmul.bf16.gmra.mxu0 %v2576
    %v3481 = vpop.f32.mrf.mxu0
    %v3482 = vadd.f32 %v2716, %v3481
    %v3483 = vpop.f32.mrf.mxu0
    %3484 = vdwg.mxu0
    %3485 = vmatpush.bf16.msra.mxu0 %v3245
    %3486 = vmatpush.bf16.msra.mxu0 %v3229
    %3487 = vmatpush.bf16.msra.mxu0 %v3213
    %3488 = vmatpush.bf16.msra.mxu0 %v3197
    %3489 = vmatpush.bf16.msra.mxu0 %v3181
    %3490 = vmatpush.bf16.msra.mxu0 %v3165
    %3491 = vmatpush.bf16.msra.mxu0 %v3149
    %3492 = vmatpush.bf16.msra.mxu0 %v3133
    %3493 = vmatmul.bf16.gmra.mxu0 %v2576
    %v3494 = vpop.f32.mrf.mxu0
    %v3495 = vadd.f32 %v2717, %v3494
    %v3496 = vpop.f32.mrf.mxu0
    %3497 = vdwg.mxu0
    %3498 = vmatpush.bf16.msra.mxu0 %v3246
    %3499 = vmatpush.bf16.msra.mxu0 %v3230
    %3500 = vmatpush.bf16.msra.mxu0 %v3214
    %3501 = vmatpush.bf16.msra.mxu0 %v3198
    %3502 = vmatpush.bf16.msra.mxu0 %v3182
    %3503 = vmatpush.bf16.msra.mxu0 %v3166
    %3504 = vmatpush.bf16.msra.mxu0 %v3150
    %3505 = vmatpush.bf16.msra.mxu0 %v3134
    %3506 = vmatmul.bf16.gmra.mxu0 %v2576
    %v3507 = vpop.f32.mrf.mxu0
    %v3508 = vadd.f32 %v2718, %v3507
    %v3509 = vpop.f32.mrf.mxu0
    %3510 = vdwg.mxu0
    %3511 = vmatpush.bf16.msra.mxu0 %v3247
    %3512 = vmatpush.bf16.msra.mxu0 %v3231
    %3513 = vmatpush.bf16.msra.mxu0 %v3215
    %3514 = vmatpush.bf16.msra.mxu0 %v3199
    %3515 = vmatpush.bf16.msra.mxu0 %v3183
    %3516 = vmatpush.bf16.msra.mxu0 %v3167
    %3517 = vmatpush.bf16.msra.mxu0 %v3151
    %3518 = vmatpush.bf16.msra.mxu0 %v3135
    %3519 = vmatmul.bf16.gmra.mxu0 %v2576
    %v3520 = vpop.f32.mrf.mxu0
    %v3521 = vadd.f32 %v2719, %v3520
    %v3522 = vpop.f32.mrf.mxu0
    %3523 = vdwg.mxu0
    %3524 = vmatpush.bf16.msra.mxu0 %v3248
    %3525 = vmatpush.bf16.msra.mxu0 %v3232
    %3526 = vmatpush.bf16.msra.mxu0 %v3216
    %3527 = vmatpush.bf16.msra.mxu0 %v3200
    %3528 = vmatpush.bf16.msra.mxu0 %v3184
    %3529 = vmatpush.bf16.msra.mxu0 %v3168
    %3530 = vmatpush.bf16.msra.mxu0 %v3152
    %3531 = vmatpush.bf16.msra.mxu0 %v3136
    %3532 = vmatmul.bf16.gmra.mxu0 %v2576
    %v3533 = vpop.f32.mrf.mxu0
    %v3534 = vadd.f32 %v2720, %v3533
    %v3535 = vpop.f32.mrf.mxu0
    %3536 = vdwg.mxu0
    %3537 = vmatpush.bf16.msra.mxu0 %v3249
    %3538 = vmatpush.bf16.msra.mxu0 %v3233
    %3539 = vmatpush.bf16.msra.mxu0 %v3217
    %3540 = vmatpush.bf16.msra.mxu0 %v3201
    %3541 = vmatpush.bf16.msra.mxu0 %v3185
    %3542 = vmatpush.bf16.msra.mxu0 %v3169
    %3543 = vmatpush.bf16.msra.mxu0 %v3153
    %3544 = vmatpush.bf16.msra.mxu0 %v3137
    %3545 = vmatmul.bf16.gmra.mxu0 %v2576
    %v3546 = vpop.f32.mrf.mxu0
    %v3547 = vadd.f32 %v2721, %v3546
    %v3548 = vpop.f32.mrf.mxu0
    %3549 = vdwg.mxu0
    %3550 = vmatpush.bf16.msra.mxu0 %v3250
    %3551 = vmatpush.bf16.msra.mxu0 %v3234
    %3552 = vmatpush.bf16.msra.mxu0 %v3218
    %3553 = vmatpush.bf16.msra.mxu0 %v3202
    %3554 = vmatpush.bf16.msra.mxu0 %v3186
    %3555 = vmatpush.bf16.msra.mxu0 %v3170
    %3556 = vmatpush.bf16.msra.mxu0 %v3154
    %3557 = vmatpush.bf16.msra.mxu0 %v3138
    %3558 = vmatmul.bf16.gmra.mxu0 %v2576
    %v3559 = vpop.f32.mrf.mxu0
    %v3560 = vadd.f32 %v2722, %v3559
    %v3561 = vpop.f32.mrf.mxu0
    %3562 = vdwg.mxu0
    %3563 = vmatpush.bf16.msra.mxu0 %v3251
    %3564 = vmatpush.bf16.msra.mxu0 %v3235
    %3565 = vmatpush.bf16.msra.mxu0 %v3219
    %3566 = vmatpush.bf16.msra.mxu0 %v3203
    %3567 = vmatpush.bf16.msra.mxu0 %v3187
    %3568 = vmatpush.bf16.msra.mxu0 %v3171
    %3569 = vmatpush.bf16.msra.mxu0 %v3155
    %3570 = vmatpush.bf16.msra.mxu0 %v3139
    %3571 = vmatmul.bf16.gmra.mxu0 %v2576
    %v3572 = vpop.f32.mrf.mxu0
    %v3573 = vadd.f32 %v2723, %v3572
    %v3574 = vpop.f32.mrf.mxu0
    %3575 = vdwg.mxu0
    %3576 = vmatpush.bf16.msra.mxu0 %v3252
    %3577 = vmatpush.bf16.msra.mxu0 %v3236
    %3578 = vmatpush.bf16.msra.mxu0 %v3220
    %3579 = vmatpush.bf16.msra.mxu0 %v3204
    %3580 = vmatpush.bf16.msra.mxu0 %v3188
    %3581 = vmatpush.bf16.msra.mxu0 %v3172
    %3582 = vmatpush.bf16.msra.mxu0 %v3156
    %3583 = vmatpush.bf16.msra.mxu0 %v3140
    %3584 = vmatmul.bf16.gmra.mxu0 %v2576
    %v3585 = vpop.f32.mrf.mxu0
    %v3586 = vadd.f32 %v2724, %v3585
    %v3587 = vpop.f32.mrf.mxu0
    %3588 = vdwg.mxu0
    %v3605 = vrot.slane %v3391, 2
    %v3606 = vrot.slane %v3404, 2
    %v3607 = vrot.slane %v3417, 2
    %v3608 = vrot.slane %v3430, 2
    %v3609 = vrot.slane %v3443, 2
    %v3610 = vrot.slane %v3456, 2
    %v3611 = vrot.slane %v3469, 2
    %v3612 = vrot.slane %v3482, 2
    %v3613 = vrot.slane %v3495, 2
    %v3614 = vrot.slane %v3508, 2
    %v3615 = vrot.slane %v3521, 2
    %v3616 = vrot.slane %v3534, 2
    %v3617 = vrot.slane %v3547, 2
    %v3618 = vrot.slane %v3560, 2
    %v3619 = vrot.slane %v3573, 2
    %v3620 = vrot.slane %v3586, 2
    %v3637 = vadd.f32 %v3391, %v3605
    %v3638 = vadd.f32 %v3404, %v3606
    %v3639 = vadd.f32 %v3417, %v3607
    %v3640 = vadd.f32 %v3430, %v3608
    %v3641 = vadd.f32 %v3443, %v3609
    %v3642 = vadd.f32 %v3456, %v3610
    %v3643 = vadd.f32 %v3469, %v3611
    %v3644 = vadd.f32 %v3482, %v3612
    %v3645 = vadd.f32 %v3495, %v3613
    %v3646 = vadd.f32 %v3508, %v3614
    %v3647 = vadd.f32 %v3521, %v3615
    %v3648 = vadd.f32 %v3534, %v3616
    %v3649 = vadd.f32 %v3547, %v3617
    %v3650 = vadd.f32 %v3560, %v3618
    %v3651 = vadd.f32 %v3573, %v3619
    %v3652 = vadd.f32 %v3586, %v3620
    %v3653 = vxor.u32 %v3637, 2147483648
    %v3654 = vxor.u32 %v3638, 2147483648
    %v3655 = vxor.u32 %v3639, 2147483648
    %v3656 = vxor.u32 %v3640, 2147483648
    %v3657 = vxor.u32 %v3641, 2147483648
    %v3658 = vxor.u32 %v3642, 2147483648
    %v3659 = vxor.u32 %v3643, 2147483648
    %v3660 = vxor.u32 %v3644, 2147483648
    %v3661 = vxor.u32 %v3645, 2147483648
    %v3662 = vxor.u32 %v3646, 2147483648
    %v3663 = vxor.u32 %v3647, 2147483648
    %v3664 = vxor.u32 %v3648, 2147483648
    %v3665 = vxor.u32 %v3649, 2147483648
    %v3666 = vxor.u32 %v3650, 2147483648
    %v3667 = vxor.u32 %v3651, 2147483648
    %v3668 = vxor.u32 %v3652, 2147483648
    %v3669 = vmul.f32 %v3653, 1.442695
    %v3670 = vpow.pop %v3669
    %v3671 = vmul.f32 %v3654, 1.442695
    %v3672 = vpow.pop %v3671
    %v3673 = vmul.f32 %v3655, 1.442695
    %v3674 = vpow.pop %v3673
    %v3675 = vmul.f32 %v3656, 1.442695
    %v3676 = vpow.pop %v3675
    %v3677 = vmul.f32 %v3657, 1.442695
    %v3678 = vpow.pop %v3677
    %v3679 = vmul.f32 %v3658, 1.442695
    %v3680 = vpow.pop %v3679
    %v3681 = vmul.f32 %v3659, 1.442695
    %v3682 = vpow.pop %v3681
    %v3683 = vmul.f32 %v3660, 1.442695
    %v3684 = vpow.pop %v3683
    %v3685 = vmul.f32 %v3661, 1.442695
    %v3686 = vpow.pop %v3685
    %v3687 = vmul.f32 %v3662, 1.442695
    %v3688 = vpow.pop %v3687
    %v3689 = vmul.f32 %v3663, 1.442695
    %v3690 = vpow.pop %v3689
    %v3691 = vmul.f32 %v3664, 1.442695
    %v3692 = vpow.pop %v3691
    %v3693 = vmul.f32 %v3665, 1.442695
    %v3694 = vpow.pop %v3693
    %v3695 = vmul.f32 %v3666, 1.442695
    %v3696 = vpow.pop %v3695
    %v3697 = vmul.f32 %v3667, 1.442695
    %v3698 = vpow.pop %v3697
    %v3699 = vmul.f32 %v3668, 1.442695
    %v3700 = vpow.pop %v3699
    %v3701 = vadd.f32 %v3670, 1.0
    %v3702 = vadd.f32 %v3672, 1.0
    %v3703 = vadd.f32 %v3674, 1.0
    %v3704 = vadd.f32 %v3676, 1.0
    %v3705 = vadd.f32 %v3678, 1.0
    %v3706 = vadd.f32 %v3680, 1.0
    %v3707 = vadd.f32 %v3682, 1.0
    %v3708 = vadd.f32 %v3684, 1.0
    %v3709 = vadd.f32 %v3686, 1.0
    %v3710 = vadd.f32 %v3688, 1.0
    %v3711 = vadd.f32 %v3690, 1.0
    %v3712 = vadd.f32 %v3692, 1.0
    %v3713 = vadd.f32 %v3694, 1.0
    %v3714 = vadd.f32 %v3696, 1.0
    %v3715 = vadd.f32 %v3698, 1.0
    %v3716 = vadd.f32 %v3700, 1.0
    %v3717 = vrcp.pop %v3701
    %v3718 = vmul.f32 %v3701, %v3717
    %v3719 = vsub.f32 1.0, %v3718
    %v3720 = vmul.f32 %v3717, %v3719
    %v3721 = vadd.f32 %v3717, %v3720
    %vm3722 = vweird.f32 %v3701
    %vm3723 = vweird.f32 %v3717
    %vm3724 = vmor %vm3722, %vm3723
    %v3725 = vsel %vm3724, %v3717, %v3721
    %v3726 = vand.u32 2147483647, %v3701
    %vm3727 = vcmp.eq.f32.partialorder %v3726, 8.507059e+37
    %v3728 = vand.u32 %v3701, 2147483648
    %v3729 = vor.u32 1.1754944e-38, %v3728
    %v3730 = vsel %vm3727, %v3729, %v3725
    %v3731 = vmul.f32 1.0, %v3730
    %v3732 = vrcp.pop %v3702
    %v3733 = vmul.f32 %v3702, %v3732
    %v3734 = vsub.f32 1.0, %v3733
    %v3735 = vmul.f32 %v3732, %v3734
    %v3736 = vadd.f32 %v3732, %v3735
    %vm3737 = vweird.f32 %v3702
    %vm3738 = vweird.f32 %v3732
    %vm3739 = vmor %vm3737, %vm3738
    %v3740 = vsel %vm3739, %v3732, %v3736
    %v3741 = vand.u32 2147483647, %v3702
    %vm3742 = vcmp.eq.f32.partialorder %v3741, 8.507059e+37
    %v3743 = vand.u32 %v3702, 2147483648
    %v3744 = vor.u32 1.1754944e-38, %v3743
    %v3745 = vsel %vm3742, %v3744, %v3740
    %v3746 = vmul.f32 1.0, %v3745
    %v3747 = vrcp.pop %v3703
    %v3748 = vmul.f32 %v3703, %v3747
    %v3749 = vsub.f32 1.0, %v3748
    %v3750 = vmul.f32 %v3747, %v3749
    %v3751 = vadd.f32 %v3747, %v3750
    %vm3752 = vweird.f32 %v3703
    %vm3753 = vweird.f32 %v3747
    %vm3754 = vmor %vm3752, %vm3753
    %v3755 = vsel %vm3754, %v3747, %v3751
    %v3756 = vand.u32 2147483647, %v3703
    %vm3757 = vcmp.eq.f32.partialorder %v3756, 8.507059e+37
    %v3758 = vand.u32 %v3703, 2147483648
    %v3759 = vor.u32 1.1754944e-38, %v3758
    %v3760 = vsel %vm3757, %v3759, %v3755
    %v3761 = vmul.f32 1.0, %v3760
    %v3762 = vrcp.pop %v3704
    %v3763 = vmul.f32 %v3704, %v3762
    %v3764 = vsub.f32 1.0, %v3763
    %v3765 = vmul.f32 %v3762, %v3764
    %v3766 = vadd.f32 %v3762, %v3765
    %vm3767 = vweird.f32 %v3704
    %vm3768 = vweird.f32 %v3762
    %vm3769 = vmor %vm3767, %vm3768
    %v3770 = vsel %vm3769, %v3762, %v3766
    %v3771 = vand.u32 2147483647, %v3704
    %vm3772 = vcmp.eq.f32.partialorder %v3771, 8.507059e+37
    %v3773 = vand.u32 %v3704, 2147483648
    %v3774 = vor.u32 1.1754944e-38, %v3773
    %v3775 = vsel %vm3772, %v3774, %v3770
    %v3776 = vmul.f32 1.0, %v3775
    %v3777 = vrcp.pop %v3705
    %v3778 = vmul.f32 %v3705, %v3777
    %v3779 = vsub.f32 1.0, %v3778
    %v3780 = vmul.f32 %v3777, %v3779
    %v3781 = vadd.f32 %v3777, %v3780
    %vm3782 = vweird.f32 %v3705
    %vm3783 = vweird.f32 %v3777
    %vm3784 = vmor %vm3782, %vm3783
    %v3785 = vsel %vm3784, %v3777, %v3781
    %v3786 = vand.u32 2147483647, %v3705
    %vm3787 = vcmp.eq.f32.partialorder %v3786, 8.507059e+37
    %v3788 = vand.u32 %v3705, 2147483648
    %v3789 = vor.u32 1.1754944e-38, %v3788
    %v3790 = vsel %vm3787, %v3789, %v3785
    %v3791 = vmul.f32 1.0, %v3790
    %v3792 = vrcp.pop %v3706
    %v3793 = vmul.f32 %v3706, %v3792
    %v3794 = vsub.f32 1.0, %v3793
    %v3795 = vmul.f32 %v3792, %v3794
    %v3796 = vadd.f32 %v3792, %v3795
    %vm3797 = vweird.f32 %v3706
    %vm3798 = vweird.f32 %v3792
    %vm3799 = vmor %vm3797, %vm3798
    %v3800 = vsel %vm3799, %v3792, %v3796
    %v3801 = vand.u32 2147483647, %v3706
    %vm3802 = vcmp.eq.f32.partialorder %v3801, 8.507059e+37
    %v3803 = vand.u32 %v3706, 2147483648
    %v3804 = vor.u32 1.1754944e-38, %v3803
    %v3805 = vsel %vm3802, %v3804, %v3800
    %v3806 = vmul.f32 1.0, %v3805
    %v3807 = vrcp.pop %v3707
    %v3808 = vmul.f32 %v3707, %v3807
    %v3809 = vsub.f32 1.0, %v3808
    %v3810 = vmul.f32 %v3807, %v3809
    %v3811 = vadd.f32 %v3807, %v3810
    %vm3812 = vweird.f32 %v3707
    %vm3813 = vweird.f32 %v3807
    %vm3814 = vmor %vm3812, %vm3813
    %v3815 = vsel %vm3814, %v3807, %v3811
    %v3816 = vand.u32 2147483647, %v3707
    %vm3817 = vcmp.eq.f32.partialorder %v3816, 8.507059e+37
    %v3818 = vand.u32 %v3707, 2147483648
    %v3819 = vor.u32 1.1754944e-38, %v3818
    %v3820 = vsel %vm3817, %v3819, %v3815
    %v3821 = vmul.f32 1.0, %v3820
    %v3822 = vrcp.pop %v3708
    %v3823 = vmul.f32 %v3708, %v3822
    %v3824 = vsub.f32 1.0, %v3823
    %v3825 = vmul.f32 %v3822, %v3824
    %v3826 = vadd.f32 %v3822, %v3825
    %vm3827 = vweird.f32 %v3708
    %vm3828 = vweird.f32 %v3822
    %vm3829 = vmor %vm3827, %vm3828
    %v3830 = vsel %vm3829, %v3822, %v3826
    %v3831 = vand.u32 2147483647, %v3708
    %vm3832 = vcmp.eq.f32.partialorder %v3831, 8.507059e+37
    %v3833 = vand.u32 %v3708, 2147483648
    %v3834 = vor.u32 1.1754944e-38, %v3833
    %v3835 = vsel %vm3832, %v3834, %v3830
    %v3836 = vmul.f32 1.0, %v3835
    %v3837 = vrcp.pop %v3709
    %v3838 = vmul.f32 %v3709, %v3837
    %v3839 = vsub.f32 1.0, %v3838
    %v3840 = vmul.f32 %v3837, %v3839
    %v3841 = vadd.f32 %v3837, %v3840
    %vm3842 = vweird.f32 %v3709
    %vm3843 = vweird.f32 %v3837
    %vm3844 = vmor %vm3842, %vm3843
    %v3845 = vsel %vm3844, %v3837, %v3841
    %v3846 = vand.u32 2147483647, %v3709
    %vm3847 = vcmp.eq.f32.partialorder %v3846, 8.507059e+37
    %v3848 = vand.u32 %v3709, 2147483648
    %v3849 = vor.u32 1.1754944e-38, %v3848
    %v3850 = vsel %vm3847, %v3849, %v3845
    %v3851 = vmul.f32 1.0, %v3850
    %v3852 = vrcp.pop %v3710
    %v3853 = vmul.f32 %v3710, %v3852
    %v3854 = vsub.f32 1.0, %v3853
    %v3855 = vmul.f32 %v3852, %v3854
    %v3856 = vadd.f32 %v3852, %v3855
    %vm3857 = vweird.f32 %v3710
    %vm3858 = vweird.f32 %v3852
    %vm3859 = vmor %vm3857, %vm3858
    %v3860 = vsel %vm3859, %v3852, %v3856
    %v3861 = vand.u32 2147483647, %v3710
    %vm3862 = vcmp.eq.f32.partialorder %v3861, 8.507059e+37
    %v3863 = vand.u32 %v3710, 2147483648
    %v3864 = vor.u32 1.1754944e-38, %v3863
    %v3865 = vsel %vm3862, %v3864, %v3860
    %v3866 = vmul.f32 1.0, %v3865
    %v3867 = vrcp.pop %v3711
    %v3868 = vmul.f32 %v3711, %v3867
    %v3869 = vsub.f32 1.0, %v3868
    %v3870 = vmul.f32 %v3867, %v3869
    %v3871 = vadd.f32 %v3867, %v3870
    %vm3872 = vweird.f32 %v3711
    %vm3873 = vweird.f32 %v3867
    %vm3874 = vmor %vm3872, %vm3873
    %v3875 = vsel %vm3874, %v3867, %v3871
    %v3876 = vand.u32 2147483647, %v3711
    %vm3877 = vcmp.eq.f32.partialorder %v3876, 8.507059e+37
    %v3878 = vand.u32 %v3711, 2147483648
    %v3879 = vor.u32 1.1754944e-38, %v3878
    %v3880 = vsel %vm3877, %v3879, %v3875
    %v3881 = vmul.f32 1.0, %v3880
    %v3882 = vrcp.pop %v3712
    %v3883 = vmul.f32 %v3712, %v3882
    %v3884 = vsub.f32 1.0, %v3883
    %v3885 = vmul.f32 %v3882, %v3884
    %v3886 = vadd.f32 %v3882, %v3885
    %vm3887 = vweird.f32 %v3712
    %vm3888 = vweird.f32 %v3882
    %vm3889 = vmor %vm3887, %vm3888
    %v3890 = vsel %vm3889, %v3882, %v3886
    %v3891 = vand.u32 2147483647, %v3712
    %vm3892 = vcmp.eq.f32.partialorder %v3891, 8.507059e+37
    %v3893 = vand.u32 %v3712, 2147483648
    %v3894 = vor.u32 1.1754944e-38, %v3893
    %v3895 = vsel %vm3892, %v3894, %v3890
    %v3896 = vmul.f32 1.0, %v3895
    %v3897 = vrcp.pop %v3713
    %v3898 = vmul.f32 %v3713, %v3897
    %v3899 = vsub.f32 1.0, %v3898
    %v3900 = vmul.f32 %v3897, %v3899
    %v3901 = vadd.f32 %v3897, %v3900
    %vm3902 = vweird.f32 %v3713
    %vm3903 = vweird.f32 %v3897
    %vm3904 = vmor %vm3902, %vm3903
    %v3905 = vsel %vm3904, %v3897, %v3901
    %v3906 = vand.u32 2147483647, %v3713
    %vm3907 = vcmp.eq.f32.partialorder %v3906, 8.507059e+37
    %v3908 = vand.u32 %v3713, 2147483648
    %v3909 = vor.u32 1.1754944e-38, %v3908
    %v3910 = vsel %vm3907, %v3909, %v3905
    %v3911 = vmul.f32 1.0, %v3910
    %v3912 = vrcp.pop %v3714
    %v3913 = vmul.f32 %v3714, %v3912
    %v3914 = vsub.f32 1.0, %v3913
    %v3915 = vmul.f32 %v3912, %v3914
    %v3916 = vadd.f32 %v3912, %v3915
    %vm3917 = vweird.f32 %v3714
    %vm3918 = vweird.f32 %v3912
    %vm3919 = vmor %vm3917, %vm3918
    %v3920 = vsel %vm3919, %v3912, %v3916
    %v3921 = vand.u32 2147483647, %v3714
    %vm3922 = vcmp.eq.f32.partialorder %v3921, 8.507059e+37
    %v3923 = vand.u32 %v3714, 2147483648
    %v3924 = vor.u32 1.1754944e-38, %v3923
    %v3925 = vsel %vm3922, %v3924, %v3920
    %v3926 = vmul.f32 1.0, %v3925
    %v3927 = vrcp.pop %v3715
    %v3928 = vmul.f32 %v3715, %v3927
    %v3929 = vsub.f32 1.0, %v3928
    %v3930 = vmul.f32 %v3927, %v3929
    %v3931 = vadd.f32 %v3927, %v3930
    %vm3932 = vweird.f32 %v3715
    %vm3933 = vweird.f32 %v3927
    %vm3934 = vmor %vm3932, %vm3933
    %v3935 = vsel %vm3934, %v3927, %v3931
    %v3936 = vand.u32 2147483647, %v3715
    %vm3937 = vcmp.eq.f32.partialorder %v3936, 8.507059e+37
    %v3938 = vand.u32 %v3715, 2147483648
    %v3939 = vor.u32 1.1754944e-38, %v3938
    %v3940 = vsel %vm3937, %v3939, %v3935
    %v3941 = vmul.f32 1.0, %v3940
    %v3942 = vrcp.pop %v3716
    %v3943 = vmul.f32 %v3716, %v3942
    %v3944 = vsub.f32 1.0, %v3943
    %v3945 = vmul.f32 %v3942, %v3944
    %v3946 = vadd.f32 %v3942, %v3945
    %vm3947 = vweird.f32 %v3716
    %vm3948 = vweird.f32 %v3942
    %vm3949 = vmor %vm3947, %vm3948
    %v3950 = vsel %vm3949, %v3942, %v3946
    %v3951 = vand.u32 2147483647, %v3716
    %vm3952 = vcmp.eq.f32.partialorder %v3951, 8.507059e+37
    %v3953 = vand.u32 %v3716, 2147483648
    %v3954 = vor.u32 1.1754944e-38, %v3953
    %v3955 = vsel %vm3952, %v3954, %v3950
    %v3956 = vmul.f32 1.0, %v3955
    %v3957 = vpack.c.bf16 %v3746, %v3731
    %v3958 = vpack.c.bf16 %v3776, %v3761
    %v3959 = vpack.c.bf16 %v3806, %v3791
    %v3960 = vpack.c.bf16 %v3836, %v3821
    %v3961 = vpack.c.bf16 %v3866, %v3851
    %v3962 = vpack.c.bf16 %v3896, %v3881
    %v3963 = vpack.c.bf16 %v3926, %v3911
    %v3964 = vpack.c.bf16 %v3956, %v3941
    %v3973 = vrot.slane %v3957, 3
    %v3974 = vrot.slane %v3958, 6
    %v3975 = vrot.slane %v3958, 1
    %v3976 = vrot.slane %v3959, 4
    %v3977 = vrot.slane %v3959, 7
    %v3978 = vrot.slane %v3960, 2
    %v3979 = vrot.slane %v3960, 5
    %v3980 = vrot.slane %v3961, 3
    %v3981 = vrot.slane %v3962, 6
    %v3982 = vrot.slane %v3962, 1
    %v3983 = vrot.slane %v3963, 4
    %v3984 = vrot.slane %v3963, 7
    %v3985 = vrot.slane %v3964, 2
    %v3986 = vrot.slane %v3964, 5
    %v3989 = vsel %vm1274, %v3957, %v3973
    %vm3990 = vcmask 1042434
    %v3993 = vsel %vm3990, %v3974, %v3975
    %vm3994 = vcmask 1041408
    %v3995 = vsel %vm3994, %v3989, %v3993
    %vm3996 = vcmask 1044484
    %v3999 = vsel %vm3996, %v3976, %v3977
    %vm4000 = vcmask 1046534
    %v4003 = vsel %vm4000, %v3978, %v3979
    %vm4004 = vcmask 1045508
    %v4005 = vsel %vm4004, %v3999, %v4003
    %vm4006 = vcmask 1043456
    %v4007 = vsel %vm4006, %v3995, %v4005
    %v4011 = vsel %vm1274, %v3961, %v3980
    %v4014 = vsel %vm3990, %v3981, %v3982
    %v4015 = vsel %vm3994, %v4011, %v4014
    %v4018 = vsel %vm3996, %v3983, %v3984
    %v4021 = vsel %vm4000, %v3985, %v3986
    %v4022 = vsel %vm4004, %v4018, %v4021
    %v4023 = vsel %vm4006, %v4015, %v4022
    %v4025 = vunpack.i.l.s16 %v4007
    %v4026 = vunpack.i.l.s16 %v4023
    %v4027 = vunpack.i.h.s16 %v4007
    %v4028 = vunpack.i.h.s16 %v4023
    %v4029 = vpack.i.b16 %v4025, %v4025
    %v4030 = vpack.i.b16 %v4026, %v4026
    %v4031 = vpack.i.b16 %v4027, %v4027
    %v4032 = vpack.i.b16 %v4028, %v4028
    %v4033 = vperm.slane %v4029, 0
    %v4034 = vperm.slane %v4029, 1
    %v4035 = vperm.slane %v4029, 2
    %v4036 = vperm.slane %v4029, 3
    %v4037 = vperm.slane %v4029, 4
    %v4038 = vperm.slane %v4029, 5
    %v4039 = vperm.slane %v4029, 6
    %v4040 = vperm.slane %v4029, 7
    %v4041 = vperm.slane %v4030, 0
    %v4042 = vperm.slane %v4030, 1
    %v4043 = vperm.slane %v4030, 2
    %v4044 = vperm.slane %v4030, 3
    %v4045 = vperm.slane %v4030, 4
    %v4046 = vperm.slane %v4030, 5
    %v4047 = vperm.slane %v4030, 6
    %v4048 = vperm.slane %v4030, 7
    %v4049 = vperm.slane %v4031, 0
    %v4050 = vperm.slane %v4031, 1
    %v4051 = vperm.slane %v4031, 2
    %v4052 = vperm.slane %v4031, 3
    %v4053 = vperm.slane %v4031, 4
    %v4054 = vperm.slane %v4031, 5
    %v4055 = vperm.slane %v4031, 6
    %v4056 = vperm.slane %v4031, 7
    %v4057 = vperm.slane %v4032, 0
    %v4058 = vperm.slane %v4032, 1
    %v4059 = vperm.slane %v4032, 2
    %v4060 = vperm.slane %v4032, 3
    %v4061 = vperm.slane %v4032, 4
    %v4062 = vperm.slane %v4032, 5
    %v4063 = vperm.slane %v4032, 6
    %v4064 = vperm.slane %v4032, 7
    %v4066 = vpack.i.b16 %v4033, %v4033
    %v4068 = vperm.slane %v4066, 0
    %v4070 = vpack.i.b16 %v4034, %v4034
    %v4072 = vperm.slane %v4070, 0
    %v4074 = vpack.i.b16 %v4035, %v4035
    %v4076 = vperm.slane %v4074, 0
    %v4078 = vpack.i.b16 %v4036, %v4036
    %v4080 = vperm.slane %v4078, 0
    %v4082 = vpack.i.b16 %v4037, %v4037
    %v4084 = vperm.slane %v4082, 0
    %v4086 = vpack.i.b16 %v4038, %v4038
    %v4088 = vperm.slane %v4086, 0
    %v4090 = vpack.i.b16 %v4039, %v4039
    %v4092 = vperm.slane %v4090, 0
    %v4094 = vpack.i.b16 %v4040, %v4040
    %v4096 = vperm.slane %v4094, 0
    %v4098 = vpack.i.b16 %v4041, %v4041
    %v4100 = vperm.slane %v4098, 0
    %v4102 = vpack.i.b16 %v4042, %v4042
    %v4104 = vperm.slane %v4102, 0
    %v4106 = vpack.i.b16 %v4043, %v4043
    %v4108 = vperm.slane %v4106, 0
    %v4110 = vpack.i.b16 %v4044, %v4044
    %v4112 = vperm.slane %v4110, 0
    %v4114 = vpack.i.b16 %v4045, %v4045
    %v4116 = vperm.slane %v4114, 0
    %v4118 = vpack.i.b16 %v4046, %v4046
    %v4120 = vperm.slane %v4118, 0
    %v4122 = vpack.i.b16 %v4047, %v4047
    %v4124 = vperm.slane %v4122, 0
    %v4126 = vpack.i.b16 %v4048, %v4048
    %v4128 = vperm.slane %v4126, 0
    %v4130 = vpack.i.b16 %v4049, %v4049
    %v4132 = vperm.slane %v4130, 0
    %v4134 = vpack.i.b16 %v4050, %v4050
    %v4136 = vperm.slane %v4134, 0
    %v4138 = vpack.i.b16 %v4051, %v4051
    %v4140 = vperm.slane %v4138, 0
    %v4142 = vpack.i.b16 %v4052, %v4052
    %v4144 = vperm.slane %v4142, 0
    %v4146 = vpack.i.b16 %v4053, %v4053
    %v4148 = vperm.slane %v4146, 0
    %v4150 = vpack.i.b16 %v4054, %v4054
    %v4152 = vperm.slane %v4150, 0
    %v4154 = vpack.i.b16 %v4055, %v4055
    %v4156 = vperm.slane %v4154, 0
    %v4158 = vpack.i.b16 %v4056, %v4056
    %v4160 = vperm.slane %v4158, 0
    %v4162 = vpack.i.b16 %v4057, %v4057
    %v4164 = vperm.slane %v4162, 0
    %v4166 = vpack.i.b16 %v4058, %v4058
    %v4168 = vperm.slane %v4166, 0
    %v4170 = vpack.i.b16 %v4059, %v4059
    %v4172 = vperm.slane %v4170, 0
    %v4174 = vpack.i.b16 %v4060, %v4060
    %v4176 = vperm.slane %v4174, 0
    %v4178 = vpack.i.b16 %v4061, %v4061
    %v4180 = vperm.slane %v4178, 0
    %v4182 = vpack.i.b16 %v4062, %v4062
    %v4184 = vperm.slane %v4182, 0
    %v4186 = vpack.i.b16 %v4063, %v4063
    %v4188 = vperm.slane %v4186, 0
    %v4190 = vpack.i.b16 %v4064, %v4064
    %v4192 = vperm.slane %v4190, 0
    %v4193 = vunpack.c.l.bf16 %v4068
    %v4194 = vunpack.c.l.bf16 %v4072
    %v4195 = vunpack.c.l.bf16 %v4076
    %v4196 = vunpack.c.l.bf16 %v4080
    %v4197 = vunpack.c.l.bf16 %v4084
    %v4198 = vunpack.c.l.bf16 %v4088
    %v4199 = vunpack.c.l.bf16 %v4092
    %v4200 = vunpack.c.l.bf16 %v4096
    %v4201 = vunpack.c.l.bf16 %v4100
    %v4202 = vunpack.c.l.bf16 %v4104
    %v4203 = vunpack.c.l.bf16 %v4108
    %v4204 = vunpack.c.l.bf16 %v4112
    %v4205 = vunpack.c.l.bf16 %v4116
    %v4206 = vunpack.c.l.bf16 %v4120
    %v4207 = vunpack.c.l.bf16 %v4124
    %v4208 = vunpack.c.l.bf16 %v4128
    %v4209 = vunpack.c.l.bf16 %v4132
    %v4210 = vunpack.c.l.bf16 %v4136
    %v4211 = vunpack.c.l.bf16 %v4140
    %v4212 = vunpack.c.l.bf16 %v4144
    %v4213 = vunpack.c.l.bf16 %v4148
    %v4214 = vunpack.c.l.bf16 %v4152
    %v4215 = vunpack.c.l.bf16 %v4156
    %v4216 = vunpack.c.l.bf16 %v4160
    %v4217 = vunpack.c.l.bf16 %v4164
    %v4218 = vunpack.c.l.bf16 %v4168
    %v4219 = vunpack.c.l.bf16 %v4172
    %v4220 = vunpack.c.l.bf16 %v4176
    %v4221 = vunpack.c.l.bf16 %v4180
    %v4222 = vunpack.c.l.bf16 %v4184
    %v4223 = vunpack.c.l.bf16 %v4188
    %v4224 = vunpack.c.l.bf16 %v4192
    %v4225 = vmul.f32 %v680, %v4193
    %v4226 = vmul.f32 %v681, %v4194
    %v4227 = vmul.f32 %v682, %v4195
    %v4228 = vmul.f32 %v683, %v4196
    %v4229 = vmul.f32 %v684, %v4197
    %v4230 = vmul.f32 %v685, %v4198
    %v4231 = vmul.f32 %v686, %v4199
    %v4232 = vmul.f32 %v687, %v4200
    %v4233 = vmul.f32 %v688, %v4201
    %v4234 = vmul.f32 %v689, %v4202
    %v4235 = vmul.f32 %v690, %v4203
    %v4236 = vmul.f32 %v691, %v4204
    %v4237 = vmul.f32 %v692, %v4205
    %v4238 = vmul.f32 %v693, %v4206
    %v4239 = vmul.f32 %v694, %v4207
    %v4240 = vmul.f32 %v695, %v4208
    %v4241 = vmul.f32 %v696, %v4193
    %v4242 = vmul.f32 %v697, %v4194
    %v4243 = vmul.f32 %v698, %v4195
    %v4244 = vmul.f32 %v699, %v4196
    %v4245 = vmul.f32 %v700, %v4197
    %v4246 = vmul.f32 %v701, %v4198
    %v4247 = vmul.f32 %v702, %v4199
    %v4248 = vmul.f32 %v703, %v4200
    %v4249 = vmul.f32 %v704, %v4201
    %v4250 = vmul.f32 %v705, %v4202
    %v4251 = vmul.f32 %v706, %v4203
    %v4252 = vmul.f32 %v707, %v4204
    %v4253 = vmul.f32 %v708, %v4205
    %v4254 = vmul.f32 %v709, %v4206
    %v4255 = vmul.f32 %v710, %v4207
    %v4256 = vmul.f32 %v711, %v4208
    %v4257 = vmul.f32 %v712, %v4209
    %v4258 = vmul.f32 %v713, %v4210
    %v4259 = vmul.f32 %v714, %v4211
    %v4260 = vmul.f32 %v715, %v4212
    %v4261 = vmul.f32 %v716, %v4213
    %v4262 = vmul.f32 %v717, %v4214
    %v4263 = vmul.f32 %v718, %v4215
    %v4264 = vmul.f32 %v719, %v4216
    %v4265 = vmul.f32 %v720, %v4217
    %v4266 = vmul.f32 %v721, %v4218
    %v4267 = vmul.f32 %v722, %v4219
    %v4268 = vmul.f32 %v723, %v4220
    %v4269 = vmul.f32 %v724, %v4221
    %v4270 = vmul.f32 %v725, %v4222
    %v4271 = vmul.f32 %v726, %v4223
    %v4272 = vmul.f32 %v727, %v4224
    %v4273 = vmul.f32 %v728, %v4209
    %v4274 = vmul.f32 %v729, %v4210
    %v4275 = vmul.f32 %v730, %v4211
    %v4276 = vmul.f32 %v731, %v4212
    %v4277 = vmul.f32 %v732, %v4213
    %v4278 = vmul.f32 %v733, %v4214
    %v4279 = vmul.f32 %v734, %v4215
    %v4280 = vmul.f32 %v735, %v4216
    %v4281 = vmul.f32 %v736, %v4217
    %v4282 = vmul.f32 %v737, %v4218
    %v4283 = vmul.f32 %v738, %v4219
    %v4284 = vmul.f32 %v739, %v4220
    %v4285 = vmul.f32 %v740, %v4221
    %v4286 = vmul.f32 %v741, %v4222
    %v4287 = vmul.f32 %v742, %v4223
    %v4288 = vmul.f32 %v743, %v4224
    %v4289 = vpack.c.bf16 %v4226, %v4225
    %v4290 = vpack.c.bf16 %v4228, %v4227
    %v4291 = vpack.c.bf16 %v4230, %v4229
    %v4292 = vpack.c.bf16 %v4232, %v4231
    %v4293 = vpack.c.bf16 %v4234, %v4233
    %v4294 = vpack.c.bf16 %v4236, %v4235
    %v4295 = vpack.c.bf16 %v4238, %v4237
    %v4296 = vpack.c.bf16 %v4240, %v4239
    %v4297 = vpack.c.bf16 %v4242, %v4241
    %v4298 = vpack.c.bf16 %v4244, %v4243
    %v4299 = vpack.c.bf16 %v4246, %v4245
    %v4300 = vpack.c.bf16 %v4248, %v4247
    %v4301 = vpack.c.bf16 %v4250, %v4249
    %v4302 = vpack.c.bf16 %v4252, %v4251
    %v4303 = vpack.c.bf16 %v4254, %v4253
    %v4304 = vpack.c.bf16 %v4256, %v4255
    %v4305 = vpack.c.bf16 %v4258, %v4257
    %v4306 = vpack.c.bf16 %v4260, %v4259
    %v4307 = vpack.c.bf16 %v4262, %v4261
    %v4308 = vpack.c.bf16 %v4264, %v4263
    %v4309 = vpack.c.bf16 %v4266, %v4265
    %v4310 = vpack.c.bf16 %v4268, %v4267
    %v4311 = vpack.c.bf16 %v4270, %v4269
    %v4312 = vpack.c.bf16 %v4272, %v4271
    %v4313 = vpack.c.bf16 %v4274, %v4273
    %v4314 = vpack.c.bf16 %v4276, %v4275
    %v4315 = vpack.c.bf16 %v4278, %v4277
    %v4316 = vpack.c.bf16 %v4280, %v4279
    %v4317 = vpack.c.bf16 %v4282, %v4281
    %v4318 = vpack.c.bf16 %v4284, %v4283
    %v4319 = vpack.c.bf16 %v4286, %v4285
    %v4320 = vpack.c.bf16 %v4288, %v4287
    %v4321 = vunpack.c.l.bf16 %v4289
    %v4322 = vunpack.c.h.bf16 %v4289
    %v4323 = vunpack.c.l.bf16 %v4290
    %v4324 = vunpack.c.h.bf16 %v4290
    %v4325 = vunpack.c.l.bf16 %v4291
    %v4326 = vunpack.c.h.bf16 %v4291
    %v4327 = vunpack.c.l.bf16 %v4292
    %v4328 = vunpack.c.h.bf16 %v4292
    %v4329 = vunpack.c.l.bf16 %v4293
    %v4330 = vunpack.c.h.bf16 %v4293
    %v4331 = vunpack.c.l.bf16 %v4294
    %v4332 = vunpack.c.h.bf16 %v4294
    %v4333 = vunpack.c.l.bf16 %v4295
    %v4334 = vunpack.c.h.bf16 %v4295
    %v4335 = vunpack.c.l.bf16 %v4296
    %v4336 = vunpack.c.h.bf16 %v4296
    %v4337 = vunpack.c.l.bf16 %v4297
    %v4338 = vunpack.c.h.bf16 %v4297
    %v4339 = vunpack.c.l.bf16 %v4298
    %v4340 = vunpack.c.h.bf16 %v4298
    %v4341 = vunpack.c.l.bf16 %v4299
    %v4342 = vunpack.c.h.bf16 %v4299
    %v4343 = vunpack.c.l.bf16 %v4300
    %v4344 = vunpack.c.h.bf16 %v4300
    %v4345 = vunpack.c.l.bf16 %v4301
    %v4346 = vunpack.c.h.bf16 %v4301
    %v4347 = vunpack.c.l.bf16 %v4302
    %v4348 = vunpack.c.h.bf16 %v4302
    %v4349 = vunpack.c.l.bf16 %v4303
    %v4350 = vunpack.c.h.bf16 %v4303
    %v4351 = vunpack.c.l.bf16 %v4304
    %v4352 = vunpack.c.h.bf16 %v4304
    %v4353 = vunpack.c.l.bf16 %v4305
    %v4354 = vunpack.c.h.bf16 %v4305
    %v4355 = vunpack.c.l.bf16 %v4306
    %v4356 = vunpack.c.h.bf16 %v4306
    %v4357 = vunpack.c.l.bf16 %v4307
    %v4358 = vunpack.c.h.bf16 %v4307
    %v4359 = vunpack.c.l.bf16 %v4308
    %v4360 = vunpack.c.h.bf16 %v4308
    %v4361 = vunpack.c.l.bf16 %v4309
    %v4362 = vunpack.c.h.bf16 %v4309
    %v4363 = vunpack.c.l.bf16 %v4310
    %v4364 = vunpack.c.h.bf16 %v4310
    %v4365 = vunpack.c.l.bf16 %v4311
    %v4366 = vunpack.c.h.bf16 %v4311
    %v4367 = vunpack.c.l.bf16 %v4312
    %v4368 = vunpack.c.h.bf16 %v4312
    %v4369 = vunpack.c.l.bf16 %v4313
    %v4370 = vunpack.c.h.bf16 %v4313
    %v4371 = vunpack.c.l.bf16 %v4314
    %v4372 = vunpack.c.h.bf16 %v4314
    %v4373 = vunpack.c.l.bf16 %v4315
    %v4374 = vunpack.c.h.bf16 %v4315
    %v4375 = vunpack.c.l.bf16 %v4316
    %v4376 = vunpack.c.h.bf16 %v4316
    %v4377 = vunpack.c.l.bf16 %v4317
    %v4378 = vunpack.c.h.bf16 %v4317
    %v4379 = vunpack.c.l.bf16 %v4318
    %v4380 = vunpack.c.h.bf16 %v4318
    %v4381 = vunpack.c.l.bf16 %v4319
    %v4382 = vunpack.c.h.bf16 %v4319
    %v4383 = vunpack.c.l.bf16 %v4320
    %v4384 = vunpack.c.h.bf16 %v4320
    %v4385 = vmax.f32 %v4321, %v4322
    %v4386 = vmax.f32 %v4385, %v4323
    %v4387 = vmax.f32 %v4386, %v4324
    %v4388 = vmax.f32 %v4387, %v4325
    %v4389 = vmax.f32 %v4388, %v4326
    %v4390 = vmax.f32 %v4389, %v4327
    %v4391 = vmax.f32 %v4390, %v4328
    %v4392 = vmax.f32 %v4391, %v4329
    %v4393 = vmax.f32 %v4392, %v4330
    %v4394 = vmax.f32 %v4393, %v4331
    %v4395 = vmax.f32 %v4394, %v4332
    %v4396 = vmax.f32 %v4395, %v4333
    %v4397 = vmax.f32 %v4396, %v4334
    %v4398 = vmax.f32 %v4397, %v4335
    %v4399 = vmax.f32 %v4398, %v4336
    %4400 = vmax.xlane.f32.xlu0 %v4399
    %v4401 = vpop.xlane.xlu0 %4400
    %v4402 = vmax.f32 %v4337, %v4338
    %v4403 = vmax.f32 %v4402, %v4339
    %v4404 = vmax.f32 %v4403, %v4340
    %v4405 = vmax.f32 %v4404, %v4341
    %v4406 = vmax.f32 %v4405, %v4342
    %v4407 = vmax.f32 %v4406, %v4343
    %v4408 = vmax.f32 %v4407, %v4344
    %v4409 = vmax.f32 %v4408, %v4345
    %v4410 = vmax.f32 %v4409, %v4346
    %v4411 = vmax.f32 %v4410, %v4347
    %v4412 = vmax.f32 %v4411, %v4348
    %v4413 = vmax.f32 %v4412, %v4349
    %v4414 = vmax.f32 %v4413, %v4350
    %v4415 = vmax.f32 %v4414, %v4351
    %v4416 = vmax.f32 %v4415, %v4352
    %4417 = vmax.xlane.f32.xlu0 %v4416
    %v4418 = vpop.xlane.xlu0 %4417
    %v4419 = vmax.f32 %v4353, %v4354
    %v4420 = vmax.f32 %v4419, %v4355
    %v4421 = vmax.f32 %v4420, %v4356
    %v4422 = vmax.f32 %v4421, %v4357
    %v4423 = vmax.f32 %v4422, %v4358
    %v4424 = vmax.f32 %v4423, %v4359
    %v4425 = vmax.f32 %v4424, %v4360
    %v4426 = vmax.f32 %v4425, %v4361
    %v4427 = vmax.f32 %v4426, %v4362
    %v4428 = vmax.f32 %v4427, %v4363
    %v4429 = vmax.f32 %v4428, %v4364
    %v4430 = vmax.f32 %v4429, %v4365
    %v4431 = vmax.f32 %v4430, %v4366
    %v4432 = vmax.f32 %v4431, %v4367
    %v4433 = vmax.f32 %v4432, %v4368
    %4434 = vmax.xlane.f32.xlu0 %v4433
    %v4435 = vpop.xlane.xlu0 %4434
    %v4436 = vmax.f32 %v4369, %v4370
    %v4437 = vmax.f32 %v4436, %v4371
    %v4438 = vmax.f32 %v4437, %v4372
    %v4439 = vmax.f32 %v4438, %v4373
    %v4440 = vmax.f32 %v4439, %v4374
    %v4441 = vmax.f32 %v4440, %v4375
    %v4442 = vmax.f32 %v4441, %v4376
    %v4443 = vmax.f32 %v4442, %v4377
    %v4444 = vmax.f32 %v4443, %v4378
    %v4445 = vmax.f32 %v4444, %v4379
    %v4446 = vmax.f32 %v4445, %v4380
    %v4447 = vmax.f32 %v4446, %v4381
    %v4448 = vmax.f32 %v4447, %v4382
    %v4449 = vmax.f32 %v4448, %v4383
    %v4450 = vmax.f32 %v4449, %v4384
    %4451 = vmax.xlane.f32.xlu0 %v4450
    %v4452 = vpop.xlane.xlu0 %4451
    %v4453 = vpack.c.bf16 %v4401, %v4401
    %v4454 = vpack.c.bf16 %v4418, %v4418
    %v4455 = vpack.c.bf16 %v4435, %v4435
    %v4456 = vpack.c.bf16 %v4452, %v4452
    %v4457 = vunpack.c.l.bf16 %v4453
    %v4458 = vunpack.c.l.bf16 %v4454
    %v4459 = vunpack.c.l.bf16 %v4455
    %v4460 = vunpack.c.l.bf16 %v4456
    %v4477 = vunpack.c.l.b16 %v4289
    %v4478 = vunpack.c.h.b16 %v4289
    %v4479 = vunpack.c.l.b16 %v4290
    %v4480 = vunpack.c.h.b16 %v4290
    %v4481 = vunpack.c.l.b16 %v4291
    %v4482 = vunpack.c.h.b16 %v4291
    %v4483 = vunpack.c.l.b16 %v4292
    %v4484 = vunpack.c.h.b16 %v4292
    %v4485 = vunpack.c.l.b16 %v4293
    %v4486 = vunpack.c.h.b16 %v4293
    %v4487 = vunpack.c.l.b16 %v4294
    %v4488 = vunpack.c.h.b16 %v4294
    %v4489 = vunpack.c.l.b16 %v4295
    %v4490 = vunpack.c.h.b16 %v4295
    %v4491 = vunpack.c.l.b16 %v4296
    %v4492 = vunpack.c.h.b16 %v4296
    %v4493 = vunpack.c.l.b16 %v4297
    %v4494 = vunpack.c.h.b16 %v4297
    %v4495 = vunpack.c.l.b16 %v4298
    %v4496 = vunpack.c.h.b16 %v4298
    %v4497 = vunpack.c.l.b16 %v4299
    %v4498 = vunpack.c.h.b16 %v4299
    %v4499 = vunpack.c.l.b16 %v4300
    %v4500 = vunpack.c.h.b16 %v4300
    %v4501 = vunpack.c.l.b16 %v4301
    %v4502 = vunpack.c.h.b16 %v4301
    %v4503 = vunpack.c.l.b16 %v4302
    %v4504 = vunpack.c.h.b16 %v4302
    %v4505 = vunpack.c.l.b16 %v4303
    %v4506 = vunpack.c.h.b16 %v4303
    %v4507 = vunpack.c.l.b16 %v4304
    %v4508 = vunpack.c.h.b16 %v4304
    %v4509 = vpack.c.b16 %v4493, %v4477
    %v4510 = vpack.c.b16 %v4494, %v4478
    %v4511 = vpack.c.b16 %v4495, %v4479
    %v4512 = vpack.c.b16 %v4496, %v4480
    %v4513 = vpack.c.b16 %v4497, %v4481
    %v4514 = vpack.c.b16 %v4498, %v4482
    %v4515 = vpack.c.b16 %v4499, %v4483
    %v4516 = vpack.c.b16 %v4500, %v4484
    %v4517 = vpack.c.b16 %v4501, %v4485
    %v4518 = vpack.c.b16 %v4502, %v4486
    %v4519 = vpack.c.b16 %v4503, %v4487
    %v4520 = vpack.c.b16 %v4504, %v4488
    %v4521 = vpack.c.b16 %v4505, %v4489
    %v4522 = vpack.c.b16 %v4506, %v4490
    %v4523 = vpack.c.b16 %v4507, %v4491
    %v4524 = vpack.c.b16 %v4508, %v4492
    %4541 = vmatpush.bf16.xpose.msra.mxu0 0
    %4542 = vmatpush.bf16.xpose.msra.mxu0 0
    %4543 = vmatpush.bf16.xpose.msra.mxu0 0
    %4544 = vmatpush.bf16.xpose.msra.mxu0 0
    %4545 = vmatpush.bf16.xpose.msra.mxu0 0
    %4546 = vmatpush.bf16.xpose.msra.mxu0 0
    %4547 = vmatpush.bf16.xpose.msra.mxu0 0
    %4548 = vmatpush.bf16.xpose.msra.mxu0 %v4509
    %4549 = vmatmul.bf16.gmra.mxu0 1065369472
    %v4550 = vpop.f32.mrf.mxu0
    %v4551 = vadd.f32 0.0, %v4550
    %v4552 = vpop.f32.mrf.mxu0
    %4553 = vdwg.mxu0
    %4554 = vmatpush.bf16.xpose.msra.mxu0 0
    %4555 = vmatpush.bf16.xpose.msra.mxu0 0
    %4556 = vmatpush.bf16.xpose.msra.mxu0 0
    %4557 = vmatpush.bf16.xpose.msra.mxu0 0
    %4558 = vmatpush.bf16.xpose.msra.mxu0 0
    %4559 = vmatpush.bf16.xpose.msra.mxu0 0
    %4560 = vmatpush.bf16.xpose.msra.mxu0 0
    %4561 = vmatpush.bf16.xpose.msra.mxu0 %v4510
    %4562 = vmatmul.bf16.gmra.mxu0 1065369472
    %v4563 = vpop.f32.mrf.mxu0
    %v4564 = vadd.f32 %v4551, %v4563
    %v4565 = vpop.f32.mrf.mxu0
    %4566 = vdwg.mxu0
    %4567 = vmatpush.bf16.xpose.msra.mxu0 0
    %4568 = vmatpush.bf16.xpose.msra.mxu0 0
    %4569 = vmatpush.bf16.xpose.msra.mxu0 0
    %4570 = vmatpush.bf16.xpose.msra.mxu0 0
    %4571 = vmatpush.bf16.xpose.msra.mxu0 0
    %4572 = vmatpush.bf16.xpose.msra.mxu0 0
    %4573 = vmatpush.bf16.xpose.msra.mxu0 0
    %4574 = vmatpush.bf16.xpose.msra.mxu0 %v4511
    %4575 = vmatmul.bf16.gmra.mxu0 1065369472
    %v4576 = vpop.f32.mrf.mxu0
    %v4577 = vadd.f32 %v4564, %v4576
    %v4578 = vpop.f32.mrf.mxu0
    %4579 = vdwg.mxu0
    %4580 = vmatpush.bf16.xpose.msra.mxu0 0
    %4581 = vmatpush.bf16.xpose.msra.mxu0 0
    %4582 = vmatpush.bf16.xpose.msra.mxu0 0
    %4583 = vmatpush.bf16.xpose.msra.mxu0 0
    %4584 = vmatpush.bf16.xpose.msra.mxu0 0
    %4585 = vmatpush.bf16.xpose.msra.mxu0 0
    %4586 = vmatpush.bf16.xpose.msra.mxu0 0
    %4587 = vmatpush.bf16.xpose.msra.mxu0 %v4512
    %4588 = vmatmul.bf16.gmra.mxu0 1065369472
    %v4589 = vpop.f32.mrf.mxu0
    %v4590 = vadd.f32 %v4577, %v4589
    %v4591 = vpop.f32.mrf.mxu0
    %4592 = vdwg.mxu0
    %4593 = vmatpush.bf16.xpose.msra.mxu0 0
    %4594 = vmatpush.bf16.xpose.msra.mxu0 0
    %4595 = vmatpush.bf16.xpose.msra.mxu0 0
    %4596 = vmatpush.bf16.xpose.msra.mxu0 0
    %4597 = vmatpush.bf16.xpose.msra.mxu0 0
    %4598 = vmatpush.bf16.xpose.msra.mxu0 0
    %4599 = vmatpush.bf16.xpose.msra.mxu0 0
    %4600 = vmatpush.bf16.xpose.msra.mxu0 %v4513
    %4601 = vmatmul.bf16.gmra.mxu0 1065369472
    %v4602 = vpop.f32.mrf.mxu0
    %v4603 = vadd.f32 %v4590, %v4602
    %v4604 = vpop.f32.mrf.mxu0
    %4605 = vdwg.mxu0
    %4606 = vmatpush.bf16.xpose.msra.mxu0 0
    %4607 = vmatpush.bf16.xpose.msra.mxu0 0
    %4608 = vmatpush.bf16.xpose.msra.mxu0 0
    %4609 = vmatpush.bf16.xpose.msra.mxu0 0
    %4610 = vmatpush.bf16.xpose.msra.mxu0 0
    %4611 = vmatpush.bf16.xpose.msra.mxu0 0
    %4612 = vmatpush.bf16.xpose.msra.mxu0 0
    %4613 = vmatpush.bf16.xpose.msra.mxu0 %v4514
    %4614 = vmatmul.bf16.gmra.mxu0 1065369472
    %v4615 = vpop.f32.mrf.mxu0
    %v4616 = vadd.f32 %v4603, %v4615
    %v4617 = vpop.f32.mrf.mxu0
    %4618 = vdwg.mxu0
    %4619 = vmatpush.bf16.xpose.msra.mxu0 0
    %4620 = vmatpush.bf16.xpose.msra.mxu0 0
    %4621 = vmatpush.bf16.xpose.msra.mxu0 0
    %4622 = vmatpush.bf16.xpose.msra.mxu0 0
    %4623 = vmatpush.bf16.xpose.msra.mxu0 0
    %4624 = vmatpush.bf16.xpose.msra.mxu0 0
    %4625 = vmatpush.bf16.xpose.msra.mxu0 0
    %4626 = vmatpush.bf16.xpose.msra.mxu0 %v4515
    %4627 = vmatmul.bf16.gmra.mxu0 1065369472
    %v4628 = vpop.f32.mrf.mxu0
    %v4629 = vadd.f32 %v4616, %v4628
    %v4630 = vpop.f32.mrf.mxu0
    %4631 = vdwg.mxu0
    %4632 = vmatpush.bf16.xpose.msra.mxu0 0
    %4633 = vmatpush.bf16.xpose.msra.mxu0 0
    %4634 = vmatpush.bf16.xpose.msra.mxu0 0
    %4635 = vmatpush.bf16.xpose.msra.mxu0 0
    %4636 = vmatpush.bf16.xpose.msra.mxu0 0
    %4637 = vmatpush.bf16.xpose.msra.mxu0 0
    %4638 = vmatpush.bf16.xpose.msra.mxu0 0
    %4639 = vmatpush.bf16.xpose.msra.mxu0 %v4516
    %4640 = vmatmul.bf16.gmra.mxu0 1065369472
    %v4641 = vpop.f32.mrf.mxu0
    %v4642 = vadd.f32 %v4629, %v4641
    %v4643 = vpop.f32.mrf.mxu0
    %4644 = vdwg.mxu0
    %4645 = vmatpush.bf16.xpose.msra.mxu0 0
    %4646 = vmatpush.bf16.xpose.msra.mxu0 0
    %4647 = vmatpush.bf16.xpose.msra.mxu0 0
    %4648 = vmatpush.bf16.xpose.msra.mxu0 0
    %4649 = vmatpush.bf16.xpose.msra.mxu0 0
    %4650 = vmatpush.bf16.xpose.msra.mxu0 0
    %4651 = vmatpush.bf16.xpose.msra.mxu0 0
    %4652 = vmatpush.bf16.xpose.msra.mxu0 %v4517
    %4653 = vmatmul.bf16.gmra.mxu0 1065369472
    %v4654 = vpop.f32.mrf.mxu0
    %v4655 = vadd.f32 %v4642, %v4654
    %v4656 = vpop.f32.mrf.mxu0
    %4657 = vdwg.mxu0
    %4658 = vmatpush.bf16.xpose.msra.mxu0 0
    %4659 = vmatpush.bf16.xpose.msra.mxu0 0
    %4660 = vmatpush.bf16.xpose.msra.mxu0 0
    %4661 = vmatpush.bf16.xpose.msra.mxu0 0
    %4662 = vmatpush.bf16.xpose.msra.mxu0 0
    %4663 = vmatpush.bf16.xpose.msra.mxu0 0
    %4664 = vmatpush.bf16.xpose.msra.mxu0 0
    %4665 = vmatpush.bf16.xpose.msra.mxu0 %v4518
    %4666 = vmatmul.bf16.gmra.mxu0 1065369472
    %v4667 = vpop.f32.mrf.mxu0
    %v4668 = vadd.f32 %v4655, %v4667
    %v4669 = vpop.f32.mrf.mxu0
    %4670 = vdwg.mxu0
    %4671 = vmatpush.bf16.xpose.msra.mxu0 0
    %4672 = vmatpush.bf16.xpose.msra.mxu0 0
    %4673 = vmatpush.bf16.xpose.msra.mxu0 0
    %4674 = vmatpush.bf16.xpose.msra.mxu0 0
    %4675 = vmatpush.bf16.xpose.msra.mxu0 0
    %4676 = vmatpush.bf16.xpose.msra.mxu0 0
    %4677 = vmatpush.bf16.xpose.msra.mxu0 0
    %4678 = vmatpush.bf16.xpose.msra.mxu0 %v4519
    %4679 = vmatmul.bf16.gmra.mxu0 1065369472
    %v4680 = vpop.f32.mrf.mxu0
    %v4681 = vadd.f32 %v4668, %v4680
    %v4682 = vpop.f32.mrf.mxu0
    %4683 = vdwg.mxu0
    %4684 = vmatpush.bf16.xpose.msra.mxu0 0
    %4685 = vmatpush.bf16.xpose.msra.mxu0 0
    %4686 = vmatpush.bf16.xpose.msra.mxu0 0
    %4687 = vmatpush.bf16.xpose.msra.mxu0 0
    %4688 = vmatpush.bf16.xpose.msra.mxu0 0
    %4689 = vmatpush.bf16.xpose.msra.mxu0 0
    %4690 = vmatpush.bf16.xpose.msra.mxu0 0
    %4691 = vmatpush.bf16.xpose.msra.mxu0 %v4520
    %4692 = vmatmul.bf16.gmra.mxu0 1065369472
    %v4693 = vpop.f32.mrf.mxu0
    %v4694 = vadd.f32 %v4681, %v4693
    %v4695 = vpop.f32.mrf.mxu0
    %4696 = vdwg.mxu0
    %4697 = vmatpush.bf16.xpose.msra.mxu0 0
    %4698 = vmatpush.bf16.xpose.msra.mxu0 0
    %4699 = vmatpush.bf16.xpose.msra.mxu0 0
    %4700 = vmatpush.bf16.xpose.msra.mxu0 0
    %4701 = vmatpush.bf16.xpose.msra.mxu0 0
    %4702 = vmatpush.bf16.xpose.msra.mxu0 0
    %4703 = vmatpush.bf16.xpose.msra.mxu0 0
    %4704 = vmatpush.bf16.xpose.msra.mxu0 %v4521
    %4705 = vmatmul.bf16.gmra.mxu0 1065369472
    %v4706 = vpop.f32.mrf.mxu0
    %v4707 = vadd.f32 %v4694, %v4706
    %v4708 = vpop.f32.mrf.mxu0
    %4709 = vdwg.mxu0
    %4710 = vmatpush.bf16.xpose.msra.mxu0 0
    %4711 = vmatpush.bf16.xpose.msra.mxu0 0
    %4712 = vmatpush.bf16.xpose.msra.mxu0 0
    %4713 = vmatpush.bf16.xpose.msra.mxu0 0
    %4714 = vmatpush.bf16.xpose.msra.mxu0 0
    %4715 = vmatpush.bf16.xpose.msra.mxu0 0
    %4716 = vmatpush.bf16.xpose.msra.mxu0 0
    %4717 = vmatpush.bf16.xpose.msra.mxu0 %v4522
    %4718 = vmatmul.bf16.gmra.mxu0 1065369472
    %v4719 = vpop.f32.mrf.mxu0
    %v4720 = vadd.f32 %v4707, %v4719
    %v4721 = vpop.f32.mrf.mxu0
    %4722 = vdwg.mxu0
    %4723 = vmatpush.bf16.xpose.msra.mxu0 0
    %4724 = vmatpush.bf16.xpose.msra.mxu0 0
    %4725 = vmatpush.bf16.xpose.msra.mxu0 0
    %4726 = vmatpush.bf16.xpose.msra.mxu0 0
    %4727 = vmatpush.bf16.xpose.msra.mxu0 0
    %4728 = vmatpush.bf16.xpose.msra.mxu0 0
    %4729 = vmatpush.bf16.xpose.msra.mxu0 0
    %4730 = vmatpush.bf16.xpose.msra.mxu0 %v4523
    %4731 = vmatmul.bf16.gmra.mxu0 1065369472
    %v4732 = vpop.f32.mrf.mxu0
    %v4733 = vadd.f32 %v4720, %v4732
    %v4734 = vpop.f32.mrf.mxu0
    %4735 = vdwg.mxu0
    %4736 = vmatpush.bf16.xpose.msra.mxu0 0
    %4737 = vmatpush.bf16.xpose.msra.mxu0 0
    %4738 = vmatpush.bf16.xpose.msra.mxu0 0
    %4739 = vmatpush.bf16.xpose.msra.mxu0 0
    %4740 = vmatpush.bf16.xpose.msra.mxu0 0
    %4741 = vmatpush.bf16.xpose.msra.mxu0 0
    %4742 = vmatpush.bf16.xpose.msra.mxu0 0
    %4743 = vmatpush.bf16.xpose.msra.mxu0 %v4524
    %4744 = vmatmul.bf16.gmra.mxu0 1065369472
    %v4745 = vpop.f32.mrf.mxu0
    %v4746 = vadd.f32 %v4733, %v4745
    %v4747 = vpop.f32.mrf.mxu0
    %4748 = vdwg.mxu0
    %v4765 = vunpack.c.l.b16 %v4305
    %v4766 = vunpack.c.h.b16 %v4305
    %v4767 = vunpack.c.l.b16 %v4306
    %v4768 = vunpack.c.h.b16 %v4306
    %v4769 = vunpack.c.l.b16 %v4307
    %v4770 = vunpack.c.h.b16 %v4307
    %v4771 = vunpack.c.l.b16 %v4308
    %v4772 = vunpack.c.h.b16 %v4308
    %v4773 = vunpack.c.l.b16 %v4309
    %v4774 = vunpack.c.h.b16 %v4309
    %v4775 = vunpack.c.l.b16 %v4310
    %v4776 = vunpack.c.h.b16 %v4310
    %v4777 = vunpack.c.l.b16 %v4311
    %v4778 = vunpack.c.h.b16 %v4311
    %v4779 = vunpack.c.l.b16 %v4312
    %v4780 = vunpack.c.h.b16 %v4312
    %v4781 = vunpack.c.l.b16 %v4313
    %v4782 = vunpack.c.h.b16 %v4313
    %v4783 = vunpack.c.l.b16 %v4314
    %v4784 = vunpack.c.h.b16 %v4314
    %v4785 = vunpack.c.l.b16 %v4315
    %v4786 = vunpack.c.h.b16 %v4315
    %v4787 = vunpack.c.l.b16 %v4316
    %v4788 = vunpack.c.h.b16 %v4316
    %v4789 = vunpack.c.l.b16 %v4317
    %v4790 = vunpack.c.h.b16 %v4317
    %v4791 = vunpack.c.l.b16 %v4318
    %v4792 = vunpack.c.h.b16 %v4318
    %v4793 = vunpack.c.l.b16 %v4319
    %v4794 = vunpack.c.h.b16 %v4319
    %v4795 = vunpack.c.l.b16 %v4320
    %v4796 = vunpack.c.h.b16 %v4320
    %v4797 = vpack.c.b16 %v4781, %v4765
    %v4798 = vpack.c.b16 %v4782, %v4766
    %v4799 = vpack.c.b16 %v4783, %v4767
    %v4800 = vpack.c.b16 %v4784, %v4768
    %v4801 = vpack.c.b16 %v4785, %v4769
    %v4802 = vpack.c.b16 %v4786, %v4770
    %v4803 = vpack.c.b16 %v4787, %v4771
    %v4804 = vpack.c.b16 %v4788, %v4772
    %v4805 = vpack.c.b16 %v4789, %v4773
    %v4806 = vpack.c.b16 %v4790, %v4774
    %v4807 = vpack.c.b16 %v4791, %v4775
    %v4808 = vpack.c.b16 %v4792, %v4776
    %v4809 = vpack.c.b16 %v4793, %v4777
    %v4810 = vpack.c.b16 %v4794, %v4778
    %v4811 = vpack.c.b16 %v4795, %v4779
    %v4812 = vpack.c.b16 %v4796, %v4780
    %4829 = vmatpush.bf16.xpose.msra.mxu0 0
    %4830 = vmatpush.bf16.xpose.msra.mxu0 0
    %4831 = vmatpush.bf16.xpose.msra.mxu0 0
    %4832 = vmatpush.bf16.xpose.msra.mxu0 0
    %4833 = vmatpush.bf16.xpose.msra.mxu0 0
    %4834 = vmatpush.bf16.xpose.msra.mxu0 0
    %4835 = vmatpush.bf16.xpose.msra.mxu0 0
    %4836 = vmatpush.bf16.xpose.msra.mxu0 %v4797
    %4837 = vmatmul.bf16.gmra.mxu0 1065369472
    %v4838 = vpop.f32.mrf.mxu0
    %v4839 = vadd.f32 0.0, %v4838
    %v4840 = vpop.f32.mrf.mxu0
    %4841 = vdwg.mxu0
    %4842 = vmatpush.bf16.xpose.msra.mxu0 0
    %4843 = vmatpush.bf16.xpose.msra.mxu0 0
    %4844 = vmatpush.bf16.xpose.msra.mxu0 0
    %4845 = vmatpush.bf16.xpose.msra.mxu0 0
    %4846 = vmatpush.bf16.xpose.msra.mxu0 0
    %4847 = vmatpush.bf16.xpose.msra.mxu0 0
    %4848 = vmatpush.bf16.xpose.msra.mxu0 0
    %4849 = vmatpush.bf16.xpose.msra.mxu0 %v4798
    %4850 = vmatmul.bf16.gmra.mxu0 1065369472
    %v4851 = vpop.f32.mrf.mxu0
    %v4852 = vadd.f32 %v4839, %v4851
    %v4853 = vpop.f32.mrf.mxu0
    %4854 = vdwg.mxu0
    %4855 = vmatpush.bf16.xpose.msra.mxu0 0
    %4856 = vmatpush.bf16.xpose.msra.mxu0 0
    %4857 = vmatpush.bf16.xpose.msra.mxu0 0
    %4858 = vmatpush.bf16.xpose.msra.mxu0 0
    %4859 = vmatpush.bf16.xpose.msra.mxu0 0
    %4860 = vmatpush.bf16.xpose.msra.mxu0 0
    %4861 = vmatpush.bf16.xpose.msra.mxu0 0
    %4862 = vmatpush.bf16.xpose.msra.mxu0 %v4799
    %4863 = vmatmul.bf16.gmra.mxu0 1065369472
    %v4864 = vpop.f32.mrf.mxu0
    %v4865 = vadd.f32 %v4852, %v4864
    %v4866 = vpop.f32.mrf.mxu0
    %4867 = vdwg.mxu0
    %4868 = vmatpush.bf16.xpose.msra.mxu0 0
    %4869 = vmatpush.bf16.xpose.msra.mxu0 0
    %4870 = vmatpush.bf16.xpose.msra.mxu0 0
    %4871 = vmatpush.bf16.xpose.msra.mxu0 0
    %4872 = vmatpush.bf16.xpose.msra.mxu0 0
    %4873 = vmatpush.bf16.xpose.msra.mxu0 0
    %4874 = vmatpush.bf16.xpose.msra.mxu0 0
    %4875 = vmatpush.bf16.xpose.msra.mxu0 %v4800
    %4876 = vmatmul.bf16.gmra.mxu0 1065369472
    %v4877 = vpop.f32.mrf.mxu0
    %v4878 = vadd.f32 %v4865, %v4877
    %v4879 = vpop.f32.mrf.mxu0
    %4880 = vdwg.mxu0
    %4881 = vmatpush.bf16.xpose.msra.mxu0 0
    %4882 = vmatpush.bf16.xpose.msra.mxu0 0
    %4883 = vmatpush.bf16.xpose.msra.mxu0 0
    %4884 = vmatpush.bf16.xpose.msra.mxu0 0
    %4885 = vmatpush.bf16.xpose.msra.mxu0 0
    %4886 = vmatpush.bf16.xpose.msra.mxu0 0
    %4887 = vmatpush.bf16.xpose.msra.mxu0 0
    %4888 = vmatpush.bf16.xpose.msra.mxu0 %v4801
    %4889 = vmatmul.bf16.gmra.mxu0 1065369472
    %v4890 = vpop.f32.mrf.mxu0
    %v4891 = vadd.f32 %v4878, %v4890
    %v4892 = vpop.f32.mrf.mxu0
    %4893 = vdwg.mxu0
    %4894 = vmatpush.bf16.xpose.msra.mxu0 0
    %4895 = vmatpush.bf16.xpose.msra.mxu0 0
    %4896 = vmatpush.bf16.xpose.msra.mxu0 0
    %4897 = vmatpush.bf16.xpose.msra.mxu0 0
    %4898 = vmatpush.bf16.xpose.msra.mxu0 0
    %4899 = vmatpush.bf16.xpose.msra.mxu0 0
    %4900 = vmatpush.bf16.xpose.msra.mxu0 0
    %4901 = vmatpush.bf16.xpose.msra.mxu0 %v4802
    %4902 = vmatmul.bf16.gmra.mxu0 1065369472
    %v4903 = vpop.f32.mrf.mxu0
    %v4904 = vadd.f32 %v4891, %v4903
    %v4905 = vpop.f32.mrf.mxu0
    %4906 = vdwg.mxu0
    %4907 = vmatpush.bf16.xpose.msra.mxu0 0
    %4908 = vmatpush.bf16.xpose.msra.mxu0 0
    %4909 = vmatpush.bf16.xpose.msra.mxu0 0
    %4910 = vmatpush.bf16.xpose.msra.mxu0 0
    %4911 = vmatpush.bf16.xpose.msra.mxu0 0
    %4912 = vmatpush.bf16.xpose.msra.mxu0 0
    %4913 = vmatpush.bf16.xpose.msra.mxu0 0
    %4914 = vmatpush.bf16.xpose.msra.mxu0 %v4803
    %4915 = vmatmul.bf16.gmra.mxu0 1065369472
    %v4916 = vpop.f32.mrf.mxu0
    %v4917 = vadd.f32 %v4904, %v4916
    %v4918 = vpop.f32.mrf.mxu0
    %4919 = vdwg.mxu0
    %4920 = vmatpush.bf16.xpose.msra.mxu0 0
    %4921 = vmatpush.bf16.xpose.msra.mxu0 0
    %4922 = vmatpush.bf16.xpose.msra.mxu0 0
    %4923 = vmatpush.bf16.xpose.msra.mxu0 0
    %4924 = vmatpush.bf16.xpose.msra.mxu0 0
    %4925 = vmatpush.bf16.xpose.msra.mxu0 0
    %4926 = vmatpush.bf16.xpose.msra.mxu0 0
    %4927 = vmatpush.bf16.xpose.msra.mxu0 %v4804
    %4928 = vmatmul.bf16.gmra.mxu0 1065369472
    %v4929 = vpop.f32.mrf.mxu0
    %v4930 = vadd.f32 %v4917, %v4929
    %v4931 = vpop.f32.mrf.mxu0
    %4932 = vdwg.mxu0
    %4933 = vmatpush.bf16.xpose.msra.mxu0 0
    %4934 = vmatpush.bf16.xpose.msra.mxu0 0
    %4935 = vmatpush.bf16.xpose.msra.mxu0 0
    %4936 = vmatpush.bf16.xpose.msra.mxu0 0
    %4937 = vmatpush.bf16.xpose.msra.mxu0 0
    %4938 = vmatpush.bf16.xpose.msra.mxu0 0
    %4939 = vmatpush.bf16.xpose.msra.mxu0 0
    %4940 = vmatpush.bf16.xpose.msra.mxu0 %v4805
    %4941 = vmatmul.bf16.gmra.mxu0 1065369472
    %v4942 = vpop.f32.mrf.mxu0
    %v4943 = vadd.f32 %v4930, %v4942
    %v4944 = vpop.f32.mrf.mxu0
    %4945 = vdwg.mxu0
    %4946 = vmatpush.bf16.xpose.msra.mxu0 0
    %4947 = vmatpush.bf16.xpose.msra.mxu0 0
    %4948 = vmatpush.bf16.xpose.msra.mxu0 0
    %4949 = vmatpush.bf16.xpose.msra.mxu0 0
    %4950 = vmatpush.bf16.xpose.msra.mxu0 0
    %4951 = vmatpush.bf16.xpose.msra.mxu0 0
    %4952 = vmatpush.bf16.xpose.msra.mxu0 0
    %4953 = vmatpush.bf16.xpose.msra.mxu0 %v4806
    %4954 = vmatmul.bf16.gmra.mxu0 1065369472
    %v4955 = vpop.f32.mrf.mxu0
    %v4956 = vadd.f32 %v4943, %v4955
    %v4957 = vpop.f32.mrf.mxu0
    %4958 = vdwg.mxu0
    %4959 = vmatpush.bf16.xpose.msra.mxu0 0
    %4960 = vmatpush.bf16.xpose.msra.mxu0 0
    %4961 = vmatpush.bf16.xpose.msra.mxu0 0
    %4962 = vmatpush.bf16.xpose.msra.mxu0 0
    %4963 = vmatpush.bf16.xpose.msra.mxu0 0
    %4964 = vmatpush.bf16.xpose.msra.mxu0 0
    %4965 = vmatpush.bf16.xpose.msra.mxu0 0
    %4966 = vmatpush.bf16.xpose.msra.mxu0 %v4807
    %4967 = vmatmul.bf16.gmra.mxu0 1065369472
    %v4968 = vpop.f32.mrf.mxu0
    %v4969 = vadd.f32 %v4956, %v4968
    %v4970 = vpop.f32.mrf.mxu0
    %4971 = vdwg.mxu0
    %4972 = vmatpush.bf16.xpose.msra.mxu0 0
    %4973 = vmatpush.bf16.xpose.msra.mxu0 0
    %4974 = vmatpush.bf16.xpose.msra.mxu0 0
    %4975 = vmatpush.bf16.xpose.msra.mxu0 0
    %4976 = vmatpush.bf16.xpose.msra.mxu0 0
    %4977 = vmatpush.bf16.xpose.msra.mxu0 0
    %4978 = vmatpush.bf16.xpose.msra.mxu0 0
    %4979 = vmatpush.bf16.xpose.msra.mxu0 %v4808
    %4980 = vmatmul.bf16.gmra.mxu0 1065369472
    %v4981 = vpop.f32.mrf.mxu0
    %v4982 = vadd.f32 %v4969, %v4981
    %v4983 = vpop.f32.mrf.mxu0
    %4984 = vdwg.mxu0
    %4985 = vmatpush.bf16.xpose.msra.mxu0 0
    %4986 = vmatpush.bf16.xpose.msra.mxu0 0
    %4987 = vmatpush.bf16.xpose.msra.mxu0 0
    %4988 = vmatpush.bf16.xpose.msra.mxu0 0
    %4989 = vmatpush.bf16.xpose.msra.mxu0 0
    %4990 = vmatpush.bf16.xpose.msra.mxu0 0
    %4991 = vmatpush.bf16.xpose.msra.mxu0 0
    %4992 = vmatpush.bf16.xpose.msra.mxu0 %v4809
    %4993 = vmatmul.bf16.gmra.mxu0 1065369472
    %v4994 = vpop.f32.mrf.mxu0
    %v4995 = vadd.f32 %v4982, %v4994
    %v4996 = vpop.f32.mrf.mxu0
    %4997 = vdwg.mxu0
    %4998 = vmatpush.bf16.xpose.msra.mxu0 0
    %4999 = vmatpush.bf16.xpose.msra.mxu0 0
    %5000 = vmatpush.bf16.xpose.msra.mxu0 0
    %5001 = vmatpush.bf16.xpose.msra.mxu0 0
    %5002 = vmatpush.bf16.xpose.msra.mxu0 0
    %5003 = vmatpush.bf16.xpose.msra.mxu0 0
    %5004 = vmatpush.bf16.xpose.msra.mxu0 0
    %5005 = vmatpush.bf16.xpose.msra.mxu0 %v4810
    %5006 = vmatmul.bf16.gmra.mxu0 1065369472
    %v5007 = vpop.f32.mrf.mxu0
    %v5008 = vadd.f32 %v4995, %v5007
    %v5009 = vpop.f32.mrf.mxu0
    %5010 = vdwg.mxu0
    %5011 = vmatpush.bf16.xpose.msra.mxu0 0
    %5012 = vmatpush.bf16.xpose.msra.mxu0 0
    %5013 = vmatpush.bf16.xpose.msra.mxu0 0
    %5014 = vmatpush.bf16.xpose.msra.mxu0 0
    %5015 = vmatpush.bf16.xpose.msra.mxu0 0
    %5016 = vmatpush.bf16.xpose.msra.mxu0 0
    %5017 = vmatpush.bf16.xpose.msra.mxu0 0
    %5018 = vmatpush.bf16.xpose.msra.mxu0 %v4811
    %5019 = vmatmul.bf16.gmra.mxu0 1065369472
    %v5020 = vpop.f32.mrf.mxu0
    %v5021 = vadd.f32 %v5008, %v5020
    %v5022 = vpop.f32.mrf.mxu0
    %5023 = vdwg.mxu0
    %5024 = vmatpush.bf16.xpose.msra.mxu0 0
    %5025 = vmatpush.bf16.xpose.msra.mxu0 0
    %5026 = vmatpush.bf16.xpose.msra.mxu0 0
    %5027 = vmatpush.bf16.xpose.msra.mxu0 0
    %5028 = vmatpush.bf16.xpose.msra.mxu0 0
    %5029 = vmatpush.bf16.xpose.msra.mxu0 0
    %5030 = vmatpush.bf16.xpose.msra.mxu0 0
    %5031 = vmatpush.bf16.xpose.msra.mxu0 %v4812
    %5032 = vmatmul.bf16.gmra.mxu0 1065369472
    %v5033 = vpop.f32.mrf.mxu0
    %v5034 = vadd.f32 %v5021, %v5033
    %v5035 = vpop.f32.mrf.mxu0
    %5036 = vdwg.mxu0
    %v5037 = vmul.f32 %v4746, 0.00048828125
    %v5038 = vmul.f32 %v5034, 0.00048828125
    %v5043 = vlaneseq
    %v5044 = vand.u32 %v5043, 127
    %v5045 = vperm.slane %v4457, %v5044
    %v5046 = vadd.s32 %v5044, 4294967288
    %v5047 = vperm.slane %v4458, %v5046
    %vm5048 = vcmask 130112
    %v5049 = vsel %vm5048, %v5047, %v5045
    %v5050 = vperm.slane %v4459, %v5044
    %v5051 = vperm.slane %v4460, %v5046
    %v5052 = vsel %vm5048, %v5051, %v5050
    %v5053 = vsel %vm1113, %v5052, %v5049
    %v5057 = vrot.slane %v5038, 7
    %v5058 = vsel %vm1113, %v5057, %v5037
    %v5060 = vsel %vm148, %v5053, 0.0
    %v5061 = vsel %vm148, %v5058, 0.0
    %v5062 = vpack.c.bf16 %v5060, %v5060
    %v5063 = vpack.c.bf16 %v5061, %v5061
    %v5064 = vld [vmem:[%s5] sm:$0xf]
    %v5065 = vld [vmem:[%s5 + $0x4] sm:$0xf]
    %v5066 = vld [vmem:[%s5 + $0x8] sm:$0xf]
    %v5067 = vld [vmem:[%s5 + $0xc] sm:$0xf]
    %v5068 = vld [vmem:[%s5 + $0x10] sm:$0xf]
    %v5069 = vld [vmem:[%s5 + $0x14] sm:$0xf]
    %v5070 = vld [vmem:[%s5 + $0x18] sm:$0xf]
    %v5071 = vld [vmem:[%s5 + $0x1c] sm:$0xf]
    %v5072 = vld [vmem:[%s5 + $0x20] sm:$0xf]
    %v5073 = vld [vmem:[%s5 + $0x24] sm:$0xf]
    %v5074 = vld [vmem:[%s5 + $0x28] sm:$0xf]
    %v5075 = vld [vmem:[%s5 + $0x2c] sm:$0xf]
    %v5076 = vld [vmem:[%s5 + $0x30] sm:$0xf]
    %v5077 = vld [vmem:[%s5 + $0x34] sm:$0xf]
    %v5078 = vld [vmem:[%s5 + $0x38] sm:$0xf]
    %v5079 = vld [vmem:[%s5 + $0x3c] sm:$0xf]
    %v5080 = vld [vmem:[%s5 + $0x40] sm:$0xf]
    %v5081 = vld [vmem:[%s5 + $0x44] sm:$0xf]
    %v5082 = vld [vmem:[%s5 + $0x48] sm:$0xf]
    %v5083 = vld [vmem:[%s5 + $0x4c] sm:$0xf]
    %v5084 = vld [vmem:[%s5 + $0x50] sm:$0xf]
    %v5085 = vld [vmem:[%s5 + $0x54] sm:$0xf]
    %v5086 = vld [vmem:[%s5 + $0x58] sm:$0xf]
    %v5087 = vld [vmem:[%s5 + $0x5c] sm:$0xf]
    %v5088 = vld [vmem:[%s5 + $0x60] sm:$0xf]
    %v5089 = vld [vmem:[%s5 + $0x64] sm:$0xf]
    %v5090 = vld [vmem:[%s5 + $0x68] sm:$0xf]
    %v5091 = vld [vmem:[%s5 + $0x6c] sm:$0xf]
    %v5092 = vld [vmem:[%s5 + $0x70] sm:$0xf]
    %v5093 = vld [vmem:[%s5 + $0x74] sm:$0xf]
    %v5094 = vld [vmem:[%s5 + $0x78] sm:$0xf]
    %v5095 = vld [vmem:[%s5 + $0x7c] sm:$0xf]
    %s5096 = sld [smem:[#allocation2]]
    %v5097 = vstv %s5096
    %v5130 = vunpack.c.l.b16 %v5064
    %v5131 = vunpack.c.l.b16 %v5065
    %v5132 = vunpack.c.l.b16 %v5066
    %v5133 = vunpack.c.l.b16 %v5067
    %v5134 = vunpack.c.l.b16 %v5068
    %v5135 = vunpack.c.l.b16 %v5069
    %v5136 = vunpack.c.l.b16 %v5070
    %v5137 = vunpack.c.l.b16 %v5071
    %v5138 = vunpack.c.l.b16 %v5072
    %v5139 = vunpack.c.l.b16 %v5073
    %v5140 = vunpack.c.l.b16 %v5074
    %v5141 = vunpack.c.l.b16 %v5075
    %v5142 = vunpack.c.l.b16 %v5076
    %v5143 = vunpack.c.l.b16 %v5077
    %v5144 = vunpack.c.l.b16 %v5078
    %v5145 = vunpack.c.l.b16 %v5079
    %v5146 = vunpack.c.l.b16 %v5080
    %v5147 = vunpack.c.l.b16 %v5081
    %v5148 = vunpack.c.l.b16 %v5082
    %v5149 = vunpack.c.l.b16 %v5083
    %v5150 = vunpack.c.l.b16 %v5084
    %v5151 = vunpack.c.l.b16 %v5085
    %v5152 = vunpack.c.l.b16 %v5086
    %v5153 = vunpack.c.l.b16 %v5087
    %v5154 = vunpack.c.l.b16 %v5088
    %v5155 = vunpack.c.l.b16 %v5089
    %v5156 = vunpack.c.l.b16 %v5090
    %v5157 = vunpack.c.l.b16 %v5091
    %v5158 = vunpack.c.l.b16 %v5092
    %v5159 = vunpack.c.l.b16 %v5093
    %v5160 = vunpack.c.l.b16 %v5094
    %v5161 = vunpack.c.l.b16 %v5095
    %v5162 = vpack.c.b16 %v5131, %v5130
    %v5163 = vpack.c.b16 %v5133, %v5132
    %v5164 = vpack.c.b16 %v5135, %v5134
    %v5165 = vpack.c.b16 %v5137, %v5136
    %v5166 = vpack.c.b16 %v5139, %v5138
    %v5167 = vpack.c.b16 %v5141, %v5140
    %v5168 = vpack.c.b16 %v5143, %v5142
    %v5169 = vpack.c.b16 %v5145, %v5144
    %v5170 = vpack.c.b16 %v5147, %v5146
    %v5171 = vpack.c.b16 %v5149, %v5148
    %v5172 = vpack.c.b16 %v5151, %v5150
    %v5173 = vpack.c.b16 %v5153, %v5152
    %v5174 = vpack.c.b16 %v5155, %v5154
    %v5175 = vpack.c.b16 %v5157, %v5156
    %v5176 = vpack.c.b16 %v5159, %v5158
    %v5177 = vpack.c.b16 %v5161, %v5160
    %5194 = vmatpush.bf16.msra.mxu0 %v5169
    %5195 = vmatpush.bf16.msra.mxu0 %v5168
    %5196 = vmatpush.bf16.msra.mxu0 %v5167
    %5197 = vmatpush.bf16.msra.mxu0 %v5166
    %5198 = vmatpush.bf16.msra.mxu0 %v5165
    %5199 = vmatpush.bf16.msra.mxu0 %v5164
    %5200 = vmatpush.bf16.msra.mxu0 %v5163
    %5201 = vmatpush.bf16.msra.mxu0 %v5162
    %5202 = vmatmul.bf16.gmra.mxu0 %v5062
    %v5203 = vpop.f32.mrf.mxu0
    %v5204 = vadd.f32 %v5097, %v5203
    %v5205 = vpop.f32.mrf.mxu0
    %5206 = vdwg.mxu0
    %5207 = vmatpush.bf16.msra.mxu0 %v5177
    %5208 = vmatpush.bf16.msra.mxu0 %v5176
    %5209 = vmatpush.bf16.msra.mxu0 %v5175
    %5210 = vmatpush.bf16.msra.mxu0 %v5174
    %5211 = vmatpush.bf16.msra.mxu0 %v5173
    %5212 = vmatpush.bf16.msra.mxu0 %v5172
    %5213 = vmatpush.bf16.msra.mxu0 %v5171
    %5214 = vmatpush.bf16.msra.mxu0 %v5170
    %5215 = vmatmul.bf16.gmra.mxu0 %v5063
    %v5216 = vpop.f32.mrf.mxu0
    %v5217 = vadd.f32 %v5204, %v5216
    %v5218 = vpop.f32.mrf.mxu0
    %5219 = vdwg.mxu0
    %v5220 = vxor.u32 %v5217, 2147483648
    %v5221 = vmul.f32 %v5220, 1.442695
    %v5222 = vpow.pop %v5221
    %v5223 = vadd.f32 %v5222, 1.0
    %v5224 = vrcp.pop %v5223
    %v5225 = vmul.f32 %v5223, %v5224
    %v5226 = vsub.f32 1.0, %v5225
    %v5227 = vmul.f32 %v5224, %v5226
    %v5228 = vadd.f32 %v5224, %v5227
    %vm5229 = vweird.f32 %v5223
    %vm5230 = vweird.f32 %v5224
    %vm5231 = vmor %vm5229, %vm5230
    %v5232 = vsel %vm5231, %v5224, %v5228
    %v5233 = vand.u32 2147483647, %v5223
    %vm5234 = vcmp.eq.f32.partialorder %v5233, 8.507059e+37
    %v5235 = vand.u32 %v5223, 2147483648
    %v5236 = vor.u32 1.1754944e-38, %v5235
    %v5237 = vsel %vm5234, %v5236, %v5232
    %v5238 = vmul.f32 1.0, %v5237
    %v5240 = vrot.slane %v5238, 1
    %v5242 = vpack.c.bf16 %v5238, %v5238
    %v5243 = vpack.c.bf16 %v5240, %v5240
    %v5245 = vsel %vm148, %v5242, 0
    %5247 = vmatpush.bf16.msra.mxu0 0
    %5248 = vmatpush.bf16.msra.mxu0 0
    %5249 = vmatpush.bf16.msra.mxu0 0
    %5250 = vmatpush.bf16.msra.mxu0 0
    %5251 = vmatpush.bf16.msra.mxu0 0
    %5252 = vmatpush.bf16.msra.mxu0 0
    %5253 = vmatpush.bf16.msra.mxu0 0
    %5254 = vmatpush.bf16.msra.mxu0 %v4509
    %5255 = vmatmul.bf16.gmra.mxu0 %v5245
    %v5256 = vpop.f32.mrf.mxu0
    %v5257 = vadd.f32 0.0, %v5256
    %v5258 = vpop.f32.mrf.mxu0
    %5259 = vdwg.mxu0
    %5260 = vmatpush.bf16.msra.mxu0 0
    %5261 = vmatpush.bf16.msra.mxu0 0
    %5262 = vmatpush.bf16.msra.mxu0 0
    %5263 = vmatpush.bf16.msra.mxu0 0
    %5264 = vmatpush.bf16.msra.mxu0 0
    %5265 = vmatpush.bf16.msra.mxu0 0
    %5266 = vmatpush.bf16.msra.mxu0 0
    %5267 = vmatpush.bf16.msra.mxu0 %v4510
    %5268 = vmatmul.bf16.gmra.mxu0 %v5245
    %v5269 = vpop.f32.mrf.mxu0
    %v5270 = vadd.f32 0.0, %v5269
    %v5271 = vpop.f32.mrf.mxu0
    %5272 = vdwg.mxu0
    %5273 = vmatpush.bf16.msra.mxu0 0
    %5274 = vmatpush.bf16.msra.mxu0 0
    %5275 = vmatpush.bf16.msra.mxu0 0
    %5276 = vmatpush.bf16.msra.mxu0 0
    %5277 = vmatpush.bf16.msra.mxu0 0
    %5278 = vmatpush.bf16.msra.mxu0 0
    %5279 = vmatpush.bf16.msra.mxu0 0
    %5280 = vmatpush.bf16.msra.mxu0 %v4511
    %5281 = vmatmul.bf16.gmra.mxu0 %v5245
    %v5282 = vpop.f32.mrf.mxu0
    %v5283 = vadd.f32 0.0, %v5282
    %v5284 = vpop.f32.mrf.mxu0
    %5285 = vdwg.mxu0
    %5286 = vmatpush.bf16.msra.mxu0 0
    %5287 = vmatpush.bf16.msra.mxu0 0
    %5288 = vmatpush.bf16.msra.mxu0 0
    %5289 = vmatpush.bf16.msra.mxu0 0
    %5290 = vmatpush.bf16.msra.mxu0 0
    %5291 = vmatpush.bf16.msra.mxu0 0
    %5292 = vmatpush.bf16.msra.mxu0 0
    %5293 = vmatpush.bf16.msra.mxu0 %v4512
    %5294 = vmatmul.bf16.gmra.mxu0 %v5245
    %v5295 = vpop.f32.mrf.mxu0
    %v5296 = vadd.f32 0.0, %v5295
    %v5297 = vpop.f32.mrf.mxu0
    %5298 = vdwg.mxu0
    %5299 = vmatpush.bf16.msra.mxu0 0
    %5300 = vmatpush.bf16.msra.mxu0 0
    %5301 = vmatpush.bf16.msra.mxu0 0
    %5302 = vmatpush.bf16.msra.mxu0 0
    %5303 = vmatpush.bf16.msra.mxu0 0
    %5304 = vmatpush.bf16.msra.mxu0 0
    %5305 = vmatpush.bf16.msra.mxu0 0
    %5306 = vmatpush.bf16.msra.mxu0 %v4513
    %5307 = vmatmul.bf16.gmra.mxu0 %v5245
    %v5308 = vpop.f32.mrf.mxu0
    %v5309 = vadd.f32 0.0, %v5308
    %v5310 = vpop.f32.mrf.mxu0
    %5311 = vdwg.mxu0
    %5312 = vmatpush.bf16.msra.mxu0 0
    %5313 = vmatpush.bf16.msra.mxu0 0
    %5314 = vmatpush.bf16.msra.mxu0 0
    %5315 = vmatpush.bf16.msra.mxu0 0
    %5316 = vmatpush.bf16.msra.mxu0 0
    %5317 = vmatpush.bf16.msra.mxu0 0
    %5318 = vmatpush.bf16.msra.mxu0 0
    %5319 = vmatpush.bf16.msra.mxu0 %v4514
    %5320 = vmatmul.bf16.gmra.mxu0 %v5245
    %v5321 = vpop.f32.mrf.mxu0
    %v5322 = vadd.f32 0.0, %v5321
    %v5323 = vpop.f32.mrf.mxu0
    %5324 = vdwg.mxu0
    %5325 = vmatpush.bf16.msra.mxu0 0
    %5326 = vmatpush.bf16.msra.mxu0 0
    %5327 = vmatpush.bf16.msra.mxu0 0
    %5328 = vmatpush.bf16.msra.mxu0 0
    %5329 = vmatpush.bf16.msra.mxu0 0
    %5330 = vmatpush.bf16.msra.mxu0 0
    %5331 = vmatpush.bf16.msra.mxu0 0
    %5332 = vmatpush.bf16.msra.mxu0 %v4515
    %5333 = vmatmul.bf16.gmra.mxu0 %v5245
    %v5334 = vpop.f32.mrf.mxu0
    %v5335 = vadd.f32 0.0, %v5334
    %v5336 = vpop.f32.mrf.mxu0
    %5337 = vdwg.mxu0
    %5338 = vmatpush.bf16.msra.mxu0 0
    %5339 = vmatpush.bf16.msra.mxu0 0
    %5340 = vmatpush.bf16.msra.mxu0 0
    %5341 = vmatpush.bf16.msra.mxu0 0
    %5342 = vmatpush.bf16.msra.mxu0 0
    %5343 = vmatpush.bf16.msra.mxu0 0
    %5344 = vmatpush.bf16.msra.mxu0 0
    %5345 = vmatpush.bf16.msra.mxu0 %v4516
    %5346 = vmatmul.bf16.gmra.mxu0 %v5245
    %v5347 = vpop.f32.mrf.mxu0
    %v5348 = vadd.f32 0.0, %v5347
    %v5349 = vpop.f32.mrf.mxu0
    %5350 = vdwg.mxu0
    %5351 = vmatpush.bf16.msra.mxu0 0
    %5352 = vmatpush.bf16.msra.mxu0 0
    %5353 = vmatpush.bf16.msra.mxu0 0
    %5354 = vmatpush.bf16.msra.mxu0 0
    %5355 = vmatpush.bf16.msra.mxu0 0
    %5356 = vmatpush.bf16.msra.mxu0 0
    %5357 = vmatpush.bf16.msra.mxu0 0
    %5358 = vmatpush.bf16.msra.mxu0 %v4517
    %5359 = vmatmul.bf16.gmra.mxu0 %v5245
    %v5360 = vpop.f32.mrf.mxu0
    %v5361 = vadd.f32 0.0, %v5360
    %v5362 = vpop.f32.mrf.mxu0
    %5363 = vdwg.mxu0
    %5364 = vmatpush.bf16.msra.mxu0 0
    %5365 = vmatpush.bf16.msra.mxu0 0
    %5366 = vmatpush.bf16.msra.mxu0 0
    %5367 = vmatpush.bf16.msra.mxu0 0
    %5368 = vmatpush.bf16.msra.mxu0 0
    %5369 = vmatpush.bf16.msra.mxu0 0
    %5370 = vmatpush.bf16.msra.mxu0 0
    %5371 = vmatpush.bf16.msra.mxu0 %v4518
    %5372 = vmatmul.bf16.gmra.mxu0 %v5245
    %v5373 = vpop.f32.mrf.mxu0
    %v5374 = vadd.f32 0.0, %v5373
    %v5375 = vpop.f32.mrf.mxu0
    %5376 = vdwg.mxu0
    %5377 = vmatpush.bf16.msra.mxu0 0
    %5378 = vmatpush.bf16.msra.mxu0 0
    %5379 = vmatpush.bf16.msra.mxu0 0
    %5380 = vmatpush.bf16.msra.mxu0 0
    %5381 = vmatpush.bf16.msra.mxu0 0
    %5382 = vmatpush.bf16.msra.mxu0 0
    %5383 = vmatpush.bf16.msra.mxu0 0
    %5384 = vmatpush.bf16.msra.mxu0 %v4519
    %5385 = vmatmul.bf16.gmra.mxu0 %v5245
    %v5386 = vpop.f32.mrf.mxu0
    %v5387 = vadd.f32 0.0, %v5386
    %v5388 = vpop.f32.mrf.mxu0
    %5389 = vdwg.mxu0
    %5390 = vmatpush.bf16.msra.mxu0 0
    %5391 = vmatpush.bf16.msra.mxu0 0
    %5392 = vmatpush.bf16.msra.mxu0 0
    %5393 = vmatpush.bf16.msra.mxu0 0
    %5394 = vmatpush.bf16.msra.mxu0 0
    %5395 = vmatpush.bf16.msra.mxu0 0
    %5396 = vmatpush.bf16.msra.mxu0 0
    %5397 = vmatpush.bf16.msra.mxu0 %v4520
    %5398 = vmatmul.bf16.gmra.mxu0 %v5245
    %v5399 = vpop.f32.mrf.mxu0
    %v5400 = vadd.f32 0.0, %v5399
    %v5401 = vpop.f32.mrf.mxu0
    %5402 = vdwg.mxu0
    %5403 = vmatpush.bf16.msra.mxu0 0
    %5404 = vmatpush.bf16.msra.mxu0 0
    %5405 = vmatpush.bf16.msra.mxu0 0
    %5406 = vmatpush.bf16.msra.mxu0 0
    %5407 = vmatpush.bf16.msra.mxu0 0
    %5408 = vmatpush.bf16.msra.mxu0 0
    %5409 = vmatpush.bf16.msra.mxu0 0
    %5410 = vmatpush.bf16.msra.mxu0 %v4521
    %5411 = vmatmul.bf16.gmra.mxu0 %v5245
    %v5412 = vpop.f32.mrf.mxu0
    %v5413 = vadd.f32 0.0, %v5412
    %v5414 = vpop.f32.mrf.mxu0
    %5415 = vdwg.mxu0
    %5416 = vmatpush.bf16.msra.mxu0 0
    %5417 = vmatpush.bf16.msra.mxu0 0
    %5418 = vmatpush.bf16.msra.mxu0 0
    %5419 = vmatpush.bf16.msra.mxu0 0
    %5420 = vmatpush.bf16.msra.mxu0 0
    %5421 = vmatpush.bf16.msra.mxu0 0
    %5422 = vmatpush.bf16.msra.mxu0 0
    %5423 = vmatpush.bf16.msra.mxu0 %v4522
    %5424 = vmatmul.bf16.gmra.mxu0 %v5245
    %v5425 = vpop.f32.mrf.mxu0
    %v5426 = vadd.f32 0.0, %v5425
    %v5427 = vpop.f32.mrf.mxu0
    %5428 = vdwg.mxu0
    %5429 = vmatpush.bf16.msra.mxu0 0
    %5430 = vmatpush.bf16.msra.mxu0 0
    %5431 = vmatpush.bf16.msra.mxu0 0
    %5432 = vmatpush.bf16.msra.mxu0 0
    %5433 = vmatpush.bf16.msra.mxu0 0
    %5434 = vmatpush.bf16.msra.mxu0 0
    %5435 = vmatpush.bf16.msra.mxu0 0
    %5436 = vmatpush.bf16.msra.mxu0 %v4523
    %5437 = vmatmul.bf16.gmra.mxu0 %v5245
    %v5438 = vpop.f32.mrf.mxu0
    %v5439 = vadd.f32 0.0, %v5438
    %v5440 = vpop.f32.mrf.mxu0
    %5441 = vdwg.mxu0
    %5442 = vmatpush.bf16.msra.mxu0 0
    %5443 = vmatpush.bf16.msra.mxu0 0
    %5444 = vmatpush.bf16.msra.mxu0 0
    %5445 = vmatpush.bf16.msra.mxu0 0
    %5446 = vmatpush.bf16.msra.mxu0 0
    %5447 = vmatpush.bf16.msra.mxu0 0
    %5448 = vmatpush.bf16.msra.mxu0 0
    %5449 = vmatpush.bf16.msra.mxu0 %v4524
    %5450 = vmatmul.bf16.gmra.mxu0 %v5245
    %v5451 = vpop.f32.mrf.mxu0
    %v5452 = vadd.f32 0.0, %v5451
    %v5453 = vpop.f32.mrf.mxu0
    %5454 = vdwg.mxu0
    %v5456 = vsel %vm148, %v5243, 0
    %5458 = vmatpush.bf16.msra.mxu0 0
    %5459 = vmatpush.bf16.msra.mxu0 0
    %5460 = vmatpush.bf16.msra.mxu0 0
    %5461 = vmatpush.bf16.msra.mxu0 0
    %5462 = vmatpush.bf16.msra.mxu0 0
    %5463 = vmatpush.bf16.msra.mxu0 0
    %5464 = vmatpush.bf16.msra.mxu0 0
    %5465 = vmatpush.bf16.msra.mxu0 %v4797
    %5466 = vmatmul.bf16.gmra.mxu0 %v5456
    %v5467 = vpop.f32.mrf.mxu0
    %v5468 = vadd.f32 0.0, %v5467
    %v5469 = vpop.f32.mrf.mxu0
    %5470 = vdwg.mxu0
    %5471 = vmatpush.bf16.msra.mxu0 0
    %5472 = vmatpush.bf16.msra.mxu0 0
    %5473 = vmatpush.bf16.msra.mxu0 0
    %5474 = vmatpush.bf16.msra.mxu0 0
    %5475 = vmatpush.bf16.msra.mxu0 0
    %5476 = vmatpush.bf16.msra.mxu0 0
    %5477 = vmatpush.bf16.msra.mxu0 0
    %5478 = vmatpush.bf16.msra.mxu0 %v4798
    %5479 = vmatmul.bf16.gmra.mxu0 %v5456
    %v5480 = vpop.f32.mrf.mxu0
    %v5481 = vadd.f32 0.0, %v5480
    %v5482 = vpop.f32.mrf.mxu0
    %5483 = vdwg.mxu0
    %5484 = vmatpush.bf16.msra.mxu0 0
    %5485 = vmatpush.bf16.msra.mxu0 0
    %5486 = vmatpush.bf16.msra.mxu0 0
    %5487 = vmatpush.bf16.msra.mxu0 0
    %5488 = vmatpush.bf16.msra.mxu0 0
    %5489 = vmatpush.bf16.msra.mxu0 0
    %5490 = vmatpush.bf16.msra.mxu0 0
    %5491 = vmatpush.bf16.msra.mxu0 %v4799
    %5492 = vmatmul.bf16.gmra.mxu0 %v5456
    %v5493 = vpop.f32.mrf.mxu0
    %v5494 = vadd.f32 0.0, %v5493
    %v5495 = vpop.f32.mrf.mxu0
    %5496 = vdwg.mxu0
    %5497 = vmatpush.bf16.msra.mxu0 0
    %5498 = vmatpush.bf16.msra.mxu0 0
    %5499 = vmatpush.bf16.msra.mxu0 0
    %5500 = vmatpush.bf16.msra.mxu0 0
    %5501 = vmatpush.bf16.msra.mxu0 0
    %5502 = vmatpush.bf16.msra.mxu0 0
    %5503 = vmatpush.bf16.msra.mxu0 0
    %5504 = vmatpush.bf16.msra.mxu0 %v4800
    %5505 = vmatmul.bf16.gmra.mxu0 %v5456
    %v5506 = vpop.f32.mrf.mxu0
    %v5507 = vadd.f32 0.0, %v5506
    %v5508 = vpop.f32.mrf.mxu0
    %5509 = vdwg.mxu0
    %5510 = vmatpush.bf16.msra.mxu0 0
    %5511 = vmatpush.bf16.msra.mxu0 0
    %5512 = vmatpush.bf16.msra.mxu0 0
    %5513 = vmatpush.bf16.msra.mxu0 0
    %5514 = vmatpush.bf16.msra.mxu0 0
    %5515 = vmatpush.bf16.msra.mxu0 0
    %5516 = vmatpush.bf16.msra.mxu0 0
    %5517 = vmatpush.bf16.msra.mxu0 %v4801
    %5518 = vmatmul.bf16.gmra.mxu0 %v5456
    %v5519 = vpop.f32.mrf.mxu0
    %v5520 = vadd.f32 0.0, %v5519
    %v5521 = vpop.f32.mrf.mxu0
    %5522 = vdwg.mxu0
    %5523 = vmatpush.bf16.msra.mxu0 0
    %5524 = vmatpush.bf16.msra.mxu0 0
    %5525 = vmatpush.bf16.msra.mxu0 0
    %5526 = vmatpush.bf16.msra.mxu0 0
    %5527 = vmatpush.bf16.msra.mxu0 0
    %5528 = vmatpush.bf16.msra.mxu0 0
    %5529 = vmatpush.bf16.msra.mxu0 0
    %5530 = vmatpush.bf16.msra.mxu0 %v4802
    %5531 = vmatmul.bf16.gmra.mxu0 %v5456
    %v5532 = vpop.f32.mrf.mxu0
    %v5533 = vadd.f32 0.0, %v5532
    %v5534 = vpop.f32.mrf.mxu0
    %5535 = vdwg.mxu0
    %5536 = vmatpush.bf16.msra.mxu0 0
    %5537 = vmatpush.bf16.msra.mxu0 0
    %5538 = vmatpush.bf16.msra.mxu0 0
    %5539 = vmatpush.bf16.msra.mxu0 0
    %5540 = vmatpush.bf16.msra.mxu0 0
    %5541 = vmatpush.bf16.msra.mxu0 0
    %5542 = vmatpush.bf16.msra.mxu0 0
    %5543 = vmatpush.bf16.msra.mxu0 %v4803
    %5544 = vmatmul.bf16.gmra.mxu0 %v5456
    %v5545 = vpop.f32.mrf.mxu0
    %v5546 = vadd.f32 0.0, %v5545
    %v5547 = vpop.f32.mrf.mxu0
    %5548 = vdwg.mxu0
    %5549 = vmatpush.bf16.msra.mxu0 0
    %5550 = vmatpush.bf16.msra.mxu0 0
    %5551 = vmatpush.bf16.msra.mxu0 0
    %5552 = vmatpush.bf16.msra.mxu0 0
    %5553 = vmatpush.bf16.msra.mxu0 0
    %5554 = vmatpush.bf16.msra.mxu0 0
    %5555 = vmatpush.bf16.msra.mxu0 0
    %5556 = vmatpush.bf16.msra.mxu0 %v4804
    %5557 = vmatmul.bf16.gmra.mxu0 %v5456
    %v5558 = vpop.f32.mrf.mxu0
    %v5559 = vadd.f32 0.0, %v5558
    %v5560 = vpop.f32.mrf.mxu0
    %5561 = vdwg.mxu0
    %5562 = vmatpush.bf16.msra.mxu0 0
    %5563 = vmatpush.bf16.msra.mxu0 0
    %5564 = vmatpush.bf16.msra.mxu0 0
    %5565 = vmatpush.bf16.msra.mxu0 0
    %5566 = vmatpush.bf16.msra.mxu0 0
    %5567 = vmatpush.bf16.msra.mxu0 0
    %5568 = vmatpush.bf16.msra.mxu0 0
    %5569 = vmatpush.bf16.msra.mxu0 %v4805
    %5570 = vmatmul.bf16.gmra.mxu0 %v5456
    %v5571 = vpop.f32.mrf.mxu0
    %v5572 = vadd.f32 0.0, %v5571
    %v5573 = vpop.f32.mrf.mxu0
    %5574 = vdwg.mxu0
    %5575 = vmatpush.bf16.msra.mxu0 0
    %5576 = vmatpush.bf16.msra.mxu0 0
    %5577 = vmatpush.bf16.msra.mxu0 0
    %5578 = vmatpush.bf16.msra.mxu0 0
    %5579 = vmatpush.bf16.msra.mxu0 0
    %5580 = vmatpush.bf16.msra.mxu0 0
    %5581 = vmatpush.bf16.msra.mxu0 0
    %5582 = vmatpush.bf16.msra.mxu0 %v4806
    %5583 = vmatmul.bf16.gmra.mxu0 %v5456
    %v5584 = vpop.f32.mrf.mxu0
    %v5585 = vadd.f32 0.0, %v5584
    %v5586 = vpop.f32.mrf.mxu0
    %5587 = vdwg.mxu0
    %5588 = vmatpush.bf16.msra.mxu0 0
    %5589 = vmatpush.bf16.msra.mxu0 0
    %5590 = vmatpush.bf16.msra.mxu0 0
    %5591 = vmatpush.bf16.msra.mxu0 0
    %5592 = vmatpush.bf16.msra.mxu0 0
    %5593 = vmatpush.bf16.msra.mxu0 0
    %5594 = vmatpush.bf16.msra.mxu0 0
    %5595 = vmatpush.bf16.msra.mxu0 %v4807
    %5596 = vmatmul.bf16.gmra.mxu0 %v5456
    %v5597 = vpop.f32.mrf.mxu0
    %v5598 = vadd.f32 0.0, %v5597
    %v5599 = vpop.f32.mrf.mxu0
    %5600 = vdwg.mxu0
    %5601 = vmatpush.bf16.msra.mxu0 0
    %5602 = vmatpush.bf16.msra.mxu0 0
    %5603 = vmatpush.bf16.msra.mxu0 0
    %5604 = vmatpush.bf16.msra.mxu0 0
    %5605 = vmatpush.bf16.msra.mxu0 0
    %5606 = vmatpush.bf16.msra.mxu0 0
    %5607 = vmatpush.bf16.msra.mxu0 0
    %5608 = vmatpush.bf16.msra.mxu0 %v4808
    %5609 = vmatmul.bf16.gmra.mxu0 %v5456
    %v5610 = vpop.f32.mrf.mxu0
    %v5611 = vadd.f32 0.0, %v5610
    %v5612 = vpop.f32.mrf.mxu0
    %5613 = vdwg.mxu0
    %5614 = vmatpush.bf16.msra.mxu0 0
    %5615 = vmatpush.bf16.msra.mxu0 0
    %5616 = vmatpush.bf16.msra.mxu0 0
    %5617 = vmatpush.bf16.msra.mxu0 0
    %5618 = vmatpush.bf16.msra.mxu0 0
    %5619 = vmatpush.bf16.msra.mxu0 0
    %5620 = vmatpush.bf16.msra.mxu0 0
    %5621 = vmatpush.bf16.msra.mxu0 %v4809
    %5622 = vmatmul.bf16.gmra.mxu0 %v5456
    %v5623 = vpop.f32.mrf.mxu0
    %v5624 = vadd.f32 0.0, %v5623
    %v5625 = vpop.f32.mrf.mxu0
    %5626 = vdwg.mxu0
    %5627 = vmatpush.bf16.msra.mxu0 0
    %5628 = vmatpush.bf16.msra.mxu0 0
    %5629 = vmatpush.bf16.msra.mxu0 0
    %5630 = vmatpush.bf16.msra.mxu0 0
    %5631 = vmatpush.bf16.msra.mxu0 0
    %5632 = vmatpush.bf16.msra.mxu0 0
    %5633 = vmatpush.bf16.msra.mxu0 0
    %5634 = vmatpush.bf16.msra.mxu0 %v4810
    %5635 = vmatmul.bf16.gmra.mxu0 %v5456
    %v5636 = vpop.f32.mrf.mxu0
    %v5637 = vadd.f32 0.0, %v5636
    %v5638 = vpop.f32.mrf.mxu0
    %5639 = vdwg.mxu0
    %5640 = vmatpush.bf16.msra.mxu0 0
    %5641 = vmatpush.bf16.msra.mxu0 0
    %5642 = vmatpush.bf16.msra.mxu0 0
    %5643 = vmatpush.bf16.msra.mxu0 0
    %5644 = vmatpush.bf16.msra.mxu0 0
    %5645 = vmatpush.bf16.msra.mxu0 0
    %5646 = vmatpush.bf16.msra.mxu0 0
    %5647 = vmatpush.bf16.msra.mxu0 %v4811
    %5648 = vmatmul.bf16.gmra.mxu0 %v5456
    %v5649 = vpop.f32.mrf.mxu0
    %v5650 = vadd.f32 0.0, %v5649
    %v5651 = vpop.f32.mrf.mxu0
    %5652 = vdwg.mxu0
    %5653 = vmatpush.bf16.msra.mxu0 0
    %5654 = vmatpush.bf16.msra.mxu0 0
    %5655 = vmatpush.bf16.msra.mxu0 0
    %5656 = vmatpush.bf16.msra.mxu0 0
    %5657 = vmatpush.bf16.msra.mxu0 0
    %5658 = vmatpush.bf16.msra.mxu0 0
    %5659 = vmatpush.bf16.msra.mxu0 0
    %5660 = vmatpush.bf16.msra.mxu0 %v4812
    %5661 = vmatmul.bf16.gmra.mxu0 %v5456
    %v5662 = vpop.f32.mrf.mxu0
    %v5663 = vadd.f32 0.0, %v5662
    %v5664 = vpop.f32.mrf.mxu0
    %5665 = vdwg.mxu0
    %v5666 = vmul.f32 %v5257, 0.0625
    %v5667 = vmul.f32 %v5270, 0.0625
    %v5668 = vmul.f32 %v5283, 0.0625
    %v5669 = vmul.f32 %v5296, 0.0625
    %v5670 = vmul.f32 %v5309, 0.0625
    %v5671 = vmul.f32 %v5322, 0.0625
    %v5672 = vmul.f32 %v5335, 0.0625
    %v5673 = vmul.f32 %v5348, 0.0625
    %v5674 = vmul.f32 %v5361, 0.0625
    %v5675 = vmul.f32 %v5374, 0.0625
    %v5676 = vmul.f32 %v5387, 0.0625
    %v5677 = vmul.f32 %v5400, 0.0625
    %v5678 = vmul.f32 %v5413, 0.0625
    %v5679 = vmul.f32 %v5426, 0.0625
    %v5680 = vmul.f32 %v5439, 0.0625
    %v5681 = vmul.f32 %v5452, 0.0625
    %v5682 = vmul.f32 %v5468, 0.0625
    %v5683 = vmul.f32 %v5481, 0.0625
    %v5684 = vmul.f32 %v5494, 0.0625
    %v5685 = vmul.f32 %v5507, 0.0625
    %v5686 = vmul.f32 %v5520, 0.0625
    %v5687 = vmul.f32 %v5533, 0.0625
    %v5688 = vmul.f32 %v5546, 0.0625
    %v5689 = vmul.f32 %v5559, 0.0625
    %v5690 = vmul.f32 %v5572, 0.0625
    %v5691 = vmul.f32 %v5585, 0.0625
    %v5692 = vmul.f32 %v5598, 0.0625
    %v5693 = vmul.f32 %v5611, 0.0625
    %v5694 = vmul.f32 %v5624, 0.0625
    %v5695 = vmul.f32 %v5637, 0.0625
    %v5696 = vmul.f32 %v5650, 0.0625
    %v5697 = vmul.f32 %v5663, 0.0625
    %v5698 = vpack.c.bf16 %v5666, %v5666
    %v5699 = vpack.c.bf16 %v5667, %v5667
    %v5700 = vpack.c.bf16 %v5668, %v5668
    %v5701 = vpack.c.bf16 %v5669, %v5669
    %v5702 = vpack.c.bf16 %v5670, %v5670
    %v5703 = vpack.c.bf16 %v5671, %v5671
    %v5704 = vpack.c.bf16 %v5672, %v5672
    %v5705 = vpack.c.bf16 %v5673, %v5673
    %v5706 = vpack.c.bf16 %v5674, %v5674
    %v5707 = vpack.c.bf16 %v5675, %v5675
    %v5708 = vpack.c.bf16 %v5676, %v5676
    %v5709 = vpack.c.bf16 %v5677, %v5677
    %v5710 = vpack.c.bf16 %v5678, %v5678
    %v5711 = vpack.c.bf16 %v5679, %v5679
    %v5712 = vpack.c.bf16 %v5680, %v5680
    %v5713 = vpack.c.bf16 %v5681, %v5681
    %v5714 = vpack.c.bf16 %v5682, %v5682
    %v5715 = vpack.c.bf16 %v5683, %v5683
    %v5716 = vpack.c.bf16 %v5684, %v5684
    %v5717 = vpack.c.bf16 %v5685, %v5685
    %v5718 = vpack.c.bf16 %v5686, %v5686
    %v5719 = vpack.c.bf16 %v5687, %v5687
    %v5720 = vpack.c.bf16 %v5688, %v5688
    %v5721 = vpack.c.bf16 %v5689, %v5689
    %v5722 = vpack.c.bf16 %v5690, %v5690
    %v5723 = vpack.c.bf16 %v5691, %v5691
    %v5724 = vpack.c.bf16 %v5692, %v5692
    %v5725 = vpack.c.bf16 %v5693, %v5693
    %v5726 = vpack.c.bf16 %v5694, %v5694
    %v5727 = vpack.c.bf16 %v5695, %v5695
    %v5728 = vpack.c.bf16 %v5696, %v5696
    %v5729 = vpack.c.bf16 %v5697, %v5697
    %v5730 = vld [vmem:[%s7] sm:$0xf]
    %v5731 = vld [vmem:[%s7 + $0x4] sm:$0xf]
    %v5732 = vld [vmem:[%s7 + $0x8] sm:$0xf]
    %v5733 = vld [vmem:[%s7 + $0xc] sm:$0xf]
    %v5734 = vld [vmem:[%s7 + $0x10] sm:$0xf]
    %v5735 = vld [vmem:[%s7 + $0x14] sm:$0xf]
    %v5736 = vld [vmem:[%s7 + $0x18] sm:$0xf]
    %v5737 = vld [vmem:[%s7 + $0x1c] sm:$0xf]
    %v5738 = vld [vmem:[%s7 + $0x20] sm:$0xf]
    %v5739 = vld [vmem:[%s7 + $0x24] sm:$0xf]
    %v5740 = vld [vmem:[%s7 + $0x28] sm:$0xf]
    %v5741 = vld [vmem:[%s7 + $0x2c] sm:$0xf]
    %v5742 = vld [vmem:[%s7 + $0x30] sm:$0xf]
    %v5743 = vld [vmem:[%s7 + $0x34] sm:$0xf]
    %v5744 = vld [vmem:[%s7 + $0x38] sm:$0xf]
    %v5745 = vld [vmem:[%s7 + $0x3c] sm:$0xf]
    %v5746 = vld [vmem:[%s7 + $0x40] sm:$0xf]
    %v5747 = vld [vmem:[%s7 + $0x44] sm:$0xf]
    %v5748 = vld [vmem:[%s7 + $0x48] sm:$0xf]
    %v5749 = vld [vmem:[%s7 + $0x4c] sm:$0xf]
    %v5750 = vld [vmem:[%s7 + $0x50] sm:$0xf]
    %v5751 = vld [vmem:[%s7 + $0x54] sm:$0xf]
    %v5752 = vld [vmem:[%s7 + $0x58] sm:$0xf]
    %v5753 = vld [vmem:[%s7 + $0x5c] sm:$0xf]
    %v5754 = vld [vmem:[%s7 + $0x60] sm:$0xf]
    %v5755 = vld [vmem:[%s7 + $0x64] sm:$0xf]
    %v5756 = vld [vmem:[%s7 + $0x68] sm:$0xf]
    %v5757 = vld [vmem:[%s7 + $0x6c] sm:$0xf]
    %v5758 = vld [vmem:[%s7 + $0x70] sm:$0xf]
    %v5759 = vld [vmem:[%s7 + $0x74] sm:$0xf]
    %v5760 = vld [vmem:[%s7 + $0x78] sm:$0xf]
    %v5761 = vld [vmem:[%s7 + $0x7c] sm:$0xf]
    %v5762 = vld [vmem:[%s7 + $0x80] sm:$0xf]
    %v5763 = vld [vmem:[%s7 + $0x84] sm:$0xf]
    %v5764 = vld [vmem:[%s7 + $0x88] sm:$0xf]
    %v5765 = vld [vmem:[%s7 + $0x8c] sm:$0xf]
    %v5766 = vld [vmem:[%s7 + $0x90] sm:$0xf]
    %v5767 = vld [vmem:[%s7 + $0x94] sm:$0xf]
    %v5768 = vld [vmem:[%s7 + $0x98] sm:$0xf]
    %v5769 = vld [vmem:[%s7 + $0x9c] sm:$0xf]
    %v5770 = vld [vmem:[%s7 + $0xa0] sm:$0xf]
    %v5771 = vld [vmem:[%s7 + $0xa4] sm:$0xf]
    %v5772 = vld [vmem:[%s7 + $0xa8] sm:$0xf]
    %v5773 = vld [vmem:[%s7 + $0xac] sm:$0xf]
    %v5774 = vld [vmem:[%s7 + $0xb0] sm:$0xf]
    %v5775 = vld [vmem:[%s7 + $0xb4] sm:$0xf]
    %v5776 = vld [vmem:[%s7 + $0xb8] sm:$0xf]
    %v5777 = vld [vmem:[%s7 + $0xbc] sm:$0xf]
    %v5778 = vld [vmem:[%s7 + $0xc0] sm:$0xf]
    %v5779 = vld [vmem:[%s7 + $0xc4] sm:$0xf]
    %v5780 = vld [vmem:[%s7 + $0xc8] sm:$0xf]
    %v5781 = vld [vmem:[%s7 + $0xcc] sm:$0xf]
    %v5782 = vld [vmem:[%s7 + $0xd0] sm:$0xf]
    %v5783 = vld [vmem:[%s7 + $0xd4] sm:$0xf]
    %v5784 = vld [vmem:[%s7 + $0xd8] sm:$0xf]
    %v5785 = vld [vmem:[%s7 + $0xdc] sm:$0xf]
    %v5786 = vld [vmem:[%s7 + $0xe0] sm:$0xf]
    %v5787 = vld [vmem:[%s7 + $0xe4] sm:$0xf]
    %v5788 = vld [vmem:[%s7 + $0xe8] sm:$0xf]
    %v5789 = vld [vmem:[%s7 + $0xec] sm:$0xf]
    %v5790 = vld [vmem:[%s7 + $0xf0] sm:$0xf]
    %v5791 = vld [vmem:[%s7 + $0xf4] sm:$0xf]
    %v5792 = vld [vmem:[%s7 + $0xf8] sm:$0xf]
    %v5793 = vld [vmem:[%s7 + $0xfc] sm:$0xf]
    %v5794 = vld [vmem:[%s7 + $0x100] sm:$0xf]
    %v5795 = vld [vmem:[%s7 + $0x104] sm:$0xf]
    %v5796 = vld [vmem:[%s7 + $0x108] sm:$0xf]
    %v5797 = vld [vmem:[%s7 + $0x10c] sm:$0xf]
    %v5798 = vld [vmem:[%s7 + $0x110] sm:$0xf]
    %v5799 = vld [vmem:[%s7 + $0x114] sm:$0xf]
    %v5800 = vld [vmem:[%s7 + $0x118] sm:$0xf]
    %v5801 = vld [vmem:[%s7 + $0x11c] sm:$0xf]
    %v5802 = vld [vmem:[%s7 + $0x120] sm:$0xf]
    %v5803 = vld [vmem:[%s7 + $0x124] sm:$0xf]
    %v5804 = vld [vmem:[%s7 + $0x128] sm:$0xf]
    %v5805 = vld [vmem:[%s7 + $0x12c] sm:$0xf]
    %v5806 = vld [vmem:[%s7 + $0x130] sm:$0xf]
    %v5807 = vld [vmem:[%s7 + $0x134] sm:$0xf]
    %v5808 = vld [vmem:[%s7 + $0x138] sm:$0xf]
    %v5809 = vld [vmem:[%s7 + $0x13c] sm:$0xf]
    %v5810 = vld [vmem:[%s7 + $0x140] sm:$0xf]
    %v5811 = vld [vmem:[%s7 + $0x144] sm:$0xf]
    %v5812 = vld [vmem:[%s7 + $0x148] sm:$0xf]
    %v5813 = vld [vmem:[%s7 + $0x14c] sm:$0xf]
    %v5814 = vld [vmem:[%s7 + $0x150] sm:$0xf]
    %v5815 = vld [vmem:[%s7 + $0x154] sm:$0xf]
    %v5816 = vld [vmem:[%s7 + $0x158] sm:$0xf]
    %v5817 = vld [vmem:[%s7 + $0x15c] sm:$0xf]
    %v5818 = vld [vmem:[%s7 + $0x160] sm:$0xf]
    %v5819 = vld [vmem:[%s7 + $0x164] sm:$0xf]
    %v5820 = vld [vmem:[%s7 + $0x168] sm:$0xf]
    %v5821 = vld [vmem:[%s7 + $0x16c] sm:$0xf]
    %v5822 = vld [vmem:[%s7 + $0x170] sm:$0xf]
    %v5823 = vld [vmem:[%s7 + $0x174] sm:$0xf]
    %v5824 = vld [vmem:[%s7 + $0x178] sm:$0xf]
    %v5825 = vld [vmem:[%s7 + $0x17c] sm:$0xf]
    %v5826 = vld [vmem:[%s7 + $0x180] sm:$0xf]
    %v5827 = vld [vmem:[%s7 + $0x184] sm:$0xf]
    %v5828 = vld [vmem:[%s7 + $0x188] sm:$0xf]
    %v5829 = vld [vmem:[%s7 + $0x18c] sm:$0xf]
    %v5830 = vld [vmem:[%s7 + $0x190] sm:$0xf]
    %v5831 = vld [vmem:[%s7 + $0x194] sm:$0xf]
    %v5832 = vld [vmem:[%s7 + $0x198] sm:$0xf]
    %v5833 = vld [vmem:[%s7 + $0x19c] sm:$0xf]
    %v5834 = vld [vmem:[%s7 + $0x1a0] sm:$0xf]
    %v5835 = vld [vmem:[%s7 + $0x1a4] sm:$0xf]
    %v5836 = vld [vmem:[%s7 + $0x1a8] sm:$0xf]
    %v5837 = vld [vmem:[%s7 + $0x1ac] sm:$0xf]
    %v5838 = vld [vmem:[%s7 + $0x1b0] sm:$0xf]
    %v5839 = vld [vmem:[%s7 + $0x1b4] sm:$0xf]
    %v5840 = vld [vmem:[%s7 + $0x1b8] sm:$0xf]
    %v5841 = vld [vmem:[%s7 + $0x1bc] sm:$0xf]
    %v5842 = vld [vmem:[%s7 + $0x1c0] sm:$0xf]
    %v5843 = vld [vmem:[%s7 + $0x1c4] sm:$0xf]
    %v5844 = vld [vmem:[%s7 + $0x1c8] sm:$0xf]
    %v5845 = vld [vmem:[%s7 + $0x1cc] sm:$0xf]
    %v5846 = vld [vmem:[%s7 + $0x1d0] sm:$0xf]
    %v5847 = vld [vmem:[%s7 + $0x1d4] sm:$0xf]
    %v5848 = vld [vmem:[%s7 + $0x1d8] sm:$0xf]
    %v5849 = vld [vmem:[%s7 + $0x1dc] sm:$0xf]
    %v5850 = vld [vmem:[%s7 + $0x1e0] sm:$0xf]
    %v5851 = vld [vmem:[%s7 + $0x1e4] sm:$0xf]
    %v5852 = vld [vmem:[%s7 + $0x1e8] sm:$0xf]
    %v5853 = vld [vmem:[%s7 + $0x1ec] sm:$0xf]
    %v5854 = vld [vmem:[%s7 + $0x1f0] sm:$0xf]
    %v5855 = vld [vmem:[%s7 + $0x1f4] sm:$0xf]
    %v5856 = vld [vmem:[%s7 + $0x1f8] sm:$0xf]
    %v5857 = vld [vmem:[%s7 + $0x1fc] sm:$0xf]
    %v5858 = vld [vmem:[%s7 + $0x200] sm:$0xf]
    %v5859 = vld [vmem:[%s7 + $0x204] sm:$0xf]
    %v5860 = vld [vmem:[%s7 + $0x208] sm:$0xf]
    %v5861 = vld [vmem:[%s7 + $0x20c] sm:$0xf]
    %v5862 = vld [vmem:[%s7 + $0x210] sm:$0xf]
    %v5863 = vld [vmem:[%s7 + $0x214] sm:$0xf]
    %v5864 = vld [vmem:[%s7 + $0x218] sm:$0xf]
    %v5865 = vld [vmem:[%s7 + $0x21c] sm:$0xf]
    %v5866 = vld [vmem:[%s7 + $0x220] sm:$0xf]
    %v5867 = vld [vmem:[%s7 + $0x224] sm:$0xf]
    %v5868 = vld [vmem:[%s7 + $0x228] sm:$0xf]
    %v5869 = vld [vmem:[%s7 + $0x22c] sm:$0xf]
    %v5870 = vld [vmem:[%s7 + $0x230] sm:$0xf]
    %v5871 = vld [vmem:[%s7 + $0x234] sm:$0xf]
    %v5872 = vld [vmem:[%s7 + $0x238] sm:$0xf]
    %v5873 = vld [vmem:[%s7 + $0x23c] sm:$0xf]
    %v5874 = vld [vmem:[%s7 + $0x240] sm:$0xf]
    %v5875 = vld [vmem:[%s7 + $0x244] sm:$0xf]
    %v5876 = vld [vmem:[%s7 + $0x248] sm:$0xf]
    %v5877 = vld [vmem:[%s7 + $0x24c] sm:$0xf]
    %v5878 = vld [vmem:[%s7 + $0x250] sm:$0xf]
    %v5879 = vld [vmem:[%s7 + $0x254] sm:$0xf]
    %v5880 = vld [vmem:[%s7 + $0x258] sm:$0xf]
    %v5881 = vld [vmem:[%s7 + $0x25c] sm:$0xf]
    %v5882 = vld [vmem:[%s7 + $0x260] sm:$0xf]
    %v5883 = vld [vmem:[%s7 + $0x264] sm:$0xf]
    %v5884 = vld [vmem:[%s7 + $0x268] sm:$0xf]
    %v5885 = vld [vmem:[%s7 + $0x26c] sm:$0xf]
    %v5886 = vld [vmem:[%s7 + $0x270] sm:$0xf]
    %v5887 = vld [vmem:[%s7 + $0x274] sm:$0xf]
    %v5888 = vld [vmem:[%s7 + $0x278] sm:$0xf]
    %v5889 = vld [vmem:[%s7 + $0x27c] sm:$0xf]
    %v5890 = vld [vmem:[%s7 + $0x280] sm:$0xf]
    %v5891 = vld [vmem:[%s7 + $0x284] sm:$0xf]
    %v5892 = vld [vmem:[%s7 + $0x288] sm:$0xf]
    %v5893 = vld [vmem:[%s7 + $0x28c] sm:$0xf]
    %v5894 = vld [vmem:[%s7 + $0x290] sm:$0xf]
    %v5895 = vld [vmem:[%s7 + $0x294] sm:$0xf]
    %v5896 = vld [vmem:[%s7 + $0x298] sm:$0xf]
    %v5897 = vld [vmem:[%s7 + $0x29c] sm:$0xf]
    %v5898 = vld [vmem:[%s7 + $0x2a0] sm:$0xf]
    %v5899 = vld [vmem:[%s7 + $0x2a4] sm:$0xf]
    %v5900 = vld [vmem:[%s7 + $0x2a8] sm:$0xf]
    %v5901 = vld [vmem:[%s7 + $0x2ac] sm:$0xf]
    %v5902 = vld [vmem:[%s7 + $0x2b0] sm:$0xf]
    %v5903 = vld [vmem:[%s7 + $0x2b4] sm:$0xf]
    %v5904 = vld [vmem:[%s7 + $0x2b8] sm:$0xf]
    %v5905 = vld [vmem:[%s7 + $0x2bc] sm:$0xf]
    %v5906 = vld [vmem:[%s7 + $0x2c0] sm:$0xf]
    %v5907 = vld [vmem:[%s7 + $0x2c4] sm:$0xf]
    %v5908 = vld [vmem:[%s7 + $0x2c8] sm:$0xf]
    %v5909 = vld [vmem:[%s7 + $0x2cc] sm:$0xf]
    %v5910 = vld [vmem:[%s7 + $0x2d0] sm:$0xf]
    %v5911 = vld [vmem:[%s7 + $0x2d4] sm:$0xf]
    %v5912 = vld [vmem:[%s7 + $0x2d8] sm:$0xf]
    %v5913 = vld [vmem:[%s7 + $0x2dc] sm:$0xf]
    %v5914 = vld [vmem:[%s7 + $0x2e0] sm:$0xf]
    %v5915 = vld [vmem:[%s7 + $0x2e4] sm:$0xf]
    %v5916 = vld [vmem:[%s7 + $0x2e8] sm:$0xf]
    %v5917 = vld [vmem:[%s7 + $0x2ec] sm:$0xf]
    %v5918 = vld [vmem:[%s7 + $0x2f0] sm:$0xf]
    %v5919 = vld [vmem:[%s7 + $0x2f4] sm:$0xf]
    %v5920 = vld [vmem:[%s7 + $0x2f8] sm:$0xf]
    %v5921 = vld [vmem:[%s7 + $0x2fc] sm:$0xf]
    %v5922 = vld [vmem:[%s7 + $0x300] sm:$0xf]
    %v5923 = vld [vmem:[%s7 + $0x304] sm:$0xf]
    %v5924 = vld [vmem:[%s7 + $0x308] sm:$0xf]
    %v5925 = vld [vmem:[%s7 + $0x30c] sm:$0xf]
    %v5926 = vld [vmem:[%s7 + $0x310] sm:$0xf]
    %v5927 = vld [vmem:[%s7 + $0x314] sm:$0xf]
    %v5928 = vld [vmem:[%s7 + $0x318] sm:$0xf]
    %v5929 = vld [vmem:[%s7 + $0x31c] sm:$0xf]
    %v5930 = vld [vmem:[%s7 + $0x320] sm:$0xf]
    %v5931 = vld [vmem:[%s7 + $0x324] sm:$0xf]
    %v5932 = vld [vmem:[%s7 + $0x328] sm:$0xf]
    %v5933 = vld [vmem:[%s7 + $0x32c] sm:$0xf]
    %v5934 = vld [vmem:[%s7 + $0x330] sm:$0xf]
    %v5935 = vld [vmem:[%s7 + $0x334] sm:$0xf]
    %v5936 = vld [vmem:[%s7 + $0x338] sm:$0xf]
    %v5937 = vld [vmem:[%s7 + $0x33c] sm:$0xf]
    %v5938 = vld [vmem:[%s7 + $0x340] sm:$0xf]
    %v5939 = vld [vmem:[%s7 + $0x344] sm:$0xf]
    %v5940 = vld [vmem:[%s7 + $0x348] sm:$0xf]
    %v5941 = vld [vmem:[%s7 + $0x34c] sm:$0xf]
    %v5942 = vld [vmem:[%s7 + $0x350] sm:$0xf]
    %v5943 = vld [vmem:[%s7 + $0x354] sm:$0xf]
    %v5944 = vld [vmem:[%s7 + $0x358] sm:$0xf]
    %v5945 = vld [vmem:[%s7 + $0x35c] sm:$0xf]
    %v5946 = vld [vmem:[%s7 + $0x360] sm:$0xf]
    %v5947 = vld [vmem:[%s7 + $0x364] sm:$0xf]
    %v5948 = vld [vmem:[%s7 + $0x368] sm:$0xf]
    %v5949 = vld [vmem:[%s7 + $0x36c] sm:$0xf]
    %v5950 = vld [vmem:[%s7 + $0x370] sm:$0xf]
    %v5951 = vld [vmem:[%s7 + $0x374] sm:$0xf]
    %v5952 = vld [vmem:[%s7 + $0x378] sm:$0xf]
    %v5953 = vld [vmem:[%s7 + $0x37c] sm:$0xf]
    %v5954 = vld [vmem:[%s7 + $0x380] sm:$0xf]
    %v5955 = vld [vmem:[%s7 + $0x384] sm:$0xf]
    %v5956 = vld [vmem:[%s7 + $0x388] sm:$0xf]
    %v5957 = vld [vmem:[%s7 + $0x38c] sm:$0xf]
    %v5958 = vld [vmem:[%s7 + $0x390] sm:$0xf]
    %v5959 = vld [vmem:[%s7 + $0x394] sm:$0xf]
    %v5960 = vld [vmem:[%s7 + $0x398] sm:$0xf]
    %v5961 = vld [vmem:[%s7 + $0x39c] sm:$0xf]
    %v5962 = vld [vmem:[%s7 + $0x3a0] sm:$0xf]
    %v5963 = vld [vmem:[%s7 + $0x3a4] sm:$0xf]
    %v5964 = vld [vmem:[%s7 + $0x3a8] sm:$0xf]
    %v5965 = vld [vmem:[%s7 + $0x3ac] sm:$0xf]
    %v5966 = vld [vmem:[%s7 + $0x3b0] sm:$0xf]
    %v5967 = vld [vmem:[%s7 + $0x3b4] sm:$0xf]
    %v5968 = vld [vmem:[%s7 + $0x3b8] sm:$0xf]
    %v5969 = vld [vmem:[%s7 + $0x3bc] sm:$0xf]
    %v5970 = vld [vmem:[%s7 + $0x3c0] sm:$0xf]
    %v5971 = vld [vmem:[%s7 + $0x3c4] sm:$0xf]
    %v5972 = vld [vmem:[%s7 + $0x3c8] sm:$0xf]
    %v5973 = vld [vmem:[%s7 + $0x3cc] sm:$0xf]
    %v5974 = vld [vmem:[%s7 + $0x3d0] sm:$0xf]
    %v5975 = vld [vmem:[%s7 + $0x3d4] sm:$0xf]
    %v5976 = vld [vmem:[%s7 + $0x3d8] sm:$0xf]
    %v5977 = vld [vmem:[%s7 + $0x3dc] sm:$0xf]
    %v5978 = vld [vmem:[%s7 + $0x3e0] sm:$0xf]
    %v5979 = vld [vmem:[%s7 + $0x3e4] sm:$0xf]
    %v5980 = vld [vmem:[%s7 + $0x3e8] sm:$0xf]
    %v5981 = vld [vmem:[%s7 + $0x3ec] sm:$0xf]
    %v5982 = vld [vmem:[%s7 + $0x3f0] sm:$0xf]
    %v5983 = vld [vmem:[%s7 + $0x3f4] sm:$0xf]
    %v5984 = vld [vmem:[%s7 + $0x3f8] sm:$0xf]
    %v5985 = vld [vmem:[%s7 + $0x3fc] sm:$0xf]
    %v5986 = vld [vmem:[%s8] sm:$0x1]
    %v5988 = vperm.slane %v5986, 0
    %v6022 = vunpack.c.l.b16 %v5698
    %v6023 = vunpack.c.l.b16 %v5699
    %v6024 = vunpack.c.l.b16 %v5700
    %v6025 = vunpack.c.l.b16 %v5701
    %v6026 = vunpack.c.l.b16 %v5702
    %v6027 = vunpack.c.l.b16 %v5703
    %v6028 = vunpack.c.l.b16 %v5704
    %v6029 = vunpack.c.l.b16 %v5705
    %v6030 = vunpack.c.l.b16 %v5706
    %v6031 = vunpack.c.l.b16 %v5707
    %v6032 = vunpack.c.l.b16 %v5708
    %v6033 = vunpack.c.l.b16 %v5709
    %v6034 = vunpack.c.l.b16 %v5710
    %v6035 = vunpack.c.l.b16 %v5711
    %v6036 = vunpack.c.l.b16 %v5712
    %v6037 = vunpack.c.l.b16 %v5713
    %v6038 = vunpack.c.l.b16 %v5714
    %v6039 = vunpack.c.l.b16 %v5715
    %v6040 = vunpack.c.l.b16 %v5716
    %v6041 = vunpack.c.l.b16 %v5717
    %v6042 = vunpack.c.l.b16 %v5718
    %v6043 = vunpack.c.l.b16 %v5719
    %v6044 = vunpack.c.l.b16 %v5720
    %v6045 = vunpack.c.l.b16 %v5721
    %v6046 = vunpack.c.l.b16 %v5722
    %v6047 = vunpack.c.l.b16 %v5723
    %v6048 = vunpack.c.l.b16 %v5724
    %v6049 = vunpack.c.l.b16 %v5725
    %v6050 = vunpack.c.l.b16 %v5726
    %v6051 = vunpack.c.l.b16 %v5727
    %v6052 = vunpack.c.l.b16 %v5728
    %v6053 = vunpack.c.l.b16 %v5729
    %v6054 = vrot.slane %v6038, 7
    %v6055 = vsel %vm1113, %v6054, %v6022
    %v6056 = vrot.slane %v6039, 7
    %v6057 = vsel %vm1113, %v6056, %v6023
    %v6058 = vrot.slane %v6040, 7
    %v6059 = vsel %vm1113, %v6058, %v6024
    %v6060 = vrot.slane %v6041, 7
    %v6061 = vsel %vm1113, %v6060, %v6025
    %v6062 = vrot.slane %v6042, 7
    %v6063 = vsel %vm1113, %v6062, %v6026
    %v6064 = vrot.slane %v6043, 7
    %v6065 = vsel %vm1113, %v6064, %v6027
    %v6066 = vrot.slane %v6044, 7
    %v6067 = vsel %vm1113, %v6066, %v6028
    %v6068 = vrot.slane %v6045, 7
    %v6069 = vsel %vm1113, %v6068, %v6029
    %v6070 = vrot.slane %v6046, 7
    %v6071 = vsel %vm1113, %v6070, %v6030
    %v6072 = vrot.slane %v6047, 7
    %v6073 = vsel %vm1113, %v6072, %v6031
    %v6074 = vrot.slane %v6048, 7
    %v6075 = vsel %vm1113, %v6074, %v6032
    %v6076 = vrot.slane %v6049, 7
    %v6077 = vsel %vm1113, %v6076, %v6033
    %v6078 = vrot.slane %v6050, 7
    %v6079 = vsel %vm1113, %v6078, %v6034
    %v6080 = vrot.slane %v6051, 7
    %v6081 = vsel %vm1113, %v6080, %v6035
    %v6082 = vrot.slane %v6052, 7
    %v6083 = vsel %vm1113, %v6082, %v6036
    %v6084 = vrot.slane %v6053, 7
    %v6085 = vsel %vm1113, %v6084, %v6037
    %v6086 = vpack.c.b16 %v6055, %v6055
    %v6087 = vpack.c.b16 %v6057, %v6057
    %v6088 = vpack.c.b16 %v6059, %v6059
    %v6089 = vpack.c.b16 %v6061, %v6061
    %v6090 = vpack.c.b16 %v6063, %v6063
    %v6091 = vpack.c.b16 %v6065, %v6065
    %v6092 = vpack.c.b16 %v6067, %v6067
    %v6093 = vpack.c.b16 %v6069, %v6069
    %v6094 = vpack.c.b16 %v6071, %v6071
    %v6095 = vpack.c.b16 %v6073, %v6073
    %v6096 = vpack.c.b16 %v6075, %v6075
    %v6097 = vpack.c.b16 %v6077, %v6077
    %v6098 = vpack.c.b16 %v6079, %v6079
    %v6099 = vpack.c.b16 %v6081, %v6081
    %v6100 = vpack.c.b16 %v6083, %v6083
    %v6101 = vpack.c.b16 %v6085, %v6085
    %v6374 = vunpack.c.l.b16 %v5730
    %v6375 = vunpack.c.l.b16 %v5731
    %v6376 = vunpack.c.l.b16 %v5732
    %v6377 = vunpack.c.l.b16 %v5733
    %v6378 = vunpack.c.l.b16 %v5734
    %v6379 = vunpack.c.l.b16 %v5735
    %v6380 = vunpack.c.l.b16 %v5736
    %v6381 = vunpack.c.l.b16 %v5737
    %v6382 = vunpack.c.l.b16 %v5738
    %v6383 = vunpack.c.l.b16 %v5739
    %v6384 = vunpack.c.l.b16 %v5740
    %v6385 = vunpack.c.l.b16 %v5741
    %v6386 = vunpack.c.l.b16 %v5742
    %v6387 = vunpack.c.l.b16 %v5743
    %v6388 = vunpack.c.l.b16 %v5744
    %v6389 = vunpack.c.l.b16 %v5745
    %v6390 = vunpack.c.l.b16 %v5746
    %v6391 = vunpack.c.l.b16 %v5747
    %v6392 = vunpack.c.l.b16 %v5748
    %v6393 = vunpack.c.l.b16 %v5749
    %v6394 = vunpack.c.l.b16 %v5750
    %v6395 = vunpack.c.l.b16 %v5751
    %v6396 = vunpack.c.l.b16 %v5752
    %v6397 = vunpack.c.l.b16 %v5753
    %v6398 = vunpack.c.l.b16 %v5754
    %v6399 = vunpack.c.l.b16 %v5755
    %v6400 = vunpack.c.l.b16 %v5756
    %v6401 = vunpack.c.l.b16 %v5757
    %v6402 = vunpack.c.l.b16 %v5758
    %v6403 = vunpack.c.l.b16 %v5759
    %v6404 = vunpack.c.l.b16 %v5760
    %v6405 = vunpack.c.l.b16 %v5761
    %v6406 = vunpack.c.l.b16 %v5762
    %v6407 = vunpack.c.l.b16 %v5763
    %v6408 = vunpack.c.l.b16 %v5764
    %v6409 = vunpack.c.l.b16 %v5765
    %v6410 = vunpack.c.l.b16 %v5766
    %v6411 = vunpack.c.l.b16 %v5767
    %v6412 = vunpack.c.l.b16 %v5768
    %v6413 = vunpack.c.l.b16 %v5769
    %v6414 = vunpack.c.l.b16 %v5770
    %v6415 = vunpack.c.l.b16 %v5771
    %v6416 = vunpack.c.l.b16 %v5772
    %v6417 = vunpack.c.l.b16 %v5773
    %v6418 = vunpack.c.l.b16 %v5774
    %v6419 = vunpack.c.l.b16 %v5775
    %v6420 = vunpack.c.l.b16 %v5776
    %v6421 = vunpack.c.l.b16 %v5777
    %v6422 = vunpack.c.l.b16 %v5778
    %v6423 = vunpack.c.l.b16 %v5779
    %v6424 = vunpack.c.l.b16 %v5780
    %v6425 = vunpack.c.l.b16 %v5781
    %v6426 = vunpack.c.l.b16 %v5782
    %v6427 = vunpack.c.l.b16 %v5783
    %v6428 = vunpack.c.l.b16 %v5784
    %v6429 = vunpack.c.l.b16 %v5785
    %v6430 = vunpack.c.l.b16 %v5786
    %v6431 = vunpack.c.l.b16 %v5787
    %v6432 = vunpack.c.l.b16 %v5788
    %v6433 = vunpack.c.l.b16 %v5789
    %v6434 = vunpack.c.l.b16 %v5790
    %v6435 = vunpack.c.l.b16 %v5791
    %v6436 = vunpack.c.l.b16 %v5792
    %v6437 = vunpack.c.l.b16 %v5793
    %v6438 = vunpack.c.l.b16 %v5794
    %v6439 = vunpack.c.l.b16 %v5795
    %v6440 = vunpack.c.l.b16 %v5796
    %v6441 = vunpack.c.l.b16 %v5797
    %v6442 = vunpack.c.l.b16 %v5798
    %v6443 = vunpack.c.l.b16 %v5799
    %v6444 = vunpack.c.l.b16 %v5800
    %v6445 = vunpack.c.l.b16 %v5801
    %v6446 = vunpack.c.l.b16 %v5802
    %v6447 = vunpack.c.l.b16 %v5803
    %v6448 = vunpack.c.l.b16 %v5804
    %v6449 = vunpack.c.l.b16 %v5805
    %v6450 = vunpack.c.l.b16 %v5806
    %v6451 = vunpack.c.l.b16 %v5807
    %v6452 = vunpack.c.l.b16 %v5808
    %v6453 = vunpack.c.l.b16 %v5809
    %v6454 = vunpack.c.l.b16 %v5810
    %v6455 = vunpack.c.l.b16 %v5811
    %v6456 = vunpack.c.l.b16 %v5812
    %v6457 = vunpack.c.l.b16 %v5813
    %v6458 = vunpack.c.l.b16 %v5814
    %v6459 = vunpack.c.l.b16 %v5815
    %v6460 = vunpack.c.l.b16 %v5816
    %v6461 = vunpack.c.l.b16 %v5817
    %v6462 = vunpack.c.l.b16 %v5818
    %v6463 = vunpack.c.l.b16 %v5819
    %v6464 = vunpack.c.l.b16 %v5820
    %v6465 = vunpack.c.l.b16 %v5821
    %v6466 = vunpack.c.l.b16 %v5822
    %v6467 = vunpack.c.l.b16 %v5823
    %v6468 = vunpack.c.l.b16 %v5824
    %v6469 = vunpack.c.l.b16 %v5825
    %v6470 = vunpack.c.l.b16 %v5826
    %v6471 = vunpack.c.l.b16 %v5827
    %v6472 = vunpack.c.l.b16 %v5828
    %v6473 = vunpack.c.l.b16 %v5829
    %v6474 = vunpack.c.l.b16 %v5830
    %v6475 = vunpack.c.l.b16 %v5831
    %v6476 = vunpack.c.l.b16 %v5832
    %v6477 = vunpack.c.l.b16 %v5833
    %v6478 = vunpack.c.l.b16 %v5834
    %v6479 = vunpack.c.l.b16 %v5835
    %v6480 = vunpack.c.l.b16 %v5836
    %v6481 = vunpack.c.l.b16 %v5837
    %v6482 = vunpack.c.l.b16 %v5838
    %v6483 = vunpack.c.l.b16 %v5839
    %v6484 = vunpack.c.l.b16 %v5840
    %v6485 = vunpack.c.l.b16 %v5841
    %v6486 = vunpack.c.l.b16 %v5842
    %v6487 = vunpack.c.l.b16 %v5843
    %v6488 = vunpack.c.l.b16 %v5844
    %v6489 = vunpack.c.l.b16 %v5845
    %v6490 = vunpack.c.l.b16 %v5846
    %v6491 = vunpack.c.l.b16 %v5847
    %v6492 = vunpack.c.l.b16 %v5848
    %v6493 = vunpack.c.l.b16 %v5849
    %v6494 = vunpack.c.l.b16 %v5850
    %v6495 = vunpack.c.l.b16 %v5851
    %v6496 = vunpack.c.l.b16 %v5852
    %v6497 = vunpack.c.l.b16 %v5853
    %v6498 = vunpack.c.l.b16 %v5854
    %v6499 = vunpack.c.l.b16 %v5855
    %v6500 = vunpack.c.l.b16 %v5856
    %v6501 = vunpack.c.l.b16 %v5857
    %v6502 = vunpack.c.l.b16 %v5858
    %v6503 = vunpack.c.l.b16 %v5859
    %v6504 = vunpack.c.l.b16 %v5860
    %v6505 = vunpack.c.l.b16 %v5861
    %v6506 = vunpack.c.l.b16 %v5862
    %v6507 = vunpack.c.l.b16 %v5863
    %v6508 = vunpack.c.l.b16 %v5864
    %v6509 = vunpack.c.l.b16 %v5865
    %v6510 = vunpack.c.l.b16 %v5866
    %v6511 = vunpack.c.l.b16 %v5867
    %v6512 = vunpack.c.l.b16 %v5868
    %v6513 = vunpack.c.l.b16 %v5869
    %v6514 = vunpack.c.l.b16 %v5870
    %v6515 = vunpack.c.l.b16 %v5871
    %v6516 = vunpack.c.l.b16 %v5872
    %v6517 = vunpack.c.l.b16 %v5873
    %v6518 = vunpack.c.l.b16 %v5874
    %v6519 = vunpack.c.l.b16 %v5875
    %v6520 = vunpack.c.l.b16 %v5876
    %v6521 = vunpack.c.l.b16 %v5877
    %v6522 = vunpack.c.l.b16 %v5878
    %v6523 = vunpack.c.l.b16 %v5879
    %v6524 = vunpack.c.l.b16 %v5880
    %v6525 = vunpack.c.l.b16 %v5881
    %v6526 = vunpack.c.l.b16 %v5882
    %v6527 = vunpack.c.l.b16 %v5883
    %v6528 = vunpack.c.l.b16 %v5884
    %v6529 = vunpack.c.l.b16 %v5885
    %v6530 = vunpack.c.l.b16 %v5886
    %v6531 = vunpack.c.l.b16 %v5887
    %v6532 = vunpack.c.l.b16 %v5888
    %v6533 = vunpack.c.l.b16 %v5889
    %v6534 = vunpack.c.l.b16 %v5890
    %v6535 = vunpack.c.l.b16 %v5891
    %v6536 = vunpack.c.l.b16 %v5892
    %v6537 = vunpack.c.l.b16 %v5893
    %v6538 = vunpack.c.l.b16 %v5894
    %v6539 = vunpack.c.l.b16 %v5895
    %v6540 = vunpack.c.l.b16 %v5896
    %v6541 = vunpack.c.l.b16 %v5897
    %v6542 = vunpack.c.l.b16 %v5898
    %v6543 = vunpack.c.l.b16 %v5899
    %v6544 = vunpack.c.l.b16 %v5900
    %v6545 = vunpack.c.l.b16 %v5901
    %v6546 = vunpack.c.l.b16 %v5902
    %v6547 = vunpack.c.l.b16 %v5903
    %v6548 = vunpack.c.l.b16 %v5904
    %v6549 = vunpack.c.l.b16 %v5905
    %v6550 = vunpack.c.l.b16 %v5906
    %v6551 = vunpack.c.l.b16 %v5907
    %v6552 = vunpack.c.l.b16 %v5908
    %v6553 = vunpack.c.l.b16 %v5909
    %v6554 = vunpack.c.l.b16 %v5910
    %v6555 = vunpack.c.l.b16 %v5911
    %v6556 = vunpack.c.l.b16 %v5912
    %v6557 = vunpack.c.l.b16 %v5913
    %v6558 = vunpack.c.l.b16 %v5914
    %v6559 = vunpack.c.l.b16 %v5915
    %v6560 = vunpack.c.l.b16 %v5916
    %v6561 = vunpack.c.l.b16 %v5917
    %v6562 = vunpack.c.l.b16 %v5918
    %v6563 = vunpack.c.l.b16 %v5919
    %v6564 = vunpack.c.l.b16 %v5920
    %v6565 = vunpack.c.l.b16 %v5921
    %v6566 = vunpack.c.l.b16 %v5922
    %v6567 = vunpack.c.l.b16 %v5923
    %v6568 = vunpack.c.l.b16 %v5924
    %v6569 = vunpack.c.l.b16 %v5925
    %v6570 = vunpack.c.l.b16 %v5926
    %v6571 = vunpack.c.l.b16 %v5927
    %v6572 = vunpack.c.l.b16 %v5928
    %v6573 = vunpack.c.l.b16 %v5929
    %v6574 = vunpack.c.l.b16 %v5930
    %v6575 = vunpack.c.l.b16 %v5931
    %v6576 = vunpack.c.l.b16 %v5932
    %v6577 = vunpack.c.l.b16 %v5933
    %v6578 = vunpack.c.l.b16 %v5934
    %v6579 = vunpack.c.l.b16 %v5935
    %v6580 = vunpack.c.l.b16 %v5936
    %v6581 = vunpack.c.l.b16 %v5937
    %v6582 = vunpack.c.l.b16 %v5938
    %v6583 = vunpack.c.l.b16 %v5939
    %v6584 = vunpack.c.l.b16 %v5940
    %v6585 = vunpack.c.l.b16 %v5941
    %v6586 = vunpack.c.l.b16 %v5942
    %v6587 = vunpack.c.l.b16 %v5943
    %v6588 = vunpack.c.l.b16 %v5944
    %v6589 = vunpack.c.l.b16 %v5945
    %v6590 = vunpack.c.l.b16 %v5946
    %v6591 = vunpack.c.l.b16 %v5947
    %v6592 = vunpack.c.l.b16 %v5948
    %v6593 = vunpack.c.l.b16 %v5949
    %v6594 = vunpack.c.l.b16 %v5950
    %v6595 = vunpack.c.l.b16 %v5951
    %v6596 = vunpack.c.l.b16 %v5952
    %v6597 = vunpack.c.l.b16 %v5953
    %v6598 = vunpack.c.l.b16 %v5954
    %v6599 = vunpack.c.l.b16 %v5955
    %v6600 = vunpack.c.l.b16 %v5956
    %v6601 = vunpack.c.l.b16 %v5957
    %v6602 = vunpack.c.l.b16 %v5958
    %v6603 = vunpack.c.l.b16 %v5959
    %v6604 = vunpack.c.l.b16 %v5960
    %v6605 = vunpack.c.l.b16 %v5961
    %v6606 = vunpack.c.l.b16 %v5962
    %v6607 = vunpack.c.l.b16 %v5963
    %v6608 = vunpack.c.l.b16 %v5964
    %v6609 = vunpack.c.l.b16 %v5965
    %v6610 = vunpack.c.l.b16 %v5966
    %v6611 = vunpack.c.l.b16 %v5967
    %v6612 = vunpack.c.l.b16 %v5968
    %v6613 = vunpack.c.l.b16 %v5969
    %v6614 = vunpack.c.l.b16 %v5970
    %v6615 = vunpack.c.l.b16 %v5971
    %v6616 = vunpack.c.l.b16 %v5972
    %v6617 = vunpack.c.l.b16 %v5973
    %v6618 = vunpack.c.l.b16 %v5974
    %v6619 = vunpack.c.l.b16 %v5975
    %v6620 = vunpack.c.l.b16 %v5976
    %v6621 = vunpack.c.l.b16 %v5977
    %v6622 = vunpack.c.l.b16 %v5978
    %v6623 = vunpack.c.l.b16 %v5979
    %v6624 = vunpack.c.l.b16 %v5980
    %v6625 = vunpack.c.l.b16 %v5981
    %v6626 = vunpack.c.l.b16 %v5982
    %v6627 = vunpack.c.l.b16 %v5983
    %v6628 = vunpack.c.l.b16 %v5984
    %v6629 = vunpack.c.l.b16 %v5985
    %v6630 = vpack.c.b16 %v6375, %v6374
    %v6631 = vpack.c.b16 %v6377, %v6376
    %v6632 = vpack.c.b16 %v6379, %v6378
    %v6633 = vpack.c.b16 %v6381, %v6380
    %v6634 = vpack.c.b16 %v6383, %v6382
    %v6635 = vpack.c.b16 %v6385, %v6384
    %v6636 = vpack.c.b16 %v6387, %v6386
    %v6637 = vpack.c.b16 %v6389, %v6388
    %v6638 = vpack.c.b16 %v6391, %v6390
    %v6639 = vpack.c.b16 %v6393, %v6392
    %v6640 = vpack.c.b16 %v6395, %v6394
    %v6641 = vpack.c.b16 %v6397, %v6396
    %v6642 = vpack.c.b16 %v6399, %v6398
    %v6643 = vpack.c.b16 %v6401, %v6400
    %v6644 = vpack.c.b16 %v6403, %v6402
    %v6645 = vpack.c.b16 %v6405, %v6404
    %v6646 = vpack.c.b16 %v6407, %v6406
    %v6647 = vpack.c.b16 %v6409, %v6408
    %v6648 = vpack.c.b16 %v6411, %v6410
    %v6649 = vpack.c.b16 %v6413, %v6412
    %v6650 = vpack.c.b16 %v6415, %v6414
    %v6651 = vpack.c.b16 %v6417, %v6416
    %v6652 = vpack.c.b16 %v6419, %v6418
    %v6653 = vpack.c.b16 %v6421, %v6420
    %v6654 = vpack.c.b16 %v6423, %v6422
    %v6655 = vpack.c.b16 %v6425, %v6424
    %v6656 = vpack.c.b16 %v6427, %v6426
    %v6657 = vpack.c.b16 %v6429, %v6428
    %v6658 = vpack.c.b16 %v6431, %v6430
    %v6659 = vpack.c.b16 %v6433, %v6432
    %v6660 = vpack.c.b16 %v6435, %v6434
    %v6661 = vpack.c.b16 %v6437, %v6436
    %v6662 = vpack.c.b16 %v6439, %v6438
    %v6663 = vpack.c.b16 %v6441, %v6440
    %v6664 = vpack.c.b16 %v6443, %v6442
    %v6665 = vpack.c.b16 %v6445, %v6444
    %v6666 = vpack.c.b16 %v6447, %v6446
    %v6667 = vpack.c.b16 %v6449, %v6448
    %v6668 = vpack.c.b16 %v6451, %v6450
    %v6669 = vpack.c.b16 %v6453, %v6452
    %v6670 = vpack.c.b16 %v6455, %v6454
    %v6671 = vpack.c.b16 %v6457, %v6456
    %v6672 = vpack.c.b16 %v6459, %v6458
    %v6673 = vpack.c.b16 %v6461, %v6460
    %v6674 = vpack.c.b16 %v6463, %v6462
    %v6675 = vpack.c.b16 %v6465, %v6464
    %v6676 = vpack.c.b16 %v6467, %v6466
    %v6677 = vpack.c.b16 %v6469, %v6468
    %v6678 = vpack.c.b16 %v6471, %v6470
    %v6679 = vpack.c.b16 %v6473, %v6472
    %v6680 = vpack.c.b16 %v6475, %v6474
    %v6681 = vpack.c.b16 %v6477, %v6476
    %v6682 = vpack.c.b16 %v6479, %v6478
    %v6683 = vpack.c.b16 %v6481, %v6480
    %v6684 = vpack.c.b16 %v6483, %v6482
    %v6685 = vpack.c.b16 %v6485, %v6484
    %v6686 = vpack.c.b16 %v6487, %v6486
    %v6687 = vpack.c.b16 %v6489, %v6488
    %v6688 = vpack.c.b16 %v6491, %v6490
    %v6689 = vpack.c.b16 %v6493, %v6492
    %v6690 = vpack.c.b16 %v6495, %v6494
    %v6691 = vpack.c.b16 %v6497, %v6496
    %v6692 = vpack.c.b16 %v6499, %v6498
    %v6693 = vpack.c.b16 %v6501, %v6500
    %v6694 = vpack.c.b16 %v6503, %v6502
    %v6695 = vpack.c.b16 %v6505, %v6504
    %v6696 = vpack.c.b16 %v6507, %v6506
    %v6697 = vpack.c.b16 %v6509, %v6508
    %v6698 = vpack.c.b16 %v6511, %v6510
    %v6699 = vpack.c.b16 %v6513, %v6512
    %v6700 = vpack.c.b16 %v6515, %v6514
    %v6701 = vpack.c.b16 %v6517, %v6516
    %v6702 = vpack.c.b16 %v6519, %v6518
    %v6703 = vpack.c.b16 %v6521, %v6520
    %v6704 = vpack.c.b16 %v6523, %v6522
    %v6705 = vpack.c.b16 %v6525, %v6524
    %v6706 = vpack.c.b16 %v6527, %v6526
    %v6707 = vpack.c.b16 %v6529, %v6528
    %v6708 = vpack.c.b16 %v6531, %v6530
    %v6709 = vpack.c.b16 %v6533, %v6532
    %v6710 = vpack.c.b16 %v6535, %v6534
    %v6711 = vpack.c.b16 %v6537, %v6536
    %v6712 = vpack.c.b16 %v6539, %v6538
    %v6713 = vpack.c.b16 %v6541, %v6540
    %v6714 = vpack.c.b16 %v6543, %v6542
    %v6715 = vpack.c.b16 %v6545, %v6544
    %v6716 = vpack.c.b16 %v6547, %v6546
    %v6717 = vpack.c.b16 %v6549, %v6548
    %v6718 = vpack.c.b16 %v6551, %v6550
    %v6719 = vpack.c.b16 %v6553, %v6552
    %v6720 = vpack.c.b16 %v6555, %v6554
    %v6721 = vpack.c.b16 %v6557, %v6556
    %v6722 = vpack.c.b16 %v6559, %v6558
    %v6723 = vpack.c.b16 %v6561, %v6560
    %v6724 = vpack.c.b16 %v6563, %v6562
    %v6725 = vpack.c.b16 %v6565, %v6564
    %v6726 = vpack.c.b16 %v6567, %v6566
    %v6727 = vpack.c.b16 %v6569, %v6568
    %v6728 = vpack.c.b16 %v6571, %v6570
    %v6729 = vpack.c.b16 %v6573, %v6572
    %v6730 = vpack.c.b16 %v6575, %v6574
    %v6731 = vpack.c.b16 %v6577, %v6576
    %v6732 = vpack.c.b16 %v6579, %v6578
    %v6733 = vpack.c.b16 %v6581, %v6580
    %v6734 = vpack.c.b16 %v6583, %v6582
    %v6735 = vpack.c.b16 %v6585, %v6584
    %v6736 = vpack.c.b16 %v6587, %v6586
    %v6737 = vpack.c.b16 %v6589, %v6588
    %v6738 = vpack.c.b16 %v6591, %v6590
    %v6739 = vpack.c.b16 %v6593, %v6592
    %v6740 = vpack.c.b16 %v6595, %v6594
    %v6741 = vpack.c.b16 %v6597, %v6596
    %v6742 = vpack.c.b16 %v6599, %v6598
    %v6743 = vpack.c.b16 %v6601, %v6600
    %v6744 = vpack.c.b16 %v6603, %v6602
    %v6745 = vpack.c.b16 %v6605, %v6604
    %v6746 = vpack.c.b16 %v6607, %v6606
    %v6747 = vpack.c.b16 %v6609, %v6608
    %v6748 = vpack.c.b16 %v6611, %v6610
    %v6749 = vpack.c.b16 %v6613, %v6612
    %v6750 = vpack.c.b16 %v6615, %v6614
    %v6751 = vpack.c.b16 %v6617, %v6616
    %v6752 = vpack.c.b16 %v6619, %v6618
    %v6753 = vpack.c.b16 %v6621, %v6620
    %v6754 = vpack.c.b16 %v6623, %v6622
    %v6755 = vpack.c.b16 %v6625, %v6624
    %v6756 = vpack.c.b16 %v6627, %v6626
    %v6757 = vpack.c.b16 %v6629, %v6628
    %6886 = vmatpush.bf16.msra.mxu0 %v6637
    %6887 = vmatpush.bf16.msra.mxu0 %v6636
    %6888 = vmatpush.bf16.msra.mxu0 %v6635
    %6889 = vmatpush.bf16.msra.mxu0 %v6634
    %6890 = vmatpush.bf16.msra.mxu0 %v6633
    %6891 = vmatpush.bf16.msra.mxu0 %v6632
    %6892 = vmatpush.bf16.msra.mxu0 %v6631
    %6893 = vmatpush.bf16.msra.mxu0 %v6630
    %6894 = vmatmul.bf16.gmra.mxu0 %v6086
    %v6895 = vpop.f32.mrf.mxu0
    %v6896 = vadd.f32 %v5988, %v6895
    %v6897 = vpop.f32.mrf.mxu0
    %6898 = vdwg.mxu0
    %6899 = vmatpush.bf16.msra.mxu0 %v6645
    %6900 = vmatpush.bf16.msra.mxu0 %v6644
    %6901 = vmatpush.bf16.msra.mxu0 %v6643
    %6902 = vmatpush.bf16.msra.mxu0 %v6642
    %6903 = vmatpush.bf16.msra.mxu0 %v6641
    %6904 = vmatpush.bf16.msra.mxu0 %v6640
    %6905 = vmatpush.bf16.msra.mxu0 %v6639
    %6906 = vmatpush.bf16.msra.mxu0 %v6638
    %6907 = vmatmul.bf16.gmra.mxu0 %v6087
    %v6908 = vpop.f32.mrf.mxu0
    %v6909 = vadd.f32 %v6896, %v6908
    %v6910 = vpop.f32.mrf.mxu0
    %6911 = vdwg.mxu0
    %6912 = vmatpush.bf16.msra.mxu0 %v6653
    %6913 = vmatpush.bf16.msra.mxu0 %v6652
    %6914 = vmatpush.bf16.msra.mxu0 %v6651
    %6915 = vmatpush.bf16.msra.mxu0 %v6650
    %6916 = vmatpush.bf16.msra.mxu0 %v6649
    %6917 = vmatpush.bf16.msra.mxu0 %v6648
    %6918 = vmatpush.bf16.msra.mxu0 %v6647
    %6919 = vmatpush.bf16.msra.mxu0 %v6646
    %6920 = vmatmul.bf16.gmra.mxu0 %v6088
    %v6921 = vpop.f32.mrf.mxu0
    %v6922 = vadd.f32 %v6909, %v6921
    %v6923 = vpop.f32.mrf.mxu0
    %6924 = vdwg.mxu0
    %6925 = vmatpush.bf16.msra.mxu0 %v6661
    %6926 = vmatpush.bf16.msra.mxu0 %v6660
    %6927 = vmatpush.bf16.msra.mxu0 %v6659
    %6928 = vmatpush.bf16.msra.mxu0 %v6658
    %6929 = vmatpush.bf16.msra.mxu0 %v6657
    %6930 = vmatpush.bf16.msra.mxu0 %v6656
    %6931 = vmatpush.bf16.msra.mxu0 %v6655
    %6932 = vmatpush.bf16.msra.mxu0 %v6654
    %6933 = vmatmul.bf16.gmra.mxu0 %v6089
    %v6934 = vpop.f32.mrf.mxu0
    %v6935 = vadd.f32 %v6922, %v6934
    %v6936 = vpop.f32.mrf.mxu0
    %6937 = vdwg.mxu0
    %6938 = vmatpush.bf16.msra.mxu0 %v6669
    %6939 = vmatpush.bf16.msra.mxu0 %v6668
    %6940 = vmatpush.bf16.msra.mxu0 %v6667
    %6941 = vmatpush.bf16.msra.mxu0 %v6666
    %6942 = vmatpush.bf16.msra.mxu0 %v6665
    %6943 = vmatpush.bf16.msra.mxu0 %v6664
    %6944 = vmatpush.bf16.msra.mxu0 %v6663
    %6945 = vmatpush.bf16.msra.mxu0 %v6662
    %6946 = vmatmul.bf16.gmra.mxu0 %v6090
    %v6947 = vpop.f32.mrf.mxu0
    %v6948 = vadd.f32 %v6935, %v6947
    %v6949 = vpop.f32.mrf.mxu0
    %6950 = vdwg.mxu0
    %6951 = vmatpush.bf16.msra.mxu0 %v6677
    %6952 = vmatpush.bf16.msra.mxu0 %v6676
    %6953 = vmatpush.bf16.msra.mxu0 %v6675
    %6954 = vmatpush.bf16.msra.mxu0 %v6674
    %6955 = vmatpush.bf16.msra.mxu0 %v6673
    %6956 = vmatpush.bf16.msra.mxu0 %v6672
    %6957 = vmatpush.bf16.msra.mxu0 %v6671
    %6958 = vmatpush.bf16.msra.mxu0 %v6670
    %6959 = vmatmul.bf16.gmra.mxu0 %v6091
    %v6960 = vpop.f32.mrf.mxu0
    %v6961 = vadd.f32 %v6948, %v6960
    %v6962 = vpop.f32.mrf.mxu0
    %6963 = vdwg.mxu0
    %6964 = vmatpush.bf16.msra.mxu0 %v6685
    %6965 = vmatpush.bf16.msra.mxu0 %v6684
    %6966 = vmatpush.bf16.msra.mxu0 %v6683
    %6967 = vmatpush.bf16.msra.mxu0 %v6682
    %6968 = vmatpush.bf16.msra.mxu0 %v6681
    %6969 = vmatpush.bf16.msra.mxu0 %v6680
    %6970 = vmatpush.bf16.msra.mxu0 %v6679
    %6971 = vmatpush.bf16.msra.mxu0 %v6678
    %6972 = vmatmul.bf16.gmra.mxu0 %v6092
    %v6973 = vpop.f32.mrf.mxu0
    %v6974 = vadd.f32 %v6961, %v6973
    %v6975 = vpop.f32.mrf.mxu0
    %6976 = vdwg.mxu0
    %6977 = vmatpush.bf16.msra.mxu0 %v6693
    %6978 = vmatpush.bf16.msra.mxu0 %v6692
    %6979 = vmatpush.bf16.msra.mxu0 %v6691
    %6980 = vmatpush.bf16.msra.mxu0 %v6690
    %6981 = vmatpush.bf16.msra.mxu0 %v6689
    %6982 = vmatpush.bf16.msra.mxu0 %v6688
    %6983 = vmatpush.bf16.msra.mxu0 %v6687
    %6984 = vmatpush.bf16.msra.mxu0 %v6686
    %6985 = vmatmul.bf16.gmra.mxu0 %v6093
    %v6986 = vpop.f32.mrf.mxu0
    %v6987 = vadd.f32 %v6974, %v6986
    %v6988 = vpop.f32.mrf.mxu0
    %6989 = vdwg.mxu0
    %6990 = vmatpush.bf16.msra.mxu0 %v6701
    %6991 = vmatpush.bf16.msra.mxu0 %v6700
    %6992 = vmatpush.bf16.msra.mxu0 %v6699
    %6993 = vmatpush.bf16.msra.mxu0 %v6698
    %6994 = vmatpush.bf16.msra.mxu0 %v6697
    %6995 = vmatpush.bf16.msra.mxu0 %v6696
    %6996 = vmatpush.bf16.msra.mxu0 %v6695
    %6997 = vmatpush.bf16.msra.mxu0 %v6694
    %6998 = vmatmul.bf16.gmra.mxu0 %v6094
    %v6999 = vpop.f32.mrf.mxu0
    %v7000 = vadd.f32 %v6987, %v6999
    %v7001 = vpop.f32.mrf.mxu0
    %7002 = vdwg.mxu0
    %7003 = vmatpush.bf16.msra.mxu0 %v6709
    %7004 = vmatpush.bf16.msra.mxu0 %v6708
    %7005 = vmatpush.bf16.msra.mxu0 %v6707
    %7006 = vmatpush.bf16.msra.mxu0 %v6706
    %7007 = vmatpush.bf16.msra.mxu0 %v6705
    %7008 = vmatpush.bf16.msra.mxu0 %v6704
    %7009 = vmatpush.bf16.msra.mxu0 %v6703
    %7010 = vmatpush.bf16.msra.mxu0 %v6702
    %7011 = vmatmul.bf16.gmra.mxu0 %v6095
    %v7012 = vpop.f32.mrf.mxu0
    %v7013 = vadd.f32 %v7000, %v7012
    %v7014 = vpop.f32.mrf.mxu0
    %7015 = vdwg.mxu0
    %7016 = vmatpush.bf16.msra.mxu0 %v6717
    %7017 = vmatpush.bf16.msra.mxu0 %v6716
    %7018 = vmatpush.bf16.msra.mxu0 %v6715
    %7019 = vmatpush.bf16.msra.mxu0 %v6714
    %7020 = vmatpush.bf16.msra.mxu0 %v6713
    %7021 = vmatpush.bf16.msra.mxu0 %v6712
    %7022 = vmatpush.bf16.msra.mxu0 %v6711
    %7023 = vmatpush.bf16.msra.mxu0 %v6710
    %7024 = vmatmul.bf16.gmra.mxu0 %v6096
    %v7025 = vpop.f32.mrf.mxu0
    %v7026 = vadd.f32 %v7013, %v7025
    %v7027 = vpop.f32.mrf.mxu0
    %7028 = vdwg.mxu0
    %7029 = vmatpush.bf16.msra.mxu0 %v6725
    %7030 = vmatpush.bf16.msra.mxu0 %v6724
    %7031 = vmatpush.bf16.msra.mxu0 %v6723
    %7032 = vmatpush.bf16.msra.mxu0 %v6722
    %7033 = vmatpush.bf16.msra.mxu0 %v6721
    %7034 = vmatpush.bf16.msra.mxu0 %v6720
    %7035 = vmatpush.bf16.msra.mxu0 %v6719
    %7036 = vmatpush.bf16.msra.mxu0 %v6718
    %7037 = vmatmul.bf16.gmra.mxu0 %v6097
    %v7038 = vpop.f32.mrf.mxu0
    %v7039 = vadd.f32 %v7026, %v7038
    %v7040 = vpop.f32.mrf.mxu0
    %7041 = vdwg.mxu0
    %7042 = vmatpush.bf16.msra.mxu0 %v6733
    %7043 = vmatpush.bf16.msra.mxu0 %v6732
    %7044 = vmatpush.bf16.msra.mxu0 %v6731
    %7045 = vmatpush.bf16.msra.mxu0 %v6730
    %7046 = vmatpush.bf16.msra.mxu0 %v6729
    %7047 = vmatpush.bf16.msra.mxu0 %v6728
    %7048 = vmatpush.bf16.msra.mxu0 %v6727
    %7049 = vmatpush.bf16.msra.mxu0 %v6726
    %7050 = vmatmul.bf16.gmra.mxu0 %v6098
    %v7051 = vpop.f32.mrf.mxu0
    %v7052 = vadd.f32 %v7039, %v7051
    %v7053 = vpop.f32.mrf.mxu0
    %7054 = vdwg.mxu0
    %7055 = vmatpush.bf16.msra.mxu0 %v6741
    %7056 = vmatpush.bf16.msra.mxu0 %v6740
    %7057 = vmatpush.bf16.msra.mxu0 %v6739
    %7058 = vmatpush.bf16.msra.mxu0 %v6738
    %7059 = vmatpush.bf16.msra.mxu0 %v6737
    %7060 = vmatpush.bf16.msra.mxu0 %v6736
    %7061 = vmatpush.bf16.msra.mxu0 %v6735
    %7062 = vmatpush.bf16.msra.mxu0 %v6734
    %7063 = vmatmul.bf16.gmra.mxu0 %v6099
    %v7064 = vpop.f32.mrf.mxu0
    %v7065 = vadd.f32 %v7052, %v7064
    %v7066 = vpop.f32.mrf.mxu0
    %7067 = vdwg.mxu0
    %7068 = vmatpush.bf16.msra.mxu0 %v6749
    %7069 = vmatpush.bf16.msra.mxu0 %v6748
    %7070 = vmatpush.bf16.msra.mxu0 %v6747
    %7071 = vmatpush.bf16.msra.mxu0 %v6746
    %7072 = vmatpush.bf16.msra.mxu0 %v6745
    %7073 = vmatpush.bf16.msra.mxu0 %v6744
    %7074 = vmatpush.bf16.msra.mxu0 %v6743
    %7075 = vmatpush.bf16.msra.mxu0 %v6742
    %7076 = vmatmul.bf16.gmra.mxu0 %v6100
    %v7077 = vpop.f32.mrf.mxu0
    %v7078 = vadd.f32 %v7065, %v7077
    %v7079 = vpop.f32.mrf.mxu0
    %7080 = vdwg.mxu0
    %7081 = vmatpush.bf16.msra.mxu0 %v6757
    %7082 = vmatpush.bf16.msra.mxu0 %v6756
    %7083 = vmatpush.bf16.msra.mxu0 %v6755
    %7084 = vmatpush.bf16.msra.mxu0 %v6754
    %7085 = vmatpush.bf16.msra.mxu0 %v6753
    %7086 = vmatpush.bf16.msra.mxu0 %v6752
    %7087 = vmatpush.bf16.msra.mxu0 %v6751
    %7088 = vmatpush.bf16.msra.mxu0 %v6750
    %7089 = vmatmul.bf16.gmra.mxu0 %v6101
    %v7090 = vpop.f32.mrf.mxu0
    %v7091 = vadd.f32 %v7078, %v7090
    %v7092 = vpop.f32.mrf.mxu0
    %7093 = vdwg.mxu0
    %7094 = vst [vmem:[#allocation3] sm:$0x3] %v7091
    // Predicated region
    $region38: #{effnet_wlf_forward.3} parent=1 // pred_check
      _
    $region39: #{effnet_wlf_forward.3} parent=1 // pred_check_branch
      %7096 = sbr.rel (0) target = $region41
    $region40: #{effnet_wlf_forward.3} parent=1 // pred_region
      %7098 = vsyncadd [#allocation4], 0
      %s7100 = sshll.u32 [#allocation3], 4
      %s7101 = int_to_ptr.vmem [resolvable:$true] %s7100
      %s7102 = sshll.u32 %s9, 4
      %s7103 = int_to_ptr.hbm [resolvable:$true] %s7102
      %7105 = dma.vmem_to_hbm [thread:$0]  %s7101, 32, %s7103, [#allocation4]
    $region41: #{effnet_wlf_forward.3} parent=1 // pred_fallthru
      _
    // Predicated region
    $region42: #{effnet_wlf_forward.3} parent=1 // pred_check
      _
    $region43: #{effnet_wlf_forward.3} parent=1 // pred_check_branch
      %7107 = sbr.rel (0) target = $region45
    $region44: #{effnet_wlf_forward.3} parent=1 // pred_region
      %7109 = dma.done [#allocation4], 32
    $region45: #{effnet_wlf_forward.3} parent=1 // pred_fallthru
      _
    %7110 = vsyncpa [#allocation4], 1

</llo_original>
